<compile_context>
chip_gen: v6e
topology: v6e:2x2x1
jax: 0.10.0
libtpu: 0.0.40
codegen_flags: <defaults>
</compile_context>

<pallas_src>
import functools
import math

import jax
import jax.numpy as jnp
from jax import lax
from jax.experimental import pallas as pl
from jax.experimental.pallas import tpu as pltpu


# ----------------------------------------------------------------------------
# In-kernel helpers (operate on traced values; everything stays in vregs/VMEM)
# ----------------------------------------------------------------------------
def _lstm_scan_unrolled(xp_flat, w_hh, T, B, H, reverse=False):
    """Run one LSTM direction over time-major-flat pre-projected inputs.

    xp_flat: (T*B, 4H)  = x @ w_ih_t + (b_ih + b_hh), rows ordered (t, b)
    w_hh:    (H, 4H)
    Returns (T*B, H) hidden states, rows ordered (t, b) (forward time order
    regardless of `reverse`).
    """
    h = jnp.zeros((B, H), jnp.float32)
    c = jnp.zeros((B, H), jnp.float32)
    outs = [None] * T
    order = range(T - 1, -1, -1) if reverse else range(T)
    for t in order:  # fully unrolled (T is small & static)
        gates = xp_flat[t * B:(t + 1) * B, :] + jnp.dot(
            h, w_hh, preferred_element_type=jnp.float32)          # (B, 4H)
        i = jax.nn.sigmoid(gates[:, 0 * H:1 * H])
        f = jax.nn.sigmoid(gates[:, 1 * H:2 * H])
        g = jnp.tanh(gates[:, 2 * H:3 * H])
        o = jax.nn.sigmoid(gates[:, 3 * H:4 * H])
        c = f * c + i * g
        h = o * jnp.tanh(c)
        outs[t] = h
    return jnp.concatenate(outs, axis=0)                           # (T*B, H)


def _mha_heads(fwd_flat, bwd_flat, w_in_t, b_in, w_out_heads, b_out,
               attn_bias, H, num_heads):
    """Head-batched multi-head self-attention on time-major-flat activations.

    fwd_flat / bwd_flat: (N, H) halves of the encoder output (N = T*B).
    attn_bias: (N, N) additive bias, 0 within a batch element, -1e30 across
    batch elements (rows are time-major so batch(n) = n % B).
    Returns (N, 2H).
    """
    E = 2 * H
    dh = E // num_heads
    qkv = (jnp.dot(fwd_flat, w_in_t[:H, :], preferred_element_type=jnp.float32)
           + jnp.dot(bwd_flat, w_in_t[H:2 * H, :], preferred_element_type=jnp.float32)
           + b_in)                                                 # (N, 3E)
    scale = 1.0 / math.sqrt(dh)
    q = jnp.stack([qkv[:, h * dh:(h + 1) * dh]
                   for h in range(num_heads)], axis=0) * scale     # (nh, N, dh)
    k = jnp.stack([qkv[:, E + h * dh:E + (h + 1) * dh]
                   for h in range(num_heads)], axis=0)             # (nh, N, dh)
    v = jnp.stack([qkv[:, 2 * E + h * dh:2 * E + (h + 1) * dh]
                   for h in range(num_heads)], axis=0)             # (nh, N, dh)

    s = jnp.einsum("hnd,hmd->hnm", q, k,
                   preferred_element_type=jnp.float32)             # (nh, N, N)
    s = s + attn_bias[None, :, :]
    s = s - jnp.max(s, axis=-1, keepdims=True)
    p = jnp.exp(s)
    p = p / jnp.sum(p, axis=-1, keepdims=True)
    ctx = jnp.einsum("hnm,hmd->hnd", p, v,
                     preferred_element_type=jnp.float32)           # (nh, N, dh)
    out_h = jnp.einsum("hnd,hde->hne", ctx, w_out_heads,
                       preferred_element_type=jnp.float32)         # (nh, N, E)
    return jnp.sum(out_h, axis=0) + b_out                          # (N, E)


# ----------------------------------------------------------------------------
# The single fused kernel
# ----------------------------------------------------------------------------
def _build_fused_kernel(num_layers, H, num_heads, T, B):
    def kernel(*refs):
        it = iter(refs)
        x_ref = next(it)
        enc = []
        for _ in range(num_layers):
            per_dir = []
            for _d in range(2):                      # 0 = fwd, 1 = bwd
                per_dir.append((next(it), next(it), next(it)))
            enc.append(per_dir)
        w_in_ref = next(it)
        b_in_ref = next(it)
        w_oh_ref = next(it)
        b_out_ref = next(it)
        bias_ref = next(it)
        d_wih_ref = next(it)
        d_whh_ref = next(it)
        d_b_ref = next(it)
        l_w_ref = next(it)
        l_b_ref = next(it)
        out_ref = next(it)

        x_flat = x_ref[...]                                         # (T*B, F)

        # ---------------- encoder: stacked bidirectional LSTM ----------------
        fwd_flat = None
        bwd_flat = None
        for li in range(num_layers):
            new_dirs = []
            for di in range(2):
                wih_ref, whh_ref, b_ref = enc[li][di]
                wih = wih_ref[...]
                bias = b_ref[...]
                if li == 0:
                    xp = jnp.dot(x_flat, wih,
                                 preferred_element_type=jnp.float32) + bias
                else:
                    # cat([fwd, bwd]) @ W  ==  fwd @ W[:H] + bwd @ W[H:]
                    xp = (jnp.dot(fwd_flat, wih[:H, :],
                                  preferred_element_type=jnp.float32)
                          + jnp.dot(bwd_flat, wih[H:2 * H, :],
                                    preferred_element_type=jnp.float32)
                          + bias)
                new_dirs.append(_lstm_scan_unrolled(
                    xp, whh_ref[...], T, B, H, reverse=(di == 1)))
            fwd_flat, bwd_flat = new_dirs

        # ---------------- self-attention over encoder output -----------------
        attn_flat = _mha_heads(fwd_flat, bwd_flat, w_in_ref[...], b_in_ref[...],
                               w_oh_ref[...], b_out_ref[...], bias_ref[...],
                               H, num_heads)                         # (T*B, 2H)

        # ---------------- decoder LSTM ----------------
        xp_dec = jnp.dot(attn_flat, d_wih_ref[...],
                         preferred_element_type=jnp.float32) + d_b_ref[...]
        dec_flat = _lstm_scan_unrolled(xp_dec, d_whh_ref[...], T, B, H)

        # ---------------- output projection (fused epilogue) ----------------
        rec = jnp.dot(dec_flat, l_w_ref[...],
                      preferred_element_type=jnp.float32) + l_b_ref[...]
        out_ref[...] = rec.astype(out_ref.dtype)

    return kernel


def _full_spec(arr):
    r = arr.ndim
    return pl.BlockSpec(arr.shape, lambda i, _r=r: (0,) * _r)


# ----------------------------------------------------------------------------
# Full forward: one pallas_call, tiny layout glue in the wrapper
# ----------------------------------------------------------------------------
def hallucination_forward(params, x, hidden_dim, num_heads):
    B, T, F = x.shape
    H = hidden_dim
    E = 2 * H
    dh = E // num_heads
    N = T * B
    num_layers = len(params["encoder"])

    # time-major flat input, rows ordered (t, b)
    x_flat = jnp.transpose(x, (1, 0, 2)).reshape(N, F)

    # block-diagonal additive attention bias (same batch -> 0, else -1e30)
    bid = jnp.arange(N, dtype=jnp.int32) % B
    attn_bias = jnp.where(bid[:, None] == bid[None, :],
                          jnp.float32(0.0), jnp.float32(-1e30))

    a = params["attn"]
    w_out_heads = a["w_out_t"].reshape(num_heads, dh, E)  # per-head rows of W_out^T

    inputs = [x_flat]
    for layer_p in params["encoder"]:
        for d in ("fwd", "bwd"):
            inputs += [layer_p[d]["w_ih_t"], layer_p[d]["w_hh_t"], layer_p[d]["b"]]
    inputs += [a["w_in_t"], a["b_in"], w_out_heads, a["b_out"], attn_bias]
    dcd = params["decoder"]
    inputs += [dcd["w_ih_t"], dcd["w_hh_t"], dcd["b"]]
    inputs += [params["out"]["w_t"], params["out"]["b"]]

    kernel = _build_fused_kernel(num_layers, H, num_heads, T, B)

    rec_flat = pl.pallas_call(
        kernel,
        out_shape=jax.ShapeDtypeStruct((N, F), jnp.float32),
        grid=(1,),
        in_specs=[_full_spec(arr) for arr in inputs],
        out_specs=pl.BlockSpec((N, F), lambda i: (0, 0)),
    )(*inputs)

    return jnp.transpose(rec_flat.reshape(T, B, F), (1, 0, 2))      # (B, T, F)


# ----------------------------------------------------------------------------
# Parameter init (deterministic, synthetic; mirrors the PyTorch shapes)
# ----------------------------------------------------------------------------
def init_params(key, feature_dim, hidden_dim, num_layers, num_heads):
    H = hidden_dim
    E = 2 * H
    keys = iter(jax.random.split(key, 128))

    def uni(shape, bound):
        return jax.random.uniform(next(keys), shape, jnp.float32, -bound, bound)

    params = {"encoder": []}
    hb = 1.0 / math.sqrt(H)

    # encoder: num_layers bidirectional LSTM layers
    for layer in range(num_layers):
        din = feature_dim if layer == 0 else 2 * H
        layer_p = {}
        for direction in ("fwd", "bwd"):
            w_ih = uni((4 * H, din), hb)
            w_hh = uni((4 * H, H), hb)
            b_ih = uni((4 * H,), hb)
            b_hh = uni((4 * H,), hb)
            layer_p[direction] = {"w_ih_t": w_ih.T, "w_hh_t": w_hh.T,
                                  "b": (b_ih + b_hh).reshape(1, 4 * H)}
        params["encoder"].append(layer_p)

    # multi-head attention (embed_dim = 2H)
    eb = 1.0 / math.sqrt(E)
    in_proj_w = uni((3 * E, E), eb)
    in_proj_b = uni((3 * E,), eb)
    out_proj_w = uni((E, E), eb)
    out_proj_b = uni((E,), eb)
    params["attn"] = {"w_in_t": in_proj_w.T, "b_in": in_proj_b.reshape(1, 3 * E),
                      "w_out_t": out_proj_w.T, "b_out": out_proj_b.reshape(1, E)}

    # decoder: single-layer unidirectional LSTM, input 2H
    w_ih = uni((4 * H, 2 * H), hb)
    w_hh = uni((4 * H, H), hb)
    b_ih = uni((4 * H,), hb)
    b_hh = uni((4 * H,), hb)
    params["decoder"] = {"w_ih_t": w_ih.T, "w_hh_t": w_hh.T,
                         "b": (b_ih + b_hh).reshape(1, 4 * H)}

    # output linear: hidden_dim -> feature_dim
    w_out = uni((feature_dim, H), hb)
    b_out = uni((feature_dim,), hb)
    params["out"] = {"w_t": w_out.T, "b": b_out.reshape(1, feature_dim)}
    return params


# ----------------------------------------------------------------------------
# Pure-JAX reference (for correctness check)
# ----------------------------------------------------------------------------
def ref_lstm(x_tbd, w_ih_t, w_hh_t, b, H):
    T, B, _ = x_tbd.shape

    def step(carry, x_t):
        h, c = carry
        gates = x_t @ w_ih_t + h @ w_hh_t + b
        i = jax.nn.sigmoid(gates[:, :H])
        f = jax.nn.sigmoid(gates[:, H:2 * H])
        g = jnp.tanh(gates[:, 2 * H:3 * H])
        o = jax.nn.sigmoid(gates[:, 3 * H:])
        c = f * c + i * g
        h = o * jnp.tanh(c)
        return (h, c), h

    init = (jnp.zeros((B, H), jnp.float32), jnp.zeros((B, H), jnp.float32))
    _, ys = lax.scan(step, init, x_tbd)
    return ys


def ref_mha(x_bte, w_in_t, b_in, w_out_t, b_out, nh):
    B, T, E = x_bte.shape
    dh = E // nh
    qkv = x_bte @ w_in_t + b_in
    q, k, v = qkv[..., :E], qkv[..., E:2 * E], qkv[..., 2 * E:]
    q = q.reshape(B, T, nh, dh).transpose(0, 2, 1, 3) / math.sqrt(dh)
    k = k.reshape(B, T, nh, dh).transpose(0, 2, 1, 3)
    v = v.reshape(B, T, nh, dh).transpose(0, 2, 1, 3)
    s = jnp.einsum("bhqd,bhkd->bhqk", q, k)
    p = jax.nn.softmax(s, axis=-1)
    ctx = jnp.einsum("bhqk,bhkd->bhqd", p, v)
    ctx = ctx.transpose(0, 2, 1, 3).reshape(B, T, E)
    return ctx @ w_out_t + b_out


def ref_forward(params, x, hidden_dim, num_heads):
    B, T, F = x.shape
    H = hidden_dim
    h = jnp.transpose(x, (1, 0, 2))
    for layer_p in params["encoder"]:
        fwd = ref_lstm(h, layer_p["fwd"]["w_ih_t"], layer_p["fwd"]["w_hh_t"],
                       layer_p["fwd"]["b"], H)
        bwd = ref_lstm(h[::-1], layer_p["bwd"]["w_ih_t"], layer_p["bwd"]["w_hh_t"],
                       layer_p["bwd"]["b"], H)[::-1]
        h = jnp.concatenate([fwd, bwd], axis=-1)
    a = params["attn"]
    attn_out = ref_mha(jnp.transpose(h, (1, 0, 2)), a["w_in_t"], a["b_in"],
                       a["w_out_t"], a["b_out"], num_heads)
    d = params["decoder"]
    dec_out = ref_lstm(jnp.transpose(attn_out, (1, 0, 2)),
                       d["w_ih_t"], d["w_hh_t"], d["b"], H)
    rec = dec_out.reshape(T * B, H) @ params["out"]["w_t"] + params["out"]["b"]
    return jnp.transpose(rec.reshape(T, B, F), (1, 0, 2))


if __name__ == "__main__":
    config = dict(feature_dim=8, hidden_dim=16, num_layers=2, dropout=0.0)
    num_heads = 4
    B, T = 2, 8

    key = jax.random.PRNGKey(0)
    pkey, xkey = jax.random.split(key)
    params = init_params(pkey, config["feature_dim"], config["hidden_dim"],
                         config["num_layers"], num_heads)
    x = jax.random.normal(xkey, (B, T, config["feature_dim"]), jnp.float32)

    @jax.jit
    def run(p, xi):
        return hallucination_forward(p, xi, config["hidden_dim"], num_heads)

    out = jax.block_until_ready(run(params, x))
    assert out.shape == (B, T, config["feature_dim"])

    ref = ref_forward(params, x, config["hidden_dim"], num_heads)
    assert bool(jnp.allclose(out, ref, atol=2e-3, rtol=2e-3)), "mismatch vs JAX reference"

    print("KERNEL_OK")
</pallas_src>

<mosaic_0001>
module attributes {stable_mosaic.version = 11 : i64} {
  func.func @kernel(%arg0: i32, %arg1: memref<16x8xf32, #tpu.memory_space<vmem>>, %arg2: memref<8x64xf32, #tpu.memory_space<vmem>>, %arg3: memref<16x64xf32, #tpu.memory_space<vmem>>, %arg4: memref<1x64xf32, #tpu.memory_space<vmem>>, %arg5: memref<8x64xf32, #tpu.memory_space<vmem>>, %arg6: memref<16x64xf32, #tpu.memory_space<vmem>>, %arg7: memref<1x64xf32, #tpu.memory_space<vmem>>, %arg8: memref<32x64xf32, #tpu.memory_space<vmem>>, %arg9: memref<16x64xf32, #tpu.memory_space<vmem>>, %arg10: memref<1x64xf32, #tpu.memory_space<vmem>>, %arg11: memref<32x64xf32, #tpu.memory_space<vmem>>, %arg12: memref<16x64xf32, #tpu.memory_space<vmem>>, %arg13: memref<1x64xf32, #tpu.memory_space<vmem>>, %arg14: memref<32x96xf32, #tpu.memory_space<vmem>>, %arg15: memref<1x96xf32, #tpu.memory_space<vmem>>, %arg16: memref<4x8x32xf32, #tpu.memory_space<vmem>>, %arg17: memref<1x32xf32, #tpu.memory_space<vmem>>, %arg18: memref<16x16xf32, #tpu.memory_space<vmem>>, %arg19: memref<32x64xf32, #tpu.memory_space<vmem>>, %arg20: memref<16x64xf32, #tpu.memory_space<vmem>>, %arg21: memref<1x64xf32, #tpu.memory_space<vmem>>, %arg22: memref<16x8xf32, #tpu.memory_space<vmem>>, %arg23: memref<1x8xf32, #tpu.memory_space<vmem>>, %arg24: memref<16x8xf32, #tpu.memory_space<vmem>>) attributes {dimension_semantics = [#tpu.dimension_semantics<arbitrary>], iteration_bounds = array<i64: 1>, scalar_prefetch = 0 : i64, scratch_operands = 0 : i64, tpu.core_type = #tpu.core_type<tc>, window_params = [{pipeline_mode = #tpu.pipeline_mode<synchronous>, transform_indices = @transform_0, window_bounds = array<i64: 16, 8>}, {pipeline_mode = #tpu.pipeline_mode<synchronous>, transform_indices = @transform_1, window_bounds = array<i64: 8, 64>}, {pipeline_mode = #tpu.pipeline_mode<synchronous>, transform_indices = @transform_2, window_bounds = array<i64: 16, 64>}, {pipeline_mode = #tpu.pipeline_mode<synchronous>, transform_indices = @transform_3, window_bounds = array<i64: 1, 64>}, {pipeline_mode = #tpu.pipeline_mode<synchronous>, transform_indices = @transform_4, window_bounds = array<i64: 8, 64>}, {pipeline_mode = #tpu.pipeline_mode<synchronous>, transform_indices = @transform_5, window_bounds = array<i64: 16, 64>}, {pipeline_mode = #tpu.pipeline_mode<synchronous>, transform_indices = @transform_6, window_bounds = array<i64: 1, 64>}, {pipeline_mode = #tpu.pipeline_mode<synchronous>, transform_indices = @transform_7, window_bounds = array<i64: 32, 64>}, {pipeline_mode = #tpu.pipeline_mode<synchronous>, transform_indices = @transform_8, window_bounds = array<i64: 16, 64>}, {pipeline_mode = #tpu.pipeline_mode<synchronous>, transform_indices = @transform_9, window_bounds = array<i64: 1, 64>}, {pipeline_mode = #tpu.pipeline_mode<synchronous>, transform_indices = @transform_10, window_bounds = array<i64: 32, 64>}, {pipeline_mode = #tpu.pipeline_mode<synchronous>, transform_indices = @transform_11, window_bounds = array<i64: 16, 64>}, {pipeline_mode = #tpu.pipeline_mode<synchronous>, transform_indices = @transform_12, window_bounds = array<i64: 1, 64>}, {pipeline_mode = #tpu.pipeline_mode<synchronous>, transform_indices = @transform_13, window_bounds = array<i64: 32, 96>}, {pipeline_mode = #tpu.pipeline_mode<synchronous>, transform_indices = @transform_14, window_bounds = array<i64: 1, 96>}, {pipeline_mode = #tpu.pipeline_mode<synchronous>, transform_indices = @transform_15, window_bounds = array<i64: 4, 8, 32>}, {pipeline_mode = #tpu.pipeline_mode<synchronous>, transform_indices = @transform_16, window_bounds = array<i64: 1, 32>}, {pipeline_mode = #tpu.pipeline_mode<synchronous>, transform_indices = @transform_17, window_bounds = array<i64: 16, 16>}, {pipeline_mode = #tpu.pipeline_mode<synchronous>, transform_indices = @transform_18, window_bounds = array<i64: 32, 64>}, {pipeline_mode = #tpu.pipeline_mode<synchronous>, transform_indices = @transform_19, window_bounds = array<i64: 16, 64>}, {pipeline_mode = #tpu.pipeline_mode<synchronous>, transform_indices = @transform_20, window_bounds = array<i64: 1, 64>}, {pipeline_mode = #tpu.pipeline_mode<synchronous>, transform_indices = @transform_21, window_bounds = array<i64: 16, 8>}, {pipeline_mode = #tpu.pipeline_mode<synchronous>, transform_indices = @transform_22, window_bounds = array<i64: 1, 8>}, {pipeline_mode = #tpu.pipeline_mode<synchronous>, transform_indices = @transform_23, window_bounds = array<i64: 16, 8>}]} {
    %c0 = arith.constant 0 : index
    %c0_0 = arith.constant 0 : index
    %0 = vector.load %arg1[%c0, %c0_0] : memref<16x8xf32, #tpu.memory_space<vmem>>, vector<16x8xf32>
    %c0_1 = arith.constant 0 : index
    %c0_2 = arith.constant 0 : index
    %1 = vector.load %arg2[%c0_1, %c0_2] : memref<8x64xf32, #tpu.memory_space<vmem>>, vector<8x64xf32>
    %c0_3 = arith.constant 0 : index
    %c0_4 = arith.constant 0 : index
    %2 = vector.load %arg4[%c0_3, %c0_4] : memref<1x64xf32, #tpu.memory_space<vmem>>, vector<1x64xf32>
    %cst = arith.constant dense<0.000000e+00> : vector<16x64xf32>
    %3 = tpu.matmul %0, %1, %cst {dimension_numbers = #tpu.dot_dimension_numbers<[1], [0], [0], [1], [0, 0, 1, 1], [], []>} : vector<16x8xf32>, vector<8x64xf32>, vector<16x64xf32> -> vector<16x64xf32>
    %4 = vector.broadcast %2 : vector<1x64xf32> to vector<16x64xf32>
    %5 = arith.addf %3, %4 : vector<16x64xf32>
    %c0_5 = arith.constant 0 : index
    %c0_6 = arith.constant 0 : index
    %6 = vector.load %arg3[%c0_5, %c0_6] : memref<16x64xf32, #tpu.memory_space<vmem>>, vector<16x64xf32>
    %cst_7 = arith.constant 0.000000e+00 : f32
    %7 = vector.broadcast %cst_7 : f32 to vector<2x16xf32>
    %cst_8 = arith.constant 0.000000e+00 : f32
    %8 = vector.broadcast %cst_8 : f32 to vector<2x16xf32>
    %9 = vector.extract_strided_slice %5 {offsets = [0, 0], sizes = [2, 64], strides = [1, 1]} : vector<16x64xf32> to vector<2x64xf32>
    %cst_9 = arith.constant dense<0.000000e+00> : vector<2x64xf32>
    %10 = tpu.matmul %7, %6, %cst_9 {dimension_numbers = #tpu.dot_dimension_numbers<[1], [0], [0], [1], [0, 0, 1, 1], [], []>} : vector<2x16xf32>, vector<16x64xf32>, vector<2x64xf32> -> vector<2x64xf32>
    %11 = arith.addf %9, %10 : vector<2x64xf32>
    %12 = vector.extract_strided_slice %11 {offsets = [0, 0], sizes = [2, 16], strides = [1, 1]} : vector<2x64xf32> to vector<2x16xf32>
    %13 = arith.negf %12 : vector<2x16xf32>
    %14 = math.exp %13 : vector<2x16xf32>
    %cst_10 = arith.constant 1.000000e+00 : f32
    %15 = vector.broadcast %cst_10 : f32 to vector<2x16xf32>
    %16 = arith.addf %15, %14 : vector<2x16xf32>
    %17 = arith.divf %15, %16 : vector<2x16xf32>
    %18 = vector.extract_strided_slice %11 {offsets = [0, 16], sizes = [2, 16], strides = [1, 1]} : vector<2x64xf32> to vector<2x16xf32>
    %19 = arith.negf %18 : vector<2x16xf32>
    %20 = math.exp %19 : vector<2x16xf32>
    %cst_11 = arith.constant 1.000000e+00 : f32
    %21 = vector.broadcast %cst_11 : f32 to vector<2x16xf32>
    %22 = arith.addf %21, %20 : vector<2x16xf32>
    %23 = arith.divf %21, %22 : vector<2x16xf32>
    %24 = vector.extract_strided_slice %11 {offsets = [0, 32], sizes = [2, 16], strides = [1, 1]} : vector<2x64xf32> to vector<2x16xf32>
    %25 = math.tanh %24 : vector<2x16xf32>
    %26 = vector.extract_strided_slice %11 {offsets = [0, 48], sizes = [2, 16], strides = [1, 1]} : vector<2x64xf32> to vector<2x16xf32>
    %27 = arith.negf %26 : vector<2x16xf32>
    %28 = math.exp %27 : vector<2x16xf32>
    %cst_12 = arith.constant 1.000000e+00 : f32
    %29 = vector.broadcast %cst_12 : f32 to vector<2x16xf32>
    %30 = arith.addf %29, %28 : vector<2x16xf32>
    %31 = arith.divf %29, %30 : vector<2x16xf32>
    %32 = arith.mulf %23, %8 : vector<2x16xf32>
    %33 = arith.mulf %17, %25 : vector<2x16xf32>
    %34 = arith.addf %32, %33 : vector<2x16xf32>
    %35 = math.tanh %34 : vector<2x16xf32>
    %36 = arith.mulf %31, %35 : vector<2x16xf32>
    %37 = vector.extract_strided_slice %5 {offsets = [2, 0], sizes = [2, 64], strides = [1, 1]} : vector<16x64xf32> to vector<2x64xf32>
    %cst_13 = arith.constant dense<0.000000e+00> : vector<2x64xf32>
    %38 = tpu.matmul %36, %6, %cst_13 {dimension_numbers = #tpu.dot_dimension_numbers<[1], [0], [0], [1], [0, 0, 1, 1], [], []>} : vector<2x16xf32>, vector<16x64xf32>, vector<2x64xf32> -> vector<2x64xf32>
    %39 = arith.addf %37, %38 : vector<2x64xf32>
    %40 = vector.extract_strided_slice %39 {offsets = [0, 0], sizes = [2, 16], strides = [1, 1]} : vector<2x64xf32> to vector<2x16xf32>
    %41 = arith.negf %40 : vector<2x16xf32>
    %42 = math.exp %41 : vector<2x16xf32>
    %cst_14 = arith.constant 1.000000e+00 : f32
    %43 = vector.broadcast %cst_14 : f32 to vector<2x16xf32>
    %44 = arith.addf %43, %42 : vector<2x16xf32>
    %45 = arith.divf %43, %44 : vector<2x16xf32>
    %46 = vector.extract_strided_slice %39 {offsets = [0, 16], sizes = [2, 16], strides = [1, 1]} : vector<2x64xf32> to vector<2x16xf32>
    %47 = arith.negf %46 : vector<2x16xf32>
    %48 = math.exp %47 : vector<2x16xf32>
    %cst_15 = arith.constant 1.000000e+00 : f32
    %49 = vector.broadcast %cst_15 : f32 to vector<2x16xf32>
    %50 = arith.addf %49, %48 : vector<2x16xf32>
    %51 = arith.divf %49, %50 : vector<2x16xf32>
    %52 = vector.extract_strided_slice %39 {offsets = [0, 32], sizes = [2, 16], strides = [1, 1]} : vector<2x64xf32> to vector<2x16xf32>
    %53 = math.tanh %52 : vector<2x16xf32>
    %54 = vector.extract_strided_slice %39 {offsets = [0, 48], sizes = [2, 16], strides = [1, 1]} : vector<2x64xf32> to vector<2x16xf32>
    %55 = arith.negf %54 : vector<2x16xf32>
    %56 = math.exp %55 : vector<2x16xf32>
    %cst_16 = arith.constant 1.000000e+00 : f32
    %57 = vector.broadcast %cst_16 : f32 to vector<2x16xf32>
    %58 = arith.addf %57, %56 : vector<2x16xf32>
    %59 = arith.divf %57, %58 : vector<2x16xf32>
    %60 = arith.mulf %51, %34 : vector<2x16xf32>
    %61 = arith.mulf %45, %53 : vector<2x16xf32>
    %62 = arith.addf %60, %61 : vector<2x16xf32>
    %63 = math.tanh %62 : vector<2x16xf32>
    %64 = arith.mulf %59, %63 : vector<2x16xf32>
    %65 = vector.extract_strided_slice %5 {offsets = [4, 0], sizes = [2, 64], strides = [1, 1]} : vector<16x64xf32> to vector<2x64xf32>
    %cst_17 = arith.constant dense<0.000000e+00> : vector<2x64xf32>
    %66 = tpu.matmul %64, %6, %cst_17 {dimension_numbers = #tpu.dot_dimension_numbers<[1], [0], [0], [1], [0, 0, 1, 1], [], []>} : vector<2x16xf32>, vector<16x64xf32>, vector<2x64xf32> -> vector<2x64xf32>
    %67 = arith.addf %65, %66 : vector<2x64xf32>
    %68 = vector.extract_strided_slice %67 {offsets = [0, 0], sizes = [2, 16], strides = [1, 1]} : vector<2x64xf32> to vector<2x16xf32>
    %69 = arith.negf %68 : vector<2x16xf32>
    %70 = math.exp %69 : vector<2x16xf32>
    %cst_18 = arith.constant 1.000000e+00 : f32
    %71 = vector.broadcast %cst_18 : f32 to vector<2x16xf32>
    %72 = arith.addf %71, %70 : vector<2x16xf32>
    %73 = arith.divf %71, %72 : vector<2x16xf32>
    %74 = vector.extract_strided_slice %67 {offsets = [0, 16], sizes = [2, 16], strides = [1, 1]} : vector<2x64xf32> to vector<2x16xf32>
    %75 = arith.negf %74 : vector<2x16xf32>
    %76 = math.exp %75 : vector<2x16xf32>
    %cst_19 = arith.constant 1.000000e+00 : f32
    %77 = vector.broadcast %cst_19 : f32 to vector<2x16xf32>
    %78 = arith.addf %77, %76 : vector<2x16xf32>
    %79 = arith.divf %77, %78 : vector<2x16xf32>
    %80 = vector.extract_strided_slice %67 {offsets = [0, 32], sizes = [2, 16], strides = [1, 1]} : vector<2x64xf32> to vector<2x16xf32>
    %81 = math.tanh %80 : vector<2x16xf32>
    %82 = vector.extract_strided_slice %67 {offsets = [0, 48], sizes = [2, 16], strides = [1, 1]} : vector<2x64xf32> to vector<2x16xf32>
    %83 = arith.negf %82 : vector<2x16xf32>
    %84 = math.exp %83 : vector<2x16xf32>
    %cst_20 = arith.constant 1.000000e+00 : f32
    %85 = vector.broadcast %cst_20 : f32 to vector<2x16xf32>
    %86 = arith.addf %85, %84 : vector<2x16xf32>
    %87 = arith.divf %85, %86 : vector<2x16xf32>
    %88 = arith.mulf %79, %62 : vector<2x16xf32>
    %89 = arith.mulf %73, %81 : vector<2x16xf32>
    %90 = arith.addf %88, %89 : vector<2x16xf32>
    %91 = math.tanh %90 : vector<2x16xf32>
    %92 = arith.mulf %87, %91 : vector<2x16xf32>
    %93 = vector.extract_strided_slice %5 {offsets = [6, 0], sizes = [2, 64], strides = [1, 1]} : vector<16x64xf32> to vector<2x64xf32>
    %cst_21 = arith.constant dense<0.000000e+00> : vector<2x64xf32>
    %94 = tpu.matmul %92, %6, %cst_21 {dimension_numbers = #tpu.dot_dimension_numbers<[1], [0], [0], [1], [0, 0, 1, 1], [], []>} : vector<2x16xf32>, vector<16x64xf32>, vector<2x64xf32> -> vector<2x64xf32>
    %95 = arith.addf %93, %94 : vector<2x64xf32>
    %96 = vector.extract_strided_slice %95 {offsets = [0, 0], sizes = [2, 16], strides = [1, 1]} : vector<2x64xf32> to vector<2x16xf32>
    %97 = arith.negf %96 : vector<2x16xf32>
    %98 = math.exp %97 : vector<2x16xf32>
    %cst_22 = arith.constant 1.000000e+00 : f32
    %99 = vector.broadcast %cst_22 : f32 to vector<2x16xf32>
    %100 = arith.addf %99, %98 : vector<2x16xf32>
    %101 = arith.divf %99, %100 : vector<2x16xf32>
    %102 = vector.extract_strided_slice %95 {offsets = [0, 16], sizes = [2, 16], strides = [1, 1]} : vector<2x64xf32> to vector<2x16xf32>
    %103 = arith.negf %102 : vector<2x16xf32>
    %104 = math.exp %103 : vector<2x16xf32>
    %cst_23 = arith.constant 1.000000e+00 : f32
    %105 = vector.broadcast %cst_23 : f32 to vector<2x16xf32>
    %106 = arith.addf %105, %104 : vector<2x16xf32>
    %107 = arith.divf %105, %106 : vector<2x16xf32>
    %108 = vector.extract_strided_slice %95 {offsets = [0, 32], sizes = [2, 16], strides = [1, 1]} : vector<2x64xf32> to vector<2x16xf32>
    %109 = math.tanh %108 : vector<2x16xf32>
    %110 = vector.extract_strided_slice %95 {offsets = [0, 48], sizes = [2, 16], strides = [1, 1]} : vector<2x64xf32> to vector<2x16xf32>
    %111 = arith.negf %110 : vector<2x16xf32>
    %112 = math.exp %111 : vector<2x16xf32>
    %cst_24 = arith.constant 1.000000e+00 : f32
    %113 = vector.broadcast %cst_24 : f32 to vector<2x16xf32>
    %114 = arith.addf %113, %112 : vector<2x16xf32>
    %115 = arith.divf %113, %114 : vector<2x16xf32>
    %116 = arith.mulf %107, %90 : vector<2x16xf32>
    %117 = arith.mulf %101, %109 : vector<2x16xf32>
    %118 = arith.addf %116, %117 : vector<2x16xf32>
    %119 = math.tanh %118 : vector<2x16xf32>
    %120 = arith.mulf %115, %119 : vector<2x16xf32>
    %121 = vector.extract_strided_slice %5 {offsets = [8, 0], sizes = [2, 64], strides = [1, 1]} : vector<16x64xf32> to vector<2x64xf32>
    %cst_25 = arith.constant dense<0.000000e+00> : vector<2x64xf32>
    %122 = tpu.matmul %120, %6, %cst_25 {dimension_numbers = #tpu.dot_dimension_numbers<[1], [0], [0], [1], [0, 0, 1, 1], [], []>} : vector<2x16xf32>, vector<16x64xf32>, vector<2x64xf32> -> vector<2x64xf32>
    %123 = arith.addf %121, %122 : vector<2x64xf32>
    %124 = vector.extract_strided_slice %123 {offsets = [0, 0], sizes = [2, 16], strides = [1, 1]} : vector<2x64xf32> to vector<2x16xf32>
    %125 = arith.negf %124 : vector<2x16xf32>
    %126 = math.exp %125 : vector<2x16xf32>
    %cst_26 = arith.constant 1.000000e+00 : f32
    %127 = vector.broadcast %cst_26 : f32 to vector<2x16xf32>
    %128 = arith.addf %127, %126 : vector<2x16xf32>
    %129 = arith.divf %127, %128 : vector<2x16xf32>
    %130 = vector.extract_strided_slice %123 {offsets = [0, 16], sizes = [2, 16], strides = [1, 1]} : vector<2x64xf32> to vector<2x16xf32>
    %131 = arith.negf %130 : vector<2x16xf32>
    %132 = math.exp %131 : vector<2x16xf32>
    %cst_27 = arith.constant 1.000000e+00 : f32
    %133 = vector.broadcast %cst_27 : f32 to vector<2x16xf32>
    %134 = arith.addf %133, %132 : vector<2x16xf32>
    %135 = arith.divf %133, %134 : vector<2x16xf32>
    %136 = vector.extract_strided_slice %123 {offsets = [0, 32], sizes = [2, 16], strides = [1, 1]} : vector<2x64xf32> to vector<2x16xf32>
    %137 = math.tanh %136 : vector<2x16xf32>
    %138 = vector.extract_strided_slice %123 {offsets = [0, 48], sizes = [2, 16], strides = [1, 1]} : vector<2x64xf32> to vector<2x16xf32>
    %139 = arith.negf %138 : vector<2x16xf32>
    %140 = math.exp %139 : vector<2x16xf32>
    %cst_28 = arith.constant 1.000000e+00 : f32
    %141 = vector.broadcast %cst_28 : f32 to vector<2x16xf32>
    %142 = arith.addf %141, %140 : vector<2x16xf32>
    %143 = arith.divf %141, %142 : vector<2x16xf32>
    %144 = arith.mulf %135, %118 : vector<2x16xf32>
    %145 = arith.mulf %129, %137 : vector<2x16xf32>
    %146 = arith.addf %144, %145 : vector<2x16xf32>
    %147 = math.tanh %146 : vector<2x16xf32>
    %148 = arith.mulf %143, %147 : vector<2x16xf32>
    %149 = vector.extract_strided_slice %5 {offsets = [10, 0], sizes = [2, 64], strides = [1, 1]} : vector<16x64xf32> to vector<2x64xf32>
    %cst_29 = arith.constant dense<0.000000e+00> : vector<2x64xf32>
    %150 = tpu.matmul %148, %6, %cst_29 {dimension_numbers = #tpu.dot_dimension_numbers<[1], [0], [0], [1], [0, 0, 1, 1], [], []>} : vector<2x16xf32>, vector<16x64xf32>, vector<2x64xf32> -> vector<2x64xf32>
    %151 = arith.addf %149, %150 : vector<2x64xf32>
    %152 = vector.extract_strided_slice %151 {offsets = [0, 0], sizes = [2, 16], strides = [1, 1]} : vector<2x64xf32> to vector<2x16xf32>
    %153 = arith.negf %152 : vector<2x16xf32>
    %154 = math.exp %153 : vector<2x16xf32>
    %cst_30 = arith.constant 1.000000e+00 : f32
    %155 = vector.broadcast %cst_30 : f32 to vector<2x16xf32>
    %156 = arith.addf %155, %154 : vector<2x16xf32>
    %157 = arith.divf %155, %156 : vector<2x16xf32>
    %158 = vector.extract_strided_slice %151 {offsets = [0, 16], sizes = [2, 16], strides = [1, 1]} : vector<2x64xf32> to vector<2x16xf32>
    %159 = arith.negf %158 : vector<2x16xf32>
    %160 = math.exp %159 : vector<2x16xf32>
    %cst_31 = arith.constant 1.000000e+00 : f32
    %161 = vector.broadcast %cst_31 : f32 to vector<2x16xf32>
    %162 = arith.addf %161, %160 : vector<2x16xf32>
    %163 = arith.divf %161, %162 : vector<2x16xf32>
    %164 = vector.extract_strided_slice %151 {offsets = [0, 32], sizes = [2, 16], strides = [1, 1]} : vector<2x64xf32> to vector<2x16xf32>
    %165 = math.tanh %164 : vector<2x16xf32>
    %166 = vector.extract_strided_slice %151 {offsets = [0, 48], sizes = [2, 16], strides = [1, 1]} : vector<2x64xf32> to vector<2x16xf32>
    %167 = arith.negf %166 : vector<2x16xf32>
    %168 = math.exp %167 : vector<2x16xf32>
    %cst_32 = arith.constant 1.000000e+00 : f32
    %169 = vector.broadcast %cst_32 : f32 to vector<2x16xf32>
    %170 = arith.addf %169, %168 : vector<2x16xf32>
    %171 = arith.divf %169, %170 : vector<2x16xf32>
    %172 = arith.mulf %163, %146 : vector<2x16xf32>
    %173 = arith.mulf %157, %165 : vector<2x16xf32>
    %174 = arith.addf %172, %173 : vector<2x16xf32>
    %175 = math.tanh %174 : vector<2x16xf32>
    %176 = arith.mulf %171, %175 : vector<2x16xf32>
    %177 = vector.extract_strided_slice %5 {offsets = [12, 0], sizes = [2, 64], strides = [1, 1]} : vector<16x64xf32> to vector<2x64xf32>
    %cst_33 = arith.constant dense<0.000000e+00> : vector<2x64xf32>
    %178 = tpu.matmul %176, %6, %cst_33 {dimension_numbers = #tpu.dot_dimension_numbers<[1], [0], [0], [1], [0, 0, 1, 1], [], []>} : vector<2x16xf32>, vector<16x64xf32>, vector<2x64xf32> -> vector<2x64xf32>
    %179 = arith.addf %177, %178 : vector<2x64xf32>
    %180 = vector.extract_strided_slice %179 {offsets = [0, 0], sizes = [2, 16], strides = [1, 1]} : vector<2x64xf32> to vector<2x16xf32>
    %181 = arith.negf %180 : vector<2x16xf32>
    %182 = math.exp %181 : vector<2x16xf32>
    %cst_34 = arith.constant 1.000000e+00 : f32
    %183 = vector.broadcast %cst_34 : f32 to vector<2x16xf32>
    %184 = arith.addf %183, %182 : vector<2x16xf32>
    %185 = arith.divf %183, %184 : vector<2x16xf32>
    %186 = vector.extract_strided_slice %179 {offsets = [0, 16], sizes = [2, 16], strides = [1, 1]} : vector<2x64xf32> to vector<2x16xf32>
    %187 = arith.negf %186 : vector<2x16xf32>
    %188 = math.exp %187 : vector<2x16xf32>
    %cst_35 = arith.constant 1.000000e+00 : f32
    %189 = vector.broadcast %cst_35 : f32 to vector<2x16xf32>
    %190 = arith.addf %189, %188 : vector<2x16xf32>
    %191 = arith.divf %189, %190 : vector<2x16xf32>
    %192 = vector.extract_strided_slice %179 {offsets = [0, 32], sizes = [2, 16], strides = [1, 1]} : vector<2x64xf32> to vector<2x16xf32>
    %193 = math.tanh %192 : vector<2x16xf32>
    %194 = vector.extract_strided_slice %179 {offsets = [0, 48], sizes = [2, 16], strides = [1, 1]} : vector<2x64xf32> to vector<2x16xf32>
    %195 = arith.negf %194 : vector<2x16xf32>
    %196 = math.exp %195 : vector<2x16xf32>
    %cst_36 = arith.constant 1.000000e+00 : f32
    %197 = vector.broadcast %cst_36 : f32 to vector<2x16xf32>
    %198 = arith.addf %197, %196 : vector<2x16xf32>
    %199 = arith.divf %197, %198 : vector<2x16xf32>
    %200 = arith.mulf %191, %174 : vector<2x16xf32>
    %201 = arith.mulf %185, %193 : vector<2x16xf32>
    %202 = arith.addf %200, %201 : vector<2x16xf32>
    %203 = math.tanh %202 : vector<2x16xf32>
    %204 = arith.mulf %199, %203 : vector<2x16xf32>
    %205 = vector.extract_strided_slice %5 {offsets = [14, 0], sizes = [2, 64], strides = [1, 1]} : vector<16x64xf32> to vector<2x64xf32>
    %cst_37 = arith.constant dense<0.000000e+00> : vector<2x64xf32>
    %206 = tpu.matmul %204, %6, %cst_37 {dimension_numbers = #tpu.dot_dimension_numbers<[1], [0], [0], [1], [0, 0, 1, 1], [], []>} : vector<2x16xf32>, vector<16x64xf32>, vector<2x64xf32> -> vector<2x64xf32>
    %207 = arith.addf %205, %206 : vector<2x64xf32>
    %208 = vector.extract_strided_slice %207 {offsets = [0, 0], sizes = [2, 16], strides = [1, 1]} : vector<2x64xf32> to vector<2x16xf32>
    %209 = arith.negf %208 : vector<2x16xf32>
    %210 = math.exp %209 : vector<2x16xf32>
    %cst_38 = arith.constant 1.000000e+00 : f32
    %211 = vector.broadcast %cst_38 : f32 to vector<2x16xf32>
    %212 = arith.addf %211, %210 : vector<2x16xf32>
    %213 = arith.divf %211, %212 : vector<2x16xf32>
    %214 = vector.extract_strided_slice %207 {offsets = [0, 16], sizes = [2, 16], strides = [1, 1]} : vector<2x64xf32> to vector<2x16xf32>
    %215 = arith.negf %214 : vector<2x16xf32>
    %216 = math.exp %215 : vector<2x16xf32>
    %cst_39 = arith.constant 1.000000e+00 : f32
    %217 = vector.broadcast %cst_39 : f32 to vector<2x16xf32>
    %218 = arith.addf %217, %216 : vector<2x16xf32>
    %219 = arith.divf %217, %218 : vector<2x16xf32>
    %220 = vector.extract_strided_slice %207 {offsets = [0, 32], sizes = [2, 16], strides = [1, 1]} : vector<2x64xf32> to vector<2x16xf32>
    %221 = math.tanh %220 : vector<2x16xf32>
    %222 = vector.extract_strided_slice %207 {offsets = [0, 48], sizes = [2, 16], strides = [1, 1]} : vector<2x64xf32> to vector<2x16xf32>
    %223 = arith.negf %222 : vector<2x16xf32>
    %224 = math.exp %223 : vector<2x16xf32>
    %cst_40 = arith.constant 1.000000e+00 : f32
    %225 = vector.broadcast %cst_40 : f32 to vector<2x16xf32>
    %226 = arith.addf %225, %224 : vector<2x16xf32>
    %227 = arith.divf %225, %226 : vector<2x16xf32>
    %228 = arith.mulf %219, %202 : vector<2x16xf32>
    %229 = arith.mulf %213, %221 : vector<2x16xf32>
    %230 = arith.addf %228, %229 : vector<2x16xf32>
    %231 = math.tanh %230 : vector<2x16xf32>
    %232 = arith.mulf %227, %231 : vector<2x16xf32>
    %233 = tpu.concatenate %36, %64, %92, %120, %148, %176, %204, %232 in 0 : vector<2x16xf32>, vector<2x16xf32>, vector<2x16xf32>, vector<2x16xf32>, vector<2x16xf32>, vector<2x16xf32>, vector<2x16xf32>, vector<2x16xf32> -> vector<16x16xf32>
    %c0_41 = arith.constant 0 : index
    %c0_42 = arith.constant 0 : index
    %234 = vector.load %arg5[%c0_41, %c0_42] : memref<8x64xf32, #tpu.memory_space<vmem>>, vector<8x64xf32>
    %c0_43 = arith.constant 0 : index
    %c0_44 = arith.constant 0 : index
    %235 = vector.load %arg7[%c0_43, %c0_44] : memref<1x64xf32, #tpu.memory_space<vmem>>, vector<1x64xf32>
    %cst_45 = arith.constant dense<0.000000e+00> : vector<16x64xf32>
    %236 = tpu.matmul %0, %234, %cst_45 {dimension_numbers = #tpu.dot_dimension_numbers<[1], [0], [0], [1], [0, 0, 1, 1], [], []>} : vector<16x8xf32>, vector<8x64xf32>, vector<16x64xf32> -> vector<16x64xf32>
    %237 = vector.broadcast %235 : vector<1x64xf32> to vector<16x64xf32>
    %238 = arith.addf %236, %237 : vector<16x64xf32>
    %c0_46 = arith.constant 0 : index
    %c0_47 = arith.constant 0 : index
    %239 = vector.load %arg6[%c0_46, %c0_47] : memref<16x64xf32, #tpu.memory_space<vmem>>, vector<16x64xf32>
    %cst_48 = arith.constant 0.000000e+00 : f32
    %240 = vector.broadcast %cst_48 : f32 to vector<2x16xf32>
    %cst_49 = arith.constant 0.000000e+00 : f32
    %241 = vector.broadcast %cst_49 : f32 to vector<2x16xf32>
    %242 = vector.extract_strided_slice %238 {offsets = [14, 0], sizes = [2, 64], strides = [1, 1]} : vector<16x64xf32> to vector<2x64xf32>
    %cst_50 = arith.constant dense<0.000000e+00> : vector<2x64xf32>
    %243 = tpu.matmul %240, %239, %cst_50 {dimension_numbers = #tpu.dot_dimension_numbers<[1], [0], [0], [1], [0, 0, 1, 1], [], []>} : vector<2x16xf32>, vector<16x64xf32>, vector<2x64xf32> -> vector<2x64xf32>
    %244 = arith.addf %242, %243 : vector<2x64xf32>
    %245 = vector.extract_strided_slice %244 {offsets = [0, 0], sizes = [2, 16], strides = [1, 1]} : vector<2x64xf32> to vector<2x16xf32>
    %246 = arith.negf %245 : vector<2x16xf32>
    %247 = math.exp %246 : vector<2x16xf32>
    %cst_51 = arith.constant 1.000000e+00 : f32
    %248 = vector.broadcast %cst_51 : f32 to vector<2x16xf32>
    %249 = arith.addf %248, %247 : vector<2x16xf32>
    %250 = arith.divf %248, %249 : vector<2x16xf32>
    %251 = vector.extract_strided_slice %244 {offsets = [0, 16], sizes = [2, 16], strides = [1, 1]} : vector<2x64xf32> to vector<2x16xf32>
    %252 = arith.negf %251 : vector<2x16xf32>
    %253 = math.exp %252 : vector<2x16xf32>
    %cst_52 = arith.constant 1.000000e+00 : f32
    %254 = vector.broadcast %cst_52 : f32 to vector<2x16xf32>
    %255 = arith.addf %254, %253 : vector<2x16xf32>
    %256 = arith.divf %254, %255 : vector<2x16xf32>
    %257 = vector.extract_strided_slice %244 {offsets = [0, 32], sizes = [2, 16], strides = [1, 1]} : vector<2x64xf32> to vector<2x16xf32>
    %258 = math.tanh %257 : vector<2x16xf32>
    %259 = vector.extract_strided_slice %244 {offsets = [0, 48], sizes = [2, 16], strides = [1, 1]} : vector<2x64xf32> to vector<2x16xf32>
    %260 = arith.negf %259 : vector<2x16xf32>
    %261 = math.exp %260 : vector<2x16xf32>
    %cst_53 = arith.constant 1.000000e+00 : f32
    %262 = vector.broadcast %cst_53 : f32 to vector<2x16xf32>
    %263 = arith.addf %262, %261 : vector<2x16xf32>
    %264 = arith.divf %262, %263 : vector<2x16xf32>
    %265 = arith.mulf %256, %241 : vector<2x16xf32>
    %266 = arith.mulf %250, %258 : vector<2x16xf32>
    %267 = arith.addf %265, %266 : vector<2x16xf32>
    %268 = math.tanh %267 : vector<2x16xf32>
    %269 = arith.mulf %264, %268 : vector<2x16xf32>
    %270 = vector.extract_strided_slice %238 {offsets = [12, 0], sizes = [2, 64], strides = [1, 1]} : vector<16x64xf32> to vector<2x64xf32>
    %cst_54 = arith.constant dense<0.000000e+00> : vector<2x64xf32>
    %271 = tpu.matmul %269, %239, %cst_54 {dimension_numbers = #tpu.dot_dimension_numbers<[1], [0], [0], [1], [0, 0, 1, 1], [], []>} : vector<2x16xf32>, vector<16x64xf32>, vector<2x64xf32> -> vector<2x64xf32>
    %272 = arith.addf %270, %271 : vector<2x64xf32>
    %273 = vector.extract_strided_slice %272 {offsets = [0, 0], sizes = [2, 16], strides = [1, 1]} : vector<2x64xf32> to vector<2x16xf32>
    %274 = arith.negf %273 : vector<2x16xf32>
    %275 = math.exp %274 : vector<2x16xf32>
    %cst_55 = arith.constant 1.000000e+00 : f32
    %276 = vector.broadcast %cst_55 : f32 to vector<2x16xf32>
    %277 = arith.addf %276, %275 : vector<2x16xf32>
    %278 = arith.divf %276, %277 : vector<2x16xf32>
    %279 = vector.extract_strided_slice %272 {offsets = [0, 16], sizes = [2, 16], strides = [1, 1]} : vector<2x64xf32> to vector<2x16xf32>
    %280 = arith.negf %279 : vector<2x16xf32>
    %281 = math.exp %280 : vector<2x16xf32>
    %cst_56 = arith.constant 1.000000e+00 : f32
    %282 = vector.broadcast %cst_56 : f32 to vector<2x16xf32>
    %283 = arith.addf %282, %281 : vector<2x16xf32>
    %284 = arith.divf %282, %283 : vector<2x16xf32>
    %285 = vector.extract_strided_slice %272 {offsets = [0, 32], sizes = [2, 16], strides = [1, 1]} : vector<2x64xf32> to vector<2x16xf32>
    %286 = math.tanh %285 : vector<2x16xf32>
    %287 = vector.extract_strided_slice %272 {offsets = [0, 48], sizes = [2, 16], strides = [1, 1]} : vector<2x64xf32> to vector<2x16xf32>
    %288 = arith.negf %287 : vector<2x16xf32>
    %289 = math.exp %288 : vector<2x16xf32>
    %cst_57 = arith.constant 1.000000e+00 : f32
    %290 = vector.broadcast %cst_57 : f32 to vector<2x16xf32>
    %291 = arith.addf %290, %289 : vector<2x16xf32>
    %292 = arith.divf %290, %291 : vector<2x16xf32>
    %293 = arith.mulf %284, %267 : vector<2x16xf32>
    %294 = arith.mulf %278, %286 : vector<2x16xf32>
    %295 = arith.addf %293, %294 : vector<2x16xf32>
    %296 = math.tanh %295 : vector<2x16xf32>
    %297 = arith.mulf %292, %296 : vector<2x16xf32>
    %298 = vector.extract_strided_slice %238 {offsets = [10, 0], sizes = [2, 64], strides = [1, 1]} : vector<16x64xf32> to vector<2x64xf32>
    %cst_58 = arith.constant dense<0.000000e+00> : vector<2x64xf32>
    %299 = tpu.matmul %297, %239, %cst_58 {dimension_numbers = #tpu.dot_dimension_numbers<[1], [0], [0], [1], [0, 0, 1, 1], [], []>} : vector<2x16xf32>, vector<16x64xf32>, vector<2x64xf32> -> vector<2x64xf32>
    %300 = arith.addf %298, %299 : vector<2x64xf32>
    %301 = vector.extract_strided_slice %300 {offsets = [0, 0], sizes = [2, 16], strides = [1, 1]} : vector<2x64xf32> to vector<2x16xf32>
    %302 = arith.negf %301 : vector<2x16xf32>
    %303 = math.exp %302 : vector<2x16xf32>
    %cst_59 = arith.constant 1.000000e+00 : f32
    %304 = vector.broadcast %cst_59 : f32 to vector<2x16xf32>
    %305 = arith.addf %304, %303 : vector<2x16xf32>
    %306 = arith.divf %304, %305 : vector<2x16xf32>
    %307 = vector.extract_strided_slice %300 {offsets = [0, 16], sizes = [2, 16], strides = [1, 1]} : vector<2x64xf32> to vector<2x16xf32>
    %308 = arith.negf %307 : vector<2x16xf32>
    %309 = math.exp %308 : vector<2x16xf32>
    %cst_60 = arith.constant 1.000000e+00 : f32
    %310 = vector.broadcast %cst_60 : f32 to vector<2x16xf32>
    %311 = arith.addf %310, %309 : vector<2x16xf32>
    %312 = arith.divf %310, %311 : vector<2x16xf32>
    %313 = vector.extract_strided_slice %300 {offsets = [0, 32], sizes = [2, 16], strides = [1, 1]} : vector<2x64xf32> to vector<2x16xf32>
    %314 = math.tanh %313 : vector<2x16xf32>
    %315 = vector.extract_strided_slice %300 {offsets = [0, 48], sizes = [2, 16], strides = [1, 1]} : vector<2x64xf32> to vector<2x16xf32>
    %316 = arith.negf %315 : vector<2x16xf32>
    %317 = math.exp %316 : vector<2x16xf32>
    %cst_61 = arith.constant 1.000000e+00 : f32
    %318 = vector.broadcast %cst_61 : f32 to vector<2x16xf32>
    %319 = arith.addf %318, %317 : vector<2x16xf32>
    %320 = arith.divf %318, %319 : vector<2x16xf32>
    %321 = arith.mulf %312, %295 : vector<2x16xf32>
    %322 = arith.mulf %306, %314 : vector<2x16xf32>
    %323 = arith.addf %321, %322 : vector<2x16xf32>
    %324 = math.tanh %323 : vector<2x16xf32>
    %325 = arith.mulf %320, %324 : vector<2x16xf32>
    %326 = vector.extract_strided_slice %238 {offsets = [8, 0], sizes = [2, 64], strides = [1, 1]} : vector<16x64xf32> to vector<2x64xf32>
    %cst_62 = arith.constant dense<0.000000e+00> : vector<2x64xf32>
    %327 = tpu.matmul %325, %239, %cst_62 {dimension_numbers = #tpu.dot_dimension_numbers<[1], [0], [0], [1], [0, 0, 1, 1], [], []>} : vector<2x16xf32>, vector<16x64xf32>, vector<2x64xf32> -> vector<2x64xf32>
    %328 = arith.addf %326, %327 : vector<2x64xf32>
    %329 = vector.extract_strided_slice %328 {offsets = [0, 0], sizes = [2, 16], strides = [1, 1]} : vector<2x64xf32> to vector<2x16xf32>
    %330 = arith.negf %329 : vector<2x16xf32>
    %331 = math.exp %330 : vector<2x16xf32>
    %cst_63 = arith.constant 1.000000e+00 : f32
    %332 = vector.broadcast %cst_63 : f32 to vector<2x16xf32>
    %333 = arith.addf %332, %331 : vector<2x16xf32>
    %334 = arith.divf %332, %333 : vector<2x16xf32>
    %335 = vector.extract_strided_slice %328 {offsets = [0, 16], sizes = [2, 16], strides = [1, 1]} : vector<2x64xf32> to vector<2x16xf32>
    %336 = arith.negf %335 : vector<2x16xf32>
    %337 = math.exp %336 : vector<2x16xf32>
    %cst_64 = arith.constant 1.000000e+00 : f32
    %338 = vector.broadcast %cst_64 : f32 to vector<2x16xf32>
    %339 = arith.addf %338, %337 : vector<2x16xf32>
    %340 = arith.divf %338, %339 : vector<2x16xf32>
    %341 = vector.extract_strided_slice %328 {offsets = [0, 32], sizes = [2, 16], strides = [1, 1]} : vector<2x64xf32> to vector<2x16xf32>
    %342 = math.tanh %341 : vector<2x16xf32>
    %343 = vector.extract_strided_slice %328 {offsets = [0, 48], sizes = [2, 16], strides = [1, 1]} : vector<2x64xf32> to vector<2x16xf32>
    %344 = arith.negf %343 : vector<2x16xf32>
    %345 = math.exp %344 : vector<2x16xf32>
    %cst_65 = arith.constant 1.000000e+00 : f32
    %346 = vector.broadcast %cst_65 : f32 to vector<2x16xf32>
    %347 = arith.addf %346, %345 : vector<2x16xf32>
    %348 = arith.divf %346, %347 : vector<2x16xf32>
    %349 = arith.mulf %340, %323 : vector<2x16xf32>
    %350 = arith.mulf %334, %342 : vector<2x16xf32>
    %351 = arith.addf %349, %350 : vector<2x16xf32>
    %352 = math.tanh %351 : vector<2x16xf32>
    %353 = arith.mulf %348, %352 : vector<2x16xf32>
    %354 = vector.extract_strided_slice %238 {offsets = [6, 0], sizes = [2, 64], strides = [1, 1]} : vector<16x64xf32> to vector<2x64xf32>
    %cst_66 = arith.constant dense<0.000000e+00> : vector<2x64xf32>
    %355 = tpu.matmul %353, %239, %cst_66 {dimension_numbers = #tpu.dot_dimension_numbers<[1], [0], [0], [1], [0, 0, 1, 1], [], []>} : vector<2x16xf32>, vector<16x64xf32>, vector<2x64xf32> -> vector<2x64xf32>
    %356 = arith.addf %354, %355 : vector<2x64xf32>
    %357 = vector.extract_strided_slice %356 {offsets = [0, 0], sizes = [2, 16], strides = [1, 1]} : vector<2x64xf32> to vector<2x16xf32>
    %358 = arith.negf %357 : vector<2x16xf32>
    %359 = math.exp %358 : vector<2x16xf32>
    %cst_67 = arith.constant 1.000000e+00 : f32
    %360 = vector.broadcast %cst_67 : f32 to vector<2x16xf32>
    %361 = arith.addf %360, %359 : vector<2x16xf32>
    %362 = arith.divf %360, %361 : vector<2x16xf32>
    %363 = vector.extract_strided_slice %356 {offsets = [0, 16], sizes = [2, 16], strides = [1, 1]} : vector<2x64xf32> to vector<2x16xf32>
    %364 = arith.negf %363 : vector<2x16xf32>
    %365 = math.exp %364 : vector<2x16xf32>
    %cst_68 = arith.constant 1.000000e+00 : f32
    %366 = vector.broadcast %cst_68 : f32 to vector<2x16xf32>
    %367 = arith.addf %366, %365 : vector<2x16xf32>
    %368 = arith.divf %366, %367 : vector<2x16xf32>
    %369 = vector.extract_strided_slice %356 {offsets = [0, 32], sizes = [2, 16], strides = [1, 1]} : vector<2x64xf32> to vector<2x16xf32>
    %370 = math.tanh %369 : vector<2x16xf32>
    %371 = vector.extract_strided_slice %356 {offsets = [0, 48], sizes = [2, 16], strides = [1, 1]} : vector<2x64xf32> to vector<2x16xf32>
    %372 = arith.negf %371 : vector<2x16xf32>
    %373 = math.exp %372 : vector<2x16xf32>
    %cst_69 = arith.constant 1.000000e+00 : f32
    %374 = vector.broadcast %cst_69 : f32 to vector<2x16xf32>
    %375 = arith.addf %374, %373 : vector<2x16xf32>
    %376 = arith.divf %374, %375 : vector<2x16xf32>
    %377 = arith.mulf %368, %351 : vector<2x16xf32>
    %378 = arith.mulf %362, %370 : vector<2x16xf32>
    %379 = arith.addf %377, %378 : vector<2x16xf32>
    %380 = math.tanh %379 : vector<2x16xf32>
    %381 = arith.mulf %376, %380 : vector<2x16xf32>
    %382 = vector.extract_strided_slice %238 {offsets = [4, 0], sizes = [2, 64], strides = [1, 1]} : vector<16x64xf32> to vector<2x64xf32>
    %cst_70 = arith.constant dense<0.000000e+00> : vector<2x64xf32>
    %383 = tpu.matmul %381, %239, %cst_70 {dimension_numbers = #tpu.dot_dimension_numbers<[1], [0], [0], [1], [0, 0, 1, 1], [], []>} : vector<2x16xf32>, vector<16x64xf32>, vector<2x64xf32> -> vector<2x64xf32>
    %384 = arith.addf %382, %383 : vector<2x64xf32>
    %385 = vector.extract_strided_slice %384 {offsets = [0, 0], sizes = [2, 16], strides = [1, 1]} : vector<2x64xf32> to vector<2x16xf32>
    %386 = arith.negf %385 : vector<2x16xf32>
    %387 = math.exp %386 : vector<2x16xf32>
    %cst_71 = arith.constant 1.000000e+00 : f32
    %388 = vector.broadcast %cst_71 : f32 to vector<2x16xf32>
    %389 = arith.addf %388, %387 : vector<2x16xf32>
    %390 = arith.divf %388, %389 : vector<2x16xf32>
    %391 = vector.extract_strided_slice %384 {offsets = [0, 16], sizes = [2, 16], strides = [1, 1]} : vector<2x64xf32> to vector<2x16xf32>
    %392 = arith.negf %391 : vector<2x16xf32>
    %393 = math.exp %392 : vector<2x16xf32>
    %cst_72 = arith.constant 1.000000e+00 : f32
    %394 = vector.broadcast %cst_72 : f32 to vector<2x16xf32>
    %395 = arith.addf %394, %393 : vector<2x16xf32>
    %396 = arith.divf %394, %395 : vector<2x16xf32>
    %397 = vector.extract_strided_slice %384 {offsets = [0, 32], sizes = [2, 16], strides = [1, 1]} : vector<2x64xf32> to vector<2x16xf32>
    %398 = math.tanh %397 : vector<2x16xf32>
    %399 = vector.extract_strided_slice %384 {offsets = [0, 48], sizes = [2, 16], strides = [1, 1]} : vector<2x64xf32> to vector<2x16xf32>
    %400 = arith.negf %399 : vector<2x16xf32>
    %401 = math.exp %400 : vector<2x16xf32>
    %cst_73 = arith.constant 1.000000e+00 : f32
    %402 = vector.broadcast %cst_73 : f32 to vector<2x16xf32>
    %403 = arith.addf %402, %401 : vector<2x16xf32>
    %404 = arith.divf %402, %403 : vector<2x16xf32>
    %405 = arith.mulf %396, %379 : vector<2x16xf32>
    %406 = arith.mulf %390, %398 : vector<2x16xf32>
    %407 = arith.addf %405, %406 : vector<2x16xf32>
    %408 = math.tanh %407 : vector<2x16xf32>
    %409 = arith.mulf %404, %408 : vector<2x16xf32>
    %410 = vector.extract_strided_slice %238 {offsets = [2, 0], sizes = [2, 64], strides = [1, 1]} : vector<16x64xf32> to vector<2x64xf32>
    %cst_74 = arith.constant dense<0.000000e+00> : vector<2x64xf32>
    %411 = tpu.matmul %409, %239, %cst_74 {dimension_numbers = #tpu.dot_dimension_numbers<[1], [0], [0], [1], [0, 0, 1, 1], [], []>} : vector<2x16xf32>, vector<16x64xf32>, vector<2x64xf32> -> vector<2x64xf32>
    %412 = arith.addf %410, %411 : vector<2x64xf32>
    %413 = vector.extract_strided_slice %412 {offsets = [0, 0], sizes = [2, 16], strides = [1, 1]} : vector<2x64xf32> to vector<2x16xf32>
    %414 = arith.negf %413 : vector<2x16xf32>
    %415 = math.exp %414 : vector<2x16xf32>
    %cst_75 = arith.constant 1.000000e+00 : f32
    %416 = vector.broadcast %cst_75 : f32 to vector<2x16xf32>
    %417 = arith.addf %416, %415 : vector<2x16xf32>
    %418 = arith.divf %416, %417 : vector<2x16xf32>
    %419 = vector.extract_strided_slice %412 {offsets = [0, 16], sizes = [2, 16], strides = [1, 1]} : vector<2x64xf32> to vector<2x16xf32>
    %420 = arith.negf %419 : vector<2x16xf32>
    %421 = math.exp %420 : vector<2x16xf32>
    %cst_76 = arith.constant 1.000000e+00 : f32
    %422 = vector.broadcast %cst_76 : f32 to vector<2x16xf32>
    %423 = arith.addf %422, %421 : vector<2x16xf32>
    %424 = arith.divf %422, %423 : vector<2x16xf32>
    %425 = vector.extract_strided_slice %412 {offsets = [0, 32], sizes = [2, 16], strides = [1, 1]} : vector<2x64xf32> to vector<2x16xf32>
    %426 = math.tanh %425 : vector<2x16xf32>
    %427 = vector.extract_strided_slice %412 {offsets = [0, 48], sizes = [2, 16], strides = [1, 1]} : vector<2x64xf32> to vector<2x16xf32>
    %428 = arith.negf %427 : vector<2x16xf32>
    %429 = math.exp %428 : vector<2x16xf32>
    %cst_77 = arith.constant 1.000000e+00 : f32
    %430 = vector.broadcast %cst_77 : f32 to vector<2x16xf32>
    %431 = arith.addf %430, %429 : vector<2x16xf32>
    %432 = arith.divf %430, %431 : vector<2x16xf32>
    %433 = arith.mulf %424, %407 : vector<2x16xf32>
    %434 = arith.mulf %418, %426 : vector<2x16xf32>
    %435 = arith.addf %433, %434 : vector<2x16xf32>
    %436 = math.tanh %435 : vector<2x16xf32>
    %437 = arith.mulf %432, %436 : vector<2x16xf32>
    %438 = vector.extract_strided_slice %238 {offsets = [0, 0], sizes = [2, 64], strides = [1, 1]} : vector<16x64xf32> to vector<2x64xf32>
    %cst_78 = arith.constant dense<0.000000e+00> : vector<2x64xf32>
    %439 = tpu.matmul %437, %239, %cst_78 {dimension_numbers = #tpu.dot_dimension_numbers<[1], [0], [0], [1], [0, 0, 1, 1], [], []>} : vector<2x16xf32>, vector<16x64xf32>, vector<2x64xf32> -> vector<2x64xf32>
    %440 = arith.addf %438, %439 : vector<2x64xf32>
    %441 = vector.extract_strided_slice %440 {offsets = [0, 0], sizes = [2, 16], strides = [1, 1]} : vector<2x64xf32> to vector<2x16xf32>
    %442 = arith.negf %441 : vector<2x16xf32>
    %443 = math.exp %442 : vector<2x16xf32>
    %cst_79 = arith.constant 1.000000e+00 : f32
    %444 = vector.broadcast %cst_79 : f32 to vector<2x16xf32>
    %445 = arith.addf %444, %443 : vector<2x16xf32>
    %446 = arith.divf %444, %445 : vector<2x16xf32>
    %447 = vector.extract_strided_slice %440 {offsets = [0, 16], sizes = [2, 16], strides = [1, 1]} : vector<2x64xf32> to vector<2x16xf32>
    %448 = arith.negf %447 : vector<2x16xf32>
    %449 = math.exp %448 : vector<2x16xf32>
    %cst_80 = arith.constant 1.000000e+00 : f32
    %450 = vector.broadcast %cst_80 : f32 to vector<2x16xf32>
    %451 = arith.addf %450, %449 : vector<2x16xf32>
    %452 = arith.divf %450, %451 : vector<2x16xf32>
    %453 = vector.extract_strided_slice %440 {offsets = [0, 32], sizes = [2, 16], strides = [1, 1]} : vector<2x64xf32> to vector<2x16xf32>
    %454 = math.tanh %453 : vector<2x16xf32>
    %455 = vector.extract_strided_slice %440 {offsets = [0, 48], sizes = [2, 16], strides = [1, 1]} : vector<2x64xf32> to vector<2x16xf32>
    %456 = arith.negf %455 : vector<2x16xf32>
    %457 = math.exp %456 : vector<2x16xf32>
    %cst_81 = arith.constant 1.000000e+00 : f32
    %458 = vector.broadcast %cst_81 : f32 to vector<2x16xf32>
    %459 = arith.addf %458, %457 : vector<2x16xf32>
    %460 = arith.divf %458, %459 : vector<2x16xf32>
    %461 = arith.mulf %452, %435 : vector<2x16xf32>
    %462 = arith.mulf %446, %454 : vector<2x16xf32>
    %463 = arith.addf %461, %462 : vector<2x16xf32>
    %464 = math.tanh %463 : vector<2x16xf32>
    %465 = arith.mulf %460, %464 : vector<2x16xf32>
    %466 = tpu.concatenate %465, %437, %409, %381, %353, %325, %297, %269 in 0 : vector<2x16xf32>, vector<2x16xf32>, vector<2x16xf32>, vector<2x16xf32>, vector<2x16xf32>, vector<2x16xf32>, vector<2x16xf32>, vector<2x16xf32> -> vector<16x16xf32>
    %c0_82 = arith.constant 0 : index
    %c0_83 = arith.constant 0 : index
    %467 = vector.load %arg8[%c0_82, %c0_83] : memref<32x64xf32, #tpu.memory_space<vmem>>, vector<32x64xf32>
    %c0_84 = arith.constant 0 : index
    %c0_85 = arith.constant 0 : index
    %468 = vector.load %arg10[%c0_84, %c0_85] : memref<1x64xf32, #tpu.memory_space<vmem>>, vector<1x64xf32>
    %469 = vector.extract_strided_slice %467 {offsets = [0, 0], sizes = [16, 64], strides = [1, 1]} : vector<32x64xf32> to vector<16x64xf32>
    %cst_86 = arith.constant dense<0.000000e+00> : vector<16x64xf32>
    %470 = tpu.matmul %233, %469, %cst_86 {dimension_numbers = #tpu.dot_dimension_numbers<[1], [0], [0], [1], [0, 0, 1, 1], [], []>} : vector<16x16xf32>, vector<16x64xf32>, vector<16x64xf32> -> vector<16x64xf32>
    %471 = vector.extract_strided_slice %467 {offsets = [16, 0], sizes = [16, 64], strides = [1, 1]} : vector<32x64xf32> to vector<16x64xf32>
    %cst_87 = arith.constant dense<0.000000e+00> : vector<16x64xf32>
    %472 = tpu.matmul %466, %471, %cst_87 {dimension_numbers = #tpu.dot_dimension_numbers<[1], [0], [0], [1], [0, 0, 1, 1], [], []>} : vector<16x16xf32>, vector<16x64xf32>, vector<16x64xf32> -> vector<16x64xf32>
    %473 = arith.addf %470, %472 : vector<16x64xf32>
    %474 = vector.broadcast %468 : vector<1x64xf32> to vector<16x64xf32>
    %475 = arith.addf %473, %474 : vector<16x64xf32>
    %c0_88 = arith.constant 0 : index
    %c0_89 = arith.constant 0 : index
    %476 = vector.load %arg9[%c0_88, %c0_89] : memref<16x64xf32, #tpu.memory_space<vmem>>, vector<16x64xf32>
    %cst_90 = arith.constant 0.000000e+00 : f32
    %477 = vector.broadcast %cst_90 : f32 to vector<2x16xf32>
    %cst_91 = arith.constant 0.000000e+00 : f32
    %478 = vector.broadcast %cst_91 : f32 to vector<2x16xf32>
    %479 = vector.extract_strided_slice %475 {offsets = [0, 0], sizes = [2, 64], strides = [1, 1]} : vector<16x64xf32> to vector<2x64xf32>
    %cst_92 = arith.constant dense<0.000000e+00> : vector<2x64xf32>
    %480 = tpu.matmul %477, %476, %cst_92 {dimension_numbers = #tpu.dot_dimension_numbers<[1], [0], [0], [1], [0, 0, 1, 1], [], []>} : vector<2x16xf32>, vector<16x64xf32>, vector<2x64xf32> -> vector<2x64xf32>
    %481 = arith.addf %479, %480 : vector<2x64xf32>
    %482 = vector.extract_strided_slice %481 {offsets = [0, 0], sizes = [2, 16], strides = [1, 1]} : vector<2x64xf32> to vector<2x16xf32>
    %483 = arith.negf %482 : vector<2x16xf32>
    %484 = math.exp %483 : vector<2x16xf32>
    %cst_93 = arith.constant 1.000000e+00 : f32
    %485 = vector.broadcast %cst_93 : f32 to vector<2x16xf32>
    %486 = arith.addf %485, %484 : vector<2x16xf32>
    %487 = arith.divf %485, %486 : vector<2x16xf32>
    %488 = vector.extract_strided_slice %481 {offsets = [0, 16], sizes = [2, 16], strides = [1, 1]} : vector<2x64xf32> to vector<2x16xf32>
    %489 = arith.negf %488 : vector<2x16xf32>
    %490 = math.exp %489 : vector<2x16xf32>
    %cst_94 = arith.constant 1.000000e+00 : f32
    %491 = vector.broadcast %cst_94 : f32 to vector<2x16xf32>
    %492 = arith.addf %491, %490 : vector<2x16xf32>
    %493 = arith.divf %491, %492 : vector<2x16xf32>
    %494 = vector.extract_strided_slice %481 {offsets = [0, 32], sizes = [2, 16], strides = [1, 1]} : vector<2x64xf32> to vector<2x16xf32>
    %495 = math.tanh %494 : vector<2x16xf32>
    %496 = vector.extract_strided_slice %481 {offsets = [0, 48], sizes = [2, 16], strides = [1, 1]} : vector<2x64xf32> to vector<2x16xf32>
    %497 = arith.negf %496 : vector<2x16xf32>
    %498 = math.exp %497 : vector<2x16xf32>
    %cst_95 = arith.constant 1.000000e+00 : f32
    %499 = vector.broadcast %cst_95 : f32 to vector<2x16xf32>
    %500 = arith.addf %499, %498 : vector<2x16xf32>
    %501 = arith.divf %499, %500 : vector<2x16xf32>
    %502 = arith.mulf %493, %478 : vector<2x16xf32>
    %503 = arith.mulf %487, %495 : vector<2x16xf32>
    %504 = arith.addf %502, %503 : vector<2x16xf32>
    %505 = math.tanh %504 : vector<2x16xf32>
    %506 = arith.mulf %501, %505 : vector<2x16xf32>
    %507 = vector.extract_strided_slice %475 {offsets = [2, 0], sizes = [2, 64], strides = [1, 1]} : vector<16x64xf32> to vector<2x64xf32>
    %cst_96 = arith.constant dense<0.000000e+00> : vector<2x64xf32>
    %508 = tpu.matmul %506, %476, %cst_96 {dimension_numbers = #tpu.dot_dimension_numbers<[1], [0], [0], [1], [0, 0, 1, 1], [], []>} : vector<2x16xf32>, vector<16x64xf32>, vector<2x64xf32> -> vector<2x64xf32>
    %509 = arith.addf %507, %508 : vector<2x64xf32>
    %510 = vector.extract_strided_slice %509 {offsets = [0, 0], sizes = [2, 16], strides = [1, 1]} : vector<2x64xf32> to vector<2x16xf32>
    %511 = arith.negf %510 : vector<2x16xf32>
    %512 = math.exp %511 : vector<2x16xf32>
    %cst_97 = arith.constant 1.000000e+00 : f32
    %513 = vector.broadcast %cst_97 : f32 to vector<2x16xf32>
    %514 = arith.addf %513, %512 : vector<2x16xf32>
    %515 = arith.divf %513, %514 : vector<2x16xf32>
    %516 = vector.extract_strided_slice %509 {offsets = [0, 16], sizes = [2, 16], strides = [1, 1]} : vector<2x64xf32> to vector<2x16xf32>
    %517 = arith.negf %516 : vector<2x16xf32>
    %518 = math.exp %517 : vector<2x16xf32>
    %cst_98 = arith.constant 1.000000e+00 : f32
    %519 = vector.broadcast %cst_98 : f32 to vector<2x16xf32>
    %520 = arith.addf %519, %518 : vector<2x16xf32>
    %521 = arith.divf %519, %520 : vector<2x16xf32>
    %522 = vector.extract_strided_slice %509 {offsets = [0, 32], sizes = [2, 16], strides = [1, 1]} : vector<2x64xf32> to vector<2x16xf32>
    %523 = math.tanh %522 : vector<2x16xf32>
    %524 = vector.extract_strided_slice %509 {offsets = [0, 48], sizes = [2, 16], strides = [1, 1]} : vector<2x64xf32> to vector<2x16xf32>
    %525 = arith.negf %524 : vector<2x16xf32>
    %526 = math.exp %525 : vector<2x16xf32>
    %cst_99 = arith.constant 1.000000e+00 : f32
    %527 = vector.broadcast %cst_99 : f32 to vector<2x16xf32>
    %528 = arith.addf %527, %526 : vector<2x16xf32>
    %529 = arith.divf %527, %528 : vector<2x16xf32>
    %530 = arith.mulf %521, %504 : vector<2x16xf32>
    %531 = arith.mulf %515, %523 : vector<2x16xf32>
    %532 = arith.addf %530, %531 : vector<2x16xf32>
    %533 = math.tanh %532 : vector<2x16xf32>
    %534 = arith.mulf %529, %533 : vector<2x16xf32>
    %535 = vector.extract_strided_slice %475 {offsets = [4, 0], sizes = [2, 64], strides = [1, 1]} : vector<16x64xf32> to vector<2x64xf32>
    %cst_100 = arith.constant dense<0.000000e+00> : vector<2x64xf32>
    %536 = tpu.matmul %534, %476, %cst_100 {dimension_numbers = #tpu.dot_dimension_numbers<[1], [0], [0], [1], [0, 0, 1, 1], [], []>} : vector<2x16xf32>, vector<16x64xf32>, vector<2x64xf32> -> vector<2x64xf32>
    %537 = arith.addf %535, %536 : vector<2x64xf32>
    %538 = vector.extract_strided_slice %537 {offsets = [0, 0], sizes = [2, 16], strides = [1, 1]} : vector<2x64xf32> to vector<2x16xf32>
    %539 = arith.negf %538 : vector<2x16xf32>
    %540 = math.exp %539 : vector<2x16xf32>
    %cst_101 = arith.constant 1.000000e+00 : f32
    %541 = vector.broadcast %cst_101 : f32 to vector<2x16xf32>
    %542 = arith.addf %541, %540 : vector<2x16xf32>
    %543 = arith.divf %541, %542 : vector<2x16xf32>
    %544 = vector.extract_strided_slice %537 {offsets = [0, 16], sizes = [2, 16], strides = [1, 1]} : vector<2x64xf32> to vector<2x16xf32>
    %545 = arith.negf %544 : vector<2x16xf32>
    %546 = math.exp %545 : vector<2x16xf32>
    %cst_102 = arith.constant 1.000000e+00 : f32
    %547 = vector.broadcast %cst_102 : f32 to vector<2x16xf32>
    %548 = arith.addf %547, %546 : vector<2x16xf32>
    %549 = arith.divf %547, %548 : vector<2x16xf32>
    %550 = vector.extract_strided_slice %537 {offsets = [0, 32], sizes = [2, 16], strides = [1, 1]} : vector<2x64xf32> to vector<2x16xf32>
    %551 = math.tanh %550 : vector<2x16xf32>
    %552 = vector.extract_strided_slice %537 {offsets = [0, 48], sizes = [2, 16], strides = [1, 1]} : vector<2x64xf32> to vector<2x16xf32>
    %553 = arith.negf %552 : vector<2x16xf32>
    %554 = math.exp %553 : vector<2x16xf32>
    %cst_103 = arith.constant 1.000000e+00 : f32
    %555 = vector.broadcast %cst_103 : f32 to vector<2x16xf32>
    %556 = arith.addf %555, %554 : vector<2x16xf32>
    %557 = arith.divf %555, %556 : vector<2x16xf32>
    %558 = arith.mulf %549, %532 : vector<2x16xf32>
    %559 = arith.mulf %543, %551 : vector<2x16xf32>
    %560 = arith.addf %558, %559 : vector<2x16xf32>
    %561 = math.tanh %560 : vector<2x16xf32>
    %562 = arith.mulf %557, %561 : vector<2x16xf32>
    %563 = vector.extract_strided_slice %475 {offsets = [6, 0], sizes = [2, 64], strides = [1, 1]} : vector<16x64xf32> to vector<2x64xf32>
    %cst_104 = arith.constant dense<0.000000e+00> : vector<2x64xf32>
    %564 = tpu.matmul %562, %476, %cst_104 {dimension_numbers = #tpu.dot_dimension_numbers<[1], [0], [0], [1], [0, 0, 1, 1], [], []>} : vector<2x16xf32>, vector<16x64xf32>, vector<2x64xf32> -> vector<2x64xf32>
    %565 = arith.addf %563, %564 : vector<2x64xf32>
    %566 = vector.extract_strided_slice %565 {offsets = [0, 0], sizes = [2, 16], strides = [1, 1]} : vector<2x64xf32> to vector<2x16xf32>
    %567 = arith.negf %566 : vector<2x16xf32>
    %568 = math.exp %567 : vector<2x16xf32>
    %cst_105 = arith.constant 1.000000e+00 : f32
    %569 = vector.broadcast %cst_105 : f32 to vector<2x16xf32>
    %570 = arith.addf %569, %568 : vector<2x16xf32>
    %571 = arith.divf %569, %570 : vector<2x16xf32>
    %572 = vector.extract_strided_slice %565 {offsets = [0, 16], sizes = [2, 16], strides = [1, 1]} : vector<2x64xf32> to vector<2x16xf32>
    %573 = arith.negf %572 : vector<2x16xf32>
    %574 = math.exp %573 : vector<2x16xf32>
    %cst_106 = arith.constant 1.000000e+00 : f32
    %575 = vector.broadcast %cst_106 : f32 to vector<2x16xf32>
    %576 = arith.addf %575, %574 : vector<2x16xf32>
    %577 = arith.divf %575, %576 : vector<2x16xf32>
    %578 = vector.extract_strided_slice %565 {offsets = [0, 32], sizes = [2, 16], strides = [1, 1]} : vector<2x64xf32> to vector<2x16xf32>
    %579 = math.tanh %578 : vector<2x16xf32>
    %580 = vector.extract_strided_slice %565 {offsets = [0, 48], sizes = [2, 16], strides = [1, 1]} : vector<2x64xf32> to vector<2x16xf32>
    %581 = arith.negf %580 : vector<2x16xf32>
    %582 = math.exp %581 : vector<2x16xf32>
    %cst_107 = arith.constant 1.000000e+00 : f32
    %583 = vector.broadcast %cst_107 : f32 to vector<2x16xf32>
    %584 = arith.addf %583, %582 : vector<2x16xf32>
    %585 = arith.divf %583, %584 : vector<2x16xf32>
    %586 = arith.mulf %577, %560 : vector<2x16xf32>
    %587 = arith.mulf %571, %579 : vector<2x16xf32>
    %588 = arith.addf %586, %587 : vector<2x16xf32>
    %589 = math.tanh %588 : vector<2x16xf32>
    %590 = arith.mulf %585, %589 : vector<2x16xf32>
    %591 = vector.extract_strided_slice %475 {offsets = [8, 0], sizes = [2, 64], strides = [1, 1]} : vector<16x64xf32> to vector<2x64xf32>
    %cst_108 = arith.constant dense<0.000000e+00> : vector<2x64xf32>
    %592 = tpu.matmul %590, %476, %cst_108 {dimension_numbers = #tpu.dot_dimension_numbers<[1], [0], [0], [1], [0, 0, 1, 1], [], []>} : vector<2x16xf32>, vector<16x64xf32>, vector<2x64xf32> -> vector<2x64xf32>
    %593 = arith.addf %591, %592 : vector<2x64xf32>
    %594 = vector.extract_strided_slice %593 {offsets = [0, 0], sizes = [2, 16], strides = [1, 1]} : vector<2x64xf32> to vector<2x16xf32>
    %595 = arith.negf %594 : vector<2x16xf32>
    %596 = math.exp %595 : vector<2x16xf32>
    %cst_109 = arith.constant 1.000000e+00 : f32
    %597 = vector.broadcast %cst_109 : f32 to vector<2x16xf32>
    %598 = arith.addf %597, %596 : vector<2x16xf32>
    %599 = arith.divf %597, %598 : vector<2x16xf32>
    %600 = vector.extract_strided_slice %593 {offsets = [0, 16], sizes = [2, 16], strides = [1, 1]} : vector<2x64xf32> to vector<2x16xf32>
    %601 = arith.negf %600 : vector<2x16xf32>
    %602 = math.exp %601 : vector<2x16xf32>
    %cst_110 = arith.constant 1.000000e+00 : f32
    %603 = vector.broadcast %cst_110 : f32 to vector<2x16xf32>
    %604 = arith.addf %603, %602 : vector<2x16xf32>
    %605 = arith.divf %603, %604 : vector<2x16xf32>
    %606 = vector.extract_strided_slice %593 {offsets = [0, 32], sizes = [2, 16], strides = [1, 1]} : vector<2x64xf32> to vector<2x16xf32>
    %607 = math.tanh %606 : vector<2x16xf32>
    %608 = vector.extract_strided_slice %593 {offsets = [0, 48], sizes = [2, 16], strides = [1, 1]} : vector<2x64xf32> to vector<2x16xf32>
    %609 = arith.negf %608 : vector<2x16xf32>
    %610 = math.exp %609 : vector<2x16xf32>
    %cst_111 = arith.constant 1.000000e+00 : f32
    %611 = vector.broadcast %cst_111 : f32 to vector<2x16xf32>
    %612 = arith.addf %611, %610 : vector<2x16xf32>
    %613 = arith.divf %611, %612 : vector<2x16xf32>
    %614 = arith.mulf %605, %588 : vector<2x16xf32>
    %615 = arith.mulf %599, %607 : vector<2x16xf32>
    %616 = arith.addf %614, %615 : vector<2x16xf32>
    %617 = math.tanh %616 : vector<2x16xf32>
    %618 = arith.mulf %613, %617 : vector<2x16xf32>
    %619 = vector.extract_strided_slice %475 {offsets = [10, 0], sizes = [2, 64], strides = [1, 1]} : vector<16x64xf32> to vector<2x64xf32>
    %cst_112 = arith.constant dense<0.000000e+00> : vector<2x64xf32>
    %620 = tpu.matmul %618, %476, %cst_112 {dimension_numbers = #tpu.dot_dimension_numbers<[1], [0], [0], [1], [0, 0, 1, 1], [], []>} : vector<2x16xf32>, vector<16x64xf32>, vector<2x64xf32> -> vector<2x64xf32>
    %621 = arith.addf %619, %620 : vector<2x64xf32>
    %622 = vector.extract_strided_slice %621 {offsets = [0, 0], sizes = [2, 16], strides = [1, 1]} : vector<2x64xf32> to vector<2x16xf32>
    %623 = arith.negf %622 : vector<2x16xf32>
    %624 = math.exp %623 : vector<2x16xf32>
    %cst_113 = arith.constant 1.000000e+00 : f32
    %625 = vector.broadcast %cst_113 : f32 to vector<2x16xf32>
    %626 = arith.addf %625, %624 : vector<2x16xf32>
    %627 = arith.divf %625, %626 : vector<2x16xf32>
    %628 = vector.extract_strided_slice %621 {offsets = [0, 16], sizes = [2, 16], strides = [1, 1]} : vector<2x64xf32> to vector<2x16xf32>
    %629 = arith.negf %628 : vector<2x16xf32>
    %630 = math.exp %629 : vector<2x16xf32>
    %cst_114 = arith.constant 1.000000e+00 : f32
    %631 = vector.broadcast %cst_114 : f32 to vector<2x16xf32>
    %632 = arith.addf %631, %630 : vector<2x16xf32>
    %633 = arith.divf %631, %632 : vector<2x16xf32>
    %634 = vector.extract_strided_slice %621 {offsets = [0, 32], sizes = [2, 16], strides = [1, 1]} : vector<2x64xf32> to vector<2x16xf32>
    %635 = math.tanh %634 : vector<2x16xf32>
    %636 = vector.extract_strided_slice %621 {offsets = [0, 48], sizes = [2, 16], strides = [1, 1]} : vector<2x64xf32> to vector<2x16xf32>
    %637 = arith.negf %636 : vector<2x16xf32>
    %638 = math.exp %637 : vector<2x16xf32>
    %cst_115 = arith.constant 1.000000e+00 : f32
    %639 = vector.broadcast %cst_115 : f32 to vector<2x16xf32>
    %640 = arith.addf %639, %638 : vector<2x16xf32>
    %641 = arith.divf %639, %640 : vector<2x16xf32>
    %642 = arith.mulf %633, %616 : vector<2x16xf32>
    %643 = arith.mulf %627, %635 : vector<2x16xf32>
    %644 = arith.addf %642, %643 : vector<2x16xf32>
    %645 = math.tanh %644 : vector<2x16xf32>
    %646 = arith.mulf %641, %645 : vector<2x16xf32>
    %647 = vector.extract_strided_slice %475 {offsets = [12, 0], sizes = [2, 64], strides = [1, 1]} : vector<16x64xf32> to vector<2x64xf32>
    %cst_116 = arith.constant dense<0.000000e+00> : vector<2x64xf32>
    %648 = tpu.matmul %646, %476, %cst_116 {dimension_numbers = #tpu.dot_dimension_numbers<[1], [0], [0], [1], [0, 0, 1, 1], [], []>} : vector<2x16xf32>, vector<16x64xf32>, vector<2x64xf32> -> vector<2x64xf32>
    %649 = arith.addf %647, %648 : vector<2x64xf32>
    %650 = vector.extract_strided_slice %649 {offsets = [0, 0], sizes = [2, 16], strides = [1, 1]} : vector<2x64xf32> to vector<2x16xf32>
    %651 = arith.negf %650 : vector<2x16xf32>
    %652 = math.exp %651 : vector<2x16xf32>
    %cst_117 = arith.constant 1.000000e+00 : f32
    %653 = vector.broadcast %cst_117 : f32 to vector<2x16xf32>
    %654 = arith.addf %653, %652 : vector<2x16xf32>
    %655 = arith.divf %653, %654 : vector<2x16xf32>
    %656 = vector.extract_strided_slice %649 {offsets = [0, 16], sizes = [2, 16], strides = [1, 1]} : vector<2x64xf32> to vector<2x16xf32>
    %657 = arith.negf %656 : vector<2x16xf32>
    %658 = math.exp %657 : vector<2x16xf32>
    %cst_118 = arith.constant 1.000000e+00 : f32
    %659 = vector.broadcast %cst_118 : f32 to vector<2x16xf32>
    %660 = arith.addf %659, %658 : vector<2x16xf32>
    %661 = arith.divf %659, %660 : vector<2x16xf32>
    %662 = vector.extract_strided_slice %649 {offsets = [0, 32], sizes = [2, 16], strides = [1, 1]} : vector<2x64xf32> to vector<2x16xf32>
    %663 = math.tanh %662 : vector<2x16xf32>
    %664 = vector.extract_strided_slice %649 {offsets = [0, 48], sizes = [2, 16], strides = [1, 1]} : vector<2x64xf32> to vector<2x16xf32>
    %665 = arith.negf %664 : vector<2x16xf32>
    %666 = math.exp %665 : vector<2x16xf32>
    %cst_119 = arith.constant 1.000000e+00 : f32
    %667 = vector.broadcast %cst_119 : f32 to vector<2x16xf32>
    %668 = arith.addf %667, %666 : vector<2x16xf32>
    %669 = arith.divf %667, %668 : vector<2x16xf32>
    %670 = arith.mulf %661, %644 : vector<2x16xf32>
    %671 = arith.mulf %655, %663 : vector<2x16xf32>
    %672 = arith.addf %670, %671 : vector<2x16xf32>
    %673 = math.tanh %672 : vector<2x16xf32>
    %674 = arith.mulf %669, %673 : vector<2x16xf32>
    %675 = vector.extract_strided_slice %475 {offsets = [14, 0], sizes = [2, 64], strides = [1, 1]} : vector<16x64xf32> to vector<2x64xf32>
    %cst_120 = arith.constant dense<0.000000e+00> : vector<2x64xf32>
    %676 = tpu.matmul %674, %476, %cst_120 {dimension_numbers = #tpu.dot_dimension_numbers<[1], [0], [0], [1], [0, 0, 1, 1], [], []>} : vector<2x16xf32>, vector<16x64xf32>, vector<2x64xf32> -> vector<2x64xf32>
    %677 = arith.addf %675, %676 : vector<2x64xf32>
    %678 = vector.extract_strided_slice %677 {offsets = [0, 0], sizes = [2, 16], strides = [1, 1]} : vector<2x64xf32> to vector<2x16xf32>
    %679 = arith.negf %678 : vector<2x16xf32>
    %680 = math.exp %679 : vector<2x16xf32>
    %cst_121 = arith.constant 1.000000e+00 : f32
    %681 = vector.broadcast %cst_121 : f32 to vector<2x16xf32>
    %682 = arith.addf %681, %680 : vector<2x16xf32>
    %683 = arith.divf %681, %682 : vector<2x16xf32>
    %684 = vector.extract_strided_slice %677 {offsets = [0, 16], sizes = [2, 16], strides = [1, 1]} : vector<2x64xf32> to vector<2x16xf32>
    %685 = arith.negf %684 : vector<2x16xf32>
    %686 = math.exp %685 : vector<2x16xf32>
    %cst_122 = arith.constant 1.000000e+00 : f32
    %687 = vector.broadcast %cst_122 : f32 to vector<2x16xf32>
    %688 = arith.addf %687, %686 : vector<2x16xf32>
    %689 = arith.divf %687, %688 : vector<2x16xf32>
    %690 = vector.extract_strided_slice %677 {offsets = [0, 32], sizes = [2, 16], strides = [1, 1]} : vector<2x64xf32> to vector<2x16xf32>
    %691 = math.tanh %690 : vector<2x16xf32>
    %692 = vector.extract_strided_slice %677 {offsets = [0, 48], sizes = [2, 16], strides = [1, 1]} : vector<2x64xf32> to vector<2x16xf32>
    %693 = arith.negf %692 : vector<2x16xf32>
    %694 = math.exp %693 : vector<2x16xf32>
    %cst_123 = arith.constant 1.000000e+00 : f32
    %695 = vector.broadcast %cst_123 : f32 to vector<2x16xf32>
    %696 = arith.addf %695, %694 : vector<2x16xf32>
    %697 = arith.divf %695, %696 : vector<2x16xf32>
    %698 = arith.mulf %689, %672 : vector<2x16xf32>
    %699 = arith.mulf %683, %691 : vector<2x16xf32>
    %700 = arith.addf %698, %699 : vector<2x16xf32>
    %701 = math.tanh %700 : vector<2x16xf32>
    %702 = arith.mulf %697, %701 : vector<2x16xf32>
    %703 = tpu.concatenate %506, %534, %562, %590, %618, %646, %674, %702 in 0 : vector<2x16xf32>, vector<2x16xf32>, vector<2x16xf32>, vector<2x16xf32>, vector<2x16xf32>, vector<2x16xf32>, vector<2x16xf32>, vector<2x16xf32> -> vector<16x16xf32>
    %c0_124 = arith.constant 0 : index
    %c0_125 = arith.constant 0 : index
    %704 = vector.load %arg11[%c0_124, %c0_125] : memref<32x64xf32, #tpu.memory_space<vmem>>, vector<32x64xf32>
    %c0_126 = arith.constant 0 : index
    %c0_127 = arith.constant 0 : index
    %705 = vector.load %arg13[%c0_126, %c0_127] : memref<1x64xf32, #tpu.memory_space<vmem>>, vector<1x64xf32>
    %706 = vector.extract_strided_slice %704 {offsets = [0, 0], sizes = [16, 64], strides = [1, 1]} : vector<32x64xf32> to vector<16x64xf32>
    %cst_128 = arith.constant dense<0.000000e+00> : vector<16x64xf32>
    %707 = tpu.matmul %233, %706, %cst_128 {dimension_numbers = #tpu.dot_dimension_numbers<[1], [0], [0], [1], [0, 0, 1, 1], [], []>} : vector<16x16xf32>, vector<16x64xf32>, vector<16x64xf32> -> vector<16x64xf32>
    %708 = vector.extract_strided_slice %704 {offsets = [16, 0], sizes = [16, 64], strides = [1, 1]} : vector<32x64xf32> to vector<16x64xf32>
    %cst_129 = arith.constant dense<0.000000e+00> : vector<16x64xf32>
    %709 = tpu.matmul %466, %708, %cst_129 {dimension_numbers = #tpu.dot_dimension_numbers<[1], [0], [0], [1], [0, 0, 1, 1], [], []>} : vector<16x16xf32>, vector<16x64xf32>, vector<16x64xf32> -> vector<16x64xf32>
    %710 = arith.addf %707, %709 : vector<16x64xf32>
    %711 = vector.broadcast %705 : vector<1x64xf32> to vector<16x64xf32>
    %712 = arith.addf %710, %711 : vector<16x64xf32>
    %c0_130 = arith.constant 0 : index
    %c0_131 = arith.constant 0 : index
    %713 = vector.load %arg12[%c0_130, %c0_131] : memref<16x64xf32, #tpu.memory_space<vmem>>, vector<16x64xf32>
    %cst_132 = arith.constant 0.000000e+00 : f32
    %714 = vector.broadcast %cst_132 : f32 to vector<2x16xf32>
    %cst_133 = arith.constant 0.000000e+00 : f32
    %715 = vector.broadcast %cst_133 : f32 to vector<2x16xf32>
    %716 = vector.extract_strided_slice %712 {offsets = [14, 0], sizes = [2, 64], strides = [1, 1]} : vector<16x64xf32> to vector<2x64xf32>
    %cst_134 = arith.constant dense<0.000000e+00> : vector<2x64xf32>
    %717 = tpu.matmul %714, %713, %cst_134 {dimension_numbers = #tpu.dot_dimension_numbers<[1], [0], [0], [1], [0, 0, 1, 1], [], []>} : vector<2x16xf32>, vector<16x64xf32>, vector<2x64xf32> -> vector<2x64xf32>
    %718 = arith.addf %716, %717 : vector<2x64xf32>
    %719 = vector.extract_strided_slice %718 {offsets = [0, 0], sizes = [2, 16], strides = [1, 1]} : vector<2x64xf32> to vector<2x16xf32>
    %720 = arith.negf %719 : vector<2x16xf32>
    %721 = math.exp %720 : vector<2x16xf32>
    %cst_135 = arith.constant 1.000000e+00 : f32
    %722 = vector.broadcast %cst_135 : f32 to vector<2x16xf32>
    %723 = arith.addf %722, %721 : vector<2x16xf32>
    %724 = arith.divf %722, %723 : vector<2x16xf32>
    %725 = vector.extract_strided_slice %718 {offsets = [0, 16], sizes = [2, 16], strides = [1, 1]} : vector<2x64xf32> to vector<2x16xf32>
    %726 = arith.negf %725 : vector<2x16xf32>
    %727 = math.exp %726 : vector<2x16xf32>
    %cst_136 = arith.constant 1.000000e+00 : f32
    %728 = vector.broadcast %cst_136 : f32 to vector<2x16xf32>
    %729 = arith.addf %728, %727 : vector<2x16xf32>
    %730 = arith.divf %728, %729 : vector<2x16xf32>
    %731 = vector.extract_strided_slice %718 {offsets = [0, 32], sizes = [2, 16], strides = [1, 1]} : vector<2x64xf32> to vector<2x16xf32>
    %732 = math.tanh %731 : vector<2x16xf32>
    %733 = vector.extract_strided_slice %718 {offsets = [0, 48], sizes = [2, 16], strides = [1, 1]} : vector<2x64xf32> to vector<2x16xf32>
    %734 = arith.negf %733 : vector<2x16xf32>
    %735 = math.exp %734 : vector<2x16xf32>
    %cst_137 = arith.constant 1.000000e+00 : f32
    %736 = vector.broadcast %cst_137 : f32 to vector<2x16xf32>
    %737 = arith.addf %736, %735 : vector<2x16xf32>
    %738 = arith.divf %736, %737 : vector<2x16xf32>
    %739 = arith.mulf %730, %715 : vector<2x16xf32>
    %740 = arith.mulf %724, %732 : vector<2x16xf32>
    %741 = arith.addf %739, %740 : vector<2x16xf32>
    %742 = math.tanh %741 : vector<2x16xf32>
    %743 = arith.mulf %738, %742 : vector<2x16xf32>
    %744 = vector.extract_strided_slice %712 {offsets = [12, 0], sizes = [2, 64], strides = [1, 1]} : vector<16x64xf32> to vector<2x64xf32>
    %cst_138 = arith.constant dense<0.000000e+00> : vector<2x64xf32>
    %745 = tpu.matmul %743, %713, %cst_138 {dimension_numbers = #tpu.dot_dimension_numbers<[1], [0], [0], [1], [0, 0, 1, 1], [], []>} : vector<2x16xf32>, vector<16x64xf32>, vector<2x64xf32> -> vector<2x64xf32>
    %746 = arith.addf %744, %745 : vector<2x64xf32>
    %747 = vector.extract_strided_slice %746 {offsets = [0, 0], sizes = [2, 16], strides = [1, 1]} : vector<2x64xf32> to vector<2x16xf32>
    %748 = arith.negf %747 : vector<2x16xf32>
    %749 = math.exp %748 : vector<2x16xf32>
    %cst_139 = arith.constant 1.000000e+00 : f32
    %750 = vector.broadcast %cst_139 : f32 to vector<2x16xf32>
    %751 = arith.addf %750, %749 : vector<2x16xf32>
    %752 = arith.divf %750, %751 : vector<2x16xf32>
    %753 = vector.extract_strided_slice %746 {offsets = [0, 16], sizes = [2, 16], strides = [1, 1]} : vector<2x64xf32> to vector<2x16xf32>
    %754 = arith.negf %753 : vector<2x16xf32>
    %755 = math.exp %754 : vector<2x16xf32>
    %cst_140 = arith.constant 1.000000e+00 : f32
    %756 = vector.broadcast %cst_140 : f32 to vector<2x16xf32>
    %757 = arith.addf %756, %755 : vector<2x16xf32>
    %758 = arith.divf %756, %757 : vector<2x16xf32>
    %759 = vector.extract_strided_slice %746 {offsets = [0, 32], sizes = [2, 16], strides = [1, 1]} : vector<2x64xf32> to vector<2x16xf32>
    %760 = math.tanh %759 : vector<2x16xf32>
    %761 = vector.extract_strided_slice %746 {offsets = [0, 48], sizes = [2, 16], strides = [1, 1]} : vector<2x64xf32> to vector<2x16xf32>
    %762 = arith.negf %761 : vector<2x16xf32>
    %763 = math.exp %762 : vector<2x16xf32>
    %cst_141 = arith.constant 1.000000e+00 : f32
    %764 = vector.broadcast %cst_141 : f32 to vector<2x16xf32>
    %765 = arith.addf %764, %763 : vector<2x16xf32>
    %766 = arith.divf %764, %765 : vector<2x16xf32>
    %767 = arith.mulf %758, %741 : vector<2x16xf32>
    %768 = arith.mulf %752, %760 : vector<2x16xf32>
    %769 = arith.addf %767, %768 : vector<2x16xf32>
    %770 = math.tanh %769 : vector<2x16xf32>
    %771 = arith.mulf %766, %770 : vector<2x16xf32>
    %772 = vector.extract_strided_slice %712 {offsets = [10, 0], sizes = [2, 64], strides = [1, 1]} : vector<16x64xf32> to vector<2x64xf32>
    %cst_142 = arith.constant dense<0.000000e+00> : vector<2x64xf32>
    %773 = tpu.matmul %771, %713, %cst_142 {dimension_numbers = #tpu.dot_dimension_numbers<[1], [0], [0], [1], [0, 0, 1, 1], [], []>} : vector<2x16xf32>, vector<16x64xf32>, vector<2x64xf32> -> vector<2x64xf32>
    %774 = arith.addf %772, %773 : vector<2x64xf32>
    %775 = vector.extract_strided_slice %774 {offsets = [0, 0], sizes = [2, 16], strides = [1, 1]} : vector<2x64xf32> to vector<2x16xf32>
    %776 = arith.negf %775 : vector<2x16xf32>
    %777 = math.exp %776 : vector<2x16xf32>
    %cst_143 = arith.constant 1.000000e+00 : f32
    %778 = vector.broadcast %cst_143 : f32 to vector<2x16xf32>
    %779 = arith.addf %778, %777 : vector<2x16xf32>
    %780 = arith.divf %778, %779 : vector<2x16xf32>
    %781 = vector.extract_strided_slice %774 {offsets = [0, 16], sizes = [2, 16], strides = [1, 1]} : vector<2x64xf32> to vector<2x16xf32>
    %782 = arith.negf %781 : vector<2x16xf32>
    %783 = math.exp %782 : vector<2x16xf32>
    %cst_144 = arith.constant 1.000000e+00 : f32
    %784 = vector.broadcast %cst_144 : f32 to vector<2x16xf32>
    %785 = arith.addf %784, %783 : vector<2x16xf32>
    %786 = arith.divf %784, %785 : vector<2x16xf32>
    %787 = vector.extract_strided_slice %774 {offsets = [0, 32], sizes = [2, 16], strides = [1, 1]} : vector<2x64xf32> to vector<2x16xf32>
    %788 = math.tanh %787 : vector<2x16xf32>
    %789 = vector.extract_strided_slice %774 {offsets = [0, 48], sizes = [2, 16], strides = [1, 1]} : vector<2x64xf32> to vector<2x16xf32>
    %790 = arith.negf %789 : vector<2x16xf32>
    %791 = math.exp %790 : vector<2x16xf32>
    %cst_145 = arith.constant 1.000000e+00 : f32
    %792 = vector.broadcast %cst_145 : f32 to vector<2x16xf32>
    %793 = arith.addf %792, %791 : vector<2x16xf32>
    %794 = arith.divf %792, %793 : vector<2x16xf32>
    %795 = arith.mulf %786, %769 : vector<2x16xf32>
    %796 = arith.mulf %780, %788 : vector<2x16xf32>
    %797 = arith.addf %795, %796 : vector<2x16xf32>
    %798 = math.tanh %797 : vector<2x16xf32>
    %799 = arith.mulf %794, %798 : vector<2x16xf32>
    %800 = vector.extract_strided_slice %712 {offsets = [8, 0], sizes = [2, 64], strides = [1, 1]} : vector<16x64xf32> to vector<2x64xf32>
    %cst_146 = arith.constant dense<0.000000e+00> : vector<2x64xf32>
    %801 = tpu.matmul %799, %713, %cst_146 {dimension_numbers = #tpu.dot_dimension_numbers<[1], [0], [0], [1], [0, 0, 1, 1], [], []>} : vector<2x16xf32>, vector<16x64xf32>, vector<2x64xf32> -> vector<2x64xf32>
    %802 = arith.addf %800, %801 : vector<2x64xf32>
    %803 = vector.extract_strided_slice %802 {offsets = [0, 0], sizes = [2, 16], strides = [1, 1]} : vector<2x64xf32> to vector<2x16xf32>
    %804 = arith.negf %803 : vector<2x16xf32>
    %805 = math.exp %804 : vector<2x16xf32>
    %cst_147 = arith.constant 1.000000e+00 : f32
    %806 = vector.broadcast %cst_147 : f32 to vector<2x16xf32>
    %807 = arith.addf %806, %805 : vector<2x16xf32>
    %808 = arith.divf %806, %807 : vector<2x16xf32>
    %809 = vector.extract_strided_slice %802 {offsets = [0, 16], sizes = [2, 16], strides = [1, 1]} : vector<2x64xf32> to vector<2x16xf32>
    %810 = arith.negf %809 : vector<2x16xf32>
    %811 = math.exp %810 : vector<2x16xf32>
    %cst_148 = arith.constant 1.000000e+00 : f32
    %812 = vector.broadcast %cst_148 : f32 to vector<2x16xf32>
    %813 = arith.addf %812, %811 : vector<2x16xf32>
    %814 = arith.divf %812, %813 : vector<2x16xf32>
    %815 = vector.extract_strided_slice %802 {offsets = [0, 32], sizes = [2, 16], strides = [1, 1]} : vector<2x64xf32> to vector<2x16xf32>
    %816 = math.tanh %815 : vector<2x16xf32>
    %817 = vector.extract_strided_slice %802 {offsets = [0, 48], sizes = [2, 16], strides = [1, 1]} : vector<2x64xf32> to vector<2x16xf32>
    %818 = arith.negf %817 : vector<2x16xf32>
    %819 = math.exp %818 : vector<2x16xf32>
    %cst_149 = arith.constant 1.000000e+00 : f32
    %820 = vector.broadcast %cst_149 : f32 to vector<2x16xf32>
    %821 = arith.addf %820, %819 : vector<2x16xf32>
    %822 = arith.divf %820, %821 : vector<2x16xf32>
    %823 = arith.mulf %814, %797 : vector<2x16xf32>
    %824 = arith.mulf %808, %816 : vector<2x16xf32>
    %825 = arith.addf %823, %824 : vector<2x16xf32>
    %826 = math.tanh %825 : vector<2x16xf32>
    %827 = arith.mulf %822, %826 : vector<2x16xf32>
    %828 = vector.extract_strided_slice %712 {offsets = [6, 0], sizes = [2, 64], strides = [1, 1]} : vector<16x64xf32> to vector<2x64xf32>
    %cst_150 = arith.constant dense<0.000000e+00> : vector<2x64xf32>
    %829 = tpu.matmul %827, %713, %cst_150 {dimension_numbers = #tpu.dot_dimension_numbers<[1], [0], [0], [1], [0, 0, 1, 1], [], []>} : vector<2x16xf32>, vector<16x64xf32>, vector<2x64xf32> -> vector<2x64xf32>
    %830 = arith.addf %828, %829 : vector<2x64xf32>
    %831 = vector.extract_strided_slice %830 {offsets = [0, 0], sizes = [2, 16], strides = [1, 1]} : vector<2x64xf32> to vector<2x16xf32>
    %832 = arith.negf %831 : vector<2x16xf32>
    %833 = math.exp %832 : vector<2x16xf32>
    %cst_151 = arith.constant 1.000000e+00 : f32
    %834 = vector.broadcast %cst_151 : f32 to vector<2x16xf32>
    %835 = arith.addf %834, %833 : vector<2x16xf32>
    %836 = arith.divf %834, %835 : vector<2x16xf32>
    %837 = vector.extract_strided_slice %830 {offsets = [0, 16], sizes = [2, 16], strides = [1, 1]} : vector<2x64xf32> to vector<2x16xf32>
    %838 = arith.negf %837 : vector<2x16xf32>
    %839 = math.exp %838 : vector<2x16xf32>
    %cst_152 = arith.constant 1.000000e+00 : f32
    %840 = vector.broadcast %cst_152 : f32 to vector<2x16xf32>
    %841 = arith.addf %840, %839 : vector<2x16xf32>
    %842 = arith.divf %840, %841 : vector<2x16xf32>
    %843 = vector.extract_strided_slice %830 {offsets = [0, 32], sizes = [2, 16], strides = [1, 1]} : vector<2x64xf32> to vector<2x16xf32>
    %844 = math.tanh %843 : vector<2x16xf32>
    %845 = vector.extract_strided_slice %830 {offsets = [0, 48], sizes = [2, 16], strides = [1, 1]} : vector<2x64xf32> to vector<2x16xf32>
    %846 = arith.negf %845 : vector<2x16xf32>
    %847 = math.exp %846 : vector<2x16xf32>
    %cst_153 = arith.constant 1.000000e+00 : f32
    %848 = vector.broadcast %cst_153 : f32 to vector<2x16xf32>
    %849 = arith.addf %848, %847 : vector<2x16xf32>
    %850 = arith.divf %848, %849 : vector<2x16xf32>
    %851 = arith.mulf %842, %825 : vector<2x16xf32>
    %852 = arith.mulf %836, %844 : vector<2x16xf32>
    %853 = arith.addf %851, %852 : vector<2x16xf32>
    %854 = math.tanh %853 : vector<2x16xf32>
    %855 = arith.mulf %850, %854 : vector<2x16xf32>
    %856 = vector.extract_strided_slice %712 {offsets = [4, 0], sizes = [2, 64], strides = [1, 1]} : vector<16x64xf32> to vector<2x64xf32>
    %cst_154 = arith.constant dense<0.000000e+00> : vector<2x64xf32>
    %857 = tpu.matmul %855, %713, %cst_154 {dimension_numbers = #tpu.dot_dimension_numbers<[1], [0], [0], [1], [0, 0, 1, 1], [], []>} : vector<2x16xf32>, vector<16x64xf32>, vector<2x64xf32> -> vector<2x64xf32>
    %858 = arith.addf %856, %857 : vector<2x64xf32>
    %859 = vector.extract_strided_slice %858 {offsets = [0, 0], sizes = [2, 16], strides = [1, 1]} : vector<2x64xf32> to vector<2x16xf32>
    %860 = arith.negf %859 : vector<2x16xf32>
    %861 = math.exp %860 : vector<2x16xf32>
    %cst_155 = arith.constant 1.000000e+00 : f32
    %862 = vector.broadcast %cst_155 : f32 to vector<2x16xf32>
    %863 = arith.addf %862, %861 : vector<2x16xf32>
    %864 = arith.divf %862, %863 : vector<2x16xf32>
    %865 = vector.extract_strided_slice %858 {offsets = [0, 16], sizes = [2, 16], strides = [1, 1]} : vector<2x64xf32> to vector<2x16xf32>
    %866 = arith.negf %865 : vector<2x16xf32>
    %867 = math.exp %866 : vector<2x16xf32>
    %cst_156 = arith.constant 1.000000e+00 : f32
    %868 = vector.broadcast %cst_156 : f32 to vector<2x16xf32>
    %869 = arith.addf %868, %867 : vector<2x16xf32>
    %870 = arith.divf %868, %869 : vector<2x16xf32>
    %871 = vector.extract_strided_slice %858 {offsets = [0, 32], sizes = [2, 16], strides = [1, 1]} : vector<2x64xf32> to vector<2x16xf32>
    %872 = math.tanh %871 : vector<2x16xf32>
    %873 = vector.extract_strided_slice %858 {offsets = [0, 48], sizes = [2, 16], strides = [1, 1]} : vector<2x64xf32> to vector<2x16xf32>
    %874 = arith.negf %873 : vector<2x16xf32>
    %875 = math.exp %874 : vector<2x16xf32>
    %cst_157 = arith.constant 1.000000e+00 : f32
    %876 = vector.broadcast %cst_157 : f32 to vector<2x16xf32>
    %877 = arith.addf %876, %875 : vector<2x16xf32>
    %878 = arith.divf %876, %877 : vector<2x16xf32>
    %879 = arith.mulf %870, %853 : vector<2x16xf32>
    %880 = arith.mulf %864, %872 : vector<2x16xf32>
    %881 = arith.addf %879, %880 : vector<2x16xf32>
    %882 = math.tanh %881 : vector<2x16xf32>
    %883 = arith.mulf %878, %882 : vector<2x16xf32>
    %884 = vector.extract_strided_slice %712 {offsets = [2, 0], sizes = [2, 64], strides = [1, 1]} : vector<16x64xf32> to vector<2x64xf32>
    %cst_158 = arith.constant dense<0.000000e+00> : vector<2x64xf32>
    %885 = tpu.matmul %883, %713, %cst_158 {dimension_numbers = #tpu.dot_dimension_numbers<[1], [0], [0], [1], [0, 0, 1, 1], [], []>} : vector<2x16xf32>, vector<16x64xf32>, vector<2x64xf32> -> vector<2x64xf32>
    %886 = arith.addf %884, %885 : vector<2x64xf32>
    %887 = vector.extract_strided_slice %886 {offsets = [0, 0], sizes = [2, 16], strides = [1, 1]} : vector<2x64xf32> to vector<2x16xf32>
    %888 = arith.negf %887 : vector<2x16xf32>
    %889 = math.exp %888 : vector<2x16xf32>
    %cst_159 = arith.constant 1.000000e+00 : f32
    %890 = vector.broadcast %cst_159 : f32 to vector<2x16xf32>
    %891 = arith.addf %890, %889 : vector<2x16xf32>
    %892 = arith.divf %890, %891 : vector<2x16xf32>
    %893 = vector.extract_strided_slice %886 {offsets = [0, 16], sizes = [2, 16], strides = [1, 1]} : vector<2x64xf32> to vector<2x16xf32>
    %894 = arith.negf %893 : vector<2x16xf32>
    %895 = math.exp %894 : vector<2x16xf32>
    %cst_160 = arith.constant 1.000000e+00 : f32
    %896 = vector.broadcast %cst_160 : f32 to vector<2x16xf32>
    %897 = arith.addf %896, %895 : vector<2x16xf32>
    %898 = arith.divf %896, %897 : vector<2x16xf32>
    %899 = vector.extract_strided_slice %886 {offsets = [0, 32], sizes = [2, 16], strides = [1, 1]} : vector<2x64xf32> to vector<2x16xf32>
    %900 = math.tanh %899 : vector<2x16xf32>
    %901 = vector.extract_strided_slice %886 {offsets = [0, 48], sizes = [2, 16], strides = [1, 1]} : vector<2x64xf32> to vector<2x16xf32>
    %902 = arith.negf %901 : vector<2x16xf32>
    %903 = math.exp %902 : vector<2x16xf32>
    %cst_161 = arith.constant 1.000000e+00 : f32
    %904 = vector.broadcast %cst_161 : f32 to vector<2x16xf32>
    %905 = arith.addf %904, %903 : vector<2x16xf32>
    %906 = arith.divf %904, %905 : vector<2x16xf32>
    %907 = arith.mulf %898, %881 : vector<2x16xf32>
    %908 = arith.mulf %892, %900 : vector<2x16xf32>
    %909 = arith.addf %907, %908 : vector<2x16xf32>
    %910 = math.tanh %909 : vector<2x16xf32>
    %911 = arith.mulf %906, %910 : vector<2x16xf32>
    %912 = vector.extract_strided_slice %712 {offsets = [0, 0], sizes = [2, 64], strides = [1, 1]} : vector<16x64xf32> to vector<2x64xf32>
    %cst_162 = arith.constant dense<0.000000e+00> : vector<2x64xf32>
    %913 = tpu.matmul %911, %713, %cst_162 {dimension_numbers = #tpu.dot_dimension_numbers<[1], [0], [0], [1], [0, 0, 1, 1], [], []>} : vector<2x16xf32>, vector<16x64xf32>, vector<2x64xf32> -> vector<2x64xf32>
    %914 = arith.addf %912, %913 : vector<2x64xf32>
    %915 = vector.extract_strided_slice %914 {offsets = [0, 0], sizes = [2, 16], strides = [1, 1]} : vector<2x64xf32> to vector<2x16xf32>
    %916 = arith.negf %915 : vector<2x16xf32>
    %917 = math.exp %916 : vector<2x16xf32>
    %cst_163 = arith.constant 1.000000e+00 : f32
    %918 = vector.broadcast %cst_163 : f32 to vector<2x16xf32>
    %919 = arith.addf %918, %917 : vector<2x16xf32>
    %920 = arith.divf %918, %919 : vector<2x16xf32>
    %921 = vector.extract_strided_slice %914 {offsets = [0, 16], sizes = [2, 16], strides = [1, 1]} : vector<2x64xf32> to vector<2x16xf32>
    %922 = arith.negf %921 : vector<2x16xf32>
    %923 = math.exp %922 : vector<2x16xf32>
    %cst_164 = arith.constant 1.000000e+00 : f32
    %924 = vector.broadcast %cst_164 : f32 to vector<2x16xf32>
    %925 = arith.addf %924, %923 : vector<2x16xf32>
    %926 = arith.divf %924, %925 : vector<2x16xf32>
    %927 = vector.extract_strided_slice %914 {offsets = [0, 32], sizes = [2, 16], strides = [1, 1]} : vector<2x64xf32> to vector<2x16xf32>
    %928 = math.tanh %927 : vector<2x16xf32>
    %929 = vector.extract_strided_slice %914 {offsets = [0, 48], sizes = [2, 16], strides = [1, 1]} : vector<2x64xf32> to vector<2x16xf32>
    %930 = arith.negf %929 : vector<2x16xf32>
    %931 = math.exp %930 : vector<2x16xf32>
    %cst_165 = arith.constant 1.000000e+00 : f32
    %932 = vector.broadcast %cst_165 : f32 to vector<2x16xf32>
    %933 = arith.addf %932, %931 : vector<2x16xf32>
    %934 = arith.divf %932, %933 : vector<2x16xf32>
    %935 = arith.mulf %926, %909 : vector<2x16xf32>
    %936 = arith.mulf %920, %928 : vector<2x16xf32>
    %937 = arith.addf %935, %936 : vector<2x16xf32>
    %938 = math.tanh %937 : vector<2x16xf32>
    %939 = arith.mulf %934, %938 : vector<2x16xf32>
    %940 = tpu.concatenate %939, %911, %883, %855, %827, %799, %771, %743 in 0 : vector<2x16xf32>, vector<2x16xf32>, vector<2x16xf32>, vector<2x16xf32>, vector<2x16xf32>, vector<2x16xf32>, vector<2x16xf32>, vector<2x16xf32> -> vector<16x16xf32>
    %c0_166 = arith.constant 0 : index
    %c0_167 = arith.constant 0 : index
    %941 = vector.load %arg14[%c0_166, %c0_167] : memref<32x96xf32, #tpu.memory_space<vmem>>, vector<32x96xf32>
    %c0_168 = arith.constant 0 : index
    %c0_169 = arith.constant 0 : index
    %942 = vector.load %arg15[%c0_168, %c0_169] : memref<1x96xf32, #tpu.memory_space<vmem>>, vector<1x96xf32>
    %c0_170 = arith.constant 0 : index
    %c0_171 = arith.constant 0 : index
    %c0_172 = arith.constant 0 : index
    %943 = vector.load %arg16[%c0_170, %c0_171, %c0_172] : memref<4x8x32xf32, #tpu.memory_space<vmem>>, vector<4x8x32xf32>
    %c0_173 = arith.constant 0 : index
    %c0_174 = arith.constant 0 : index
    %944 = vector.load %arg17[%c0_173, %c0_174] : memref<1x32xf32, #tpu.memory_space<vmem>>, vector<1x32xf32>
    %c0_175 = arith.constant 0 : index
    %c0_176 = arith.constant 0 : index
    %945 = vector.load %arg18[%c0_175, %c0_176] : memref<16x16xf32, #tpu.memory_space<vmem>>, vector<16x16xf32>
    %946 = vector.extract_strided_slice %941 {offsets = [0, 0], sizes = [16, 96], strides = [1, 1]} : vector<32x96xf32> to vector<16x96xf32>
    %cst_177 = arith.constant dense<0.000000e+00> : vector<16x96xf32>
    %947 = tpu.matmul %703, %946, %cst_177 {dimension_numbers = #tpu.dot_dimension_numbers<[1], [0], [0], [1], [0, 0, 1, 1], [], []>} : vector<16x16xf32>, vector<16x96xf32>, vector<16x96xf32> -> vector<16x96xf32>
    %948 = vector.extract_strided_slice %941 {offsets = [16, 0], sizes = [16, 96], strides = [1, 1]} : vector<32x96xf32> to vector<16x96xf32>
    %cst_178 = arith.constant dense<0.000000e+00> : vector<16x96xf32>
    %949 = tpu.matmul %940, %948, %cst_178 {dimension_numbers = #tpu.dot_dimension_numbers<[1], [0], [0], [1], [0, 0, 1, 1], [], []>} : vector<16x16xf32>, vector<16x96xf32>, vector<16x96xf32> -> vector<16x96xf32>
    %950 = arith.addf %947, %949 : vector<16x96xf32>
    %951 = vector.broadcast %942 : vector<1x96xf32> to vector<16x96xf32>
    %952 = arith.addf %950, %951 : vector<16x96xf32>
    %953 = vector.extract_strided_slice %952 {offsets = [0, 0], sizes = [16, 8], strides = [1, 1]} : vector<16x96xf32> to vector<16x8xf32>
    %954 = vector.extract_strided_slice %952 {offsets = [0, 8], sizes = [16, 8], strides = [1, 1]} : vector<16x96xf32> to vector<16x8xf32>
    %955 = vector.extract_strided_slice %952 {offsets = [0, 16], sizes = [16, 8], strides = [1, 1]} : vector<16x96xf32> to vector<16x8xf32>
    %956 = vector.extract_strided_slice %952 {offsets = [0, 24], sizes = [16, 8], strides = [1, 1]} : vector<16x96xf32> to vector<16x8xf32>
    %957 = vector.shape_cast %953 : vector<16x8xf32> to vector<1x16x8xf32>
    %958 = vector.shape_cast %954 : vector<16x8xf32> to vector<1x16x8xf32>
    %959 = vector.shape_cast %955 : vector<16x8xf32> to vector<1x16x8xf32>
    %960 = vector.shape_cast %956 : vector<16x8xf32> to vector<1x16x8xf32>
    %961 = tpu.concatenate %957, %958, %959, %960 in 0 : vector<1x16x8xf32>, vector<1x16x8xf32>, vector<1x16x8xf32>, vector<1x16x8xf32> -> vector<4x16x8xf32>
    %cst_179 = arith.constant 0.353553385 : f32
    %962 = vector.broadcast %cst_179 : f32 to vector<4x16x8xf32>
    %963 = arith.mulf %961, %962 : vector<4x16x8xf32>
    %964 = vector.extract_strided_slice %952 {offsets = [0, 32], sizes = [16, 8], strides = [1, 1]} : vector<16x96xf32> to vector<16x8xf32>
    %965 = vector.extract_strided_slice %952 {offsets = [0, 40], sizes = [16, 8], strides = [1, 1]} : vector<16x96xf32> to vector<16x8xf32>
    %966 = vector.extract_strided_slice %952 {offsets = [0, 48], sizes = [16, 8], strides = [1, 1]} : vector<16x96xf32> to vector<16x8xf32>
    %967 = vector.extract_strided_slice %952 {offsets = [0, 56], sizes = [16, 8], strides = [1, 1]} : vector<16x96xf32> to vector<16x8xf32>
    %968 = vector.shape_cast %964 : vector<16x8xf32> to vector<1x16x8xf32>
    %969 = vector.shape_cast %965 : vector<16x8xf32> to vector<1x16x8xf32>
    %970 = vector.shape_cast %966 : vector<16x8xf32> to vector<1x16x8xf32>
    %971 = vector.shape_cast %967 : vector<16x8xf32> to vector<1x16x8xf32>
    %972 = tpu.concatenate %968, %969, %970, %971 in 0 : vector<1x16x8xf32>, vector<1x16x8xf32>, vector<1x16x8xf32>, vector<1x16x8xf32> -> vector<4x16x8xf32>
    %973 = vector.extract_strided_slice %952 {offsets = [0, 64], sizes = [16, 8], strides = [1, 1]} : vector<16x96xf32> to vector<16x8xf32>
    %974 = vector.extract_strided_slice %952 {offsets = [0, 72], sizes = [16, 8], strides = [1, 1]} : vector<16x96xf32> to vector<16x8xf32>
    %975 = vector.extract_strided_slice %952 {offsets = [0, 80], sizes = [16, 8], strides = [1, 1]} : vector<16x96xf32> to vector<16x8xf32>
    %976 = vector.extract_strided_slice %952 {offsets = [0, 88], sizes = [16, 8], strides = [1, 1]} : vector<16x96xf32> to vector<16x8xf32>
    %977 = vector.shape_cast %973 : vector<16x8xf32> to vector<1x16x8xf32>
    %978 = vector.shape_cast %974 : vector<16x8xf32> to vector<1x16x8xf32>
    %979 = vector.shape_cast %975 : vector<16x8xf32> to vector<1x16x8xf32>
    %980 = vector.shape_cast %976 : vector<16x8xf32> to vector<1x16x8xf32>
    %981 = tpu.concatenate %977, %978, %979, %980 in 0 : vector<1x16x8xf32>, vector<1x16x8xf32>, vector<1x16x8xf32>, vector<1x16x8xf32> -> vector<4x16x8xf32>
    "tpu.trace_start"() <{level = 10 : i32, message = "hnd,hmd->hnm"}> : () -> ()
    %cst_180 = arith.constant dense<0.000000e+00> : vector<4x16x16xf32>
    %982 = tpu.matmul %963, %972, %cst_180 {dimension_numbers = #tpu.dot_dimension_numbers<[2], [2], [1], [1], [0, 0, 0, 1, 1, 1], [0], [0]>} : vector<4x16x8xf32>, vector<4x16x8xf32>, vector<4x16x16xf32> -> vector<4x16x16xf32>
    "tpu.trace_stop"() : () -> ()
    %983 = vector.shape_cast %945 : vector<16x16xf32> to vector<1x16x16xf32>
    %984 = vector.broadcast %983 : vector<1x16x16xf32> to vector<4x16x16xf32>
    %985 = arith.addf %982, %984 : vector<4x16x16xf32>
    %cst_181 = arith.constant dense<0xFF800000> : vector<4x16xf32>
    %986 = vector.multi_reduction <maximumf>, %985, %cst_181 [2] : vector<4x16x16xf32> to vector<4x16xf32>
    %987 = vector.shape_cast %986 : vector<4x16xf32> to vector<4x16x1xf32>
    %988 = vector.broadcast %987 : vector<4x16x1xf32> to vector<4x16x16xf32>
    %989 = arith.subf %985, %988 : vector<4x16x16xf32>
    %990 = math.exp %989 : vector<4x16x16xf32>
    %cst_182 = arith.constant dense<0.000000e+00> : vector<4x16xf32>
    %991 = vector.multi_reduction <add>, %990, %cst_182 [2] : vector<4x16x16xf32> to vector<4x16xf32>
    %992 = vector.shape_cast %991 : vector<4x16xf32> to vector<4x16x1xf32>
    %993 = vector.broadcast %992 : vector<4x16x1xf32> to vector<4x16x16xf32>
    %994 = arith.divf %990, %993 : vector<4x16x16xf32>
    "tpu.trace_start"() <{level = 10 : i32, message = "hnm,hmd->hnd"}> : () -> ()
    %cst_183 = arith.constant dense<0.000000e+00> : vector<4x16x8xf32>
    %995 = tpu.matmul %994, %981, %cst_183 {dimension_numbers = #tpu.dot_dimension_numbers<[2], [1], [1], [2], [0, 0, 0, 1, 1, 2], [0], [0]>} : vector<4x16x16xf32>, vector<4x16x8xf32>, vector<4x16x8xf32> -> vector<4x16x8xf32>
    "tpu.trace_stop"() : () -> ()
    "tpu.trace_start"() <{level = 10 : i32, message = "hnd,hde->hne"}> : () -> ()
    %cst_184 = arith.constant dense<0.000000e+00> : vector<4x16x32xf32>
    %996 = tpu.matmul %995, %943, %cst_184 {dimension_numbers = #tpu.dot_dimension_numbers<[2], [1], [1], [2], [0, 0, 0, 1, 1, 2], [0], [0]>} : vector<4x16x8xf32>, vector<4x8x32xf32>, vector<4x16x32xf32> -> vector<4x16x32xf32>
    "tpu.trace_stop"() : () -> ()
    %cst_185 = arith.constant dense<0.000000e+00> : vector<16x32xf32>
    %997 = vector.multi_reduction <add>, %996, %cst_185 [0] : vector<4x16x32xf32> to vector<16x32xf32>
    %998 = vector.broadcast %944 : vector<1x32xf32> to vector<16x32xf32>
    %999 = arith.addf %997, %998 : vector<16x32xf32>
    %c0_186 = arith.constant 0 : index
    %c0_187 = arith.constant 0 : index
    %1000 = vector.load %arg19[%c0_186, %c0_187] : memref<32x64xf32, #tpu.memory_space<vmem>>, vector<32x64xf32>
    %cst_188 = arith.constant dense<0.000000e+00> : vector<16x64xf32>
    %1001 = tpu.matmul %999, %1000, %cst_188 {dimension_numbers = #tpu.dot_dimension_numbers<[1], [0], [0], [1], [0, 0, 1, 1], [], []>} : vector<16x32xf32>, vector<32x64xf32>, vector<16x64xf32> -> vector<16x64xf32>
    %c0_189 = arith.constant 0 : index
    %c0_190 = arith.constant 0 : index
    %1002 = vector.load %arg21[%c0_189, %c0_190] : memref<1x64xf32, #tpu.memory_space<vmem>>, vector<1x64xf32>
    %1003 = vector.broadcast %1002 : vector<1x64xf32> to vector<16x64xf32>
    %1004 = arith.addf %1001, %1003 : vector<16x64xf32>
    %c0_191 = arith.constant 0 : index
    %c0_192 = arith.constant 0 : index
    %1005 = vector.load %arg20[%c0_191, %c0_192] : memref<16x64xf32, #tpu.memory_space<vmem>>, vector<16x64xf32>
    %cst_193 = arith.constant 0.000000e+00 : f32
    %1006 = vector.broadcast %cst_193 : f32 to vector<2x16xf32>
    %cst_194 = arith.constant 0.000000e+00 : f32
    %1007 = vector.broadcast %cst_194 : f32 to vector<2x16xf32>
    %1008 = vector.extract_strided_slice %1004 {offsets = [0, 0], sizes = [2, 64], strides = [1, 1]} : vector<16x64xf32> to vector<2x64xf32>
    %cst_195 = arith.constant dense<0.000000e+00> : vector<2x64xf32>
    %1009 = tpu.matmul %1006, %1005, %cst_195 {dimension_numbers = #tpu.dot_dimension_numbers<[1], [0], [0], [1], [0, 0, 1, 1], [], []>} : vector<2x16xf32>, vector<16x64xf32>, vector<2x64xf32> -> vector<2x64xf32>
    %1010 = arith.addf %1008, %1009 : vector<2x64xf32>
    %1011 = vector.extract_strided_slice %1010 {offsets = [0, 0], sizes = [2, 16], strides = [1, 1]} : vector<2x64xf32> to vector<2x16xf32>
    %1012 = arith.negf %1011 : vector<2x16xf32>
    %1013 = math.exp %1012 : vector<2x16xf32>
    %cst_196 = arith.constant 1.000000e+00 : f32
    %1014 = vector.broadcast %cst_196 : f32 to vector<2x16xf32>
    %1015 = arith.addf %1014, %1013 : vector<2x16xf32>
    %1016 = arith.divf %1014, %1015 : vector<2x16xf32>
    %1017 = vector.extract_strided_slice %1010 {offsets = [0, 16], sizes = [2, 16], strides = [1, 1]} : vector<2x64xf32> to vector<2x16xf32>
    %1018 = arith.negf %1017 : vector<2x16xf32>
    %1019 = math.exp %1018 : vector<2x16xf32>
    %cst_197 = arith.constant 1.000000e+00 : f32
    %1020 = vector.broadcast %cst_197 : f32 to vector<2x16xf32>
    %1021 = arith.addf %1020, %1019 : vector<2x16xf32>
    %1022 = arith.divf %1020, %1021 : vector<2x16xf32>
    %1023 = vector.extract_strided_slice %1010 {offsets = [0, 32], sizes = [2, 16], strides = [1, 1]} : vector<2x64xf32> to vector<2x16xf32>
    %1024 = math.tanh %1023 : vector<2x16xf32>
    %1025 = vector.extract_strided_slice %1010 {offsets = [0, 48], sizes = [2, 16], strides = [1, 1]} : vector<2x64xf32> to vector<2x16xf32>
    %1026 = arith.negf %1025 : vector<2x16xf32>
    %1027 = math.exp %1026 : vector<2x16xf32>
    %cst_198 = arith.constant 1.000000e+00 : f32
    %1028 = vector.broadcast %cst_198 : f32 to vector<2x16xf32>
    %1029 = arith.addf %1028, %1027 : vector<2x16xf32>
    %1030 = arith.divf %1028, %1029 : vector<2x16xf32>
    %1031 = arith.mulf %1022, %1007 : vector<2x16xf32>
    %1032 = arith.mulf %1016, %1024 : vector<2x16xf32>
    %1033 = arith.addf %1031, %1032 : vector<2x16xf32>
    %1034 = math.tanh %1033 : vector<2x16xf32>
    %1035 = arith.mulf %1030, %1034 : vector<2x16xf32>
    %1036 = vector.extract_strided_slice %1004 {offsets = [2, 0], sizes = [2, 64], strides = [1, 1]} : vector<16x64xf32> to vector<2x64xf32>
    %cst_199 = arith.constant dense<0.000000e+00> : vector<2x64xf32>
    %1037 = tpu.matmul %1035, %1005, %cst_199 {dimension_numbers = #tpu.dot_dimension_numbers<[1], [0], [0], [1], [0, 0, 1, 1], [], []>} : vector<2x16xf32>, vector<16x64xf32>, vector<2x64xf32> -> vector<2x64xf32>
    %1038 = arith.addf %1036, %1037 : vector<2x64xf32>
    %1039 = vector.extract_strided_slice %1038 {offsets = [0, 0], sizes = [2, 16], strides = [1, 1]} : vector<2x64xf32> to vector<2x16xf32>
    %1040 = arith.negf %1039 : vector<2x16xf32>
    %1041 = math.exp %1040 : vector<2x16xf32>
    %cst_200 = arith.constant 1.000000e+00 : f32
    %1042 = vector.broadcast %cst_200 : f32 to vector<2x16xf32>
    %1043 = arith.addf %1042, %1041 : vector<2x16xf32>
    %1044 = arith.divf %1042, %1043 : vector<2x16xf32>
    %1045 = vector.extract_strided_slice %1038 {offsets = [0, 16], sizes = [2, 16], strides = [1, 1]} : vector<2x64xf32> to vector<2x16xf32>
    %1046 = arith.negf %1045 : vector<2x16xf32>
    %1047 = math.exp %1046 : vector<2x16xf32>
    %cst_201 = arith.constant 1.000000e+00 : f32
    %1048 = vector.broadcast %cst_201 : f32 to vector<2x16xf32>
    %1049 = arith.addf %1048, %1047 : vector<2x16xf32>
    %1050 = arith.divf %1048, %1049 : vector<2x16xf32>
    %1051 = vector.extract_strided_slice %1038 {offsets = [0, 32], sizes = [2, 16], strides = [1, 1]} : vector<2x64xf32> to vector<2x16xf32>
    %1052 = math.tanh %1051 : vector<2x16xf32>
    %1053 = vector.extract_strided_slice %1038 {offsets = [0, 48], sizes = [2, 16], strides = [1, 1]} : vector<2x64xf32> to vector<2x16xf32>
    %1054 = arith.negf %1053 : vector<2x16xf32>
    %1055 = math.exp %1054 : vector<2x16xf32>
    %cst_202 = arith.constant 1.000000e+00 : f32
    %1056 = vector.broadcast %cst_202 : f32 to vector<2x16xf32>
    %1057 = arith.addf %1056, %1055 : vector<2x16xf32>
    %1058 = arith.divf %1056, %1057 : vector<2x16xf32>
    %1059 = arith.mulf %1050, %1033 : vector<2x16xf32>
    %1060 = arith.mulf %1044, %1052 : vector<2x16xf32>
    %1061 = arith.addf %1059, %1060 : vector<2x16xf32>
    %1062 = math.tanh %1061 : vector<2x16xf32>
    %1063 = arith.mulf %1058, %1062 : vector<2x16xf32>
    %1064 = vector.extract_strided_slice %1004 {offsets = [4, 0], sizes = [2, 64], strides = [1, 1]} : vector<16x64xf32> to vector<2x64xf32>
    %cst_203 = arith.constant dense<0.000000e+00> : vector<2x64xf32>
    %1065 = tpu.matmul %1063, %1005, %cst_203 {dimension_numbers = #tpu.dot_dimension_numbers<[1], [0], [0], [1], [0, 0, 1, 1], [], []>} : vector<2x16xf32>, vector<16x64xf32>, vector<2x64xf32> -> vector<2x64xf32>
    %1066 = arith.addf %1064, %1065 : vector<2x64xf32>
    %1067 = vector.extract_strided_slice %1066 {offsets = [0, 0], sizes = [2, 16], strides = [1, 1]} : vector<2x64xf32> to vector<2x16xf32>
    %1068 = arith.negf %1067 : vector<2x16xf32>
    %1069 = math.exp %1068 : vector<2x16xf32>
    %cst_204 = arith.constant 1.000000e+00 : f32
    %1070 = vector.broadcast %cst_204 : f32 to vector<2x16xf32>
    %1071 = arith.addf %1070, %1069 : vector<2x16xf32>
    %1072 = arith.divf %1070, %1071 : vector<2x16xf32>
    %1073 = vector.extract_strided_slice %1066 {offsets = [0, 16], sizes = [2, 16], strides = [1, 1]} : vector<2x64xf32> to vector<2x16xf32>
    %1074 = arith.negf %1073 : vector<2x16xf32>
    %1075 = math.exp %1074 : vector<2x16xf32>
    %cst_205 = arith.constant 1.000000e+00 : f32
    %1076 = vector.broadcast %cst_205 : f32 to vector<2x16xf32>
    %1077 = arith.addf %1076, %1075 : vector<2x16xf32>
    %1078 = arith.divf %1076, %1077 : vector<2x16xf32>
    %1079 = vector.extract_strided_slice %1066 {offsets = [0, 32], sizes = [2, 16], strides = [1, 1]} : vector<2x64xf32> to vector<2x16xf32>
    %1080 = math.tanh %1079 : vector<2x16xf32>
    %1081 = vector.extract_strided_slice %1066 {offsets = [0, 48], sizes = [2, 16], strides = [1, 1]} : vector<2x64xf32> to vector<2x16xf32>
    %1082 = arith.negf %1081 : vector<2x16xf32>
    %1083 = math.exp %1082 : vector<2x16xf32>
    %cst_206 = arith.constant 1.000000e+00 : f32
    %1084 = vector.broadcast %cst_206 : f32 to vector<2x16xf32>
    %1085 = arith.addf %1084, %1083 : vector<2x16xf32>
    %1086 = arith.divf %1084, %1085 : vector<2x16xf32>
    %1087 = arith.mulf %1078, %1061 : vector<2x16xf32>
    %1088 = arith.mulf %1072, %1080 : vector<2x16xf32>
    %1089 = arith.addf %1087, %1088 : vector<2x16xf32>
    %1090 = math.tanh %1089 : vector<2x16xf32>
    %1091 = arith.mulf %1086, %1090 : vector<2x16xf32>
    %1092 = vector.extract_strided_slice %1004 {offsets = [6, 0], sizes = [2, 64], strides = [1, 1]} : vector<16x64xf32> to vector<2x64xf32>
    %cst_207 = arith.constant dense<0.000000e+00> : vector<2x64xf32>
    %1093 = tpu.matmul %1091, %1005, %cst_207 {dimension_numbers = #tpu.dot_dimension_numbers<[1], [0], [0], [1], [0, 0, 1, 1], [], []>} : vector<2x16xf32>, vector<16x64xf32>, vector<2x64xf32> -> vector<2x64xf32>
    %1094 = arith.addf %1092, %1093 : vector<2x64xf32>
    %1095 = vector.extract_strided_slice %1094 {offsets = [0, 0], sizes = [2, 16], strides = [1, 1]} : vector<2x64xf32> to vector<2x16xf32>
    %1096 = arith.negf %1095 : vector<2x16xf32>
    %1097 = math.exp %1096 : vector<2x16xf32>
    %cst_208 = arith.constant 1.000000e+00 : f32
    %1098 = vector.broadcast %cst_208 : f32 to vector<2x16xf32>
    %1099 = arith.addf %1098, %1097 : vector<2x16xf32>
    %1100 = arith.divf %1098, %1099 : vector<2x16xf32>
    %1101 = vector.extract_strided_slice %1094 {offsets = [0, 16], sizes = [2, 16], strides = [1, 1]} : vector<2x64xf32> to vector<2x16xf32>
    %1102 = arith.negf %1101 : vector<2x16xf32>
    %1103 = math.exp %1102 : vector<2x16xf32>
    %cst_209 = arith.constant 1.000000e+00 : f32
    %1104 = vector.broadcast %cst_209 : f32 to vector<2x16xf32>
    %1105 = arith.addf %1104, %1103 : vector<2x16xf32>
    %1106 = arith.divf %1104, %1105 : vector<2x16xf32>
    %1107 = vector.extract_strided_slice %1094 {offsets = [0, 32], sizes = [2, 16], strides = [1, 1]} : vector<2x64xf32> to vector<2x16xf32>
    %1108 = math.tanh %1107 : vector<2x16xf32>
    %1109 = vector.extract_strided_slice %1094 {offsets = [0, 48], sizes = [2, 16], strides = [1, 1]} : vector<2x64xf32> to vector<2x16xf32>
    %1110 = arith.negf %1109 : vector<2x16xf32>
    %1111 = math.exp %1110 : vector<2x16xf32>
    %cst_210 = arith.constant 1.000000e+00 : f32
    %1112 = vector.broadcast %cst_210 : f32 to vector<2x16xf32>
    %1113 = arith.addf %1112, %1111 : vector<2x16xf32>
    %1114 = arith.divf %1112, %1113 : vector<2x16xf32>
    %1115 = arith.mulf %1106, %1089 : vector<2x16xf32>
    %1116 = arith.mulf %1100, %1108 : vector<2x16xf32>
    %1117 = arith.addf %1115, %1116 : vector<2x16xf32>
    %1118 = math.tanh %1117 : vector<2x16xf32>
    %1119 = arith.mulf %1114, %1118 : vector<2x16xf32>
    %1120 = vector.extract_strided_slice %1004 {offsets = [8, 0], sizes = [2, 64], strides = [1, 1]} : vector<16x64xf32> to vector<2x64xf32>
    %cst_211 = arith.constant dense<0.000000e+00> : vector<2x64xf32>
    %1121 = tpu.matmul %1119, %1005, %cst_211 {dimension_numbers = #tpu.dot_dimension_numbers<[1], [0], [0], [1], [0, 0, 1, 1], [], []>} : vector<2x16xf32>, vector<16x64xf32>, vector<2x64xf32> -> vector<2x64xf32>
    %1122 = arith.addf %1120, %1121 : vector<2x64xf32>
    %1123 = vector.extract_strided_slice %1122 {offsets = [0, 0], sizes = [2, 16], strides = [1, 1]} : vector<2x64xf32> to vector<2x16xf32>
    %1124 = arith.negf %1123 : vector<2x16xf32>
    %1125 = math.exp %1124 : vector<2x16xf32>
    %cst_212 = arith.constant 1.000000e+00 : f32
    %1126 = vector.broadcast %cst_212 : f32 to vector<2x16xf32>
    %1127 = arith.addf %1126, %1125 : vector<2x16xf32>
    %1128 = arith.divf %1126, %1127 : vector<2x16xf32>
    %1129 = vector.extract_strided_slice %1122 {offsets = [0, 16], sizes = [2, 16], strides = [1, 1]} : vector<2x64xf32> to vector<2x16xf32>
    %1130 = arith.negf %1129 : vector<2x16xf32>
    %1131 = math.exp %1130 : vector<2x16xf32>
    %cst_213 = arith.constant 1.000000e+00 : f32
    %1132 = vector.broadcast %cst_213 : f32 to vector<2x16xf32>
    %1133 = arith.addf %1132, %1131 : vector<2x16xf32>
    %1134 = arith.divf %1132, %1133 : vector<2x16xf32>
    %1135 = vector.extract_strided_slice %1122 {offsets = [0, 32], sizes = [2, 16], strides = [1, 1]} : vector<2x64xf32> to vector<2x16xf32>
    %1136 = math.tanh %1135 : vector<2x16xf32>
    %1137 = vector.extract_strided_slice %1122 {offsets = [0, 48], sizes = [2, 16], strides = [1, 1]} : vector<2x64xf32> to vector<2x16xf32>
    %1138 = arith.negf %1137 : vector<2x16xf32>
    %1139 = math.exp %1138 : vector<2x16xf32>
    %cst_214 = arith.constant 1.000000e+00 : f32
    %1140 = vector.broadcast %cst_214 : f32 to vector<2x16xf32>
    %1141 = arith.addf %1140, %1139 : vector<2x16xf32>
    %1142 = arith.divf %1140, %1141 : vector<2x16xf32>
    %1143 = arith.mulf %1134, %1117 : vector<2x16xf32>
    %1144 = arith.mulf %1128, %1136 : vector<2x16xf32>
    %1145 = arith.addf %1143, %1144 : vector<2x16xf32>
    %1146 = math.tanh %1145 : vector<2x16xf32>
    %1147 = arith.mulf %1142, %1146 : vector<2x16xf32>
    %1148 = vector.extract_strided_slice %1004 {offsets = [10, 0], sizes = [2, 64], strides = [1, 1]} : vector<16x64xf32> to vector<2x64xf32>
    %cst_215 = arith.constant dense<0.000000e+00> : vector<2x64xf32>
    %1149 = tpu.matmul %1147, %1005, %cst_215 {dimension_numbers = #tpu.dot_dimension_numbers<[1], [0], [0], [1], [0, 0, 1, 1], [], []>} : vector<2x16xf32>, vector<16x64xf32>, vector<2x64xf32> -> vector<2x64xf32>
    %1150 = arith.addf %1148, %1149 : vector<2x64xf32>
    %1151 = vector.extract_strided_slice %1150 {offsets = [0, 0], sizes = [2, 16], strides = [1, 1]} : vector<2x64xf32> to vector<2x16xf32>
    %1152 = arith.negf %1151 : vector<2x16xf32>
    %1153 = math.exp %1152 : vector<2x16xf32>
    %cst_216 = arith.constant 1.000000e+00 : f32
    %1154 = vector.broadcast %cst_216 : f32 to vector<2x16xf32>
    %1155 = arith.addf %1154, %1153 : vector<2x16xf32>
    %1156 = arith.divf %1154, %1155 : vector<2x16xf32>
    %1157 = vector.extract_strided_slice %1150 {offsets = [0, 16], sizes = [2, 16], strides = [1, 1]} : vector<2x64xf32> to vector<2x16xf32>
    %1158 = arith.negf %1157 : vector<2x16xf32>
    %1159 = math.exp %1158 : vector<2x16xf32>
    %cst_217 = arith.constant 1.000000e+00 : f32
    %1160 = vector.broadcast %cst_217 : f32 to vector<2x16xf32>
    %1161 = arith.addf %1160, %1159 : vector<2x16xf32>
    %1162 = arith.divf %1160, %1161 : vector<2x16xf32>
    %1163 = vector.extract_strided_slice %1150 {offsets = [0, 32], sizes = [2, 16], strides = [1, 1]} : vector<2x64xf32> to vector<2x16xf32>
    %1164 = math.tanh %1163 : vector<2x16xf32>
    %1165 = vector.extract_strided_slice %1150 {offsets = [0, 48], sizes = [2, 16], strides = [1, 1]} : vector<2x64xf32> to vector<2x16xf32>
    %1166 = arith.negf %1165 : vector<2x16xf32>
    %1167 = math.exp %1166 : vector<2x16xf32>
    %cst_218 = arith.constant 1.000000e+00 : f32
    %1168 = vector.broadcast %cst_218 : f32 to vector<2x16xf32>
    %1169 = arith.addf %1168, %1167 : vector<2x16xf32>
    %1170 = arith.divf %1168, %1169 : vector<2x16xf32>
    %1171 = arith.mulf %1162, %1145 : vector<2x16xf32>
    %1172 = arith.mulf %1156, %1164 : vector<2x16xf32>
    %1173 = arith.addf %1171, %1172 : vector<2x16xf32>
    %1174 = math.tanh %1173 : vector<2x16xf32>
    %1175 = arith.mulf %1170, %1174 : vector<2x16xf32>
    %1176 = vector.extract_strided_slice %1004 {offsets = [12, 0], sizes = [2, 64], strides = [1, 1]} : vector<16x64xf32> to vector<2x64xf32>
    %cst_219 = arith.constant dense<0.000000e+00> : vector<2x64xf32>
    %1177 = tpu.matmul %1175, %1005, %cst_219 {dimension_numbers = #tpu.dot_dimension_numbers<[1], [0], [0], [1], [0, 0, 1, 1], [], []>} : vector<2x16xf32>, vector<16x64xf32>, vector<2x64xf32> -> vector<2x64xf32>
    %1178 = arith.addf %1176, %1177 : vector<2x64xf32>
    %1179 = vector.extract_strided_slice %1178 {offsets = [0, 0], sizes = [2, 16], strides = [1, 1]} : vector<2x64xf32> to vector<2x16xf32>
    %1180 = arith.negf %1179 : vector<2x16xf32>
    %1181 = math.exp %1180 : vector<2x16xf32>
    %cst_220 = arith.constant 1.000000e+00 : f32
    %1182 = vector.broadcast %cst_220 : f32 to vector<2x16xf32>
    %1183 = arith.addf %1182, %1181 : vector<2x16xf32>
    %1184 = arith.divf %1182, %1183 : vector<2x16xf32>
    %1185 = vector.extract_strided_slice %1178 {offsets = [0, 16], sizes = [2, 16], strides = [1, 1]} : vector<2x64xf32> to vector<2x16xf32>
    %1186 = arith.negf %1185 : vector<2x16xf32>
    %1187 = math.exp %1186 : vector<2x16xf32>
    %cst_221 = arith.constant 1.000000e+00 : f32
    %1188 = vector.broadcast %cst_221 : f32 to vector<2x16xf32>
    %1189 = arith.addf %1188, %1187 : vector<2x16xf32>
    %1190 = arith.divf %1188, %1189 : vector<2x16xf32>
    %1191 = vector.extract_strided_slice %1178 {offsets = [0, 32], sizes = [2, 16], strides = [1, 1]} : vector<2x64xf32> to vector<2x16xf32>
    %1192 = math.tanh %1191 : vector<2x16xf32>
    %1193 = vector.extract_strided_slice %1178 {offsets = [0, 48], sizes = [2, 16], strides = [1, 1]} : vector<2x64xf32> to vector<2x16xf32>
    %1194 = arith.negf %1193 : vector<2x16xf32>
    %1195 = math.exp %1194 : vector<2x16xf32>
    %cst_222 = arith.constant 1.000000e+00 : f32
    %1196 = vector.broadcast %cst_222 : f32 to vector<2x16xf32>
    %1197 = arith.addf %1196, %1195 : vector<2x16xf32>
    %1198 = arith.divf %1196, %1197 : vector<2x16xf32>
    %1199 = arith.mulf %1190, %1173 : vector<2x16xf32>
    %1200 = arith.mulf %1184, %1192 : vector<2x16xf32>
    %1201 = arith.addf %1199, %1200 : vector<2x16xf32>
    %1202 = math.tanh %1201 : vector<2x16xf32>
    %1203 = arith.mulf %1198, %1202 : vector<2x16xf32>
    %1204 = vector.extract_strided_slice %1004 {offsets = [14, 0], sizes = [2, 64], strides = [1, 1]} : vector<16x64xf32> to vector<2x64xf32>
    %cst_223 = arith.constant dense<0.000000e+00> : vector<2x64xf32>
    %1205 = tpu.matmul %1203, %1005, %cst_223 {dimension_numbers = #tpu.dot_dimension_numbers<[1], [0], [0], [1], [0, 0, 1, 1], [], []>} : vector<2x16xf32>, vector<16x64xf32>, vector<2x64xf32> -> vector<2x64xf32>
    %1206 = arith.addf %1204, %1205 : vector<2x64xf32>
    %1207 = vector.extract_strided_slice %1206 {offsets = [0, 0], sizes = [2, 16], strides = [1, 1]} : vector<2x64xf32> to vector<2x16xf32>
    %1208 = arith.negf %1207 : vector<2x16xf32>
    %1209 = math.exp %1208 : vector<2x16xf32>
    %cst_224 = arith.constant 1.000000e+00 : f32
    %1210 = vector.broadcast %cst_224 : f32 to vector<2x16xf32>
    %1211 = arith.addf %1210, %1209 : vector<2x16xf32>
    %1212 = arith.divf %1210, %1211 : vector<2x16xf32>
    %1213 = vector.extract_strided_slice %1206 {offsets = [0, 16], sizes = [2, 16], strides = [1, 1]} : vector<2x64xf32> to vector<2x16xf32>
    %1214 = arith.negf %1213 : vector<2x16xf32>
    %1215 = math.exp %1214 : vector<2x16xf32>
    %cst_225 = arith.constant 1.000000e+00 : f32
    %1216 = vector.broadcast %cst_225 : f32 to vector<2x16xf32>
    %1217 = arith.addf %1216, %1215 : vector<2x16xf32>
    %1218 = arith.divf %1216, %1217 : vector<2x16xf32>
    %1219 = vector.extract_strided_slice %1206 {offsets = [0, 32], sizes = [2, 16], strides = [1, 1]} : vector<2x64xf32> to vector<2x16xf32>
    %1220 = math.tanh %1219 : vector<2x16xf32>
    %1221 = vector.extract_strided_slice %1206 {offsets = [0, 48], sizes = [2, 16], strides = [1, 1]} : vector<2x64xf32> to vector<2x16xf32>
    %1222 = arith.negf %1221 : vector<2x16xf32>
    %1223 = math.exp %1222 : vector<2x16xf32>
    %cst_226 = arith.constant 1.000000e+00 : f32
    %1224 = vector.broadcast %cst_226 : f32 to vector<2x16xf32>
    %1225 = arith.addf %1224, %1223 : vector<2x16xf32>
    %1226 = arith.divf %1224, %1225 : vector<2x16xf32>
    %1227 = arith.mulf %1218, %1201 : vector<2x16xf32>
    %1228 = arith.mulf %1212, %1220 : vector<2x16xf32>
    %1229 = arith.addf %1227, %1228 : vector<2x16xf32>
    %1230 = math.tanh %1229 : vector<2x16xf32>
    %1231 = arith.mulf %1226, %1230 : vector<2x16xf32>
    %1232 = tpu.concatenate %1035, %1063, %1091, %1119, %1147, %1175, %1203, %1231 in 0 : vector<2x16xf32>, vector<2x16xf32>, vector<2x16xf32>, vector<2x16xf32>, vector<2x16xf32>, vector<2x16xf32>, vector<2x16xf32>, vector<2x16xf32> -> vector<16x16xf32>
    %c0_227 = arith.constant 0 : index
    %c0_228 = arith.constant 0 : index
    %1233 = vector.load %arg22[%c0_227, %c0_228] : memref<16x8xf32, #tpu.memory_space<vmem>>, vector<16x8xf32>
    %cst_229 = arith.constant dense<0.000000e+00> : vector<16x8xf32>
    %1234 = tpu.matmul %1232, %1233, %cst_229 {dimension_numbers = #tpu.dot_dimension_numbers<[1], [0], [0], [1], [0, 0, 1, 1], [], []>} : vector<16x16xf32>, vector<16x8xf32>, vector<16x8xf32> -> vector<16x8xf32>
    %c0_230 = arith.constant 0 : index
    %c0_231 = arith.constant 0 : index
    %1235 = vector.load %arg23[%c0_230, %c0_231] : memref<1x8xf32, #tpu.memory_space<vmem>>, vector<1x8xf32>
    %1236 = vector.broadcast %1235 : vector<1x8xf32> to vector<16x8xf32>
    %1237 = arith.addf %1234, %1236 : vector<16x8xf32>
    %c0_232 = arith.constant 0 : index
    %c0_233 = arith.constant 0 : index
    %1238 = vector.load %arg24[%c0_232, %c0_233] : memref<16x8xf32, #tpu.memory_space<vmem>>, vector<16x8xf32>
    tpu.vector_store %arg24[%c0_232, %c0_233], %1237 {strides = array<i32>} : memref<16x8xf32, #tpu.memory_space<vmem>>, vector<16x8xf32>,
    return
  }
  func.func @transform_0(%arg0: i32) -> (i32, i32) {
    %c0_i32 = arith.constant 0 : i32
    %c0_i32_0 = arith.constant 0 : i32
    %c0_i32_1 = arith.constant 0 : i32
    return %c0_i32, %c0_i32_0 : i32, i32
  }
  func.func @transform_1(%arg0: i32) -> (i32, i32) {
    %c0_i32 = arith.constant 0 : i32
    %c0_i32_0 = arith.constant 0 : i32
    %c0_i32_1 = arith.constant 0 : i32
    return %c0_i32, %c0_i32_0 : i32, i32
  }
  func.func @transform_2(%arg0: i32) -> (i32, i32) {
    %c0_i32 = arith.constant 0 : i32
    %c0_i32_0 = arith.constant 0 : i32
    %c0_i32_1 = arith.constant 0 : i32
    return %c0_i32, %c0_i32_0 : i32, i32
  }
  func.func @transform_3(%arg0: i32) -> (i32, i32) {
    %c0_i32 = arith.constant 0 : i32
    %c0_i32_0 = arith.constant 0 : i32
    %c0_i32_1 = arith.constant 0 : i32
    return %c0_i32, %c0_i32_0 : i32, i32
  }
  func.func @transform_4(%arg0: i32) -> (i32, i32) {
    %c0_i32 = arith.constant 0 : i32
    %c0_i32_0 = arith.constant 0 : i32
    %c0_i32_1 = arith.constant 0 : i32
    return %c0_i32, %c0_i32_0 : i32, i32
  }
  func.func @transform_5(%arg0: i32) -> (i32, i32) {
    %c0_i32 = arith.constant 0 : i32
    %c0_i32_0 = arith.constant 0 : i32
    %c0_i32_1 = arith.constant 0 : i32
    return %c0_i32, %c0_i32_0 : i32, i32
  }
  func.func @transform_6(%arg0: i32) -> (i32, i32) {
    %c0_i32 = arith.constant 0 : i32
    %c0_i32_0 = arith.constant 0 : i32
    %c0_i32_1 = arith.constant 0 : i32
    return %c0_i32, %c0_i32_0 : i32, i32
  }
  func.func @transform_7(%arg0: i32) -> (i32, i32) {
    %c0_i32 = arith.constant 0 : i32
    %c0_i32_0 = arith.constant 0 : i32
    %c0_i32_1 = arith.constant 0 : i32
    return %c0_i32, %c0_i32_0 : i32, i32
  }
  func.func @transform_8(%arg0: i32) -> (i32, i32) {
    %c0_i32 = arith.constant 0 : i32
    %c0_i32_0 = arith.constant 0 : i32
    %c0_i32_1 = arith.constant 0 : i32
    return %c0_i32, %c0_i32_0 : i32, i32
  }
  func.func @transform_9(%arg0: i32) -> (i32, i32) {
    %c0_i32 = arith.constant 0 : i32
    %c0_i32_0 = arith.constant 0 : i32
    %c0_i32_1 = arith.constant 0 : i32
    return %c0_i32, %c0_i32_0 : i32, i32
  }
  func.func @transform_10(%arg0: i32) -> (i32, i32) {
    %c0_i32 = arith.constant 0 : i32
    %c0_i32_0 = arith.constant 0 : i32
    %c0_i32_1 = arith.constant 0 : i32
    return %c0_i32, %c0_i32_0 : i32, i32
  }
  func.func @transform_11(%arg0: i32) -> (i32, i32) {
    %c0_i32 = arith.constant 0 : i32
    %c0_i32_0 = arith.constant 0 : i32
    %c0_i32_1 = arith.constant 0 : i32
    return %c0_i32, %c0_i32_0 : i32, i32
  }
  func.func @transform_12(%arg0: i32) -> (i32, i32) {
    %c0_i32 = arith.constant 0 : i32
    %c0_i32_0 = arith.constant 0 : i32
    %c0_i32_1 = arith.constant 0 : i32
    return %c0_i32, %c0_i32_0 : i32, i32
  }
  func.func @transform_13(%arg0: i32) -> (i32, i32) {
    %c0_i32 = arith.constant 0 : i32
    %c0_i32_0 = arith.constant 0 : i32
    %c0_i32_1 = arith.constant 0 : i32
    return %c0_i32, %c0_i32_0 : i32, i32
  }
  func.func @transform_14(%arg0: i32) -> (i32, i32) {
    %c0_i32 = arith.constant 0 : i32
    %c0_i32_0 = arith.constant 0 : i32
    %c0_i32_1 = arith.constant 0 : i32
    return %c0_i32, %c0_i32_0 : i32, i32
  }
  func.func @transform_15(%arg0: i32) -> (i32, i32, i32) {
    %c0_i32 = arith.constant 0 : i32
    %c0_i32_0 = arith.constant 0 : i32
    %c0_i32_1 = arith.constant 0 : i32
    %c0_i32_2 = arith.constant 0 : i32
    return %c0_i32, %c0_i32_0, %c0_i32_1 : i32, i32, i32
  }
  func.func @transform_16(%arg0: i32) -> (i32, i32) {
    %c0_i32 = arith.constant 0 : i32
    %c0_i32_0 = arith.constant 0 : i32
    %c0_i32_1 = arith.constant 0 : i32
    return %c0_i32, %c0_i32_0 : i32, i32
  }
  func.func @transform_17(%arg0: i32) -> (i32, i32) {
    %c0_i32 = arith.constant 0 : i32
    %c0_i32_0 = arith.constant 0 : i32
    %c0_i32_1 = arith.constant 0 : i32
    return %c0_i32, %c0_i32_0 : i32, i32
  }
  func.func @transform_18(%arg0: i32) -> (i32, i32) {
    %c0_i32 = arith.constant 0 : i32
    %c0_i32_0 = arith.constant 0 : i32
    %c0_i32_1 = arith.constant 0 : i32
    return %c0_i32, %c0_i32_0 : i32, i32
  }
  func.func @transform_19(%arg0: i32) -> (i32, i32) {
    %c0_i32 = arith.constant 0 : i32
    %c0_i32_0 = arith.constant 0 : i32
    %c0_i32_1 = arith.constant 0 : i32
    return %c0_i32, %c0_i32_0 : i32, i32
  }
  func.func @transform_20(%arg0: i32) -> (i32, i32) {
    %c0_i32 = arith.constant 0 : i32
    %c0_i32_0 = arith.constant 0 : i32
    %c0_i32_1 = arith.constant 0 : i32
    return %c0_i32, %c0_i32_0 : i32, i32
  }
  func.func @transform_21(%arg0: i32) -> (i32, i32) {
    %c0_i32 = arith.constant 0 : i32
    %c0_i32_0 = arith.constant 0 : i32
    %c0_i32_1 = arith.constant 0 : i32
    return %c0_i32, %c0_i32_0 : i32, i32
  }
  func.func @transform_22(%arg0: i32) -> (i32, i32) {
    %c0_i32 = arith.constant 0 : i32
    %c0_i32_0 = arith.constant 0 : i32
    %c0_i32_1 = arith.constant 0 : i32
    return %c0_i32, %c0_i32_0 : i32, i32
  }
  func.func @transform_23(%arg0: i32) -> (i32, i32) {
    %c0_i32 = arith.constant 0 : i32
    %c0_i32_0 = arith.constant 0 : i32
    %c0_i32_1 = arith.constant 0 : i32
    return %c0_i32, %c0_i32_0 : i32, i32
  }
}

</mosaic_0001>

<llo_original>
// kernel: run.1
$region0: #{run.1}
  #allocation0 [shape = 'u32[]', space=smem, size = 0x4, offset = 0x4, fixed_abs, tag = 'smem constant byte address 0x4 - core index']
  #allocation1 [shape = 'u32[144,128]{1,0:T(1,128)}', space=vmem, size = 0x12000, scoped, tag = 'internal scratch']
  %s0 = inlined_call_operand.vmem [shape: f32[16,8], index: 0, kind: input, shape index: {}]
  %s1 = inlined_call_operand.hbm [shape: f32[8,64], index: 1, kind: input, shape index: {}]
  %s2 = inlined_call_operand.vmem [shape: f32[16,64], index: 2, kind: input, shape index: {}]
  %s3 = inlined_call_operand.hbm [shape: f32[1,64], index: 3, kind: input, shape index: {}]
  %s4 = inlined_call_operand.hbm [shape: f32[8,64], index: 4, kind: input, shape index: {}]
  %s5 = inlined_call_operand.hbm [shape: f32[16,64], index: 5, kind: input, shape index: {}]
  %s6 = inlined_call_operand.hbm [shape: f32[1,64], index: 6, kind: input, shape index: {}]
  %s7 = inlined_call_operand.vmem [shape: f32[32,64], index: 7, kind: input, shape index: {}]
  %s8 = inlined_call_operand.vmem [shape: f32[16,64], index: 8, kind: input, shape index: {}]
  %s9 = inlined_call_operand.hbm [shape: f32[1,64], index: 9, kind: input, shape index: {}]
  %s10 = inlined_call_operand.vmem [shape: f32[32,64], index: 10, kind: input, shape index: {}]
  %s11 = inlined_call_operand.hbm [shape: f32[16,64], index: 11, kind: input, shape index: {}]
  %s12 = inlined_call_operand.hbm [shape: f32[1,64], index: 12, kind: input, shape index: {}]
  %s13 = inlined_call_operand.hbm [shape: f32[32,96], index: 13, kind: input, shape index: {}]
  %s14 = inlined_call_operand.hbm [shape: f32[1,96], index: 14, kind: input, shape index: {}]
  %s15 = inlined_call_operand.hbm [shape: f32[4,8,32], index: 15, kind: input, shape index: {}]
  %s16 = inlined_call_operand.hbm [shape: f32[1,32], index: 16, kind: input, shape index: {}]
  %s17 = inlined_call_operand.vmem [shape: f32[16,16], index: 17, kind: input, shape index: {}]
  %s18 = inlined_call_operand.hbm [shape: f32[32,64], index: 18, kind: input, shape index: {}]
  %s19 = inlined_call_operand.hbm [shape: f32[16,64], index: 19, kind: input, shape index: {}]
  %s20 = inlined_call_operand.hbm [shape: f32[1,64], index: 20, kind: input, shape index: {}]
  %s21 = inlined_call_operand.vmem [shape: f32[16,8], index: 21, kind: input, shape index: {}]
  %s22 = inlined_call_operand.vmem [shape: f32[1,8], index: 22, kind: input, shape index: {}]
  %s23 = inlined_call_operand.vmem [shape: f32[16,8], index: 23, kind: output, shape index: {}]
  %s24 = sld [smem:[#allocation0]]
  $region162: #{run.1} parent=0
    _
  %s26 = ssub.s32 1, %s24
  %s27 = scalar_select 0, %s26, %s24
  $region1: #{run.1} parent=0
    #allocation2 [shape = 'u8[4096]{0}', space=vmem, size = 0x1000, scoped, tag = 'input window, operand 1, single buffered']
    #allocation3 [shape = 's32[1]{0}', space=sflag, size = 0x4, scoped, tag = 'scoped memory for run.1']
    #allocation4 [shape = 'u8[512]{0}', space=vmem, size = 0x400, scoped, tag = 'input window, operand 3, single buffered']
    #allocation5 [shape = 's32[1]{0}', space=sflag, size = 0x4, scoped, tag = 'scoped memory for run.1']
    #allocation6 [shape = 'u8[4096]{0}', space=vmem, size = 0x1000, scoped, tag = 'input window, operand 4, single buffered']
    #allocation7 [shape = 'u8[8192]{0}', space=vmem, size = 0x2000, scoped, tag = 'input window, operand 5, single buffered']
    #allocation8 [shape = 's32[1]{0}', space=sflag, size = 0x4, scoped, tag = 'scoped memory for run.1']
    #allocation9 [shape = 'u8[512]{0}', space=vmem, size = 0x400, scoped, tag = 'input window, operand 6, single buffered']
    #allocation10 [shape = 'u8[512]{0}', space=vmem, size = 0x400, scoped, tag = 'input window, operand 9, single buffered']
    #allocation11 [shape = 's32[1]{0}', space=sflag, size = 0x4, scoped, tag = 'scoped memory for run.1']
    #allocation12 [shape = 'u8[8192]{0}', space=vmem, size = 0x2000, scoped, tag = 'input window, operand 11, single buffered']
    #allocation13 [shape = 'u8[512]{0}', space=vmem, size = 0x400, scoped, tag = 'input window, operand 12, single buffered']
    #allocation14 [shape = 's32[1]{0}', space=sflag, size = 0x4, scoped, tag = 'scoped memory for run.1']
    #allocation15 [shape = 'u8[16384]{0}', space=vmem, size = 0x4000, scoped, tag = 'input window, operand 13, single buffered']
    #allocation16 [shape = 'u8[512]{0}', space=vmem, size = 0x400, scoped, tag = 'input window, operand 14, single buffered']
    #allocation17 [shape = 's32[1]{0}', space=sflag, size = 0x4, scoped, tag = 'scoped memory for run.1']
    #allocation18 [shape = 'u8[16384]{0}', space=vmem, size = 0x4000, scoped, tag = 'input window, operand 15, single buffered']
    #allocation19 [shape = 'u8[512]{0}', space=vmem, size = 0x400, scoped, tag = 'input window, operand 16, single buffered']
    #allocation20 [shape = 's32[1]{0}', space=sflag, size = 0x4, scoped, tag = 'scoped memory for run.1']
    #allocation21 [shape = 'u8[16384]{0}', space=vmem, size = 0x4000, scoped, tag = 'input window, operand 18, single buffered']
    #allocation22 [shape = 'u8[8192]{0}', space=vmem, size = 0x2000, scoped, tag = 'input window, operand 19, single buffered']
    #allocation23 [shape = 's32[1]{0}', space=sflag, size = 0x4, scoped, tag = 'scoped memory for run.1']
    #allocation24 [shape = 'u8[512]{0}', space=vmem, size = 0x400, scoped, tag = 'input window, operand 20, single buffered']
    %28 = vsyncpa [#allocation3], 0
    %29 = vsyncpa [#allocation5], 0
    %30 = vsyncpa [#allocation8], 0
    %31 = vsyncpa [#allocation11], 0
    %32 = vsyncpa [#allocation14], 0
    %33 = vsyncpa [#allocation17], 0
    %34 = vsyncpa [#allocation20], 0
    %35 = vsyncpa [#allocation23], 0
    // Predicated region
    $region2: #{run.1} parent=1 // pred_check
      _
    $region3: #{run.1} parent=1 // pred_check_branch
      %37 = sbr.rel (0) target = $region5
    $region4: #{run.1} parent=1 // pred_region
      _
    $region5: #{run.1} parent=1 // pred_fallthru
      _
    // Predicated region
    $region6: #{run.1} parent=1 // pred_check
      _
    $region7: #{run.1} parent=1 // pred_check_branch
      %39 = sbr.rel (0) target = $region9
    $region8: #{run.1} parent=1 // pred_region
      %s41 = ssub.s32 128, 128
      %42 = vsyncadd [#allocation3], %s41
      %s44 = sshll.u32 [#allocation2], 4
      %s45 = int_to_ptr.vmem [resolvable:$true] %s44
      %47 = dma.hbm_to_vmem [thread:$0]  %s1, 128, %s45, [#allocation3]
    $region9: #{run.1} parent=1 // pred_fallthru
      _
    // Predicated region
    $region10: #{run.1} parent=1 // pred_check
      _
    $region11: #{run.1} parent=1 // pred_check_branch
      %49 = sbr.rel (0) target = $region13
    $region12: #{run.1} parent=1 // pred_region
      _
    $region13: #{run.1} parent=1 // pred_fallthru
      _
    // Predicated region
    $region14: #{run.1} parent=1 // pred_check
      _
    $region15: #{run.1} parent=1 // pred_check_branch
      %51 = sbr.rel (0) target = $region17
    $region16: #{run.1} parent=1 // pred_region
      %s53 = ssub.s32 16, 16
      %54 = vsyncadd [#allocation5], %s53
      %s56 = sshll.u32 [#allocation4], 4
      %s57 = int_to_ptr.vmem [resolvable:$true] %s56
      %59 = dma.hbm_to_vmem [thread:$0]  %s3, 16, %s57, [#allocation5]
    $region17: #{run.1} parent=1 // pred_fallthru
      _
    // Predicated region
    $region18: #{run.1} parent=1 // pred_check
      _
    $region19: #{run.1} parent=1 // pred_check_branch
      %61 = sbr.rel (0) target = $region21
    $region20: #{run.1} parent=1 // pred_region
      %s63 = ssub.s32 128, 128
      %64 = vsyncadd [#allocation5], %s63
      %s66 = sshll.u32 [#allocation6], 4
      %s67 = int_to_ptr.vmem [resolvable:$true] %s66
      %69 = dma.hbm_to_vmem [thread:$0]  %s4, 128, %s67, [#allocation5]
    $region21: #{run.1} parent=1 // pred_fallthru
      _
    // Predicated region
    $region22: #{run.1} parent=1 // pred_check
      _
    $region23: #{run.1} parent=1 // pred_check_branch
      %71 = sbr.rel (0) target = $region25
    $region24: #{run.1} parent=1 // pred_region
      %s73 = ssub.s32 256, 256
      %74 = vsyncadd [#allocation8], %s73
      %s75 = sshll.u32 [#allocation7], 4
      %s76 = int_to_ptr.vmem [resolvable:$true] %s75
      %81 = dma.hbm_to_vmem [thread:$0]  %s5, 256, %s76, [#allocation8], 128, 128, 8
    $region25: #{run.1} parent=1 // pred_fallthru
      _
    // Predicated region
    $region26: #{run.1} parent=1 // pred_check
      _
    $region27: #{run.1} parent=1 // pred_check_branch
      %83 = sbr.rel (0) target = $region29
    $region28: #{run.1} parent=1 // pred_region
      %s85 = ssub.s32 16, 16
      %86 = vsyncadd [#allocation8], %s85
      %s88 = sshll.u32 [#allocation9], 4
      %s89 = int_to_ptr.vmem [resolvable:$true] %s88
      %91 = dma.hbm_to_vmem [thread:$0]  %s6, 16, %s89, [#allocation8]
    $region29: #{run.1} parent=1 // pred_fallthru
      _
    // Predicated region
    $region30: #{run.1} parent=1 // pred_check
      _
    $region31: #{run.1} parent=1 // pred_check_branch
      %93 = sbr.rel (0) target = $region33
    $region32: #{run.1} parent=1 // pred_region
      _
    $region33: #{run.1} parent=1 // pred_fallthru
      _
    // Predicated region
    $region34: #{run.1} parent=1 // pred_check
      _
    $region35: #{run.1} parent=1 // pred_check_branch
      %95 = sbr.rel (0) target = $region37
    $region36: #{run.1} parent=1 // pred_region
      _
    $region37: #{run.1} parent=1 // pred_fallthru
      _
    // Predicated region
    $region38: #{run.1} parent=1 // pred_check
      _
    $region39: #{run.1} parent=1 // pred_check_branch
      %97 = sbr.rel (0) target = $region41
    $region40: #{run.1} parent=1 // pred_region
      %s99 = ssub.s32 16, 16
      %100 = vsyncadd [#allocation11], %s99
      %s102 = sshll.u32 [#allocation10], 4
      %s103 = int_to_ptr.vmem [resolvable:$true] %s102
      %105 = dma.hbm_to_vmem [thread:$0]  %s9, 16, %s103, [#allocation11]
    $region41: #{run.1} parent=1 // pred_fallthru
      _
    // Predicated region
    $region42: #{run.1} parent=1 // pred_check
      _
    $region43: #{run.1} parent=1 // pred_check_branch
      %107 = sbr.rel (0) target = $region45
    $region44: #{run.1} parent=1 // pred_region
      _
    $region45: #{run.1} parent=1 // pred_fallthru
      _
    // Predicated region
    $region46: #{run.1} parent=1 // pred_check
      _
    $region47: #{run.1} parent=1 // pred_check_branch
      %109 = sbr.rel (0) target = $region49
    $region48: #{run.1} parent=1 // pred_region
      %s111 = ssub.s32 256, 256
      %112 = vsyncadd [#allocation11], %s111
      %s113 = sshll.u32 [#allocation12], 4
      %s114 = int_to_ptr.vmem [resolvable:$true] %s113
      %119 = dma.hbm_to_vmem [thread:$0]  %s11, 256, %s114, [#allocation11], 128, 128, 8
    $region49: #{run.1} parent=1 // pred_fallthru
      _
    // Predicated region
    $region50: #{run.1} parent=1 // pred_check
      _
    $region51: #{run.1} parent=1 // pred_check_branch
      %121 = sbr.rel (0) target = $region53
    $region52: #{run.1} parent=1 // pred_region
      %s123 = ssub.s32 16, 16
      %124 = vsyncadd [#allocation14], %s123
      %s126 = sshll.u32 [#allocation13], 4
      %s127 = int_to_ptr.vmem [resolvable:$true] %s126
      %129 = dma.hbm_to_vmem [thread:$0]  %s12, 16, %s127, [#allocation14]
    $region53: #{run.1} parent=1 // pred_fallthru
      _
    // Predicated region
    $region54: #{run.1} parent=1 // pred_check
      _
    $region55: #{run.1} parent=1 // pred_check_branch
      %131 = sbr.rel (0) target = $region57
    $region56: #{run.1} parent=1 // pred_region
      %s133 = ssub.s32 512, 512
      %134 = vsyncadd [#allocation14], %s133
      %s135 = sshll.u32 [#allocation15], 4
      %s136 = int_to_ptr.vmem [resolvable:$true] %s135
      %141 = dma.hbm_to_vmem [thread:$0]  %s13, 512, %s136, [#allocation14], 128, 128, 8
    $region57: #{run.1} parent=1 // pred_fallthru
      _
    // Predicated region
    $region58: #{run.1} parent=1 // pred_check
      _
    $region59: #{run.1} parent=1 // pred_check_branch
      %143 = sbr.rel (0) target = $region61
    $region60: #{run.1} parent=1 // pred_region
      %s145 = ssub.s32 16, 16
      %146 = vsyncadd [#allocation17], %s145
      %s148 = sshll.u32 [#allocation16], 4
      %s149 = int_to_ptr.vmem [resolvable:$true] %s148
      %151 = dma.hbm_to_vmem [thread:$0]  %s14, 16, %s149, [#allocation17]
    $region61: #{run.1} parent=1 // pred_fallthru
      _
    // Predicated region
    $region62: #{run.1} parent=1 // pred_check
      _
    $region63: #{run.1} parent=1 // pred_check_branch
      %153 = sbr.rel (0) target = $region65
    $region64: #{run.1} parent=1 // pred_region
      %s155 = ssub.s32 512, 512
      %156 = vsyncadd [#allocation17], %s155
      %s157 = sshll.u32 [#allocation18], 4
      %s158 = int_to_ptr.vmem [resolvable:$true] %s157
      %163 = dma.hbm_to_vmem [thread:$0]  %s15, 512, %s158, [#allocation17], 128, 128, 8
    $region65: #{run.1} parent=1 // pred_fallthru
      _
    // Predicated region
    $region66: #{run.1} parent=1 // pred_check
      _
    $region67: #{run.1} parent=1 // pred_check_branch
      %165 = sbr.rel (0) target = $region69
    $region68: #{run.1} parent=1 // pred_region
      %s167 = ssub.s32 16, 16
      %168 = vsyncadd [#allocation20], %s167
      %s170 = sshll.u32 [#allocation19], 4
      %s171 = int_to_ptr.vmem [resolvable:$true] %s170
      %173 = dma.hbm_to_vmem [thread:$0]  %s16, 16, %s171, [#allocation20]
    $region69: #{run.1} parent=1 // pred_fallthru
      _
    // Predicated region
    $region70: #{run.1} parent=1 // pred_check
      _
    $region71: #{run.1} parent=1 // pred_check_branch
      %175 = sbr.rel (0) target = $region73
    $region72: #{run.1} parent=1 // pred_region
      _
    $region73: #{run.1} parent=1 // pred_fallthru
      _
    // Predicated region
    $region74: #{run.1} parent=1 // pred_check
      _
    $region75: #{run.1} parent=1 // pred_check_branch
      %177 = sbr.rel (0) target = $region77
    $region76: #{run.1} parent=1 // pred_region
      %s179 = ssub.s32 512, 512
      %180 = vsyncadd [#allocation20], %s179
      %s181 = sshll.u32 [#allocation21], 4
      %s182 = int_to_ptr.vmem [resolvable:$true] %s181
      %187 = dma.hbm_to_vmem [thread:$0]  %s18, 512, %s182, [#allocation20], 128, 128, 8
    $region77: #{run.1} parent=1 // pred_fallthru
      _
    // Predicated region
    $region78: #{run.1} parent=1 // pred_check
      _
    $region79: #{run.1} parent=1 // pred_check_branch
      %189 = sbr.rel (0) target = $region81
    $region80: #{run.1} parent=1 // pred_region
      %s191 = ssub.s32 256, 256
      %192 = vsyncadd [#allocation23], %s191
      %s193 = sshll.u32 [#allocation22], 4
      %s194 = int_to_ptr.vmem [resolvable:$true] %s193
      %199 = dma.hbm_to_vmem [thread:$0]  %s19, 256, %s194, [#allocation23], 128, 128, 8
    $region81: #{run.1} parent=1 // pred_fallthru
      _
    // Predicated region
    $region82: #{run.1} parent=1 // pred_check
      _
    $region83: #{run.1} parent=1 // pred_check_branch
      %201 = sbr.rel (0) target = $region85
    $region84: #{run.1} parent=1 // pred_region
      %s203 = ssub.s32 16, 16
      %204 = vsyncadd [#allocation23], %s203
      %s206 = sshll.u32 [#allocation24], 4
      %s207 = int_to_ptr.vmem [resolvable:$true] %s206
      %209 = dma.hbm_to_vmem [thread:$0]  %s20, 16, %s207, [#allocation23]
    $region85: #{run.1} parent=1 // pred_fallthru
      _
    // Predicated region
    $region86: #{run.1} parent=1 // pred_check
      _
    $region87: #{run.1} parent=1 // pred_check_branch
      %211 = sbr.rel (0) target = $region89
    $region88: #{run.1} parent=1 // pred_region
      _
    $region89: #{run.1} parent=1 // pred_fallthru
      _
    // Predicated region
    $region90: #{run.1} parent=1 // pred_check
      _
    $region91: #{run.1} parent=1 // pred_check_branch
      %213 = sbr.rel (0) target = $region93
    $region92: #{run.1} parent=1 // pred_region
      _
    $region93: #{run.1} parent=1 // pred_fallthru
      _
    // Predicated region
    $region94: #{run.1} parent=1 // pred_check
      _
    $region95: #{run.1} parent=1 // pred_check_branch
      %215 = sbr.rel (0) target = $region97
    $region96: #{run.1} parent=1 // pred_region
      %216 = dma.done [#allocation3], 128
    $region97: #{run.1} parent=1 // pred_fallthru
      _
    // Predicated region
    $region98: #{run.1} parent=1 // pred_check
      _
    $region99: #{run.1} parent=1 // pred_check_branch
      %218 = sbr.rel (0) target = $region101
    $region100: #{run.1} parent=1 // pred_region
      %219 = dma.done [#allocation5], 16
    $region101: #{run.1} parent=1 // pred_fallthru
      _
    // Predicated region
    $region102: #{run.1} parent=1 // pred_check
      _
    $region103: #{run.1} parent=1 // pred_check_branch
      %221 = sbr.rel (0) target = $region105
    $region104: #{run.1} parent=1 // pred_region
      %222 = dma.done [#allocation5], 128
    $region105: #{run.1} parent=1 // pred_fallthru
      _
    // Predicated region
    $region106: #{run.1} parent=1 // pred_check
      _
    $region107: #{run.1} parent=1 // pred_check_branch
      %224 = sbr.rel (0) target = $region109
    $region108: #{run.1} parent=1 // pred_region
      %225 = dma.done [#allocation8], 256
    $region109: #{run.1} parent=1 // pred_fallthru
      _
    // Predicated region
    $region110: #{run.1} parent=1 // pred_check
      _
    $region111: #{run.1} parent=1 // pred_check_branch
      %227 = sbr.rel (0) target = $region113
    $region112: #{run.1} parent=1 // pred_region
      %228 = dma.done [#allocation8], 16
    $region113: #{run.1} parent=1 // pred_fallthru
      _
    // Predicated region
    $region114: #{run.1} parent=1 // pred_check
      _
    $region115: #{run.1} parent=1 // pred_check_branch
      %230 = sbr.rel (0) target = $region117
    $region116: #{run.1} parent=1 // pred_region
      %231 = dma.done [#allocation11], 16
    $region117: #{run.1} parent=1 // pred_fallthru
      _
    // Predicated region
    $region118: #{run.1} parent=1 // pred_check
      _
    $region119: #{run.1} parent=1 // pred_check_branch
      %233 = sbr.rel (0) target = $region121
    $region120: #{run.1} parent=1 // pred_region
      %234 = dma.done [#allocation11], 256
    $region121: #{run.1} parent=1 // pred_fallthru
      _
    // Predicated region
    $region122: #{run.1} parent=1 // pred_check
      _
    $region123: #{run.1} parent=1 // pred_check_branch
      %236 = sbr.rel (0) target = $region125
    $region124: #{run.1} parent=1 // pred_region
      %237 = dma.done [#allocation14], 16
    $region125: #{run.1} parent=1 // pred_fallthru
      _
    // Predicated region
    $region126: #{run.1} parent=1 // pred_check
      _
    $region127: #{run.1} parent=1 // pred_check_branch
      %239 = sbr.rel (0) target = $region129
    $region128: #{run.1} parent=1 // pred_region
      %240 = dma.done [#allocation14], 512
    $region129: #{run.1} parent=1 // pred_fallthru
      _
    // Predicated region
    $region130: #{run.1} parent=1 // pred_check
      _
    $region131: #{run.1} parent=1 // pred_check_branch
      %242 = sbr.rel (0) target = $region133
    $region132: #{run.1} parent=1 // pred_region
      %243 = dma.done [#allocation17], 16
    $region133: #{run.1} parent=1 // pred_fallthru
      _
    // Predicated region
    $region134: #{run.1} parent=1 // pred_check
      _
    $region135: #{run.1} parent=1 // pred_check_branch
      %245 = sbr.rel (0) target = $region137
    $region136: #{run.1} parent=1 // pred_region
      %246 = dma.done [#allocation17], 512
    $region137: #{run.1} parent=1 // pred_fallthru
      _
    // Predicated region
    $region138: #{run.1} parent=1 // pred_check
      _
    $region139: #{run.1} parent=1 // pred_check_branch
      %248 = sbr.rel (0) target = $region141
    $region140: #{run.1} parent=1 // pred_region
      %249 = dma.done [#allocation20], 16
    $region141: #{run.1} parent=1 // pred_fallthru
      _
    // Predicated region
    $region142: #{run.1} parent=1 // pred_check
      _
    $region143: #{run.1} parent=1 // pred_check_branch
      %251 = sbr.rel (0) target = $region145
    $region144: #{run.1} parent=1 // pred_region
      %252 = dma.done [#allocation20], 512
    $region145: #{run.1} parent=1 // pred_fallthru
      _
    // Predicated region
    $region146: #{run.1} parent=1 // pred_check
      _
    $region147: #{run.1} parent=1 // pred_check_branch
      %254 = sbr.rel (0) target = $region149
    $region148: #{run.1} parent=1 // pred_region
      %255 = dma.done [#allocation23], 256
    $region149: #{run.1} parent=1 // pred_fallthru
      _
    // Predicated region
    $region150: #{run.1} parent=1 // pred_check
      _
    $region151: #{run.1} parent=1 // pred_check_branch
      %257 = sbr.rel (0) target = $region153
    $region152: #{run.1} parent=1 // pred_region
      %258 = dma.done [#allocation23], 16
    $region153: #{run.1} parent=1 // pred_fallthru
      _
    %v259 = vld [vmem:[%s0] sm:$0xff]
    %v260 = vld [vmem:[%s0 + $0x8] sm:$0xff]
    %v261 = vld [vmem:[#allocation2] sm:$0xff]
    %v262 = vld [vmem:[#allocation4] sm:$0x1]
    %v264 = vlaneseq
    %v265 = vshrl.u32 %v264, 7
    %v266 = vsub.s32 0, %v265
    %v267 = vrot.slane %v262, %v266
    %vm269 = vcmask 64512
    %v271 = vsel %vm269, %v259, 0
    %v274 = vsel %vm269, %v260, 0
    %276 = vmatprep.subr.mxu0 0.0
    %277 = vmatpush1.msra.mxu0 0.0
    %278 = vmatprep.subr.mxu0 0.0
    %279 = vmatpush1.msra.mxu0 0.0
    %280 = vmatprep.subr.mxu0 0.0
    %281 = vmatpush1.msra.mxu0 0.0
    %282 = vmatprep.subr.mxu0 0.0
    %283 = vmatpush1.msra.mxu0 0.0
    %284 = vmatprep.subr.mxu0 0.0
    %285 = vmatpush1.msra.mxu0 0.0
    %286 = vmatprep.subr.mxu0 0.0
    %287 = vmatpush1.msra.mxu0 0.0
    %288 = vmatprep.subr.mxu0 0.0
    %289 = vmatpush1.msra.mxu0 0.0
    %290 = vmatprep.subr.mxu0 0.0
    %291 = vmatpush1.msra.mxu0 0.0
    %292 = vmatprep.subr.mxu0 0.0
    %293 = vmatpush1.msra.mxu0 0.0
    %294 = vmatprep.subr.mxu0 0.0
    %295 = vmatpush1.msra.mxu0 0.0
    %296 = vmatprep.subr.mxu0 0.0
    %297 = vmatpush1.msra.mxu0 0.0
    %298 = vmatprep.subr.mxu0 0.0
    %299 = vmatpush1.msra.mxu0 0.0
    %300 = vmatprep.subr.mxu0 0.0
    %301 = vmatpush1.msra.mxu0 0.0
    %302 = vmatprep.subr.mxu0 0.0
    %303 = vmatpush1.msra.mxu0 0.0
    %304 = vmatprep.subr.mxu0 0.0
    %305 = vmatpush1.msra.mxu0 0.0
    %306 = vmatprep.subr.mxu0 0.0
    %307 = vmatpush1.msra.mxu0 %v261
    %308 = vmatprep.subr.mxu0 0.0
    %309 = vmatpush2.msra.mxu0 0.0
    %310 = vmatprep.subr.mxu0 0.0
    %311 = vmatpush2.msra.mxu0 0.0
    %312 = vmatprep.subr.mxu0 0.0
    %313 = vmatpush2.msra.mxu0 0.0
    %314 = vmatprep.subr.mxu0 0.0
    %315 = vmatpush2.msra.mxu0 0.0
    %316 = vmatprep.subr.mxu0 0.0
    %317 = vmatpush2.msra.mxu0 0.0
    %318 = vmatprep.subr.mxu0 0.0
    %319 = vmatpush2.msra.mxu0 0.0
    %320 = vmatprep.subr.mxu0 0.0
    %321 = vmatpush2.msra.mxu0 0.0
    %322 = vmatprep.subr.mxu0 0.0
    %323 = vmatpush2.msra.mxu0 0.0
    %324 = vmatprep.subr.mxu0 0.0
    %325 = vmatpush2.msra.mxu0 0.0
    %326 = vmatprep.subr.mxu0 0.0
    %327 = vmatpush2.msra.mxu0 0.0
    %328 = vmatprep.subr.mxu0 0.0
    %329 = vmatpush2.msra.mxu0 0.0
    %330 = vmatprep.subr.mxu0 0.0
    %331 = vmatpush2.msra.mxu0 0.0
    %332 = vmatprep.subr.mxu0 0.0
    %333 = vmatpush2.msra.mxu0 0.0
    %334 = vmatprep.subr.mxu0 0.0
    %335 = vmatpush2.msra.mxu0 0.0
    %336 = vmatprep.subr.mxu0 0.0
    %337 = vmatpush2.msra.mxu0 0.0
    %338 = vmatprep.subr.mxu0 0.0
    %339 = vmatpush2.msra.mxu0 0.0
    %340 = vmatprep.mubr.f32.mxu0 0.0
    %341 = vmatmul.mubr.f32.gmra.mxu0 %v271
    %v342 = vpop.f32.mrf.mxu0
    %v343 = vadd.f32 %v267, %v342
    %v344 = vpop.f32.mrf.mxu0
    %345 = vmatprep.mubr.f32.mxu0 0.0
    %346 = vmatmul.mubr.f32.gmra.mxu0 %v274
    %v347 = vpop.f32.mrf.mxu0
    %v348 = vadd.f32 %v267, %v347
    %v349 = vpop.f32.mrf.mxu0
    %350 = vdwg.mxu0
    %v351 = vld [vmem:[%s2] sm:$0xff]
    %v352 = vld [vmem:[%s2 + $0x8] sm:$0xff]
    %vm353 = vcmask 130048
    %v355 = vsel %vm353, 0.0, 0
    %357 = vmatprep.subr.mxu0 0.0
    %358 = vmatpush1.msra.mxu0 0.0
    %359 = vmatprep.subr.mxu0 0.0
    %360 = vmatpush1.msra.mxu0 0.0
    %361 = vmatprep.subr.mxu0 0.0
    %362 = vmatpush1.msra.mxu0 0.0
    %363 = vmatprep.subr.mxu0 0.0
    %364 = vmatpush1.msra.mxu0 0.0
    %365 = vmatprep.subr.mxu0 0.0
    %366 = vmatpush1.msra.mxu0 0.0
    %367 = vmatprep.subr.mxu0 0.0
    %368 = vmatpush1.msra.mxu0 0.0
    %369 = vmatprep.subr.mxu0 0.0
    %370 = vmatpush1.msra.mxu0 0.0
    %371 = vmatprep.subr.mxu0 0.0
    %372 = vmatpush1.msra.mxu0 0.0
    %373 = vmatprep.subr.mxu0 0.0
    %374 = vmatpush1.msra.mxu0 0.0
    %375 = vmatprep.subr.mxu0 0.0
    %376 = vmatpush1.msra.mxu0 0.0
    %377 = vmatprep.subr.mxu0 0.0
    %378 = vmatpush1.msra.mxu0 0.0
    %379 = vmatprep.subr.mxu0 0.0
    %380 = vmatpush1.msra.mxu0 0.0
    %381 = vmatprep.subr.mxu0 0.0
    %382 = vmatpush1.msra.mxu0 0.0
    %383 = vmatprep.subr.mxu0 0.0
    %384 = vmatpush1.msra.mxu0 0.0
    %385 = vmatprep.subr.mxu0 0.0
    %386 = vmatpush1.msra.mxu0 %v352
    %387 = vmatprep.subr.mxu0 0.0
    %388 = vmatpush1.msra.mxu0 %v351
    %389 = vmatprep.subr.mxu0 0.0
    %390 = vmatpush2.msra.mxu0 0.0
    %391 = vmatprep.subr.mxu0 0.0
    %392 = vmatpush2.msra.mxu0 0.0
    %393 = vmatprep.subr.mxu0 0.0
    %394 = vmatpush2.msra.mxu0 0.0
    %395 = vmatprep.subr.mxu0 0.0
    %396 = vmatpush2.msra.mxu0 0.0
    %397 = vmatprep.subr.mxu0 0.0
    %398 = vmatpush2.msra.mxu0 0.0
    %399 = vmatprep.subr.mxu0 0.0
    %400 = vmatpush2.msra.mxu0 0.0
    %401 = vmatprep.subr.mxu0 0.0
    %402 = vmatpush2.msra.mxu0 0.0
    %403 = vmatprep.subr.mxu0 0.0
    %404 = vmatpush2.msra.mxu0 0.0
    %405 = vmatprep.subr.mxu0 0.0
    %406 = vmatpush2.msra.mxu0 0.0
    %407 = vmatprep.subr.mxu0 0.0
    %408 = vmatpush2.msra.mxu0 0.0
    %409 = vmatprep.subr.mxu0 0.0
    %410 = vmatpush2.msra.mxu0 0.0
    %411 = vmatprep.subr.mxu0 0.0
    %412 = vmatpush2.msra.mxu0 0.0
    %413 = vmatprep.subr.mxu0 0.0
    %414 = vmatpush2.msra.mxu0 0.0
    %415 = vmatprep.subr.mxu0 0.0
    %416 = vmatpush2.msra.mxu0 0.0
    %417 = vmatprep.subr.mxu0 0.0
    %418 = vmatpush2.msra.mxu0 0.0
    %419 = vmatprep.subr.mxu0 0.0
    %420 = vmatpush2.msra.mxu0 0.0
    %421 = vmatprep.mubr.f32.mxu0 0.0
    %422 = vmatmul.mubr.f32.gmra.mxu0 %v355
    %v423 = vpop.f32.mrf.mxu0
    %v424 = vadd.f32 0.0, %v423
    %v425 = vpop.f32.mrf.mxu0
    %426 = vdwg.mxu0
    %v427 = vadd.f32 %v343, %v424
    %v428 = vxor.u32 %v427, 2147483648
    %v429 = vmul.f32 %v428, 1.442695
    %v430 = vpow.pop %v429
    %v431 = vadd.f32 %v430, 1.0
    %v432 = vrcp.pop %v431
    %v433 = vmul.f32 1.0, %v432
    %v434 = vtanh.pop %v427
    %v435 = vmul.f32 %v433, 0.0
    %437 = vrot.lane.b32.xlu0 %v434, 96
    %v438 = vpop.permute.xlu0 %437
    %v440 = vmul.f32 %v433, %v438
    %442 = vrot.lane.b32.xlu0 %v440, 16
    %v443 = vpop.permute.xlu0 %442
    %v445 = vadd.f32 %v435, %v443
    %v446 = vtanh.pop %v445
    %448 = vrot.lane.b32.xlu0 %v446, 32
    %v449 = vpop.permute.xlu0 %448
    %v451 = vmul.f32 %v433, %v449
    %453 = vrot.lane.b32.xlu0 %v451, 80
    %v454 = vpop.permute.xlu0 %453
    %v455 = vsel %vm353, %v454, 0
    %457 = vmatprep.subr.mxu0 0.0
    %458 = vmatpush1.msra.mxu0 0.0
    %459 = vmatprep.subr.mxu0 0.0
    %460 = vmatpush1.msra.mxu0 0.0
    %461 = vmatprep.subr.mxu0 0.0
    %462 = vmatpush1.msra.mxu0 0.0
    %463 = vmatprep.subr.mxu0 0.0
    %464 = vmatpush1.msra.mxu0 0.0
    %465 = vmatprep.subr.mxu0 0.0
    %466 = vmatpush1.msra.mxu0 0.0
    %467 = vmatprep.subr.mxu0 0.0
    %468 = vmatpush1.msra.mxu0 0.0
    %469 = vmatprep.subr.mxu0 0.0
    %470 = vmatpush1.msra.mxu0 0.0
    %471 = vmatprep.subr.mxu0 0.0
    %472 = vmatpush1.msra.mxu0 0.0
    %473 = vmatprep.subr.mxu0 0.0
    %474 = vmatpush1.msra.mxu0 0.0
    %475 = vmatprep.subr.mxu0 0.0
    %476 = vmatpush1.msra.mxu0 0.0
    %477 = vmatprep.subr.mxu0 0.0
    %478 = vmatpush1.msra.mxu0 0.0
    %479 = vmatprep.subr.mxu0 0.0
    %480 = vmatpush1.msra.mxu0 0.0
    %481 = vmatprep.subr.mxu0 0.0
    %482 = vmatpush1.msra.mxu0 0.0
    %483 = vmatprep.subr.mxu0 0.0
    %484 = vmatpush1.msra.mxu0 0.0
    %485 = vmatprep.subr.mxu0 0.0
    %486 = vmatpush1.msra.mxu0 %v352
    %487 = vmatprep.subr.mxu0 0.0
    %488 = vmatpush1.msra.mxu0 %v351
    %489 = vmatprep.subr.mxu0 0.0
    %490 = vmatpush2.msra.mxu0 0.0
    %491 = vmatprep.subr.mxu0 0.0
    %492 = vmatpush2.msra.mxu0 0.0
    %493 = vmatprep.subr.mxu0 0.0
    %494 = vmatpush2.msra.mxu0 0.0
    %495 = vmatprep.subr.mxu0 0.0
    %496 = vmatpush2.msra.mxu0 0.0
    %497 = vmatprep.subr.mxu0 0.0
    %498 = vmatpush2.msra.mxu0 0.0
    %499 = vmatprep.subr.mxu0 0.0
    %500 = vmatpush2.msra.mxu0 0.0
    %501 = vmatprep.subr.mxu0 0.0
    %502 = vmatpush2.msra.mxu0 0.0
    %503 = vmatprep.subr.mxu0 0.0
    %504 = vmatpush2.msra.mxu0 0.0
    %505 = vmatprep.subr.mxu0 0.0
    %506 = vmatpush2.msra.mxu0 0.0
    %507 = vmatprep.subr.mxu0 0.0
    %508 = vmatpush2.msra.mxu0 0.0
    %509 = vmatprep.subr.mxu0 0.0
    %510 = vmatpush2.msra.mxu0 0.0
    %511 = vmatprep.subr.mxu0 0.0
    %512 = vmatpush2.msra.mxu0 0.0
    %513 = vmatprep.subr.mxu0 0.0
    %514 = vmatpush2.msra.mxu0 0.0
    %515 = vmatprep.subr.mxu0 0.0
    %516 = vmatpush2.msra.mxu0 0.0
    %517 = vmatprep.subr.mxu0 0.0
    %518 = vmatpush2.msra.mxu0 0.0
    %519 = vmatprep.subr.mxu0 0.0
    %520 = vmatpush2.msra.mxu0 0.0
    %521 = vmatprep.mubr.f32.mxu0 0.0
    %522 = vmatmul.mubr.f32.gmra.mxu0 %v455
    %v523 = vpop.f32.mrf.mxu0
    %v524 = vadd.f32 0.0, %v523
    %v525 = vpop.f32.mrf.mxu0
    %526 = vdwg.mxu0
    %v528 = vrot.slane %v524, 6
    %v530 = vadd.f32 %v343, %v528
    %v531 = vxor.u32 %v530, 2147483648
    %v532 = vmul.f32 %v531, 1.442695
    %v533 = vpow.pop %v532
    %v534 = vadd.f32 %v533, 1.0
    %v535 = vrcp.pop %v534
    %v536 = vmul.f32 1.0, %v535
    %v537 = vtanh.pop %v530
    %v539 = vrot.slane %v445, 6
    %v541 = vmul.f32 %v536, %v539
    %543 = vrot.lane.b32.xlu0 %v537, 96
    %v544 = vpop.permute.xlu0 %543
    %v546 = vmul.f32 %v536, %v544
    %548 = vrot.lane.b32.xlu0 %v546, 16
    %v549 = vpop.permute.xlu0 %548
    %v551 = vadd.f32 %v541, %v549
    %v552 = vtanh.pop %v551
    %554 = vrot.lane.b32.xlu0 %v552, 32
    %v555 = vpop.permute.xlu0 %554
    %v557 = vmul.f32 %v536, %v555
    %v559 = vrot.slane %v557, 2
    %560 = vrot.lane.b32.xlu0 %v559, 80
    %v561 = vpop.permute.xlu0 %560
    %v562 = vsel %vm353, %v561, 0
    %564 = vmatprep.subr.mxu0 0.0
    %565 = vmatpush1.msra.mxu0 0.0
    %566 = vmatprep.subr.mxu0 0.0
    %567 = vmatpush1.msra.mxu0 0.0
    %568 = vmatprep.subr.mxu0 0.0
    %569 = vmatpush1.msra.mxu0 0.0
    %570 = vmatprep.subr.mxu0 0.0
    %571 = vmatpush1.msra.mxu0 0.0
    %572 = vmatprep.subr.mxu0 0.0
    %573 = vmatpush1.msra.mxu0 0.0
    %574 = vmatprep.subr.mxu0 0.0
    %575 = vmatpush1.msra.mxu0 0.0
    %576 = vmatprep.subr.mxu0 0.0
    %577 = vmatpush1.msra.mxu0 0.0
    %578 = vmatprep.subr.mxu0 0.0
    %579 = vmatpush1.msra.mxu0 0.0
    %580 = vmatprep.subr.mxu0 0.0
    %581 = vmatpush1.msra.mxu0 0.0
    %582 = vmatprep.subr.mxu0 0.0
    %583 = vmatpush1.msra.mxu0 0.0
    %584 = vmatprep.subr.mxu0 0.0
    %585 = vmatpush1.msra.mxu0 0.0
    %586 = vmatprep.subr.mxu0 0.0
    %587 = vmatpush1.msra.mxu0 0.0
    %588 = vmatprep.subr.mxu0 0.0
    %589 = vmatpush1.msra.mxu0 0.0
    %590 = vmatprep.subr.mxu0 0.0
    %591 = vmatpush1.msra.mxu0 0.0
    %592 = vmatprep.subr.mxu0 0.0
    %593 = vmatpush1.msra.mxu0 %v352
    %594 = vmatprep.subr.mxu0 0.0
    %595 = vmatpush1.msra.mxu0 %v351
    %596 = vmatprep.subr.mxu0 0.0
    %597 = vmatpush2.msra.mxu0 0.0
    %598 = vmatprep.subr.mxu0 0.0
    %599 = vmatpush2.msra.mxu0 0.0
    %600 = vmatprep.subr.mxu0 0.0
    %601 = vmatpush2.msra.mxu0 0.0
    %602 = vmatprep.subr.mxu0 0.0
    %603 = vmatpush2.msra.mxu0 0.0
    %604 = vmatprep.subr.mxu0 0.0
    %605 = vmatpush2.msra.mxu0 0.0
    %606 = vmatprep.subr.mxu0 0.0
    %607 = vmatpush2.msra.mxu0 0.0
    %608 = vmatprep.subr.mxu0 0.0
    %609 = vmatpush2.msra.mxu0 0.0
    %610 = vmatprep.subr.mxu0 0.0
    %611 = vmatpush2.msra.mxu0 0.0
    %612 = vmatprep.subr.mxu0 0.0
    %613 = vmatpush2.msra.mxu0 0.0
    %614 = vmatprep.subr.mxu0 0.0
    %615 = vmatpush2.msra.mxu0 0.0
    %616 = vmatprep.subr.mxu0 0.0
    %617 = vmatpush2.msra.mxu0 0.0
    %618 = vmatprep.subr.mxu0 0.0
    %619 = vmatpush2.msra.mxu0 0.0
    %620 = vmatprep.subr.mxu0 0.0
    %621 = vmatpush2.msra.mxu0 0.0
    %622 = vmatprep.subr.mxu0 0.0
    %623 = vmatpush2.msra.mxu0 0.0
    %624 = vmatprep.subr.mxu0 0.0
    %625 = vmatpush2.msra.mxu0 0.0
    %626 = vmatprep.subr.mxu0 0.0
    %627 = vmatpush2.msra.mxu0 0.0
    %628 = vmatprep.mubr.f32.mxu0 0.0
    %629 = vmatmul.mubr.f32.gmra.mxu0 %v562
    %v630 = vpop.f32.mrf.mxu0
    %v631 = vadd.f32 0.0, %v630
    %v632 = vpop.f32.mrf.mxu0
    %633 = vdwg.mxu0
    %v635 = vrot.slane %v631, 4
    %v637 = vadd.f32 %v343, %v635
    %v638 = vxor.u32 %v637, 2147483648
    %v639 = vmul.f32 %v638, 1.442695
    %v640 = vpow.pop %v639
    %v641 = vadd.f32 %v640, 1.0
    %v642 = vrcp.pop %v641
    %v643 = vmul.f32 1.0, %v642
    %v644 = vtanh.pop %v637
    %v646 = vrot.slane %v551, 6
    %v648 = vmul.f32 %v643, %v646
    %650 = vrot.lane.b32.xlu0 %v644, 96
    %v651 = vpop.permute.xlu0 %650
    %v653 = vmul.f32 %v643, %v651
    %655 = vrot.lane.b32.xlu0 %v653, 16
    %v656 = vpop.permute.xlu0 %655
    %v658 = vadd.f32 %v648, %v656
    %v659 = vtanh.pop %v658
    %661 = vrot.lane.b32.xlu0 %v659, 32
    %v662 = vpop.permute.xlu0 %661
    %v664 = vmul.f32 %v643, %v662
    %v666 = vrot.slane %v664, 4
    %667 = vrot.lane.b32.xlu0 %v666, 80
    %v668 = vpop.permute.xlu0 %667
    %v669 = vsel %vm353, %v668, 0
    %671 = vmatprep.subr.mxu0 0.0
    %672 = vmatpush1.msra.mxu0 0.0
    %673 = vmatprep.subr.mxu0 0.0
    %674 = vmatpush1.msra.mxu0 0.0
    %675 = vmatprep.subr.mxu0 0.0
    %676 = vmatpush1.msra.mxu0 0.0
    %677 = vmatprep.subr.mxu0 0.0
    %678 = vmatpush1.msra.mxu0 0.0
    %679 = vmatprep.subr.mxu0 0.0
    %680 = vmatpush1.msra.mxu0 0.0
    %681 = vmatprep.subr.mxu0 0.0
    %682 = vmatpush1.msra.mxu0 0.0
    %683 = vmatprep.subr.mxu0 0.0
    %684 = vmatpush1.msra.mxu0 0.0
    %685 = vmatprep.subr.mxu0 0.0
    %686 = vmatpush1.msra.mxu0 0.0
    %687 = vmatprep.subr.mxu0 0.0
    %688 = vmatpush1.msra.mxu0 0.0
    %689 = vmatprep.subr.mxu0 0.0
    %690 = vmatpush1.msra.mxu0 0.0
    %691 = vmatprep.subr.mxu0 0.0
    %692 = vmatpush1.msra.mxu0 0.0
    %693 = vmatprep.subr.mxu0 0.0
    %694 = vmatpush1.msra.mxu0 0.0
    %695 = vmatprep.subr.mxu0 0.0
    %696 = vmatpush1.msra.mxu0 0.0
    %697 = vmatprep.subr.mxu0 0.0
    %698 = vmatpush1.msra.mxu0 0.0
    %699 = vmatprep.subr.mxu0 0.0
    %700 = vmatpush1.msra.mxu0 %v352
    %701 = vmatprep.subr.mxu0 0.0
    %702 = vmatpush1.msra.mxu0 %v351
    %703 = vmatprep.subr.mxu0 0.0
    %704 = vmatpush2.msra.mxu0 0.0
    %705 = vmatprep.subr.mxu0 0.0
    %706 = vmatpush2.msra.mxu0 0.0
    %707 = vmatprep.subr.mxu0 0.0
    %708 = vmatpush2.msra.mxu0 0.0
    %709 = vmatprep.subr.mxu0 0.0
    %710 = vmatpush2.msra.mxu0 0.0
    %711 = vmatprep.subr.mxu0 0.0
    %712 = vmatpush2.msra.mxu0 0.0
    %713 = vmatprep.subr.mxu0 0.0
    %714 = vmatpush2.msra.mxu0 0.0
    %715 = vmatprep.subr.mxu0 0.0
    %716 = vmatpush2.msra.mxu0 0.0
    %717 = vmatprep.subr.mxu0 0.0
    %718 = vmatpush2.msra.mxu0 0.0
    %719 = vmatprep.subr.mxu0 0.0
    %720 = vmatpush2.msra.mxu0 0.0
    %721 = vmatprep.subr.mxu0 0.0
    %722 = vmatpush2.msra.mxu0 0.0
    %723 = vmatprep.subr.mxu0 0.0
    %724 = vmatpush2.msra.mxu0 0.0
    %725 = vmatprep.subr.mxu0 0.0
    %726 = vmatpush2.msra.mxu0 0.0
    %727 = vmatprep.subr.mxu0 0.0
    %728 = vmatpush2.msra.mxu0 0.0
    %729 = vmatprep.subr.mxu0 0.0
    %730 = vmatpush2.msra.mxu0 0.0
    %731 = vmatprep.subr.mxu0 0.0
    %732 = vmatpush2.msra.mxu0 0.0
    %733 = vmatprep.subr.mxu0 0.0
    %734 = vmatpush2.msra.mxu0 0.0
    %735 = vmatprep.mubr.f32.mxu0 0.0
    %736 = vmatmul.mubr.f32.gmra.mxu0 %v669
    %v737 = vpop.f32.mrf.mxu0
    %v738 = vadd.f32 0.0, %v737
    %v739 = vpop.f32.mrf.mxu0
    %740 = vdwg.mxu0
    %v742 = vrot.slane %v738, 2
    %v744 = vadd.f32 %v343, %v742
    %v745 = vxor.u32 %v744, 2147483648
    %v746 = vmul.f32 %v745, 1.442695
    %v747 = vpow.pop %v746
    %v748 = vadd.f32 %v747, 1.0
    %v749 = vrcp.pop %v748
    %v750 = vmul.f32 1.0, %v749
    %v751 = vtanh.pop %v744
    %v753 = vrot.slane %v658, 6
    %v755 = vmul.f32 %v750, %v753
    %757 = vrot.lane.b32.xlu0 %v751, 96
    %v758 = vpop.permute.xlu0 %757
    %v760 = vmul.f32 %v750, %v758
    %762 = vrot.lane.b32.xlu0 %v760, 16
    %v763 = vpop.permute.xlu0 %762
    %v765 = vadd.f32 %v755, %v763
    %v766 = vtanh.pop %v765
    %768 = vrot.lane.b32.xlu0 %v766, 32
    %v769 = vpop.permute.xlu0 %768
    %v771 = vmul.f32 %v750, %v769
    %v773 = vrot.slane %v771, 6
    %774 = vrot.lane.b32.xlu0 %v773, 80
    %v775 = vpop.permute.xlu0 %774
    %v776 = vsel %vm353, %v775, 0
    %778 = vmatprep.subr.mxu0 0.0
    %779 = vmatpush1.msra.mxu0 0.0
    %780 = vmatprep.subr.mxu0 0.0
    %781 = vmatpush1.msra.mxu0 0.0
    %782 = vmatprep.subr.mxu0 0.0
    %783 = vmatpush1.msra.mxu0 0.0
    %784 = vmatprep.subr.mxu0 0.0
    %785 = vmatpush1.msra.mxu0 0.0
    %786 = vmatprep.subr.mxu0 0.0
    %787 = vmatpush1.msra.mxu0 0.0
    %788 = vmatprep.subr.mxu0 0.0
    %789 = vmatpush1.msra.mxu0 0.0
    %790 = vmatprep.subr.mxu0 0.0
    %791 = vmatpush1.msra.mxu0 0.0
    %792 = vmatprep.subr.mxu0 0.0
    %793 = vmatpush1.msra.mxu0 0.0
    %794 = vmatprep.subr.mxu0 0.0
    %795 = vmatpush1.msra.mxu0 0.0
    %796 = vmatprep.subr.mxu0 0.0
    %797 = vmatpush1.msra.mxu0 0.0
    %798 = vmatprep.subr.mxu0 0.0
    %799 = vmatpush1.msra.mxu0 0.0
    %800 = vmatprep.subr.mxu0 0.0
    %801 = vmatpush1.msra.mxu0 0.0
    %802 = vmatprep.subr.mxu0 0.0
    %803 = vmatpush1.msra.mxu0 0.0
    %804 = vmatprep.subr.mxu0 0.0
    %805 = vmatpush1.msra.mxu0 0.0
    %806 = vmatprep.subr.mxu0 0.0
    %807 = vmatpush1.msra.mxu0 %v352
    %808 = vmatprep.subr.mxu0 0.0
    %809 = vmatpush1.msra.mxu0 %v351
    %810 = vmatprep.subr.mxu0 0.0
    %811 = vmatpush2.msra.mxu0 0.0
    %812 = vmatprep.subr.mxu0 0.0
    %813 = vmatpush2.msra.mxu0 0.0
    %814 = vmatprep.subr.mxu0 0.0
    %815 = vmatpush2.msra.mxu0 0.0
    %816 = vmatprep.subr.mxu0 0.0
    %817 = vmatpush2.msra.mxu0 0.0
    %818 = vmatprep.subr.mxu0 0.0
    %819 = vmatpush2.msra.mxu0 0.0
    %820 = vmatprep.subr.mxu0 0.0
    %821 = vmatpush2.msra.mxu0 0.0
    %822 = vmatprep.subr.mxu0 0.0
    %823 = vmatpush2.msra.mxu0 0.0
    %824 = vmatprep.subr.mxu0 0.0
    %825 = vmatpush2.msra.mxu0 0.0
    %826 = vmatprep.subr.mxu0 0.0
    %827 = vmatpush2.msra.mxu0 0.0
    %828 = vmatprep.subr.mxu0 0.0
    %829 = vmatpush2.msra.mxu0 0.0
    %830 = vmatprep.subr.mxu0 0.0
    %831 = vmatpush2.msra.mxu0 0.0
    %832 = vmatprep.subr.mxu0 0.0
    %833 = vmatpush2.msra.mxu0 0.0
    %834 = vmatprep.subr.mxu0 0.0
    %835 = vmatpush2.msra.mxu0 0.0
    %836 = vmatprep.subr.mxu0 0.0
    %837 = vmatpush2.msra.mxu0 0.0
    %838 = vmatprep.subr.mxu0 0.0
    %839 = vmatpush2.msra.mxu0 0.0
    %840 = vmatprep.subr.mxu0 0.0
    %841 = vmatpush2.msra.mxu0 0.0
    %842 = vmatprep.mubr.f32.mxu0 0.0
    %843 = vmatmul.mubr.f32.gmra.mxu0 %v776
    %v844 = vpop.f32.mrf.mxu0
    %v845 = vadd.f32 0.0, %v844
    %v846 = vpop.f32.mrf.mxu0
    %847 = vdwg.mxu0
    %v848 = vadd.f32 %v348, %v845
    %v849 = vxor.u32 %v848, 2147483648
    %v850 = vmul.f32 %v849, 1.442695
    %v851 = vpow.pop %v850
    %v852 = vadd.f32 %v851, 1.0
    %v853 = vrcp.pop %v852
    %v854 = vmul.f32 1.0, %v853
    %v855 = vtanh.pop %v848
    %v857 = vrot.slane %v765, 6
    %v859 = vmul.f32 %v854, %v857
    %861 = vrot.lane.b32.xlu0 %v855, 96
    %v862 = vpop.permute.xlu0 %861
    %v864 = vmul.f32 %v854, %v862
    %866 = vrot.lane.b32.xlu0 %v864, 16
    %v867 = vpop.permute.xlu0 %866
    %v869 = vadd.f32 %v859, %v867
    %v870 = vtanh.pop %v869
    %872 = vrot.lane.b32.xlu0 %v870, 32
    %v873 = vpop.permute.xlu0 %872
    %v875 = vmul.f32 %v854, %v873
    %877 = vrot.lane.b32.xlu0 %v875, 80
    %v878 = vpop.permute.xlu0 %877
    %v879 = vsel %vm353, %v878, 0
    %881 = vmatprep.subr.mxu0 0.0
    %882 = vmatpush1.msra.mxu0 0.0
    %883 = vmatprep.subr.mxu0 0.0
    %884 = vmatpush1.msra.mxu0 0.0
    %885 = vmatprep.subr.mxu0 0.0
    %886 = vmatpush1.msra.mxu0 0.0
    %887 = vmatprep.subr.mxu0 0.0
    %888 = vmatpush1.msra.mxu0 0.0
    %889 = vmatprep.subr.mxu0 0.0
    %890 = vmatpush1.msra.mxu0 0.0
    %891 = vmatprep.subr.mxu0 0.0
    %892 = vmatpush1.msra.mxu0 0.0
    %893 = vmatprep.subr.mxu0 0.0
    %894 = vmatpush1.msra.mxu0 0.0
    %895 = vmatprep.subr.mxu0 0.0
    %896 = vmatpush1.msra.mxu0 0.0
    %897 = vmatprep.subr.mxu0 0.0
    %898 = vmatpush1.msra.mxu0 0.0
    %899 = vmatprep.subr.mxu0 0.0
    %900 = vmatpush1.msra.mxu0 0.0
    %901 = vmatprep.subr.mxu0 0.0
    %902 = vmatpush1.msra.mxu0 0.0
    %903 = vmatprep.subr.mxu0 0.0
    %904 = vmatpush1.msra.mxu0 0.0
    %905 = vmatprep.subr.mxu0 0.0
    %906 = vmatpush1.msra.mxu0 0.0
    %907 = vmatprep.subr.mxu0 0.0
    %908 = vmatpush1.msra.mxu0 0.0
    %909 = vmatprep.subr.mxu0 0.0
    %910 = vmatpush1.msra.mxu0 %v352
    %911 = vmatprep.subr.mxu0 0.0
    %912 = vmatpush1.msra.mxu0 %v351
    %913 = vmatprep.subr.mxu0 0.0
    %914 = vmatpush2.msra.mxu0 0.0
    %915 = vmatprep.subr.mxu0 0.0
    %916 = vmatpush2.msra.mxu0 0.0
    %917 = vmatprep.subr.mxu0 0.0
    %918 = vmatpush2.msra.mxu0 0.0
    %919 = vmatprep.subr.mxu0 0.0
    %920 = vmatpush2.msra.mxu0 0.0
    %921 = vmatprep.subr.mxu0 0.0
    %922 = vmatpush2.msra.mxu0 0.0
    %923 = vmatprep.subr.mxu0 0.0
    %924 = vmatpush2.msra.mxu0 0.0
    %925 = vmatprep.subr.mxu0 0.0
    %926 = vmatpush2.msra.mxu0 0.0
    %927 = vmatprep.subr.mxu0 0.0
    %928 = vmatpush2.msra.mxu0 0.0
    %929 = vmatprep.subr.mxu0 0.0
    %930 = vmatpush2.msra.mxu0 0.0
    %931 = vmatprep.subr.mxu0 0.0
    %932 = vmatpush2.msra.mxu0 0.0
    %933 = vmatprep.subr.mxu0 0.0
    %934 = vmatpush2.msra.mxu0 0.0
    %935 = vmatprep.subr.mxu0 0.0
    %936 = vmatpush2.msra.mxu0 0.0
    %937 = vmatprep.subr.mxu0 0.0
    %938 = vmatpush2.msra.mxu0 0.0
    %939 = vmatprep.subr.mxu0 0.0
    %940 = vmatpush2.msra.mxu0 0.0
    %941 = vmatprep.subr.mxu0 0.0
    %942 = vmatpush2.msra.mxu0 0.0
    %943 = vmatprep.subr.mxu0 0.0
    %944 = vmatpush2.msra.mxu0 0.0
    %945 = vmatprep.mubr.f32.mxu0 0.0
    %946 = vmatmul.mubr.f32.gmra.mxu0 %v879
    %v947 = vpop.f32.mrf.mxu0
    %v948 = vadd.f32 0.0, %v947
    %v949 = vpop.f32.mrf.mxu0
    %950 = vdwg.mxu0
    %v952 = vrot.slane %v948, 6
    %v954 = vadd.f32 %v348, %v952
    %v955 = vxor.u32 %v954, 2147483648
    %v956 = vmul.f32 %v955, 1.442695
    %v957 = vpow.pop %v956
    %v958 = vadd.f32 %v957, 1.0
    %v959 = vrcp.pop %v958
    %v960 = vmul.f32 1.0, %v959
    %v961 = vtanh.pop %v954
    %v963 = vrot.slane %v869, 6
    %v965 = vmul.f32 %v960, %v963
    %967 = vrot.lane.b32.xlu0 %v961, 96
    %v968 = vpop.permute.xlu0 %967
    %v970 = vmul.f32 %v960, %v968
    %972 = vrot.lane.b32.xlu0 %v970, 16
    %v973 = vpop.permute.xlu0 %972
    %v975 = vadd.f32 %v965, %v973
    %v976 = vtanh.pop %v975
    %978 = vrot.lane.b32.xlu0 %v976, 32
    %v979 = vpop.permute.xlu0 %978
    %v981 = vmul.f32 %v960, %v979
    %v983 = vrot.slane %v981, 2
    %984 = vrot.lane.b32.xlu0 %v983, 80
    %v985 = vpop.permute.xlu0 %984
    %v986 = vsel %vm353, %v985, 0
    %988 = vmatprep.subr.mxu0 0.0
    %989 = vmatpush1.msra.mxu0 0.0
    %990 = vmatprep.subr.mxu0 0.0
    %991 = vmatpush1.msra.mxu0 0.0
    %992 = vmatprep.subr.mxu0 0.0
    %993 = vmatpush1.msra.mxu0 0.0
    %994 = vmatprep.subr.mxu0 0.0
    %995 = vmatpush1.msra.mxu0 0.0
    %996 = vmatprep.subr.mxu0 0.0
    %997 = vmatpush1.msra.mxu0 0.0
    %998 = vmatprep.subr.mxu0 0.0
    %999 = vmatpush1.msra.mxu0 0.0
    %1000 = vmatprep.subr.mxu0 0.0
    %1001 = vmatpush1.msra.mxu0 0.0
    %1002 = vmatprep.subr.mxu0 0.0
    %1003 = vmatpush1.msra.mxu0 0.0
    %1004 = vmatprep.subr.mxu0 0.0
    %1005 = vmatpush1.msra.mxu0 0.0
    %1006 = vmatprep.subr.mxu0 0.0
    %1007 = vmatpush1.msra.mxu0 0.0
    %1008 = vmatprep.subr.mxu0 0.0
    %1009 = vmatpush1.msra.mxu0 0.0
    %1010 = vmatprep.subr.mxu0 0.0
    %1011 = vmatpush1.msra.mxu0 0.0
    %1012 = vmatprep.subr.mxu0 0.0
    %1013 = vmatpush1.msra.mxu0 0.0
    %1014 = vmatprep.subr.mxu0 0.0
    %1015 = vmatpush1.msra.mxu0 0.0
    %1016 = vmatprep.subr.mxu0 0.0
    %1017 = vmatpush1.msra.mxu0 %v352
    %1018 = vmatprep.subr.mxu0 0.0
    %1019 = vmatpush1.msra.mxu0 %v351
    %1020 = vmatprep.subr.mxu0 0.0
    %1021 = vmatpush2.msra.mxu0 0.0
    %1022 = vmatprep.subr.mxu0 0.0
    %1023 = vmatpush2.msra.mxu0 0.0
    %1024 = vmatprep.subr.mxu0 0.0
    %1025 = vmatpush2.msra.mxu0 0.0
    %1026 = vmatprep.subr.mxu0 0.0
    %1027 = vmatpush2.msra.mxu0 0.0
    %1028 = vmatprep.subr.mxu0 0.0
    %1029 = vmatpush2.msra.mxu0 0.0
    %1030 = vmatprep.subr.mxu0 0.0
    %1031 = vmatpush2.msra.mxu0 0.0
    %1032 = vmatprep.subr.mxu0 0.0
    %1033 = vmatpush2.msra.mxu0 0.0
    %1034 = vmatprep.subr.mxu0 0.0
    %1035 = vmatpush2.msra.mxu0 0.0
    %1036 = vmatprep.subr.mxu0 0.0
    %1037 = vmatpush2.msra.mxu0 0.0
    %1038 = vmatprep.subr.mxu0 0.0
    %1039 = vmatpush2.msra.mxu0 0.0
    %1040 = vmatprep.subr.mxu0 0.0
    %1041 = vmatpush2.msra.mxu0 0.0
    %1042 = vmatprep.subr.mxu0 0.0
    %1043 = vmatpush2.msra.mxu0 0.0
    %1044 = vmatprep.subr.mxu0 0.0
    %1045 = vmatpush2.msra.mxu0 0.0
    %1046 = vmatprep.subr.mxu0 0.0
    %1047 = vmatpush2.msra.mxu0 0.0
    %1048 = vmatprep.subr.mxu0 0.0
    %1049 = vmatpush2.msra.mxu0 0.0
    %1050 = vmatprep.subr.mxu0 0.0
    %1051 = vmatpush2.msra.mxu0 0.0
    %1052 = vmatprep.mubr.f32.mxu0 0.0
    %1053 = vmatmul.mubr.f32.gmra.mxu0 %v986
    %v1054 = vpop.f32.mrf.mxu0
    %v1055 = vadd.f32 0.0, %v1054
    %v1056 = vpop.f32.mrf.mxu0
    %1057 = vdwg.mxu0
    %v1059 = vrot.slane %v1055, 4
    %v1061 = vadd.f32 %v348, %v1059
    %v1062 = vxor.u32 %v1061, 2147483648
    %v1063 = vmul.f32 %v1062, 1.442695
    %v1064 = vpow.pop %v1063
    %v1065 = vadd.f32 %v1064, 1.0
    %v1066 = vrcp.pop %v1065
    %v1067 = vmul.f32 1.0, %v1066
    %v1068 = vtanh.pop %v1061
    %v1070 = vrot.slane %v975, 6
    %v1072 = vmul.f32 %v1067, %v1070
    %1074 = vrot.lane.b32.xlu0 %v1068, 96
    %v1075 = vpop.permute.xlu0 %1074
    %v1077 = vmul.f32 %v1067, %v1075
    %1079 = vrot.lane.b32.xlu0 %v1077, 16
    %v1080 = vpop.permute.xlu0 %1079
    %v1082 = vadd.f32 %v1072, %v1080
    %v1083 = vtanh.pop %v1082
    %1085 = vrot.lane.b32.xlu0 %v1083, 32
    %v1086 = vpop.permute.xlu0 %1085
    %v1088 = vmul.f32 %v1067, %v1086
    %v1090 = vrot.slane %v1088, 4
    %1091 = vrot.lane.b32.xlu0 %v1090, 80
    %v1092 = vpop.permute.xlu0 %1091
    %v1093 = vsel %vm353, %v1092, 0
    %1095 = vmatprep.subr.mxu0 0.0
    %1096 = vmatpush1.msra.mxu0 0.0
    %1097 = vmatprep.subr.mxu0 0.0
    %1098 = vmatpush1.msra.mxu0 0.0
    %1099 = vmatprep.subr.mxu0 0.0
    %1100 = vmatpush1.msra.mxu0 0.0
    %1101 = vmatprep.subr.mxu0 0.0
    %1102 = vmatpush1.msra.mxu0 0.0
    %1103 = vmatprep.subr.mxu0 0.0
    %1104 = vmatpush1.msra.mxu0 0.0
    %1105 = vmatprep.subr.mxu0 0.0
    %1106 = vmatpush1.msra.mxu0 0.0
    %1107 = vmatprep.subr.mxu0 0.0
    %1108 = vmatpush1.msra.mxu0 0.0
    %1109 = vmatprep.subr.mxu0 0.0
    %1110 = vmatpush1.msra.mxu0 0.0
    %1111 = vmatprep.subr.mxu0 0.0
    %1112 = vmatpush1.msra.mxu0 0.0
    %1113 = vmatprep.subr.mxu0 0.0
    %1114 = vmatpush1.msra.mxu0 0.0
    %1115 = vmatprep.subr.mxu0 0.0
    %1116 = vmatpush1.msra.mxu0 0.0
    %1117 = vmatprep.subr.mxu0 0.0
    %1118 = vmatpush1.msra.mxu0 0.0
    %1119 = vmatprep.subr.mxu0 0.0
    %1120 = vmatpush1.msra.mxu0 0.0
    %1121 = vmatprep.subr.mxu0 0.0
    %1122 = vmatpush1.msra.mxu0 0.0
    %1123 = vmatprep.subr.mxu0 0.0
    %1124 = vmatpush1.msra.mxu0 %v352
    %1125 = vmatprep.subr.mxu0 0.0
    %1126 = vmatpush1.msra.mxu0 %v351
    %1127 = vmatprep.subr.mxu0 0.0
    %1128 = vmatpush2.msra.mxu0 0.0
    %1129 = vmatprep.subr.mxu0 0.0
    %1130 = vmatpush2.msra.mxu0 0.0
    %1131 = vmatprep.subr.mxu0 0.0
    %1132 = vmatpush2.msra.mxu0 0.0
    %1133 = vmatprep.subr.mxu0 0.0
    %1134 = vmatpush2.msra.mxu0 0.0
    %1135 = vmatprep.subr.mxu0 0.0
    %1136 = vmatpush2.msra.mxu0 0.0
    %1137 = vmatprep.subr.mxu0 0.0
    %1138 = vmatpush2.msra.mxu0 0.0
    %1139 = vmatprep.subr.mxu0 0.0
    %1140 = vmatpush2.msra.mxu0 0.0
    %1141 = vmatprep.subr.mxu0 0.0
    %1142 = vmatpush2.msra.mxu0 0.0
    %1143 = vmatprep.subr.mxu0 0.0
    %1144 = vmatpush2.msra.mxu0 0.0
    %1145 = vmatprep.subr.mxu0 0.0
    %1146 = vmatpush2.msra.mxu0 0.0
    %1147 = vmatprep.subr.mxu0 0.0
    %1148 = vmatpush2.msra.mxu0 0.0
    %1149 = vmatprep.subr.mxu0 0.0
    %1150 = vmatpush2.msra.mxu0 0.0
    %1151 = vmatprep.subr.mxu0 0.0
    %1152 = vmatpush2.msra.mxu0 0.0
    %1153 = vmatprep.subr.mxu0 0.0
    %1154 = vmatpush2.msra.mxu0 0.0
    %1155 = vmatprep.subr.mxu0 0.0
    %1156 = vmatpush2.msra.mxu0 0.0
    %1157 = vmatprep.subr.mxu0 0.0
    %1158 = vmatpush2.msra.mxu0 0.0
    %1159 = vmatprep.mubr.f32.mxu0 0.0
    %1160 = vmatmul.mubr.f32.gmra.mxu0 %v1093
    %v1161 = vpop.f32.mrf.mxu0
    %v1162 = vadd.f32 0.0, %v1161
    %v1163 = vpop.f32.mrf.mxu0
    %1164 = vdwg.mxu0
    %v1166 = vrot.slane %v1162, 2
    %v1168 = vadd.f32 %v348, %v1166
    %v1169 = vxor.u32 %v1168, 2147483648
    %v1170 = vmul.f32 %v1169, 1.442695
    %v1171 = vpow.pop %v1170
    %v1172 = vadd.f32 %v1171, 1.0
    %v1173 = vrcp.pop %v1172
    %v1174 = vmul.f32 1.0, %v1173
    %v1175 = vtanh.pop %v1168
    %v1177 = vrot.slane %v1082, 6
    %v1179 = vmul.f32 %v1174, %v1177
    %1181 = vrot.lane.b32.xlu0 %v1175, 96
    %v1182 = vpop.permute.xlu0 %1181
    %v1184 = vmul.f32 %v1174, %v1182
    %1186 = vrot.lane.b32.xlu0 %v1184, 16
    %v1187 = vpop.permute.xlu0 %1186
    %v1189 = vadd.f32 %v1179, %v1187
    %v1190 = vtanh.pop %v1189
    %1192 = vrot.lane.b32.xlu0 %v1190, 32
    %v1193 = vpop.permute.xlu0 %1192
    %v1195 = vmul.f32 %v1174, %v1193
    %vm1196 = vcmask 1041408
    %v1197 = vsel %vm1196, %v451, %v557
    %vm1198 = vcmask 1043456
    %v1199 = vsel %vm1198, %v1197, %v664
    %vm1200 = vcmask 1045504
    %v1201 = vsel %vm1200, %v1199, %v771
    %v1202 = vsel %vm1196, %v875, %v981
    %v1203 = vsel %vm1198, %v1202, %v1088
    %v1204 = vsel %vm1200, %v1203, %v1195
    %v1205 = vld [vmem:[#allocation6] sm:$0xff]
    %v1206 = vld [vmem:[#allocation9] sm:$0x1]
    %v1208 = vlaneseq
    %v1209 = vshrl.u32 %v1208, 7
    %v1210 = vsub.s32 0, %v1209
    %v1211 = vrot.slane %v1206, %v1210
    %1213 = vmatprep.subr.mxu0 0.0
    %1214 = vmatpush1.msra.mxu0 0.0
    %1215 = vmatprep.subr.mxu0 0.0
    %1216 = vmatpush1.msra.mxu0 0.0
    %1217 = vmatprep.subr.mxu0 0.0
    %1218 = vmatpush1.msra.mxu0 0.0
    %1219 = vmatprep.subr.mxu0 0.0
    %1220 = vmatpush1.msra.mxu0 0.0
    %1221 = vmatprep.subr.mxu0 0.0
    %1222 = vmatpush1.msra.mxu0 0.0
    %1223 = vmatprep.subr.mxu0 0.0
    %1224 = vmatpush1.msra.mxu0 0.0
    %1225 = vmatprep.subr.mxu0 0.0
    %1226 = vmatpush1.msra.mxu0 0.0
    %1227 = vmatprep.subr.mxu0 0.0
    %1228 = vmatpush1.msra.mxu0 0.0
    %1229 = vmatprep.subr.mxu0 0.0
    %1230 = vmatpush1.msra.mxu0 0.0
    %1231 = vmatprep.subr.mxu0 0.0
    %1232 = vmatpush1.msra.mxu0 0.0
    %1233 = vmatprep.subr.mxu0 0.0
    %1234 = vmatpush1.msra.mxu0 0.0
    %1235 = vmatprep.subr.mxu0 0.0
    %1236 = vmatpush1.msra.mxu0 0.0
    %1237 = vmatprep.subr.mxu0 0.0
    %1238 = vmatpush1.msra.mxu0 0.0
    %1239 = vmatprep.subr.mxu0 0.0
    %1240 = vmatpush1.msra.mxu0 0.0
    %1241 = vmatprep.subr.mxu0 0.0
    %1242 = vmatpush1.msra.mxu0 0.0
    %1243 = vmatprep.subr.mxu0 0.0
    %1244 = vmatpush1.msra.mxu0 %v1205
    %1245 = vmatprep.subr.mxu0 0.0
    %1246 = vmatpush2.msra.mxu0 0.0
    %1247 = vmatprep.subr.mxu0 0.0
    %1248 = vmatpush2.msra.mxu0 0.0
    %1249 = vmatprep.subr.mxu0 0.0
    %1250 = vmatpush2.msra.mxu0 0.0
    %1251 = vmatprep.subr.mxu0 0.0
    %1252 = vmatpush2.msra.mxu0 0.0
    %1253 = vmatprep.subr.mxu0 0.0
    %1254 = vmatpush2.msra.mxu0 0.0
    %1255 = vmatprep.subr.mxu0 0.0
    %1256 = vmatpush2.msra.mxu0 0.0
    %1257 = vmatprep.subr.mxu0 0.0
    %1258 = vmatpush2.msra.mxu0 0.0
    %1259 = vmatprep.subr.mxu0 0.0
    %1260 = vmatpush2.msra.mxu0 0.0
    %1261 = vmatprep.subr.mxu0 0.0
    %1262 = vmatpush2.msra.mxu0 0.0
    %1263 = vmatprep.subr.mxu0 0.0
    %1264 = vmatpush2.msra.mxu0 0.0
    %1265 = vmatprep.subr.mxu0 0.0
    %1266 = vmatpush2.msra.mxu0 0.0
    %1267 = vmatprep.subr.mxu0 0.0
    %1268 = vmatpush2.msra.mxu0 0.0
    %1269 = vmatprep.subr.mxu0 0.0
    %1270 = vmatpush2.msra.mxu0 0.0
    %1271 = vmatprep.subr.mxu0 0.0
    %1272 = vmatpush2.msra.mxu0 0.0
    %1273 = vmatprep.subr.mxu0 0.0
    %1274 = vmatpush2.msra.mxu0 0.0
    %1275 = vmatprep.subr.mxu0 0.0
    %1276 = vmatpush2.msra.mxu0 0.0
    %1277 = vmatprep.mubr.f32.mxu0 0.0
    %1278 = vmatmul.mubr.f32.gmra.mxu0 %v271
    %v1279 = vpop.f32.mrf.mxu0
    %v1280 = vadd.f32 %v1211, %v1279
    %v1281 = vpop.f32.mrf.mxu0
    %1282 = vmatprep.mubr.f32.mxu0 0.0
    %1283 = vmatmul.mubr.f32.gmra.mxu0 %v274
    %v1284 = vpop.f32.mrf.mxu0
    %v1285 = vadd.f32 %v1211, %v1284
    %v1286 = vpop.f32.mrf.mxu0
    %1287 = vdwg.mxu0
    %v1288 = vld [vmem:[#allocation7] sm:$0xff]
    %v1289 = vld [vmem:[#allocation7 + $0x8] sm:$0xff]
    %1290 = vmatprep.subr.mxu0 0.0
    %1291 = vmatpush1.msra.mxu0 0.0
    %1292 = vmatprep.subr.mxu0 0.0
    %1293 = vmatpush1.msra.mxu0 0.0
    %1294 = vmatprep.subr.mxu0 0.0
    %1295 = vmatpush1.msra.mxu0 0.0
    %1296 = vmatprep.subr.mxu0 0.0
    %1297 = vmatpush1.msra.mxu0 0.0
    %1298 = vmatprep.subr.mxu0 0.0
    %1299 = vmatpush1.msra.mxu0 0.0
    %1300 = vmatprep.subr.mxu0 0.0
    %1301 = vmatpush1.msra.mxu0 0.0
    %1302 = vmatprep.subr.mxu0 0.0
    %1303 = vmatpush1.msra.mxu0 0.0
    %1304 = vmatprep.subr.mxu0 0.0
    %1305 = vmatpush1.msra.mxu0 0.0
    %1306 = vmatprep.subr.mxu0 0.0
    %1307 = vmatpush1.msra.mxu0 0.0
    %1308 = vmatprep.subr.mxu0 0.0
    %1309 = vmatpush1.msra.mxu0 0.0
    %1310 = vmatprep.subr.mxu0 0.0
    %1311 = vmatpush1.msra.mxu0 0.0
    %1312 = vmatprep.subr.mxu0 0.0
    %1313 = vmatpush1.msra.mxu0 0.0
    %1314 = vmatprep.subr.mxu0 0.0
    %1315 = vmatpush1.msra.mxu0 0.0
    %1316 = vmatprep.subr.mxu0 0.0
    %1317 = vmatpush1.msra.mxu0 0.0
    %1318 = vmatprep.subr.mxu0 0.0
    %1319 = vmatpush1.msra.mxu0 %v1289
    %1320 = vmatprep.subr.mxu0 0.0
    %1321 = vmatpush1.msra.mxu0 %v1288
    %1322 = vmatprep.subr.mxu0 0.0
    %1323 = vmatpush2.msra.mxu0 0.0
    %1324 = vmatprep.subr.mxu0 0.0
    %1325 = vmatpush2.msra.mxu0 0.0
    %1326 = vmatprep.subr.mxu0 0.0
    %1327 = vmatpush2.msra.mxu0 0.0
    %1328 = vmatprep.subr.mxu0 0.0
    %1329 = vmatpush2.msra.mxu0 0.0
    %1330 = vmatprep.subr.mxu0 0.0
    %1331 = vmatpush2.msra.mxu0 0.0
    %1332 = vmatprep.subr.mxu0 0.0
    %1333 = vmatpush2.msra.mxu0 0.0
    %1334 = vmatprep.subr.mxu0 0.0
    %1335 = vmatpush2.msra.mxu0 0.0
    %1336 = vmatprep.subr.mxu0 0.0
    %1337 = vmatpush2.msra.mxu0 0.0
    %1338 = vmatprep.subr.mxu0 0.0
    %1339 = vmatpush2.msra.mxu0 0.0
    %1340 = vmatprep.subr.mxu0 0.0
    %1341 = vmatpush2.msra.mxu0 0.0
    %1342 = vmatprep.subr.mxu0 0.0
    %1343 = vmatpush2.msra.mxu0 0.0
    %1344 = vmatprep.subr.mxu0 0.0
    %1345 = vmatpush2.msra.mxu0 0.0
    %1346 = vmatprep.subr.mxu0 0.0
    %1347 = vmatpush2.msra.mxu0 0.0
    %1348 = vmatprep.subr.mxu0 0.0
    %1349 = vmatpush2.msra.mxu0 0.0
    %1350 = vmatprep.subr.mxu0 0.0
    %1351 = vmatpush2.msra.mxu0 0.0
    %1352 = vmatprep.subr.mxu0 0.0
    %1353 = vmatpush2.msra.mxu0 0.0
    %1354 = vmatprep.mubr.f32.mxu0 0.0
    %1355 = vmatmul.mubr.f32.gmra.mxu0 %v355
    %v1356 = vpop.f32.mrf.mxu0
    %v1357 = vadd.f32 0.0, %v1356
    %v1358 = vpop.f32.mrf.mxu0
    %1359 = vdwg.mxu0
    %v1361 = vrot.slane %v1357, 2
    %v1363 = vadd.f32 %v1285, %v1361
    %v1364 = vxor.u32 %v1363, 2147483648
    %v1365 = vmul.f32 %v1364, 1.442695
    %v1366 = vpow.pop %v1365
    %v1367 = vadd.f32 %v1366, 1.0
    %v1368 = vrcp.pop %v1367
    %v1369 = vmul.f32 1.0, %v1368
    %v1370 = vtanh.pop %v1363
    %v1371 = vmul.f32 %v1369, 0.0
    %1373 = vrot.lane.b32.xlu0 %v1370, 96
    %v1374 = vpop.permute.xlu0 %1373
    %v1376 = vmul.f32 %v1369, %v1374
    %1378 = vrot.lane.b32.xlu0 %v1376, 16
    %v1379 = vpop.permute.xlu0 %1378
    %v1381 = vadd.f32 %v1371, %v1379
    %v1382 = vtanh.pop %v1381
    %1384 = vrot.lane.b32.xlu0 %v1382, 32
    %v1385 = vpop.permute.xlu0 %1384
    %v1387 = vmul.f32 %v1369, %v1385
    %v1389 = vrot.slane %v1387, 6
    %1390 = vrot.lane.b32.xlu0 %v1389, 80
    %v1391 = vpop.permute.xlu0 %1390
    %v1392 = vsel %vm353, %v1391, 0
    %1394 = vmatprep.subr.mxu0 0.0
    %1395 = vmatpush1.msra.mxu0 0.0
    %1396 = vmatprep.subr.mxu0 0.0
    %1397 = vmatpush1.msra.mxu0 0.0
    %1398 = vmatprep.subr.mxu0 0.0
    %1399 = vmatpush1.msra.mxu0 0.0
    %1400 = vmatprep.subr.mxu0 0.0
    %1401 = vmatpush1.msra.mxu0 0.0
    %1402 = vmatprep.subr.mxu0 0.0
    %1403 = vmatpush1.msra.mxu0 0.0
    %1404 = vmatprep.subr.mxu0 0.0
    %1405 = vmatpush1.msra.mxu0 0.0
    %1406 = vmatprep.subr.mxu0 0.0
    %1407 = vmatpush1.msra.mxu0 0.0
    %1408 = vmatprep.subr.mxu0 0.0
    %1409 = vmatpush1.msra.mxu0 0.0
    %1410 = vmatprep.subr.mxu0 0.0
    %1411 = vmatpush1.msra.mxu0 0.0
    %1412 = vmatprep.subr.mxu0 0.0
    %1413 = vmatpush1.msra.mxu0 0.0
    %1414 = vmatprep.subr.mxu0 0.0
    %1415 = vmatpush1.msra.mxu0 0.0
    %1416 = vmatprep.subr.mxu0 0.0
    %1417 = vmatpush1.msra.mxu0 0.0
    %1418 = vmatprep.subr.mxu0 0.0
    %1419 = vmatpush1.msra.mxu0 0.0
    %1420 = vmatprep.subr.mxu0 0.0
    %1421 = vmatpush1.msra.mxu0 0.0
    %1422 = vmatprep.subr.mxu0 0.0
    %1423 = vmatpush1.msra.mxu0 %v1289
    %1424 = vmatprep.subr.mxu0 0.0
    %1425 = vmatpush1.msra.mxu0 %v1288
    %1426 = vmatprep.subr.mxu0 0.0
    %1427 = vmatpush2.msra.mxu0 0.0
    %1428 = vmatprep.subr.mxu0 0.0
    %1429 = vmatpush2.msra.mxu0 0.0
    %1430 = vmatprep.subr.mxu0 0.0
    %1431 = vmatpush2.msra.mxu0 0.0
    %1432 = vmatprep.subr.mxu0 0.0
    %1433 = vmatpush2.msra.mxu0 0.0
    %1434 = vmatprep.subr.mxu0 0.0
    %1435 = vmatpush2.msra.mxu0 0.0
    %1436 = vmatprep.subr.mxu0 0.0
    %1437 = vmatpush2.msra.mxu0 0.0
    %1438 = vmatprep.subr.mxu0 0.0
    %1439 = vmatpush2.msra.mxu0 0.0
    %1440 = vmatprep.subr.mxu0 0.0
    %1441 = vmatpush2.msra.mxu0 0.0
    %1442 = vmatprep.subr.mxu0 0.0
    %1443 = vmatpush2.msra.mxu0 0.0
    %1444 = vmatprep.subr.mxu0 0.0
    %1445 = vmatpush2.msra.mxu0 0.0
    %1446 = vmatprep.subr.mxu0 0.0
    %1447 = vmatpush2.msra.mxu0 0.0
    %1448 = vmatprep.subr.mxu0 0.0
    %1449 = vmatpush2.msra.mxu0 0.0
    %1450 = vmatprep.subr.mxu0 0.0
    %1451 = vmatpush2.msra.mxu0 0.0
    %1452 = vmatprep.subr.mxu0 0.0
    %1453 = vmatpush2.msra.mxu0 0.0
    %1454 = vmatprep.subr.mxu0 0.0
    %1455 = vmatpush2.msra.mxu0 0.0
    %1456 = vmatprep.subr.mxu0 0.0
    %1457 = vmatpush2.msra.mxu0 0.0
    %1458 = vmatprep.mubr.f32.mxu0 0.0
    %1459 = vmatmul.mubr.f32.gmra.mxu0 %v1392
    %v1460 = vpop.f32.mrf.mxu0
    %v1461 = vadd.f32 0.0, %v1460
    %v1462 = vpop.f32.mrf.mxu0
    %1463 = vdwg.mxu0
    %v1465 = vrot.slane %v1461, 4
    %v1467 = vadd.f32 %v1285, %v1465
    %v1468 = vxor.u32 %v1467, 2147483648
    %v1469 = vmul.f32 %v1468, 1.442695
    %v1470 = vpow.pop %v1469
    %v1471 = vadd.f32 %v1470, 1.0
    %v1472 = vrcp.pop %v1471
    %v1473 = vmul.f32 1.0, %v1472
    %v1474 = vtanh.pop %v1467
    %v1476 = vrot.slane %v1381, 2
    %v1478 = vmul.f32 %v1473, %v1476
    %1480 = vrot.lane.b32.xlu0 %v1474, 96
    %v1481 = vpop.permute.xlu0 %1480
    %v1483 = vmul.f32 %v1473, %v1481
    %1485 = vrot.lane.b32.xlu0 %v1483, 16
    %v1486 = vpop.permute.xlu0 %1485
    %v1488 = vadd.f32 %v1478, %v1486
    %v1489 = vtanh.pop %v1488
    %1491 = vrot.lane.b32.xlu0 %v1489, 32
    %v1492 = vpop.permute.xlu0 %1491
    %v1494 = vmul.f32 %v1473, %v1492
    %v1496 = vrot.slane %v1494, 4
    %1497 = vrot.lane.b32.xlu0 %v1496, 80
    %v1498 = vpop.permute.xlu0 %1497
    %v1499 = vsel %vm353, %v1498, 0
    %1501 = vmatprep.subr.mxu0 0.0
    %1502 = vmatpush1.msra.mxu0 0.0
    %1503 = vmatprep.subr.mxu0 0.0
    %1504 = vmatpush1.msra.mxu0 0.0
    %1505 = vmatprep.subr.mxu0 0.0
    %1506 = vmatpush1.msra.mxu0 0.0
    %1507 = vmatprep.subr.mxu0 0.0
    %1508 = vmatpush1.msra.mxu0 0.0
    %1509 = vmatprep.subr.mxu0 0.0
    %1510 = vmatpush1.msra.mxu0 0.0
    %1511 = vmatprep.subr.mxu0 0.0
    %1512 = vmatpush1.msra.mxu0 0.0
    %1513 = vmatprep.subr.mxu0 0.0
    %1514 = vmatpush1.msra.mxu0 0.0
    %1515 = vmatprep.subr.mxu0 0.0
    %1516 = vmatpush1.msra.mxu0 0.0
    %1517 = vmatprep.subr.mxu0 0.0
    %1518 = vmatpush1.msra.mxu0 0.0
    %1519 = vmatprep.subr.mxu0 0.0
    %1520 = vmatpush1.msra.mxu0 0.0
    %1521 = vmatprep.subr.mxu0 0.0
    %1522 = vmatpush1.msra.mxu0 0.0
    %1523 = vmatprep.subr.mxu0 0.0
    %1524 = vmatpush1.msra.mxu0 0.0
    %1525 = vmatprep.subr.mxu0 0.0
    %1526 = vmatpush1.msra.mxu0 0.0
    %1527 = vmatprep.subr.mxu0 0.0
    %1528 = vmatpush1.msra.mxu0 0.0
    %1529 = vmatprep.subr.mxu0 0.0
    %1530 = vmatpush1.msra.mxu0 %v1289
    %1531 = vmatprep.subr.mxu0 0.0
    %1532 = vmatpush1.msra.mxu0 %v1288
    %1533 = vmatprep.subr.mxu0 0.0
    %1534 = vmatpush2.msra.mxu0 0.0
    %1535 = vmatprep.subr.mxu0 0.0
    %1536 = vmatpush2.msra.mxu0 0.0
    %1537 = vmatprep.subr.mxu0 0.0
    %1538 = vmatpush2.msra.mxu0 0.0
    %1539 = vmatprep.subr.mxu0 0.0
    %1540 = vmatpush2.msra.mxu0 0.0
    %1541 = vmatprep.subr.mxu0 0.0
    %1542 = vmatpush2.msra.mxu0 0.0
    %1543 = vmatprep.subr.mxu0 0.0
    %1544 = vmatpush2.msra.mxu0 0.0
    %1545 = vmatprep.subr.mxu0 0.0
    %1546 = vmatpush2.msra.mxu0 0.0
    %1547 = vmatprep.subr.mxu0 0.0
    %1548 = vmatpush2.msra.mxu0 0.0
    %1549 = vmatprep.subr.mxu0 0.0
    %1550 = vmatpush2.msra.mxu0 0.0
    %1551 = vmatprep.subr.mxu0 0.0
    %1552 = vmatpush2.msra.mxu0 0.0
    %1553 = vmatprep.subr.mxu0 0.0
    %1554 = vmatpush2.msra.mxu0 0.0
    %1555 = vmatprep.subr.mxu0 0.0
    %1556 = vmatpush2.msra.mxu0 0.0
    %1557 = vmatprep.subr.mxu0 0.0
    %1558 = vmatpush2.msra.mxu0 0.0
    %1559 = vmatprep.subr.mxu0 0.0
    %1560 = vmatpush2.msra.mxu0 0.0
    %1561 = vmatprep.subr.mxu0 0.0
    %1562 = vmatpush2.msra.mxu0 0.0
    %1563 = vmatprep.subr.mxu0 0.0
    %1564 = vmatpush2.msra.mxu0 0.0
    %1565 = vmatprep.mubr.f32.mxu0 0.0
    %1566 = vmatmul.mubr.f32.gmra.mxu0 %v1499
    %v1567 = vpop.f32.mrf.mxu0
    %v1568 = vadd.f32 0.0, %v1567
    %v1569 = vpop.f32.mrf.mxu0
    %1570 = vdwg.mxu0
    %v1572 = vrot.slane %v1568, 6
    %v1574 = vadd.f32 %v1285, %v1572
    %v1575 = vxor.u32 %v1574, 2147483648
    %v1576 = vmul.f32 %v1575, 1.442695
    %v1577 = vpow.pop %v1576
    %v1578 = vadd.f32 %v1577, 1.0
    %v1579 = vrcp.pop %v1578
    %v1580 = vmul.f32 1.0, %v1579
    %v1581 = vtanh.pop %v1574
    %v1583 = vrot.slane %v1488, 2
    %v1585 = vmul.f32 %v1580, %v1583
    %1587 = vrot.lane.b32.xlu0 %v1581, 96
    %v1588 = vpop.permute.xlu0 %1587
    %v1590 = vmul.f32 %v1580, %v1588
    %1592 = vrot.lane.b32.xlu0 %v1590, 16
    %v1593 = vpop.permute.xlu0 %1592
    %v1595 = vadd.f32 %v1585, %v1593
    %v1596 = vtanh.pop %v1595
    %1598 = vrot.lane.b32.xlu0 %v1596, 32
    %v1599 = vpop.permute.xlu0 %1598
    %v1601 = vmul.f32 %v1580, %v1599
    %v1603 = vrot.slane %v1601, 2
    %1604 = vrot.lane.b32.xlu0 %v1603, 80
    %v1605 = vpop.permute.xlu0 %1604
    %v1606 = vsel %vm353, %v1605, 0
    %1608 = vmatprep.subr.mxu0 0.0
    %1609 = vmatpush1.msra.mxu0 0.0
    %1610 = vmatprep.subr.mxu0 0.0
    %1611 = vmatpush1.msra.mxu0 0.0
    %1612 = vmatprep.subr.mxu0 0.0
    %1613 = vmatpush1.msra.mxu0 0.0
    %1614 = vmatprep.subr.mxu0 0.0
    %1615 = vmatpush1.msra.mxu0 0.0
    %1616 = vmatprep.subr.mxu0 0.0
    %1617 = vmatpush1.msra.mxu0 0.0
    %1618 = vmatprep.subr.mxu0 0.0
    %1619 = vmatpush1.msra.mxu0 0.0
    %1620 = vmatprep.subr.mxu0 0.0
    %1621 = vmatpush1.msra.mxu0 0.0
    %1622 = vmatprep.subr.mxu0 0.0
    %1623 = vmatpush1.msra.mxu0 0.0
    %1624 = vmatprep.subr.mxu0 0.0
    %1625 = vmatpush1.msra.mxu0 0.0
    %1626 = vmatprep.subr.mxu0 0.0
    %1627 = vmatpush1.msra.mxu0 0.0
    %1628 = vmatprep.subr.mxu0 0.0
    %1629 = vmatpush1.msra.mxu0 0.0
    %1630 = vmatprep.subr.mxu0 0.0
    %1631 = vmatpush1.msra.mxu0 0.0
    %1632 = vmatprep.subr.mxu0 0.0
    %1633 = vmatpush1.msra.mxu0 0.0
    %1634 = vmatprep.subr.mxu0 0.0
    %1635 = vmatpush1.msra.mxu0 0.0
    %1636 = vmatprep.subr.mxu0 0.0
    %1637 = vmatpush1.msra.mxu0 %v1289
    %1638 = vmatprep.subr.mxu0 0.0
    %1639 = vmatpush1.msra.mxu0 %v1288
    %1640 = vmatprep.subr.mxu0 0.0
    %1641 = vmatpush2.msra.mxu0 0.0
    %1642 = vmatprep.subr.mxu0 0.0
    %1643 = vmatpush2.msra.mxu0 0.0
    %1644 = vmatprep.subr.mxu0 0.0
    %1645 = vmatpush2.msra.mxu0 0.0
    %1646 = vmatprep.subr.mxu0 0.0
    %1647 = vmatpush2.msra.mxu0 0.0
    %1648 = vmatprep.subr.mxu0 0.0
    %1649 = vmatpush2.msra.mxu0 0.0
    %1650 = vmatprep.subr.mxu0 0.0
    %1651 = vmatpush2.msra.mxu0 0.0
    %1652 = vmatprep.subr.mxu0 0.0
    %1653 = vmatpush2.msra.mxu0 0.0
    %1654 = vmatprep.subr.mxu0 0.0
    %1655 = vmatpush2.msra.mxu0 0.0
    %1656 = vmatprep.subr.mxu0 0.0
    %1657 = vmatpush2.msra.mxu0 0.0
    %1658 = vmatprep.subr.mxu0 0.0
    %1659 = vmatpush2.msra.mxu0 0.0
    %1660 = vmatprep.subr.mxu0 0.0
    %1661 = vmatpush2.msra.mxu0 0.0
    %1662 = vmatprep.subr.mxu0 0.0
    %1663 = vmatpush2.msra.mxu0 0.0
    %1664 = vmatprep.subr.mxu0 0.0
    %1665 = vmatpush2.msra.mxu0 0.0
    %1666 = vmatprep.subr.mxu0 0.0
    %1667 = vmatpush2.msra.mxu0 0.0
    %1668 = vmatprep.subr.mxu0 0.0
    %1669 = vmatpush2.msra.mxu0 0.0
    %1670 = vmatprep.subr.mxu0 0.0
    %1671 = vmatpush2.msra.mxu0 0.0
    %1672 = vmatprep.mubr.f32.mxu0 0.0
    %1673 = vmatmul.mubr.f32.gmra.mxu0 %v1606
    %v1674 = vpop.f32.mrf.mxu0
    %v1675 = vadd.f32 0.0, %v1674
    %v1676 = vpop.f32.mrf.mxu0
    %1677 = vdwg.mxu0
    %v1678 = vadd.f32 %v1285, %v1675
    %v1679 = vxor.u32 %v1678, 2147483648
    %v1680 = vmul.f32 %v1679, 1.442695
    %v1681 = vpow.pop %v1680
    %v1682 = vadd.f32 %v1681, 1.0
    %v1683 = vrcp.pop %v1682
    %v1684 = vmul.f32 1.0, %v1683
    %v1685 = vtanh.pop %v1678
    %v1687 = vrot.slane %v1595, 2
    %v1689 = vmul.f32 %v1684, %v1687
    %1691 = vrot.lane.b32.xlu0 %v1685, 96
    %v1692 = vpop.permute.xlu0 %1691
    %v1694 = vmul.f32 %v1684, %v1692
    %1696 = vrot.lane.b32.xlu0 %v1694, 16
    %v1697 = vpop.permute.xlu0 %1696
    %v1699 = vadd.f32 %v1689, %v1697
    %v1700 = vtanh.pop %v1699
    %1702 = vrot.lane.b32.xlu0 %v1700, 32
    %v1703 = vpop.permute.xlu0 %1702
    %v1705 = vmul.f32 %v1684, %v1703
    %1707 = vrot.lane.b32.xlu0 %v1705, 80
    %v1708 = vpop.permute.xlu0 %1707
    %v1709 = vsel %vm353, %v1708, 0
    %1711 = vmatprep.subr.mxu0 0.0
    %1712 = vmatpush1.msra.mxu0 0.0
    %1713 = vmatprep.subr.mxu0 0.0
    %1714 = vmatpush1.msra.mxu0 0.0
    %1715 = vmatprep.subr.mxu0 0.0
    %1716 = vmatpush1.msra.mxu0 0.0
    %1717 = vmatprep.subr.mxu0 0.0
    %1718 = vmatpush1.msra.mxu0 0.0
    %1719 = vmatprep.subr.mxu0 0.0
    %1720 = vmatpush1.msra.mxu0 0.0
    %1721 = vmatprep.subr.mxu0 0.0
    %1722 = vmatpush1.msra.mxu0 0.0
    %1723 = vmatprep.subr.mxu0 0.0
    %1724 = vmatpush1.msra.mxu0 0.0
    %1725 = vmatprep.subr.mxu0 0.0
    %1726 = vmatpush1.msra.mxu0 0.0
    %1727 = vmatprep.subr.mxu0 0.0
    %1728 = vmatpush1.msra.mxu0 0.0
    %1729 = vmatprep.subr.mxu0 0.0
    %1730 = vmatpush1.msra.mxu0 0.0
    %1731 = vmatprep.subr.mxu0 0.0
    %1732 = vmatpush1.msra.mxu0 0.0
    %1733 = vmatprep.subr.mxu0 0.0
    %1734 = vmatpush1.msra.mxu0 0.0
    %1735 = vmatprep.subr.mxu0 0.0
    %1736 = vmatpush1.msra.mxu0 0.0
    %1737 = vmatprep.subr.mxu0 0.0
    %1738 = vmatpush1.msra.mxu0 0.0
    %1739 = vmatprep.subr.mxu0 0.0
    %1740 = vmatpush1.msra.mxu0 %v1289
    %1741 = vmatprep.subr.mxu0 0.0
    %1742 = vmatpush1.msra.mxu0 %v1288
    %1743 = vmatprep.subr.mxu0 0.0
    %1744 = vmatpush2.msra.mxu0 0.0
    %1745 = vmatprep.subr.mxu0 0.0
    %1746 = vmatpush2.msra.mxu0 0.0
    %1747 = vmatprep.subr.mxu0 0.0
    %1748 = vmatpush2.msra.mxu0 0.0
    %1749 = vmatprep.subr.mxu0 0.0
    %1750 = vmatpush2.msra.mxu0 0.0
    %1751 = vmatprep.subr.mxu0 0.0
    %1752 = vmatpush2.msra.mxu0 0.0
    %1753 = vmatprep.subr.mxu0 0.0
    %1754 = vmatpush2.msra.mxu0 0.0
    %1755 = vmatprep.subr.mxu0 0.0
    %1756 = vmatpush2.msra.mxu0 0.0
    %1757 = vmatprep.subr.mxu0 0.0
    %1758 = vmatpush2.msra.mxu0 0.0
    %1759 = vmatprep.subr.mxu0 0.0
    %1760 = vmatpush2.msra.mxu0 0.0
    %1761 = vmatprep.subr.mxu0 0.0
    %1762 = vmatpush2.msra.mxu0 0.0
    %1763 = vmatprep.subr.mxu0 0.0
    %1764 = vmatpush2.msra.mxu0 0.0
    %1765 = vmatprep.subr.mxu0 0.0
    %1766 = vmatpush2.msra.mxu0 0.0
    %1767 = vmatprep.subr.mxu0 0.0
    %1768 = vmatpush2.msra.mxu0 0.0
    %1769 = vmatprep.subr.mxu0 0.0
    %1770 = vmatpush2.msra.mxu0 0.0
    %1771 = vmatprep.subr.mxu0 0.0
    %1772 = vmatpush2.msra.mxu0 0.0
    %1773 = vmatprep.subr.mxu0 0.0
    %1774 = vmatpush2.msra.mxu0 0.0
    %1775 = vmatprep.mubr.f32.mxu0 0.0
    %1776 = vmatmul.mubr.f32.gmra.mxu0 %v1709
    %v1777 = vpop.f32.mrf.mxu0
    %v1778 = vadd.f32 0.0, %v1777
    %v1779 = vpop.f32.mrf.mxu0
    %1780 = vdwg.mxu0
    %v1782 = vrot.slane %v1778, 2
    %v1784 = vadd.f32 %v1280, %v1782
    %v1785 = vxor.u32 %v1784, 2147483648
    %v1786 = vmul.f32 %v1785, 1.442695
    %v1787 = vpow.pop %v1786
    %v1788 = vadd.f32 %v1787, 1.0
    %v1789 = vrcp.pop %v1788
    %v1790 = vmul.f32 1.0, %v1789
    %v1791 = vtanh.pop %v1784
    %v1793 = vrot.slane %v1699, 2
    %v1795 = vmul.f32 %v1790, %v1793
    %1797 = vrot.lane.b32.xlu0 %v1791, 96
    %v1798 = vpop.permute.xlu0 %1797
    %v1800 = vmul.f32 %v1790, %v1798
    %1802 = vrot.lane.b32.xlu0 %v1800, 16
    %v1803 = vpop.permute.xlu0 %1802
    %v1805 = vadd.f32 %v1795, %v1803
    %v1806 = vtanh.pop %v1805
    %1808 = vrot.lane.b32.xlu0 %v1806, 32
    %v1809 = vpop.permute.xlu0 %1808
    %v1811 = vmul.f32 %v1790, %v1809
    %v1813 = vrot.slane %v1811, 6
    %1814 = vrot.lane.b32.xlu0 %v1813, 80
    %v1815 = vpop.permute.xlu0 %1814
    %v1816 = vsel %vm353, %v1815, 0
    %1818 = vmatprep.subr.mxu0 0.0
    %1819 = vmatpush1.msra.mxu0 0.0
    %1820 = vmatprep.subr.mxu0 0.0
    %1821 = vmatpush1.msra.mxu0 0.0
    %1822 = vmatprep.subr.mxu0 0.0
    %1823 = vmatpush1.msra.mxu0 0.0
    %1824 = vmatprep.subr.mxu0 0.0
    %1825 = vmatpush1.msra.mxu0 0.0
    %1826 = vmatprep.subr.mxu0 0.0
    %1827 = vmatpush1.msra.mxu0 0.0
    %1828 = vmatprep.subr.mxu0 0.0
    %1829 = vmatpush1.msra.mxu0 0.0
    %1830 = vmatprep.subr.mxu0 0.0
    %1831 = vmatpush1.msra.mxu0 0.0
    %1832 = vmatprep.subr.mxu0 0.0
    %1833 = vmatpush1.msra.mxu0 0.0
    %1834 = vmatprep.subr.mxu0 0.0
    %1835 = vmatpush1.msra.mxu0 0.0
    %1836 = vmatprep.subr.mxu0 0.0
    %1837 = vmatpush1.msra.mxu0 0.0
    %1838 = vmatprep.subr.mxu0 0.0
    %1839 = vmatpush1.msra.mxu0 0.0
    %1840 = vmatprep.subr.mxu0 0.0
    %1841 = vmatpush1.msra.mxu0 0.0
    %1842 = vmatprep.subr.mxu0 0.0
    %1843 = vmatpush1.msra.mxu0 0.0
    %1844 = vmatprep.subr.mxu0 0.0
    %1845 = vmatpush1.msra.mxu0 0.0
    %1846 = vmatprep.subr.mxu0 0.0
    %1847 = vmatpush1.msra.mxu0 %v1289
    %1848 = vmatprep.subr.mxu0 0.0
    %1849 = vmatpush1.msra.mxu0 %v1288
    %1850 = vmatprep.subr.mxu0 0.0
    %1851 = vmatpush2.msra.mxu0 0.0
    %1852 = vmatprep.subr.mxu0 0.0
    %1853 = vmatpush2.msra.mxu0 0.0
    %1854 = vmatprep.subr.mxu0 0.0
    %1855 = vmatpush2.msra.mxu0 0.0
    %1856 = vmatprep.subr.mxu0 0.0
    %1857 = vmatpush2.msra.mxu0 0.0
    %1858 = vmatprep.subr.mxu0 0.0
    %1859 = vmatpush2.msra.mxu0 0.0
    %1860 = vmatprep.subr.mxu0 0.0
    %1861 = vmatpush2.msra.mxu0 0.0
    %1862 = vmatprep.subr.mxu0 0.0
    %1863 = vmatpush2.msra.mxu0 0.0
    %1864 = vmatprep.subr.mxu0 0.0
    %1865 = vmatpush2.msra.mxu0 0.0
    %1866 = vmatprep.subr.mxu0 0.0
    %1867 = vmatpush2.msra.mxu0 0.0
    %1868 = vmatprep.subr.mxu0 0.0
    %1869 = vmatpush2.msra.mxu0 0.0
    %1870 = vmatprep.subr.mxu0 0.0
    %1871 = vmatpush2.msra.mxu0 0.0
    %1872 = vmatprep.subr.mxu0 0.0
    %1873 = vmatpush2.msra.mxu0 0.0
    %1874 = vmatprep.subr.mxu0 0.0
    %1875 = vmatpush2.msra.mxu0 0.0
    %1876 = vmatprep.subr.mxu0 0.0
    %1877 = vmatpush2.msra.mxu0 0.0
    %1878 = vmatprep.subr.mxu0 0.0
    %1879 = vmatpush2.msra.mxu0 0.0
    %1880 = vmatprep.subr.mxu0 0.0
    %1881 = vmatpush2.msra.mxu0 0.0
    %1882 = vmatprep.mubr.f32.mxu0 0.0
    %1883 = vmatmul.mubr.f32.gmra.mxu0 %v1816
    %v1884 = vpop.f32.mrf.mxu0
    %v1885 = vadd.f32 0.0, %v1884
    %v1886 = vpop.f32.mrf.mxu0
    %1887 = vdwg.mxu0
    %v1889 = vrot.slane %v1885, 4
    %v1891 = vadd.f32 %v1280, %v1889
    %v1892 = vxor.u32 %v1891, 2147483648
    %v1893 = vmul.f32 %v1892, 1.442695
    %v1894 = vpow.pop %v1893
    %v1895 = vadd.f32 %v1894, 1.0
    %v1896 = vrcp.pop %v1895
    %v1897 = vmul.f32 1.0, %v1896
    %v1898 = vtanh.pop %v1891
    %v1900 = vrot.slane %v1805, 2
    %v1902 = vmul.f32 %v1897, %v1900
    %1904 = vrot.lane.b32.xlu0 %v1898, 96
    %v1905 = vpop.permute.xlu0 %1904
    %v1907 = vmul.f32 %v1897, %v1905
    %1909 = vrot.lane.b32.xlu0 %v1907, 16
    %v1910 = vpop.permute.xlu0 %1909
    %v1912 = vadd.f32 %v1902, %v1910
    %v1913 = vtanh.pop %v1912
    %1915 = vrot.lane.b32.xlu0 %v1913, 32
    %v1916 = vpop.permute.xlu0 %1915
    %v1918 = vmul.f32 %v1897, %v1916
    %v1920 = vrot.slane %v1918, 4
    %1921 = vrot.lane.b32.xlu0 %v1920, 80
    %v1922 = vpop.permute.xlu0 %1921
    %v1923 = vsel %vm353, %v1922, 0
    %1925 = vmatprep.subr.mxu0 0.0
    %1926 = vmatpush1.msra.mxu0 0.0
    %1927 = vmatprep.subr.mxu0 0.0
    %1928 = vmatpush1.msra.mxu0 0.0
    %1929 = vmatprep.subr.mxu0 0.0
    %1930 = vmatpush1.msra.mxu0 0.0
    %1931 = vmatprep.subr.mxu0 0.0
    %1932 = vmatpush1.msra.mxu0 0.0
    %1933 = vmatprep.subr.mxu0 0.0
    %1934 = vmatpush1.msra.mxu0 0.0
    %1935 = vmatprep.subr.mxu0 0.0
    %1936 = vmatpush1.msra.mxu0 0.0
    %1937 = vmatprep.subr.mxu0 0.0
    %1938 = vmatpush1.msra.mxu0 0.0
    %1939 = vmatprep.subr.mxu0 0.0
    %1940 = vmatpush1.msra.mxu0 0.0
    %1941 = vmatprep.subr.mxu0 0.0
    %1942 = vmatpush1.msra.mxu0 0.0
    %1943 = vmatprep.subr.mxu0 0.0
    %1944 = vmatpush1.msra.mxu0 0.0
    %1945 = vmatprep.subr.mxu0 0.0
    %1946 = vmatpush1.msra.mxu0 0.0
    %1947 = vmatprep.subr.mxu0 0.0
    %1948 = vmatpush1.msra.mxu0 0.0
    %1949 = vmatprep.subr.mxu0 0.0
    %1950 = vmatpush1.msra.mxu0 0.0
    %1951 = vmatprep.subr.mxu0 0.0
    %1952 = vmatpush1.msra.mxu0 0.0
    %1953 = vmatprep.subr.mxu0 0.0
    %1954 = vmatpush1.msra.mxu0 %v1289
    %1955 = vmatprep.subr.mxu0 0.0
    %1956 = vmatpush1.msra.mxu0 %v1288
    %1957 = vmatprep.subr.mxu0 0.0
    %1958 = vmatpush2.msra.mxu0 0.0
    %1959 = vmatprep.subr.mxu0 0.0
    %1960 = vmatpush2.msra.mxu0 0.0
    %1961 = vmatprep.subr.mxu0 0.0
    %1962 = vmatpush2.msra.mxu0 0.0
    %1963 = vmatprep.subr.mxu0 0.0
    %1964 = vmatpush2.msra.mxu0 0.0
    %1965 = vmatprep.subr.mxu0 0.0
    %1966 = vmatpush2.msra.mxu0 0.0
    %1967 = vmatprep.subr.mxu0 0.0
    %1968 = vmatpush2.msra.mxu0 0.0
    %1969 = vmatprep.subr.mxu0 0.0
    %1970 = vmatpush2.msra.mxu0 0.0
    %1971 = vmatprep.subr.mxu0 0.0
    %1972 = vmatpush2.msra.mxu0 0.0
    %1973 = vmatprep.subr.mxu0 0.0
    %1974 = vmatpush2.msra.mxu0 0.0
    %1975 = vmatprep.subr.mxu0 0.0
    %1976 = vmatpush2.msra.mxu0 0.0
    %1977 = vmatprep.subr.mxu0 0.0
    %1978 = vmatpush2.msra.mxu0 0.0
    %1979 = vmatprep.subr.mxu0 0.0
    %1980 = vmatpush2.msra.mxu0 0.0
    %1981 = vmatprep.subr.mxu0 0.0
    %1982 = vmatpush2.msra.mxu0 0.0
    %1983 = vmatprep.subr.mxu0 0.0
    %1984 = vmatpush2.msra.mxu0 0.0
    %1985 = vmatprep.subr.mxu0 0.0
    %1986 = vmatpush2.msra.mxu0 0.0
    %1987 = vmatprep.subr.mxu0 0.0
    %1988 = vmatpush2.msra.mxu0 0.0
    %1989 = vmatprep.mubr.f32.mxu0 0.0
    %1990 = vmatmul.mubr.f32.gmra.mxu0 %v1923
    %v1991 = vpop.f32.mrf.mxu0
    %v1992 = vadd.f32 0.0, %v1991
    %v1993 = vpop.f32.mrf.mxu0
    %1994 = vdwg.mxu0
    %v1996 = vrot.slane %v1992, 6
    %v1998 = vadd.f32 %v1280, %v1996
    %v1999 = vxor.u32 %v1998, 2147483648
    %v2000 = vmul.f32 %v1999, 1.442695
    %v2001 = vpow.pop %v2000
    %v2002 = vadd.f32 %v2001, 1.0
    %v2003 = vrcp.pop %v2002
    %v2004 = vmul.f32 1.0, %v2003
    %v2005 = vtanh.pop %v1998
    %v2007 = vrot.slane %v1912, 2
    %v2009 = vmul.f32 %v2004, %v2007
    %2011 = vrot.lane.b32.xlu0 %v2005, 96
    %v2012 = vpop.permute.xlu0 %2011
    %v2014 = vmul.f32 %v2004, %v2012
    %2016 = vrot.lane.b32.xlu0 %v2014, 16
    %v2017 = vpop.permute.xlu0 %2016
    %v2019 = vadd.f32 %v2009, %v2017
    %v2020 = vtanh.pop %v2019
    %2022 = vrot.lane.b32.xlu0 %v2020, 32
    %v2023 = vpop.permute.xlu0 %2022
    %v2025 = vmul.f32 %v2004, %v2023
    %v2027 = vrot.slane %v2025, 2
    %2028 = vrot.lane.b32.xlu0 %v2027, 80
    %v2029 = vpop.permute.xlu0 %2028
    %v2030 = vsel %vm353, %v2029, 0
    %2032 = vmatprep.subr.mxu0 0.0
    %2033 = vmatpush1.msra.mxu0 0.0
    %2034 = vmatprep.subr.mxu0 0.0
    %2035 = vmatpush1.msra.mxu0 0.0
    %2036 = vmatprep.subr.mxu0 0.0
    %2037 = vmatpush1.msra.mxu0 0.0
    %2038 = vmatprep.subr.mxu0 0.0
    %2039 = vmatpush1.msra.mxu0 0.0
    %2040 = vmatprep.subr.mxu0 0.0
    %2041 = vmatpush1.msra.mxu0 0.0
    %2042 = vmatprep.subr.mxu0 0.0
    %2043 = vmatpush1.msra.mxu0 0.0
    %2044 = vmatprep.subr.mxu0 0.0
    %2045 = vmatpush1.msra.mxu0 0.0
    %2046 = vmatprep.subr.mxu0 0.0
    %2047 = vmatpush1.msra.mxu0 0.0
    %2048 = vmatprep.subr.mxu0 0.0
    %2049 = vmatpush1.msra.mxu0 0.0
    %2050 = vmatprep.subr.mxu0 0.0
    %2051 = vmatpush1.msra.mxu0 0.0
    %2052 = vmatprep.subr.mxu0 0.0
    %2053 = vmatpush1.msra.mxu0 0.0
    %2054 = vmatprep.subr.mxu0 0.0
    %2055 = vmatpush1.msra.mxu0 0.0
    %2056 = vmatprep.subr.mxu0 0.0
    %2057 = vmatpush1.msra.mxu0 0.0
    %2058 = vmatprep.subr.mxu0 0.0
    %2059 = vmatpush1.msra.mxu0 0.0
    %2060 = vmatprep.subr.mxu0 0.0
    %2061 = vmatpush1.msra.mxu0 %v1289
    %2062 = vmatprep.subr.mxu0 0.0
    %2063 = vmatpush1.msra.mxu0 %v1288
    %2064 = vmatprep.subr.mxu0 0.0
    %2065 = vmatpush2.msra.mxu0 0.0
    %2066 = vmatprep.subr.mxu0 0.0
    %2067 = vmatpush2.msra.mxu0 0.0
    %2068 = vmatprep.subr.mxu0 0.0
    %2069 = vmatpush2.msra.mxu0 0.0
    %2070 = vmatprep.subr.mxu0 0.0
    %2071 = vmatpush2.msra.mxu0 0.0
    %2072 = vmatprep.subr.mxu0 0.0
    %2073 = vmatpush2.msra.mxu0 0.0
    %2074 = vmatprep.subr.mxu0 0.0
    %2075 = vmatpush2.msra.mxu0 0.0
    %2076 = vmatprep.subr.mxu0 0.0
    %2077 = vmatpush2.msra.mxu0 0.0
    %2078 = vmatprep.subr.mxu0 0.0
    %2079 = vmatpush2.msra.mxu0 0.0
    %2080 = vmatprep.subr.mxu0 0.0
    %2081 = vmatpush2.msra.mxu0 0.0
    %2082 = vmatprep.subr.mxu0 0.0
    %2083 = vmatpush2.msra.mxu0 0.0
    %2084 = vmatprep.subr.mxu0 0.0
    %2085 = vmatpush2.msra.mxu0 0.0
    %2086 = vmatprep.subr.mxu0 0.0
    %2087 = vmatpush2.msra.mxu0 0.0
    %2088 = vmatprep.subr.mxu0 0.0
    %2089 = vmatpush2.msra.mxu0 0.0
    %2090 = vmatprep.subr.mxu0 0.0
    %2091 = vmatpush2.msra.mxu0 0.0
    %2092 = vmatprep.subr.mxu0 0.0
    %2093 = vmatpush2.msra.mxu0 0.0
    %2094 = vmatprep.subr.mxu0 0.0
    %2095 = vmatpush2.msra.mxu0 0.0
    %2096 = vmatprep.mubr.f32.mxu0 0.0
    %2097 = vmatmul.mubr.f32.gmra.mxu0 %v2030
    %v2098 = vpop.f32.mrf.mxu0
    %v2099 = vadd.f32 0.0, %v2098
    %v2100 = vpop.f32.mrf.mxu0
    %2101 = vdwg.mxu0
    %v2102 = vadd.f32 %v1280, %v2099
    %v2103 = vxor.u32 %v2102, 2147483648
    %v2104 = vmul.f32 %v2103, 1.442695
    %v2105 = vpow.pop %v2104
    %v2106 = vadd.f32 %v2105, 1.0
    %v2107 = vrcp.pop %v2106
    %v2108 = vmul.f32 1.0, %v2107
    %v2109 = vtanh.pop %v2102
    %v2111 = vrot.slane %v2019, 2
    %v2113 = vmul.f32 %v2108, %v2111
    %2115 = vrot.lane.b32.xlu0 %v2109, 96
    %v2116 = vpop.permute.xlu0 %2115
    %v2118 = vmul.f32 %v2108, %v2116
    %2120 = vrot.lane.b32.xlu0 %v2118, 16
    %v2121 = vpop.permute.xlu0 %2120
    %v2123 = vadd.f32 %v2113, %v2121
    %v2124 = vtanh.pop %v2123
    %2126 = vrot.lane.b32.xlu0 %v2124, 32
    %v2127 = vpop.permute.xlu0 %2126
    %v2129 = vmul.f32 %v2108, %v2127
    %v2130 = vsel %vm1196, %v2129, %v2025
    %v2131 = vsel %vm1198, %v2130, %v1918
    %v2132 = vsel %vm1200, %v2131, %v1811
    %v2133 = vsel %vm1196, %v1705, %v1601
    %v2134 = vsel %vm1198, %v2133, %v1494
    %v2135 = vsel %vm1200, %v2134, %v1387
    %v2136 = vld [vmem:[%s7] sm:$0xff]
    %v2137 = vld [vmem:[%s7 + $0x8] sm:$0xff]
    %v2138 = vld [vmem:[%s7 + $0x10] sm:$0xff]
    %v2139 = vld [vmem:[%s7 + $0x18] sm:$0xff]
    %v2140 = vld [vmem:[#allocation10] sm:$0x1]
    %2143 = vrot.lane.b32.xlu0 %v2132, 80
    %v2144 = vpop.permute.xlu0 %2143
    %2145 = vrot.lane.b32.xlu0 %v2135, 80
    %v2146 = vpop.permute.xlu0 %2145
    %v2147 = vsel %vm353, %v2144, 0
    %v2149 = vsel %vm353, %v2146, 0
    %2151 = vmatprep.subr.mxu0 0.0
    %2152 = vmatpush1.msra.mxu0 0.0
    %2153 = vmatprep.subr.mxu0 0.0
    %2154 = vmatpush1.msra.mxu0 0.0
    %2155 = vmatprep.subr.mxu0 0.0
    %2156 = vmatpush1.msra.mxu0 0.0
    %2157 = vmatprep.subr.mxu0 0.0
    %2158 = vmatpush1.msra.mxu0 0.0
    %2159 = vmatprep.subr.mxu0 0.0
    %2160 = vmatpush1.msra.mxu0 0.0
    %2161 = vmatprep.subr.mxu0 0.0
    %2162 = vmatpush1.msra.mxu0 0.0
    %2163 = vmatprep.subr.mxu0 0.0
    %2164 = vmatpush1.msra.mxu0 0.0
    %2165 = vmatprep.subr.mxu0 0.0
    %2166 = vmatpush1.msra.mxu0 0.0
    %2167 = vmatprep.subr.mxu0 0.0
    %2168 = vmatpush1.msra.mxu0 0.0
    %2169 = vmatprep.subr.mxu0 0.0
    %2170 = vmatpush1.msra.mxu0 0.0
    %2171 = vmatprep.subr.mxu0 0.0
    %2172 = vmatpush1.msra.mxu0 0.0
    %2173 = vmatprep.subr.mxu0 0.0
    %2174 = vmatpush1.msra.mxu0 0.0
    %2175 = vmatprep.subr.mxu0 0.0
    %2176 = vmatpush1.msra.mxu0 0.0
    %2177 = vmatprep.subr.mxu0 0.0
    %2178 = vmatpush1.msra.mxu0 0.0
    %2179 = vmatprep.subr.mxu0 0.0
    %2180 = vmatpush1.msra.mxu0 %v2139
    %2181 = vmatprep.subr.mxu0 0.0
    %2182 = vmatpush1.msra.mxu0 %v2138
    %2183 = vmatprep.subr.mxu0 0.0
    %2184 = vmatpush2.msra.mxu0 0.0
    %2185 = vmatprep.subr.mxu0 0.0
    %2186 = vmatpush2.msra.mxu0 0.0
    %2187 = vmatprep.subr.mxu0 0.0
    %2188 = vmatpush2.msra.mxu0 0.0
    %2189 = vmatprep.subr.mxu0 0.0
    %2190 = vmatpush2.msra.mxu0 0.0
    %2191 = vmatprep.subr.mxu0 0.0
    %2192 = vmatpush2.msra.mxu0 0.0
    %2193 = vmatprep.subr.mxu0 0.0
    %2194 = vmatpush2.msra.mxu0 0.0
    %2195 = vmatprep.subr.mxu0 0.0
    %2196 = vmatpush2.msra.mxu0 0.0
    %2197 = vmatprep.subr.mxu0 0.0
    %2198 = vmatpush2.msra.mxu0 0.0
    %2199 = vmatprep.subr.mxu0 0.0
    %2200 = vmatpush2.msra.mxu0 0.0
    %2201 = vmatprep.subr.mxu0 0.0
    %2202 = vmatpush2.msra.mxu0 0.0
    %2203 = vmatprep.subr.mxu0 0.0
    %2204 = vmatpush2.msra.mxu0 0.0
    %2205 = vmatprep.subr.mxu0 0.0
    %2206 = vmatpush2.msra.mxu0 0.0
    %2207 = vmatprep.subr.mxu0 0.0
    %2208 = vmatpush2.msra.mxu0 0.0
    %2209 = vmatprep.subr.mxu0 0.0
    %2210 = vmatpush2.msra.mxu0 0.0
    %2211 = vmatprep.subr.mxu0 0.0
    %2212 = vmatpush2.msra.mxu0 0.0
    %2213 = vmatprep.subr.mxu0 0.0
    %2214 = vmatpush2.msra.mxu0 0.0
    %2215 = vmatprep.mubr.f32.mxu0 0.0
    %2216 = vmatmul.mubr.f32.gmra.mxu0 %v2147
    %v2217 = vpop.f32.mrf.mxu0
    %v2218 = vadd.f32 0.0, %v2217
    %v2219 = vpop.f32.mrf.mxu0
    %2220 = vmatprep.mubr.f32.mxu0 0.0
    %2221 = vmatmul.mubr.f32.gmra.mxu0 %v2149
    %v2222 = vpop.f32.mrf.mxu0
    %v2223 = vadd.f32 0.0, %v2222
    %v2224 = vpop.f32.mrf.mxu0
    %2225 = vdwg.mxu0
    %2228 = vrot.lane.b32.xlu0 %v1201, 80
    %v2229 = vpop.permute.xlu0 %2228
    %2230 = vrot.lane.b32.xlu0 %v1204, 80
    %v2231 = vpop.permute.xlu0 %2230
    %v2232 = vsel %vm353, %v2229, 0
    %v2234 = vsel %vm353, %v2231, 0
    %2236 = vmatprep.subr.mxu0 0.0
    %2237 = vmatpush1.msra.mxu0 0.0
    %2238 = vmatprep.subr.mxu0 0.0
    %2239 = vmatpush1.msra.mxu0 0.0
    %2240 = vmatprep.subr.mxu0 0.0
    %2241 = vmatpush1.msra.mxu0 0.0
    %2242 = vmatprep.subr.mxu0 0.0
    %2243 = vmatpush1.msra.mxu0 0.0
    %2244 = vmatprep.subr.mxu0 0.0
    %2245 = vmatpush1.msra.mxu0 0.0
    %2246 = vmatprep.subr.mxu0 0.0
    %2247 = vmatpush1.msra.mxu0 0.0
    %2248 = vmatprep.subr.mxu0 0.0
    %2249 = vmatpush1.msra.mxu0 0.0
    %2250 = vmatprep.subr.mxu0 0.0
    %2251 = vmatpush1.msra.mxu0 0.0
    %2252 = vmatprep.subr.mxu0 0.0
    %2253 = vmatpush1.msra.mxu0 0.0
    %2254 = vmatprep.subr.mxu0 0.0
    %2255 = vmatpush1.msra.mxu0 0.0
    %2256 = vmatprep.subr.mxu0 0.0
    %2257 = vmatpush1.msra.mxu0 0.0
    %2258 = vmatprep.subr.mxu0 0.0
    %2259 = vmatpush1.msra.mxu0 0.0
    %2260 = vmatprep.subr.mxu0 0.0
    %2261 = vmatpush1.msra.mxu0 0.0
    %2262 = vmatprep.subr.mxu0 0.0
    %2263 = vmatpush1.msra.mxu0 0.0
    %2264 = vmatprep.subr.mxu0 0.0
    %2265 = vmatpush1.msra.mxu0 %v2137
    %2266 = vmatprep.subr.mxu0 0.0
    %2267 = vmatpush1.msra.mxu0 %v2136
    %2268 = vmatprep.subr.mxu0 0.0
    %2269 = vmatpush2.msra.mxu0 0.0
    %2270 = vmatprep.subr.mxu0 0.0
    %2271 = vmatpush2.msra.mxu0 0.0
    %2272 = vmatprep.subr.mxu0 0.0
    %2273 = vmatpush2.msra.mxu0 0.0
    %2274 = vmatprep.subr.mxu0 0.0
    %2275 = vmatpush2.msra.mxu0 0.0
    %2276 = vmatprep.subr.mxu0 0.0
    %2277 = vmatpush2.msra.mxu0 0.0
    %2278 = vmatprep.subr.mxu0 0.0
    %2279 = vmatpush2.msra.mxu0 0.0
    %2280 = vmatprep.subr.mxu0 0.0
    %2281 = vmatpush2.msra.mxu0 0.0
    %2282 = vmatprep.subr.mxu0 0.0
    %2283 = vmatpush2.msra.mxu0 0.0
    %2284 = vmatprep.subr.mxu0 0.0
    %2285 = vmatpush2.msra.mxu0 0.0
    %2286 = vmatprep.subr.mxu0 0.0
    %2287 = vmatpush2.msra.mxu0 0.0
    %2288 = vmatprep.subr.mxu0 0.0
    %2289 = vmatpush2.msra.mxu0 0.0
    %2290 = vmatprep.subr.mxu0 0.0
    %2291 = vmatpush2.msra.mxu0 0.0
    %2292 = vmatprep.subr.mxu0 0.0
    %2293 = vmatpush2.msra.mxu0 0.0
    %2294 = vmatprep.subr.mxu0 0.0
    %2295 = vmatpush2.msra.mxu0 0.0
    %2296 = vmatprep.subr.mxu0 0.0
    %2297 = vmatpush2.msra.mxu0 0.0
    %2298 = vmatprep.subr.mxu0 0.0
    %2299 = vmatpush2.msra.mxu0 0.0
    %2300 = vmatprep.mubr.f32.mxu0 0.0
    %2301 = vmatmul.mubr.f32.gmra.mxu0 %v2232
    %v2302 = vpop.f32.mrf.mxu0
    %v2303 = vadd.f32 %v2218, %v2302
    %v2304 = vpop.f32.mrf.mxu0
    %2305 = vmatprep.mubr.f32.mxu0 0.0
    %2306 = vmatmul.mubr.f32.gmra.mxu0 %v2234
    %v2307 = vpop.f32.mrf.mxu0
    %v2308 = vadd.f32 %v2223, %v2307
    %v2309 = vpop.f32.mrf.mxu0
    %2310 = vdwg.mxu0
    %v2312 = vlaneseq
    %v2313 = vshrl.u32 %v2312, 7
    %v2314 = vsub.s32 0, %v2313
    %v2315 = vrot.slane %v2140, %v2314
    %v2317 = vadd.f32 %v2303, %v2315
    %v2318 = vadd.f32 %v2308, %v2315
    %v2319 = vld [vmem:[%s8] sm:$0xff]
    %v2320 = vld [vmem:[%s8 + $0x8] sm:$0xff]
    %2321 = vmatprep.subr.mxu0 0.0
    %2322 = vmatpush1.msra.mxu0 0.0
    %2323 = vmatprep.subr.mxu0 0.0
    %2324 = vmatpush1.msra.mxu0 0.0
    %2325 = vmatprep.subr.mxu0 0.0
    %2326 = vmatpush1.msra.mxu0 0.0
    %2327 = vmatprep.subr.mxu0 0.0
    %2328 = vmatpush1.msra.mxu0 0.0
    %2329 = vmatprep.subr.mxu0 0.0
    %2330 = vmatpush1.msra.mxu0 0.0
    %2331 = vmatprep.subr.mxu0 0.0
    %2332 = vmatpush1.msra.mxu0 0.0
    %2333 = vmatprep.subr.mxu0 0.0
    %2334 = vmatpush1.msra.mxu0 0.0
    %2335 = vmatprep.subr.mxu0 0.0
    %2336 = vmatpush1.msra.mxu0 0.0
    %2337 = vmatprep.subr.mxu0 0.0
    %2338 = vmatpush1.msra.mxu0 0.0
    %2339 = vmatprep.subr.mxu0 0.0
    %2340 = vmatpush1.msra.mxu0 0.0
    %2341 = vmatprep.subr.mxu0 0.0
    %2342 = vmatpush1.msra.mxu0 0.0
    %2343 = vmatprep.subr.mxu0 0.0
    %2344 = vmatpush1.msra.mxu0 0.0
    %2345 = vmatprep.subr.mxu0 0.0
    %2346 = vmatpush1.msra.mxu0 0.0
    %2347 = vmatprep.subr.mxu0 0.0
    %2348 = vmatpush1.msra.mxu0 0.0
    %2349 = vmatprep.subr.mxu0 0.0
    %2350 = vmatpush1.msra.mxu0 %v2320
    %2351 = vmatprep.subr.mxu0 0.0
    %2352 = vmatpush1.msra.mxu0 %v2319
    %2353 = vmatprep.subr.mxu0 0.0
    %2354 = vmatpush2.msra.mxu0 0.0
    %2355 = vmatprep.subr.mxu0 0.0
    %2356 = vmatpush2.msra.mxu0 0.0
    %2357 = vmatprep.subr.mxu0 0.0
    %2358 = vmatpush2.msra.mxu0 0.0
    %2359 = vmatprep.subr.mxu0 0.0
    %2360 = vmatpush2.msra.mxu0 0.0
    %2361 = vmatprep.subr.mxu0 0.0
    %2362 = vmatpush2.msra.mxu0 0.0
    %2363 = vmatprep.subr.mxu0 0.0
    %2364 = vmatpush2.msra.mxu0 0.0
    %2365 = vmatprep.subr.mxu0 0.0
    %2366 = vmatpush2.msra.mxu0 0.0
    %2367 = vmatprep.subr.mxu0 0.0
    %2368 = vmatpush2.msra.mxu0 0.0
    %2369 = vmatprep.subr.mxu0 0.0
    %2370 = vmatpush2.msra.mxu0 0.0
    %2371 = vmatprep.subr.mxu0 0.0
    %2372 = vmatpush2.msra.mxu0 0.0
    %2373 = vmatprep.subr.mxu0 0.0
    %2374 = vmatpush2.msra.mxu0 0.0
    %2375 = vmatprep.subr.mxu0 0.0
    %2376 = vmatpush2.msra.mxu0 0.0
    %2377 = vmatprep.subr.mxu0 0.0
    %2378 = vmatpush2.msra.mxu0 0.0
    %2379 = vmatprep.subr.mxu0 0.0
    %2380 = vmatpush2.msra.mxu0 0.0
    %2381 = vmatprep.subr.mxu0 0.0
    %2382 = vmatpush2.msra.mxu0 0.0
    %2383 = vmatprep.subr.mxu0 0.0
    %2384 = vmatpush2.msra.mxu0 0.0
    %2385 = vmatprep.mubr.f32.mxu0 0.0
    %2386 = vmatmul.mubr.f32.gmra.mxu0 %v355
    %v2387 = vpop.f32.mrf.mxu0
    %v2388 = vadd.f32 0.0, %v2387
    %v2389 = vpop.f32.mrf.mxu0
    %2390 = vdwg.mxu0
    %v2391 = vadd.f32 %v2317, %v2388
    %v2392 = vxor.u32 %v2391, 2147483648
    %v2393 = vmul.f32 %v2392, 1.442695
    %v2394 = vpow.pop %v2393
    %v2395 = vadd.f32 %v2394, 1.0
    %v2396 = vrcp.pop %v2395
    %v2397 = vmul.f32 1.0, %v2396
    %v2398 = vtanh.pop %v2391
    %v2399 = vmul.f32 %v2397, 0.0
    %2401 = vrot.lane.b32.xlu0 %v2398, 96
    %v2402 = vpop.permute.xlu0 %2401
    %v2404 = vmul.f32 %v2397, %v2402
    %2406 = vrot.lane.b32.xlu0 %v2404, 16
    %v2407 = vpop.permute.xlu0 %2406
    %v2409 = vadd.f32 %v2399, %v2407
    %v2410 = vtanh.pop %v2409
    %2412 = vrot.lane.b32.xlu0 %v2410, 32
    %v2413 = vpop.permute.xlu0 %2412
    %v2415 = vmul.f32 %v2397, %v2413
    %2417 = vrot.lane.b32.xlu0 %v2415, 80
    %v2418 = vpop.permute.xlu0 %2417
    %v2419 = vsel %vm353, %v2418, 0
    %2421 = vmatprep.subr.mxu0 0.0
    %2422 = vmatpush1.msra.mxu0 0.0
    %2423 = vmatprep.subr.mxu0 0.0
    %2424 = vmatpush1.msra.mxu0 0.0
    %2425 = vmatprep.subr.mxu0 0.0
    %2426 = vmatpush1.msra.mxu0 0.0
    %2427 = vmatprep.subr.mxu0 0.0
    %2428 = vmatpush1.msra.mxu0 0.0
    %2429 = vmatprep.subr.mxu0 0.0
    %2430 = vmatpush1.msra.mxu0 0.0
    %2431 = vmatprep.subr.mxu0 0.0
    %2432 = vmatpush1.msra.mxu0 0.0
    %2433 = vmatprep.subr.mxu0 0.0
    %2434 = vmatpush1.msra.mxu0 0.0
    %2435 = vmatprep.subr.mxu0 0.0
    %2436 = vmatpush1.msra.mxu0 0.0
    %2437 = vmatprep.subr.mxu0 0.0
    %2438 = vmatpush1.msra.mxu0 0.0
    %2439 = vmatprep.subr.mxu0 0.0
    %2440 = vmatpush1.msra.mxu0 0.0
    %2441 = vmatprep.subr.mxu0 0.0
    %2442 = vmatpush1.msra.mxu0 0.0
    %2443 = vmatprep.subr.mxu0 0.0
    %2444 = vmatpush1.msra.mxu0 0.0
    %2445 = vmatprep.subr.mxu0 0.0
    %2446 = vmatpush1.msra.mxu0 0.0
    %2447 = vmatprep.subr.mxu0 0.0
    %2448 = vmatpush1.msra.mxu0 0.0
    %2449 = vmatprep.subr.mxu0 0.0
    %2450 = vmatpush1.msra.mxu0 %v2320
    %2451 = vmatprep.subr.mxu0 0.0
    %2452 = vmatpush1.msra.mxu0 %v2319
    %2453 = vmatprep.subr.mxu0 0.0
    %2454 = vmatpush2.msra.mxu0 0.0
    %2455 = vmatprep.subr.mxu0 0.0
    %2456 = vmatpush2.msra.mxu0 0.0
    %2457 = vmatprep.subr.mxu0 0.0
    %2458 = vmatpush2.msra.mxu0 0.0
    %2459 = vmatprep.subr.mxu0 0.0
    %2460 = vmatpush2.msra.mxu0 0.0
    %2461 = vmatprep.subr.mxu0 0.0
    %2462 = vmatpush2.msra.mxu0 0.0
    %2463 = vmatprep.subr.mxu0 0.0
    %2464 = vmatpush2.msra.mxu0 0.0
    %2465 = vmatprep.subr.mxu0 0.0
    %2466 = vmatpush2.msra.mxu0 0.0
    %2467 = vmatprep.subr.mxu0 0.0
    %2468 = vmatpush2.msra.mxu0 0.0
    %2469 = vmatprep.subr.mxu0 0.0
    %2470 = vmatpush2.msra.mxu0 0.0
    %2471 = vmatprep.subr.mxu0 0.0
    %2472 = vmatpush2.msra.mxu0 0.0
    %2473 = vmatprep.subr.mxu0 0.0
    %2474 = vmatpush2.msra.mxu0 0.0
    %2475 = vmatprep.subr.mxu0 0.0
    %2476 = vmatpush2.msra.mxu0 0.0
    %2477 = vmatprep.subr.mxu0 0.0
    %2478 = vmatpush2.msra.mxu0 0.0
    %2479 = vmatprep.subr.mxu0 0.0
    %2480 = vmatpush2.msra.mxu0 0.0
    %2481 = vmatprep.subr.mxu0 0.0
    %2482 = vmatpush2.msra.mxu0 0.0
    %2483 = vmatprep.subr.mxu0 0.0
    %2484 = vmatpush2.msra.mxu0 0.0
    %2485 = vmatprep.mubr.f32.mxu0 0.0
    %2486 = vmatmul.mubr.f32.gmra.mxu0 %v2419
    %v2487 = vpop.f32.mrf.mxu0
    %v2488 = vadd.f32 0.0, %v2487
    %v2489 = vpop.f32.mrf.mxu0
    %2490 = vdwg.mxu0
    %v2492 = vrot.slane %v2488, 6
    %v2494 = vadd.f32 %v2317, %v2492
    %v2495 = vxor.u32 %v2494, 2147483648
    %v2496 = vmul.f32 %v2495, 1.442695
    %v2497 = vpow.pop %v2496
    %v2498 = vadd.f32 %v2497, 1.0
    %v2499 = vrcp.pop %v2498
    %v2500 = vmul.f32 1.0, %v2499
    %v2501 = vtanh.pop %v2494
    %v2503 = vrot.slane %v2409, 6
    %v2505 = vmul.f32 %v2500, %v2503
    %2507 = vrot.lane.b32.xlu0 %v2501, 96
    %v2508 = vpop.permute.xlu0 %2507
    %v2510 = vmul.f32 %v2500, %v2508
    %2512 = vrot.lane.b32.xlu0 %v2510, 16
    %v2513 = vpop.permute.xlu0 %2512
    %v2515 = vadd.f32 %v2505, %v2513
    %v2516 = vtanh.pop %v2515
    %2518 = vrot.lane.b32.xlu0 %v2516, 32
    %v2519 = vpop.permute.xlu0 %2518
    %v2521 = vmul.f32 %v2500, %v2519
    %v2523 = vrot.slane %v2521, 2
    %2524 = vrot.lane.b32.xlu0 %v2523, 80
    %v2525 = vpop.permute.xlu0 %2524
    %v2526 = vsel %vm353, %v2525, 0
    %2528 = vmatprep.subr.mxu0 0.0
    %2529 = vmatpush1.msra.mxu0 0.0
    %2530 = vmatprep.subr.mxu0 0.0
    %2531 = vmatpush1.msra.mxu0 0.0
    %2532 = vmatprep.subr.mxu0 0.0
    %2533 = vmatpush1.msra.mxu0 0.0
    %2534 = vmatprep.subr.mxu0 0.0
    %2535 = vmatpush1.msra.mxu0 0.0
    %2536 = vmatprep.subr.mxu0 0.0
    %2537 = vmatpush1.msra.mxu0 0.0
    %2538 = vmatprep.subr.mxu0 0.0
    %2539 = vmatpush1.msra.mxu0 0.0
    %2540 = vmatprep.subr.mxu0 0.0
    %2541 = vmatpush1.msra.mxu0 0.0
    %2542 = vmatprep.subr.mxu0 0.0
    %2543 = vmatpush1.msra.mxu0 0.0
    %2544 = vmatprep.subr.mxu0 0.0
    %2545 = vmatpush1.msra.mxu0 0.0
    %2546 = vmatprep.subr.mxu0 0.0
    %2547 = vmatpush1.msra.mxu0 0.0
    %2548 = vmatprep.subr.mxu0 0.0
    %2549 = vmatpush1.msra.mxu0 0.0
    %2550 = vmatprep.subr.mxu0 0.0
    %2551 = vmatpush1.msra.mxu0 0.0
    %2552 = vmatprep.subr.mxu0 0.0
    %2553 = vmatpush1.msra.mxu0 0.0
    %2554 = vmatprep.subr.mxu0 0.0
    %2555 = vmatpush1.msra.mxu0 0.0
    %2556 = vmatprep.subr.mxu0 0.0
    %2557 = vmatpush1.msra.mxu0 %v2320
    %2558 = vmatprep.subr.mxu0 0.0
    %2559 = vmatpush1.msra.mxu0 %v2319
    %2560 = vmatprep.subr.mxu0 0.0
    %2561 = vmatpush2.msra.mxu0 0.0
    %2562 = vmatprep.subr.mxu0 0.0
    %2563 = vmatpush2.msra.mxu0 0.0
    %2564 = vmatprep.subr.mxu0 0.0
    %2565 = vmatpush2.msra.mxu0 0.0
    %2566 = vmatprep.subr.mxu0 0.0
    %2567 = vmatpush2.msra.mxu0 0.0
    %2568 = vmatprep.subr.mxu0 0.0
    %2569 = vmatpush2.msra.mxu0 0.0
    %2570 = vmatprep.subr.mxu0 0.0
    %2571 = vmatpush2.msra.mxu0 0.0
    %2572 = vmatprep.subr.mxu0 0.0
    %2573 = vmatpush2.msra.mxu0 0.0
    %2574 = vmatprep.subr.mxu0 0.0
    %2575 = vmatpush2.msra.mxu0 0.0
    %2576 = vmatprep.subr.mxu0 0.0
    %2577 = vmatpush2.msra.mxu0 0.0
    %2578 = vmatprep.subr.mxu0 0.0
    %2579 = vmatpush2.msra.mxu0 0.0
    %2580 = vmatprep.subr.mxu0 0.0
    %2581 = vmatpush2.msra.mxu0 0.0
    %2582 = vmatprep.subr.mxu0 0.0
    %2583 = vmatpush2.msra.mxu0 0.0
    %2584 = vmatprep.subr.mxu0 0.0
    %2585 = vmatpush2.msra.mxu0 0.0
    %2586 = vmatprep.subr.mxu0 0.0
    %2587 = vmatpush2.msra.mxu0 0.0
    %2588 = vmatprep.subr.mxu0 0.0
    %2589 = vmatpush2.msra.mxu0 0.0
    %2590 = vmatprep.subr.mxu0 0.0
    %2591 = vmatpush2.msra.mxu0 0.0
    %2592 = vmatprep.mubr.f32.mxu0 0.0
    %2593 = vmatmul.mubr.f32.gmra.mxu0 %v2526
    %v2594 = vpop.f32.mrf.mxu0
    %v2595 = vadd.f32 0.0, %v2594
    %v2596 = vpop.f32.mrf.mxu0
    %2597 = vdwg.mxu0
    %v2599 = vrot.slane %v2595, 4
    %v2601 = vadd.f32 %v2317, %v2599
    %v2602 = vxor.u32 %v2601, 2147483648
    %v2603 = vmul.f32 %v2602, 1.442695
    %v2604 = vpow.pop %v2603
    %v2605 = vadd.f32 %v2604, 1.0
    %v2606 = vrcp.pop %v2605
    %v2607 = vmul.f32 1.0, %v2606
    %v2608 = vtanh.pop %v2601
    %v2610 = vrot.slane %v2515, 6
    %v2612 = vmul.f32 %v2607, %v2610
    %2614 = vrot.lane.b32.xlu0 %v2608, 96
    %v2615 = vpop.permute.xlu0 %2614
    %v2617 = vmul.f32 %v2607, %v2615
    %2619 = vrot.lane.b32.xlu0 %v2617, 16
    %v2620 = vpop.permute.xlu0 %2619
    %v2622 = vadd.f32 %v2612, %v2620
    %v2623 = vtanh.pop %v2622
    %2625 = vrot.lane.b32.xlu0 %v2623, 32
    %v2626 = vpop.permute.xlu0 %2625
    %v2628 = vmul.f32 %v2607, %v2626
    %v2630 = vrot.slane %v2628, 4
    %2631 = vrot.lane.b32.xlu0 %v2630, 80
    %v2632 = vpop.permute.xlu0 %2631
    %v2633 = vsel %vm353, %v2632, 0
    %2635 = vmatprep.subr.mxu0 0.0
    %2636 = vmatpush1.msra.mxu0 0.0
    %2637 = vmatprep.subr.mxu0 0.0
    %2638 = vmatpush1.msra.mxu0 0.0
    %2639 = vmatprep.subr.mxu0 0.0
    %2640 = vmatpush1.msra.mxu0 0.0
    %2641 = vmatprep.subr.mxu0 0.0
    %2642 = vmatpush1.msra.mxu0 0.0
    %2643 = vmatprep.subr.mxu0 0.0
    %2644 = vmatpush1.msra.mxu0 0.0
    %2645 = vmatprep.subr.mxu0 0.0
    %2646 = vmatpush1.msra.mxu0 0.0
    %2647 = vmatprep.subr.mxu0 0.0
    %2648 = vmatpush1.msra.mxu0 0.0
    %2649 = vmatprep.subr.mxu0 0.0
    %2650 = vmatpush1.msra.mxu0 0.0
    %2651 = vmatprep.subr.mxu0 0.0
    %2652 = vmatpush1.msra.mxu0 0.0
    %2653 = vmatprep.subr.mxu0 0.0
    %2654 = vmatpush1.msra.mxu0 0.0
    %2655 = vmatprep.subr.mxu0 0.0
    %2656 = vmatpush1.msra.mxu0 0.0
    %2657 = vmatprep.subr.mxu0 0.0
    %2658 = vmatpush1.msra.mxu0 0.0
    %2659 = vmatprep.subr.mxu0 0.0
    %2660 = vmatpush1.msra.mxu0 0.0
    %2661 = vmatprep.subr.mxu0 0.0
    %2662 = vmatpush1.msra.mxu0 0.0
    %2663 = vmatprep.subr.mxu0 0.0
    %2664 = vmatpush1.msra.mxu0 %v2320
    %2665 = vmatprep.subr.mxu0 0.0
    %2666 = vmatpush1.msra.mxu0 %v2319
    %2667 = vmatprep.subr.mxu0 0.0
    %2668 = vmatpush2.msra.mxu0 0.0
    %2669 = vmatprep.subr.mxu0 0.0
    %2670 = vmatpush2.msra.mxu0 0.0
    %2671 = vmatprep.subr.mxu0 0.0
    %2672 = vmatpush2.msra.mxu0 0.0
    %2673 = vmatprep.subr.mxu0 0.0
    %2674 = vmatpush2.msra.mxu0 0.0
    %2675 = vmatprep.subr.mxu0 0.0
    %2676 = vmatpush2.msra.mxu0 0.0
    %2677 = vmatprep.subr.mxu0 0.0
    %2678 = vmatpush2.msra.mxu0 0.0
    %2679 = vmatprep.subr.mxu0 0.0
    %2680 = vmatpush2.msra.mxu0 0.0
    %2681 = vmatprep.subr.mxu0 0.0
    %2682 = vmatpush2.msra.mxu0 0.0
    %2683 = vmatprep.subr.mxu0 0.0
    %2684 = vmatpush2.msra.mxu0 0.0
    %2685 = vmatprep.subr.mxu0 0.0
    %2686 = vmatpush2.msra.mxu0 0.0
    %2687 = vmatprep.subr.mxu0 0.0
    %2688 = vmatpush2.msra.mxu0 0.0
    %2689 = vmatprep.subr.mxu0 0.0
    %2690 = vmatpush2.msra.mxu0 0.0
    %2691 = vmatprep.subr.mxu0 0.0
    %2692 = vmatpush2.msra.mxu0 0.0
    %2693 = vmatprep.subr.mxu0 0.0
    %2694 = vmatpush2.msra.mxu0 0.0
    %2695 = vmatprep.subr.mxu0 0.0
    %2696 = vmatpush2.msra.mxu0 0.0
    %2697 = vmatprep.subr.mxu0 0.0
    %2698 = vmatpush2.msra.mxu0 0.0
    %2699 = vmatprep.mubr.f32.mxu0 0.0
    %2700 = vmatmul.mubr.f32.gmra.mxu0 %v2633
    %v2701 = vpop.f32.mrf.mxu0
    %v2702 = vadd.f32 0.0, %v2701
    %v2703 = vpop.f32.mrf.mxu0
    %2704 = vdwg.mxu0
    %v2706 = vrot.slane %v2702, 2
    %v2708 = vadd.f32 %v2317, %v2706
    %v2709 = vxor.u32 %v2708, 2147483648
    %v2710 = vmul.f32 %v2709, 1.442695
    %v2711 = vpow.pop %v2710
    %v2712 = vadd.f32 %v2711, 1.0
    %v2713 = vrcp.pop %v2712
    %v2714 = vmul.f32 1.0, %v2713
    %v2715 = vtanh.pop %v2708
    %v2717 = vrot.slane %v2622, 6
    %v2719 = vmul.f32 %v2714, %v2717
    %2721 = vrot.lane.b32.xlu0 %v2715, 96
    %v2722 = vpop.permute.xlu0 %2721
    %v2724 = vmul.f32 %v2714, %v2722
    %2726 = vrot.lane.b32.xlu0 %v2724, 16
    %v2727 = vpop.permute.xlu0 %2726
    %v2729 = vadd.f32 %v2719, %v2727
    %v2730 = vtanh.pop %v2729
    %2732 = vrot.lane.b32.xlu0 %v2730, 32
    %v2733 = vpop.permute.xlu0 %2732
    %v2735 = vmul.f32 %v2714, %v2733
    %v2737 = vrot.slane %v2735, 6
    %2738 = vrot.lane.b32.xlu0 %v2737, 80
    %v2739 = vpop.permute.xlu0 %2738
    %v2740 = vsel %vm353, %v2739, 0
    %2742 = vmatprep.subr.mxu0 0.0
    %2743 = vmatpush1.msra.mxu0 0.0
    %2744 = vmatprep.subr.mxu0 0.0
    %2745 = vmatpush1.msra.mxu0 0.0
    %2746 = vmatprep.subr.mxu0 0.0
    %2747 = vmatpush1.msra.mxu0 0.0
    %2748 = vmatprep.subr.mxu0 0.0
    %2749 = vmatpush1.msra.mxu0 0.0
    %2750 = vmatprep.subr.mxu0 0.0
    %2751 = vmatpush1.msra.mxu0 0.0
    %2752 = vmatprep.subr.mxu0 0.0
    %2753 = vmatpush1.msra.mxu0 0.0
    %2754 = vmatprep.subr.mxu0 0.0
    %2755 = vmatpush1.msra.mxu0 0.0
    %2756 = vmatprep.subr.mxu0 0.0
    %2757 = vmatpush1.msra.mxu0 0.0
    %2758 = vmatprep.subr.mxu0 0.0
    %2759 = vmatpush1.msra.mxu0 0.0
    %2760 = vmatprep.subr.mxu0 0.0
    %2761 = vmatpush1.msra.mxu0 0.0
    %2762 = vmatprep.subr.mxu0 0.0
    %2763 = vmatpush1.msra.mxu0 0.0
    %2764 = vmatprep.subr.mxu0 0.0
    %2765 = vmatpush1.msra.mxu0 0.0
    %2766 = vmatprep.subr.mxu0 0.0
    %2767 = vmatpush1.msra.mxu0 0.0
    %2768 = vmatprep.subr.mxu0 0.0
    %2769 = vmatpush1.msra.mxu0 0.0
    %2770 = vmatprep.subr.mxu0 0.0
    %2771 = vmatpush1.msra.mxu0 %v2320
    %2772 = vmatprep.subr.mxu0 0.0
    %2773 = vmatpush1.msra.mxu0 %v2319
    %2774 = vmatprep.subr.mxu0 0.0
    %2775 = vmatpush2.msra.mxu0 0.0
    %2776 = vmatprep.subr.mxu0 0.0
    %2777 = vmatpush2.msra.mxu0 0.0
    %2778 = vmatprep.subr.mxu0 0.0
    %2779 = vmatpush2.msra.mxu0 0.0
    %2780 = vmatprep.subr.mxu0 0.0
    %2781 = vmatpush2.msra.mxu0 0.0
    %2782 = vmatprep.subr.mxu0 0.0
    %2783 = vmatpush2.msra.mxu0 0.0
    %2784 = vmatprep.subr.mxu0 0.0
    %2785 = vmatpush2.msra.mxu0 0.0
    %2786 = vmatprep.subr.mxu0 0.0
    %2787 = vmatpush2.msra.mxu0 0.0
    %2788 = vmatprep.subr.mxu0 0.0
    %2789 = vmatpush2.msra.mxu0 0.0
    %2790 = vmatprep.subr.mxu0 0.0
    %2791 = vmatpush2.msra.mxu0 0.0
    %2792 = vmatprep.subr.mxu0 0.0
    %2793 = vmatpush2.msra.mxu0 0.0
    %2794 = vmatprep.subr.mxu0 0.0
    %2795 = vmatpush2.msra.mxu0 0.0
    %2796 = vmatprep.subr.mxu0 0.0
    %2797 = vmatpush2.msra.mxu0 0.0
    %2798 = vmatprep.subr.mxu0 0.0
    %2799 = vmatpush2.msra.mxu0 0.0
    %2800 = vmatprep.subr.mxu0 0.0
    %2801 = vmatpush2.msra.mxu0 0.0
    %2802 = vmatprep.subr.mxu0 0.0
    %2803 = vmatpush2.msra.mxu0 0.0
    %2804 = vmatprep.subr.mxu0 0.0
    %2805 = vmatpush2.msra.mxu0 0.0
    %2806 = vmatprep.mubr.f32.mxu0 0.0
    %2807 = vmatmul.mubr.f32.gmra.mxu0 %v2740
    %v2808 = vpop.f32.mrf.mxu0
    %v2809 = vadd.f32 0.0, %v2808
    %v2810 = vpop.f32.mrf.mxu0
    %2811 = vdwg.mxu0
    %v2812 = vadd.f32 %v2318, %v2809
    %v2813 = vxor.u32 %v2812, 2147483648
    %v2814 = vmul.f32 %v2813, 1.442695
    %v2815 = vpow.pop %v2814
    %v2816 = vadd.f32 %v2815, 1.0
    %v2817 = vrcp.pop %v2816
    %v2818 = vmul.f32 1.0, %v2817
    %v2819 = vtanh.pop %v2812
    %v2821 = vrot.slane %v2729, 6
    %v2823 = vmul.f32 %v2818, %v2821
    %2825 = vrot.lane.b32.xlu0 %v2819, 96
    %v2826 = vpop.permute.xlu0 %2825
    %v2828 = vmul.f32 %v2818, %v2826
    %2830 = vrot.lane.b32.xlu0 %v2828, 16
    %v2831 = vpop.permute.xlu0 %2830
    %v2833 = vadd.f32 %v2823, %v2831
    %v2834 = vtanh.pop %v2833
    %2836 = vrot.lane.b32.xlu0 %v2834, 32
    %v2837 = vpop.permute.xlu0 %2836
    %v2839 = vmul.f32 %v2818, %v2837
    %2841 = vrot.lane.b32.xlu0 %v2839, 80
    %v2842 = vpop.permute.xlu0 %2841
    %v2843 = vsel %vm353, %v2842, 0
    %2845 = vmatprep.subr.mxu0 0.0
    %2846 = vmatpush1.msra.mxu0 0.0
    %2847 = vmatprep.subr.mxu0 0.0
    %2848 = vmatpush1.msra.mxu0 0.0
    %2849 = vmatprep.subr.mxu0 0.0
    %2850 = vmatpush1.msra.mxu0 0.0
    %2851 = vmatprep.subr.mxu0 0.0
    %2852 = vmatpush1.msra.mxu0 0.0
    %2853 = vmatprep.subr.mxu0 0.0
    %2854 = vmatpush1.msra.mxu0 0.0
    %2855 = vmatprep.subr.mxu0 0.0
    %2856 = vmatpush1.msra.mxu0 0.0
    %2857 = vmatprep.subr.mxu0 0.0
    %2858 = vmatpush1.msra.mxu0 0.0
    %2859 = vmatprep.subr.mxu0 0.0
    %2860 = vmatpush1.msra.mxu0 0.0
    %2861 = vmatprep.subr.mxu0 0.0
    %2862 = vmatpush1.msra.mxu0 0.0
    %2863 = vmatprep.subr.mxu0 0.0
    %2864 = vmatpush1.msra.mxu0 0.0
    %2865 = vmatprep.subr.mxu0 0.0
    %2866 = vmatpush1.msra.mxu0 0.0
    %2867 = vmatprep.subr.mxu0 0.0
    %2868 = vmatpush1.msra.mxu0 0.0
    %2869 = vmatprep.subr.mxu0 0.0
    %2870 = vmatpush1.msra.mxu0 0.0
    %2871 = vmatprep.subr.mxu0 0.0
    %2872 = vmatpush1.msra.mxu0 0.0
    %2873 = vmatprep.subr.mxu0 0.0
    %2874 = vmatpush1.msra.mxu0 %v2320
    %2875 = vmatprep.subr.mxu0 0.0
    %2876 = vmatpush1.msra.mxu0 %v2319
    %2877 = vmatprep.subr.mxu0 0.0
    %2878 = vmatpush2.msra.mxu0 0.0
    %2879 = vmatprep.subr.mxu0 0.0
    %2880 = vmatpush2.msra.mxu0 0.0
    %2881 = vmatprep.subr.mxu0 0.0
    %2882 = vmatpush2.msra.mxu0 0.0
    %2883 = vmatprep.subr.mxu0 0.0
    %2884 = vmatpush2.msra.mxu0 0.0
    %2885 = vmatprep.subr.mxu0 0.0
    %2886 = vmatpush2.msra.mxu0 0.0
    %2887 = vmatprep.subr.mxu0 0.0
    %2888 = vmatpush2.msra.mxu0 0.0
    %2889 = vmatprep.subr.mxu0 0.0
    %2890 = vmatpush2.msra.mxu0 0.0
    %2891 = vmatprep.subr.mxu0 0.0
    %2892 = vmatpush2.msra.mxu0 0.0
    %2893 = vmatprep.subr.mxu0 0.0
    %2894 = vmatpush2.msra.mxu0 0.0
    %2895 = vmatprep.subr.mxu0 0.0
    %2896 = vmatpush2.msra.mxu0 0.0
    %2897 = vmatprep.subr.mxu0 0.0
    %2898 = vmatpush2.msra.mxu0 0.0
    %2899 = vmatprep.subr.mxu0 0.0
    %2900 = vmatpush2.msra.mxu0 0.0
    %2901 = vmatprep.subr.mxu0 0.0
    %2902 = vmatpush2.msra.mxu0 0.0
    %2903 = vmatprep.subr.mxu0 0.0
    %2904 = vmatpush2.msra.mxu0 0.0
    %2905 = vmatprep.subr.mxu0 0.0
    %2906 = vmatpush2.msra.mxu0 0.0
    %2907 = vmatprep.subr.mxu0 0.0
    %2908 = vmatpush2.msra.mxu0 0.0
    %2909 = vmatprep.mubr.f32.mxu0 0.0
    %2910 = vmatmul.mubr.f32.gmra.mxu0 %v2843
    %v2911 = vpop.f32.mrf.mxu0
    %v2912 = vadd.f32 0.0, %v2911
    %v2913 = vpop.f32.mrf.mxu0
    %2914 = vdwg.mxu0
    %v2916 = vrot.slane %v2912, 6
    %v2918 = vadd.f32 %v2318, %v2916
    %v2919 = vxor.u32 %v2918, 2147483648
    %v2920 = vmul.f32 %v2919, 1.442695
    %v2921 = vpow.pop %v2920
    %v2922 = vadd.f32 %v2921, 1.0
    %v2923 = vrcp.pop %v2922
    %v2924 = vmul.f32 1.0, %v2923
    %v2925 = vtanh.pop %v2918
    %v2927 = vrot.slane %v2833, 6
    %v2929 = vmul.f32 %v2924, %v2927
    %2931 = vrot.lane.b32.xlu0 %v2925, 96
    %v2932 = vpop.permute.xlu0 %2931
    %v2934 = vmul.f32 %v2924, %v2932
    %2936 = vrot.lane.b32.xlu0 %v2934, 16
    %v2937 = vpop.permute.xlu0 %2936
    %v2939 = vadd.f32 %v2929, %v2937
    %v2940 = vtanh.pop %v2939
    %2942 = vrot.lane.b32.xlu0 %v2940, 32
    %v2943 = vpop.permute.xlu0 %2942
    %v2945 = vmul.f32 %v2924, %v2943
    %v2947 = vrot.slane %v2945, 2
    %2948 = vrot.lane.b32.xlu0 %v2947, 80
    %v2949 = vpop.permute.xlu0 %2948
    %v2950 = vsel %vm353, %v2949, 0
    %2952 = vmatprep.subr.mxu0 0.0
    %2953 = vmatpush1.msra.mxu0 0.0
    %2954 = vmatprep.subr.mxu0 0.0
    %2955 = vmatpush1.msra.mxu0 0.0
    %2956 = vmatprep.subr.mxu0 0.0
    %2957 = vmatpush1.msra.mxu0 0.0
    %2958 = vmatprep.subr.mxu0 0.0
    %2959 = vmatpush1.msra.mxu0 0.0
    %2960 = vmatprep.subr.mxu0 0.0
    %2961 = vmatpush1.msra.mxu0 0.0
    %2962 = vmatprep.subr.mxu0 0.0
    %2963 = vmatpush1.msra.mxu0 0.0
    %2964 = vmatprep.subr.mxu0 0.0
    %2965 = vmatpush1.msra.mxu0 0.0
    %2966 = vmatprep.subr.mxu0 0.0
    %2967 = vmatpush1.msra.mxu0 0.0
    %2968 = vmatprep.subr.mxu0 0.0
    %2969 = vmatpush1.msra.mxu0 0.0
    %2970 = vmatprep.subr.mxu0 0.0
    %2971 = vmatpush1.msra.mxu0 0.0
    %2972 = vmatprep.subr.mxu0 0.0
    %2973 = vmatpush1.msra.mxu0 0.0
    %2974 = vmatprep.subr.mxu0 0.0
    %2975 = vmatpush1.msra.mxu0 0.0
    %2976 = vmatprep.subr.mxu0 0.0
    %2977 = vmatpush1.msra.mxu0 0.0
    %2978 = vmatprep.subr.mxu0 0.0
    %2979 = vmatpush1.msra.mxu0 0.0
    %2980 = vmatprep.subr.mxu0 0.0
    %2981 = vmatpush1.msra.mxu0 %v2320
    %2982 = vmatprep.subr.mxu0 0.0
    %2983 = vmatpush1.msra.mxu0 %v2319
    %2984 = vmatprep.subr.mxu0 0.0
    %2985 = vmatpush2.msra.mxu0 0.0
    %2986 = vmatprep.subr.mxu0 0.0
    %2987 = vmatpush2.msra.mxu0 0.0
    %2988 = vmatprep.subr.mxu0 0.0
    %2989 = vmatpush2.msra.mxu0 0.0
    %2990 = vmatprep.subr.mxu0 0.0
    %2991 = vmatpush2.msra.mxu0 0.0
    %2992 = vmatprep.subr.mxu0 0.0
    %2993 = vmatpush2.msra.mxu0 0.0
    %2994 = vmatprep.subr.mxu0 0.0
    %2995 = vmatpush2.msra.mxu0 0.0
    %2996 = vmatprep.subr.mxu0 0.0
    %2997 = vmatpush2.msra.mxu0 0.0
    %2998 = vmatprep.subr.mxu0 0.0
    %2999 = vmatpush2.msra.mxu0 0.0
    %3000 = vmatprep.subr.mxu0 0.0
    %3001 = vmatpush2.msra.mxu0 0.0
    %3002 = vmatprep.subr.mxu0 0.0
    %3003 = vmatpush2.msra.mxu0 0.0
    %3004 = vmatprep.subr.mxu0 0.0
    %3005 = vmatpush2.msra.mxu0 0.0
    %3006 = vmatprep.subr.mxu0 0.0
    %3007 = vmatpush2.msra.mxu0 0.0
    %3008 = vmatprep.subr.mxu0 0.0
    %3009 = vmatpush2.msra.mxu0 0.0
    %3010 = vmatprep.subr.mxu0 0.0
    %3011 = vmatpush2.msra.mxu0 0.0
    %3012 = vmatprep.subr.mxu0 0.0
    %3013 = vmatpush2.msra.mxu0 0.0
    %3014 = vmatprep.subr.mxu0 0.0
    %3015 = vmatpush2.msra.mxu0 0.0
    %3016 = vmatprep.mubr.f32.mxu0 0.0
    %3017 = vmatmul.mubr.f32.gmra.mxu0 %v2950
    %v3018 = vpop.f32.mrf.mxu0
    %v3019 = vadd.f32 0.0, %v3018
    %v3020 = vpop.f32.mrf.mxu0
    %3021 = vdwg.mxu0
    %v3023 = vrot.slane %v3019, 4
    %v3025 = vadd.f32 %v2318, %v3023
    %v3026 = vxor.u32 %v3025, 2147483648
    %v3027 = vmul.f32 %v3026, 1.442695
    %v3028 = vpow.pop %v3027
    %v3029 = vadd.f32 %v3028, 1.0
    %v3030 = vrcp.pop %v3029
    %v3031 = vmul.f32 1.0, %v3030
    %v3032 = vtanh.pop %v3025
    %v3034 = vrot.slane %v2939, 6
    %v3036 = vmul.f32 %v3031, %v3034
    %3038 = vrot.lane.b32.xlu0 %v3032, 96
    %v3039 = vpop.permute.xlu0 %3038
    %v3041 = vmul.f32 %v3031, %v3039
    %3043 = vrot.lane.b32.xlu0 %v3041, 16
    %v3044 = vpop.permute.xlu0 %3043
    %v3046 = vadd.f32 %v3036, %v3044
    %v3047 = vtanh.pop %v3046
    %3049 = vrot.lane.b32.xlu0 %v3047, 32
    %v3050 = vpop.permute.xlu0 %3049
    %v3052 = vmul.f32 %v3031, %v3050
    %v3054 = vrot.slane %v3052, 4
    %3055 = vrot.lane.b32.xlu0 %v3054, 80
    %v3056 = vpop.permute.xlu0 %3055
    %v3057 = vsel %vm353, %v3056, 0
    %3059 = vmatprep.subr.mxu0 0.0
    %3060 = vmatpush1.msra.mxu0 0.0
    %3061 = vmatprep.subr.mxu0 0.0
    %3062 = vmatpush1.msra.mxu0 0.0
    %3063 = vmatprep.subr.mxu0 0.0
    %3064 = vmatpush1.msra.mxu0 0.0
    %3065 = vmatprep.subr.mxu0 0.0
    %3066 = vmatpush1.msra.mxu0 0.0
    %3067 = vmatprep.subr.mxu0 0.0
    %3068 = vmatpush1.msra.mxu0 0.0
    %3069 = vmatprep.subr.mxu0 0.0
    %3070 = vmatpush1.msra.mxu0 0.0
    %3071 = vmatprep.subr.mxu0 0.0
    %3072 = vmatpush1.msra.mxu0 0.0
    %3073 = vmatprep.subr.mxu0 0.0
    %3074 = vmatpush1.msra.mxu0 0.0
    %3075 = vmatprep.subr.mxu0 0.0
    %3076 = vmatpush1.msra.mxu0 0.0
    %3077 = vmatprep.subr.mxu0 0.0
    %3078 = vmatpush1.msra.mxu0 0.0
    %3079 = vmatprep.subr.mxu0 0.0
    %3080 = vmatpush1.msra.mxu0 0.0
    %3081 = vmatprep.subr.mxu0 0.0
    %3082 = vmatpush1.msra.mxu0 0.0
    %3083 = vmatprep.subr.mxu0 0.0
    %3084 = vmatpush1.msra.mxu0 0.0
    %3085 = vmatprep.subr.mxu0 0.0
    %3086 = vmatpush1.msra.mxu0 0.0
    %3087 = vmatprep.subr.mxu0 0.0
    %3088 = vmatpush1.msra.mxu0 %v2320
    %3089 = vmatprep.subr.mxu0 0.0
    %3090 = vmatpush1.msra.mxu0 %v2319
    %3091 = vmatprep.subr.mxu0 0.0
    %3092 = vmatpush2.msra.mxu0 0.0
    %3093 = vmatprep.subr.mxu0 0.0
    %3094 = vmatpush2.msra.mxu0 0.0
    %3095 = vmatprep.subr.mxu0 0.0
    %3096 = vmatpush2.msra.mxu0 0.0
    %3097 = vmatprep.subr.mxu0 0.0
    %3098 = vmatpush2.msra.mxu0 0.0
    %3099 = vmatprep.subr.mxu0 0.0
    %3100 = vmatpush2.msra.mxu0 0.0
    %3101 = vmatprep.subr.mxu0 0.0
    %3102 = vmatpush2.msra.mxu0 0.0
    %3103 = vmatprep.subr.mxu0 0.0
    %3104 = vmatpush2.msra.mxu0 0.0
    %3105 = vmatprep.subr.mxu0 0.0
    %3106 = vmatpush2.msra.mxu0 0.0
    %3107 = vmatprep.subr.mxu0 0.0
    %3108 = vmatpush2.msra.mxu0 0.0
    %3109 = vmatprep.subr.mxu0 0.0
    %3110 = vmatpush2.msra.mxu0 0.0
    %3111 = vmatprep.subr.mxu0 0.0
    %3112 = vmatpush2.msra.mxu0 0.0
    %3113 = vmatprep.subr.mxu0 0.0
    %3114 = vmatpush2.msra.mxu0 0.0
    %3115 = vmatprep.subr.mxu0 0.0
    %3116 = vmatpush2.msra.mxu0 0.0
    %3117 = vmatprep.subr.mxu0 0.0
    %3118 = vmatpush2.msra.mxu0 0.0
    %3119 = vmatprep.subr.mxu0 0.0
    %3120 = vmatpush2.msra.mxu0 0.0
    %3121 = vmatprep.subr.mxu0 0.0
    %3122 = vmatpush2.msra.mxu0 0.0
    %3123 = vmatprep.mubr.f32.mxu0 0.0
    %3124 = vmatmul.mubr.f32.gmra.mxu0 %v3057
    %v3125 = vpop.f32.mrf.mxu0
    %v3126 = vadd.f32 0.0, %v3125
    %v3127 = vpop.f32.mrf.mxu0
    %3128 = vdwg.mxu0
    %v3130 = vrot.slane %v3126, 2
    %v3132 = vadd.f32 %v2318, %v3130
    %v3133 = vxor.u32 %v3132, 2147483648
    %v3134 = vmul.f32 %v3133, 1.442695
    %v3135 = vpow.pop %v3134
    %v3136 = vadd.f32 %v3135, 1.0
    %v3137 = vrcp.pop %v3136
    %v3138 = vmul.f32 1.0, %v3137
    %v3139 = vtanh.pop %v3132
    %v3141 = vrot.slane %v3046, 6
    %v3143 = vmul.f32 %v3138, %v3141
    %3145 = vrot.lane.b32.xlu0 %v3139, 96
    %v3146 = vpop.permute.xlu0 %3145
    %v3148 = vmul.f32 %v3138, %v3146
    %3150 = vrot.lane.b32.xlu0 %v3148, 16
    %v3151 = vpop.permute.xlu0 %3150
    %v3153 = vadd.f32 %v3143, %v3151
    %v3154 = vtanh.pop %v3153
    %3156 = vrot.lane.b32.xlu0 %v3154, 32
    %v3157 = vpop.permute.xlu0 %3156
    %v3159 = vmul.f32 %v3138, %v3157
    %v3160 = vsel %vm1196, %v2415, %v2521
    %v3161 = vsel %vm1198, %v3160, %v2628
    %v3162 = vsel %vm1200, %v3161, %v2735
    %v3163 = vsel %vm1196, %v2839, %v2945
    %v3164 = vsel %vm1198, %v3163, %v3052
    %v3165 = vsel %vm1200, %v3164, %v3159
    %v3166 = vld [vmem:[%s10] sm:$0xff]
    %v3167 = vld [vmem:[%s10 + $0x8] sm:$0xff]
    %v3168 = vld [vmem:[%s10 + $0x10] sm:$0xff]
    %v3169 = vld [vmem:[%s10 + $0x18] sm:$0xff]
    %v3170 = vld [vmem:[#allocation13] sm:$0x1]
    %3171 = vmatprep.subr.mxu0 0.0
    %3172 = vmatpush1.msra.mxu0 0.0
    %3173 = vmatprep.subr.mxu0 0.0
    %3174 = vmatpush1.msra.mxu0 0.0
    %3175 = vmatprep.subr.mxu0 0.0
    %3176 = vmatpush1.msra.mxu0 0.0
    %3177 = vmatprep.subr.mxu0 0.0
    %3178 = vmatpush1.msra.mxu0 0.0
    %3179 = vmatprep.subr.mxu0 0.0
    %3180 = vmatpush1.msra.mxu0 0.0
    %3181 = vmatprep.subr.mxu0 0.0
    %3182 = vmatpush1.msra.mxu0 0.0
    %3183 = vmatprep.subr.mxu0 0.0
    %3184 = vmatpush1.msra.mxu0 0.0
    %3185 = vmatprep.subr.mxu0 0.0
    %3186 = vmatpush1.msra.mxu0 0.0
    %3187 = vmatprep.subr.mxu0 0.0
    %3188 = vmatpush1.msra.mxu0 0.0
    %3189 = vmatprep.subr.mxu0 0.0
    %3190 = vmatpush1.msra.mxu0 0.0
    %3191 = vmatprep.subr.mxu0 0.0
    %3192 = vmatpush1.msra.mxu0 0.0
    %3193 = vmatprep.subr.mxu0 0.0
    %3194 = vmatpush1.msra.mxu0 0.0
    %3195 = vmatprep.subr.mxu0 0.0
    %3196 = vmatpush1.msra.mxu0 0.0
    %3197 = vmatprep.subr.mxu0 0.0
    %3198 = vmatpush1.msra.mxu0 0.0
    %3199 = vmatprep.subr.mxu0 0.0
    %3200 = vmatpush1.msra.mxu0 %v3169
    %3201 = vmatprep.subr.mxu0 0.0
    %3202 = vmatpush1.msra.mxu0 %v3168
    %3203 = vmatprep.subr.mxu0 0.0
    %3204 = vmatpush2.msra.mxu0 0.0
    %3205 = vmatprep.subr.mxu0 0.0
    %3206 = vmatpush2.msra.mxu0 0.0
    %3207 = vmatprep.subr.mxu0 0.0
    %3208 = vmatpush2.msra.mxu0 0.0
    %3209 = vmatprep.subr.mxu0 0.0
    %3210 = vmatpush2.msra.mxu0 0.0
    %3211 = vmatprep.subr.mxu0 0.0
    %3212 = vmatpush2.msra.mxu0 0.0
    %3213 = vmatprep.subr.mxu0 0.0
    %3214 = vmatpush2.msra.mxu0 0.0
    %3215 = vmatprep.subr.mxu0 0.0
    %3216 = vmatpush2.msra.mxu0 0.0
    %3217 = vmatprep.subr.mxu0 0.0
    %3218 = vmatpush2.msra.mxu0 0.0
    %3219 = vmatprep.subr.mxu0 0.0
    %3220 = vmatpush2.msra.mxu0 0.0
    %3221 = vmatprep.subr.mxu0 0.0
    %3222 = vmatpush2.msra.mxu0 0.0
    %3223 = vmatprep.subr.mxu0 0.0
    %3224 = vmatpush2.msra.mxu0 0.0
    %3225 = vmatprep.subr.mxu0 0.0
    %3226 = vmatpush2.msra.mxu0 0.0
    %3227 = vmatprep.subr.mxu0 0.0
    %3228 = vmatpush2.msra.mxu0 0.0
    %3229 = vmatprep.subr.mxu0 0.0
    %3230 = vmatpush2.msra.mxu0 0.0
    %3231 = vmatprep.subr.mxu0 0.0
    %3232 = vmatpush2.msra.mxu0 0.0
    %3233 = vmatprep.subr.mxu0 0.0
    %3234 = vmatpush2.msra.mxu0 0.0
    %3235 = vmatprep.mubr.f32.mxu0 0.0
    %3236 = vmatmul.mubr.f32.gmra.mxu0 %v2147
    %v3237 = vpop.f32.mrf.mxu0
    %v3238 = vadd.f32 0.0, %v3237
    %v3239 = vpop.f32.mrf.mxu0
    %3240 = vmatprep.mubr.f32.mxu0 0.0
    %3241 = vmatmul.mubr.f32.gmra.mxu0 %v2149
    %v3242 = vpop.f32.mrf.mxu0
    %v3243 = vadd.f32 0.0, %v3242
    %v3244 = vpop.f32.mrf.mxu0
    %3245 = vdwg.mxu0
    %3246 = vmatprep.subr.mxu0 0.0
    %3247 = vmatpush1.msra.mxu0 0.0
    %3248 = vmatprep.subr.mxu0 0.0
    %3249 = vmatpush1.msra.mxu0 0.0
    %3250 = vmatprep.subr.mxu0 0.0
    %3251 = vmatpush1.msra.mxu0 0.0
    %3252 = vmatprep.subr.mxu0 0.0
    %3253 = vmatpush1.msra.mxu0 0.0
    %3254 = vmatprep.subr.mxu0 0.0
    %3255 = vmatpush1.msra.mxu0 0.0
    %3256 = vmatprep.subr.mxu0 0.0
    %3257 = vmatpush1.msra.mxu0 0.0
    %3258 = vmatprep.subr.mxu0 0.0
    %3259 = vmatpush1.msra.mxu0 0.0
    %3260 = vmatprep.subr.mxu0 0.0
    %3261 = vmatpush1.msra.mxu0 0.0
    %3262 = vmatprep.subr.mxu0 0.0
    %3263 = vmatpush1.msra.mxu0 0.0
    %3264 = vmatprep.subr.mxu0 0.0
    %3265 = vmatpush1.msra.mxu0 0.0
    %3266 = vmatprep.subr.mxu0 0.0
    %3267 = vmatpush1.msra.mxu0 0.0
    %3268 = vmatprep.subr.mxu0 0.0
    %3269 = vmatpush1.msra.mxu0 0.0
    %3270 = vmatprep.subr.mxu0 0.0
    %3271 = vmatpush1.msra.mxu0 0.0
    %3272 = vmatprep.subr.mxu0 0.0
    %3273 = vmatpush1.msra.mxu0 0.0
    %3274 = vmatprep.subr.mxu0 0.0
    %3275 = vmatpush1.msra.mxu0 %v3167
    %3276 = vmatprep.subr.mxu0 0.0
    %3277 = vmatpush1.msra.mxu0 %v3166
    %3278 = vmatprep.subr.mxu0 0.0
    %3279 = vmatpush2.msra.mxu0 0.0
    %3280 = vmatprep.subr.mxu0 0.0
    %3281 = vmatpush2.msra.mxu0 0.0
    %3282 = vmatprep.subr.mxu0 0.0
    %3283 = vmatpush2.msra.mxu0 0.0
    %3284 = vmatprep.subr.mxu0 0.0
    %3285 = vmatpush2.msra.mxu0 0.0
    %3286 = vmatprep.subr.mxu0 0.0
    %3287 = vmatpush2.msra.mxu0 0.0
    %3288 = vmatprep.subr.mxu0 0.0
    %3289 = vmatpush2.msra.mxu0 0.0
    %3290 = vmatprep.subr.mxu0 0.0
    %3291 = vmatpush2.msra.mxu0 0.0
    %3292 = vmatprep.subr.mxu0 0.0
    %3293 = vmatpush2.msra.mxu0 0.0
    %3294 = vmatprep.subr.mxu0 0.0
    %3295 = vmatpush2.msra.mxu0 0.0
    %3296 = vmatprep.subr.mxu0 0.0
    %3297 = vmatpush2.msra.mxu0 0.0
    %3298 = vmatprep.subr.mxu0 0.0
    %3299 = vmatpush2.msra.mxu0 0.0
    %3300 = vmatprep.subr.mxu0 0.0
    %3301 = vmatpush2.msra.mxu0 0.0
    %3302 = vmatprep.subr.mxu0 0.0
    %3303 = vmatpush2.msra.mxu0 0.0
    %3304 = vmatprep.subr.mxu0 0.0
    %3305 = vmatpush2.msra.mxu0 0.0
    %3306 = vmatprep.subr.mxu0 0.0
    %3307 = vmatpush2.msra.mxu0 0.0
    %3308 = vmatprep.subr.mxu0 0.0
    %3309 = vmatpush2.msra.mxu0 0.0
    %3310 = vmatprep.mubr.f32.mxu0 0.0
    %3311 = vmatmul.mubr.f32.gmra.mxu0 %v2232
    %v3312 = vpop.f32.mrf.mxu0
    %v3313 = vadd.f32 %v3238, %v3312
    %v3314 = vpop.f32.mrf.mxu0
    %3315 = vmatprep.mubr.f32.mxu0 0.0
    %3316 = vmatmul.mubr.f32.gmra.mxu0 %v2234
    %v3317 = vpop.f32.mrf.mxu0
    %v3318 = vadd.f32 %v3243, %v3317
    %v3319 = vpop.f32.mrf.mxu0
    %3320 = vdwg.mxu0
    %v3322 = vlaneseq
    %v3323 = vshrl.u32 %v3322, 7
    %v3324 = vsub.s32 0, %v3323
    %v3325 = vrot.slane %v3170, %v3324
    %v3327 = vadd.f32 %v3313, %v3325
    %v3328 = vadd.f32 %v3318, %v3325
    %v3329 = vld [vmem:[#allocation12] sm:$0xff]
    %v3330 = vld [vmem:[#allocation12 + $0x8] sm:$0xff]
    %3331 = vmatprep.subr.mxu0 0.0
    %3332 = vmatpush1.msra.mxu0 0.0
    %3333 = vmatprep.subr.mxu0 0.0
    %3334 = vmatpush1.msra.mxu0 0.0
    %3335 = vmatprep.subr.mxu0 0.0
    %3336 = vmatpush1.msra.mxu0 0.0
    %3337 = vmatprep.subr.mxu0 0.0
    %3338 = vmatpush1.msra.mxu0 0.0
    %3339 = vmatprep.subr.mxu0 0.0
    %3340 = vmatpush1.msra.mxu0 0.0
    %3341 = vmatprep.subr.mxu0 0.0
    %3342 = vmatpush1.msra.mxu0 0.0
    %3343 = vmatprep.subr.mxu0 0.0
    %3344 = vmatpush1.msra.mxu0 0.0
    %3345 = vmatprep.subr.mxu0 0.0
    %3346 = vmatpush1.msra.mxu0 0.0
    %3347 = vmatprep.subr.mxu0 0.0
    %3348 = vmatpush1.msra.mxu0 0.0
    %3349 = vmatprep.subr.mxu0 0.0
    %3350 = vmatpush1.msra.mxu0 0.0
    %3351 = vmatprep.subr.mxu0 0.0
    %3352 = vmatpush1.msra.mxu0 0.0
    %3353 = vmatprep.subr.mxu0 0.0
    %3354 = vmatpush1.msra.mxu0 0.0
    %3355 = vmatprep.subr.mxu0 0.0
    %3356 = vmatpush1.msra.mxu0 0.0
    %3357 = vmatprep.subr.mxu0 0.0
    %3358 = vmatpush1.msra.mxu0 0.0
    %3359 = vmatprep.subr.mxu0 0.0
    %3360 = vmatpush1.msra.mxu0 %v3330
    %3361 = vmatprep.subr.mxu0 0.0
    %3362 = vmatpush1.msra.mxu0 %v3329
    %3363 = vmatprep.subr.mxu0 0.0
    %3364 = vmatpush2.msra.mxu0 0.0
    %3365 = vmatprep.subr.mxu0 0.0
    %3366 = vmatpush2.msra.mxu0 0.0
    %3367 = vmatprep.subr.mxu0 0.0
    %3368 = vmatpush2.msra.mxu0 0.0
    %3369 = vmatprep.subr.mxu0 0.0
    %3370 = vmatpush2.msra.mxu0 0.0
    %3371 = vmatprep.subr.mxu0 0.0
    %3372 = vmatpush2.msra.mxu0 0.0
    %3373 = vmatprep.subr.mxu0 0.0
    %3374 = vmatpush2.msra.mxu0 0.0
    %3375 = vmatprep.subr.mxu0 0.0
    %3376 = vmatpush2.msra.mxu0 0.0
    %3377 = vmatprep.subr.mxu0 0.0
    %3378 = vmatpush2.msra.mxu0 0.0
    %3379 = vmatprep.subr.mxu0 0.0
    %3380 = vmatpush2.msra.mxu0 0.0
    %3381 = vmatprep.subr.mxu0 0.0
    %3382 = vmatpush2.msra.mxu0 0.0
    %3383 = vmatprep.subr.mxu0 0.0
    %3384 = vmatpush2.msra.mxu0 0.0
    %3385 = vmatprep.subr.mxu0 0.0
    %3386 = vmatpush2.msra.mxu0 0.0
    %3387 = vmatprep.subr.mxu0 0.0
    %3388 = vmatpush2.msra.mxu0 0.0
    %3389 = vmatprep.subr.mxu0 0.0
    %3390 = vmatpush2.msra.mxu0 0.0
    %3391 = vmatprep.subr.mxu0 0.0
    %3392 = vmatpush2.msra.mxu0 0.0
    %3393 = vmatprep.subr.mxu0 0.0
    %3394 = vmatpush2.msra.mxu0 0.0
    %3395 = vmatprep.mubr.f32.mxu0 0.0
    %3396 = vmatmul.mubr.f32.gmra.mxu0 %v355
    %v3397 = vpop.f32.mrf.mxu0
    %v3398 = vadd.f32 0.0, %v3397
    %v3399 = vpop.f32.mrf.mxu0
    %3400 = vdwg.mxu0
    %v3402 = vrot.slane %v3398, 2
    %v3404 = vadd.f32 %v3328, %v3402
    %v3405 = vxor.u32 %v3404, 2147483648
    %v3406 = vmul.f32 %v3405, 1.442695
    %v3407 = vpow.pop %v3406
    %v3408 = vadd.f32 %v3407, 1.0
    %v3409 = vrcp.pop %v3408
    %v3410 = vmul.f32 1.0, %v3409
    %v3411 = vtanh.pop %v3404
    %v3412 = vmul.f32 %v3410, 0.0
    %3414 = vrot.lane.b32.xlu0 %v3411, 96
    %v3415 = vpop.permute.xlu0 %3414
    %v3417 = vmul.f32 %v3410, %v3415
    %3419 = vrot.lane.b32.xlu0 %v3417, 16
    %v3420 = vpop.permute.xlu0 %3419
    %v3422 = vadd.f32 %v3412, %v3420
    %v3423 = vtanh.pop %v3422
    %3425 = vrot.lane.b32.xlu0 %v3423, 32
    %v3426 = vpop.permute.xlu0 %3425
    %v3428 = vmul.f32 %v3410, %v3426
    %v3430 = vrot.slane %v3428, 6
    %3431 = vrot.lane.b32.xlu0 %v3430, 80
    %v3432 = vpop.permute.xlu0 %3431
    %v3433 = vsel %vm353, %v3432, 0
    %3435 = vmatprep.subr.mxu0 0.0
    %3436 = vmatpush1.msra.mxu0 0.0
    %3437 = vmatprep.subr.mxu0 0.0
    %3438 = vmatpush1.msra.mxu0 0.0
    %3439 = vmatprep.subr.mxu0 0.0
    %3440 = vmatpush1.msra.mxu0 0.0
    %3441 = vmatprep.subr.mxu0 0.0
    %3442 = vmatpush1.msra.mxu0 0.0
    %3443 = vmatprep.subr.mxu0 0.0
    %3444 = vmatpush1.msra.mxu0 0.0
    %3445 = vmatprep.subr.mxu0 0.0
    %3446 = vmatpush1.msra.mxu0 0.0
    %3447 = vmatprep.subr.mxu0 0.0
    %3448 = vmatpush1.msra.mxu0 0.0
    %3449 = vmatprep.subr.mxu0 0.0
    %3450 = vmatpush1.msra.mxu0 0.0
    %3451 = vmatprep.subr.mxu0 0.0
    %3452 = vmatpush1.msra.mxu0 0.0
    %3453 = vmatprep.subr.mxu0 0.0
    %3454 = vmatpush1.msra.mxu0 0.0
    %3455 = vmatprep.subr.mxu0 0.0
    %3456 = vmatpush1.msra.mxu0 0.0
    %3457 = vmatprep.subr.mxu0 0.0
    %3458 = vmatpush1.msra.mxu0 0.0
    %3459 = vmatprep.subr.mxu0 0.0
    %3460 = vmatpush1.msra.mxu0 0.0
    %3461 = vmatprep.subr.mxu0 0.0
    %3462 = vmatpush1.msra.mxu0 0.0
    %3463 = vmatprep.subr.mxu0 0.0
    %3464 = vmatpush1.msra.mxu0 %v3330
    %3465 = vmatprep.subr.mxu0 0.0
    %3466 = vmatpush1.msra.mxu0 %v3329
    %3467 = vmatprep.subr.mxu0 0.0
    %3468 = vmatpush2.msra.mxu0 0.0
    %3469 = vmatprep.subr.mxu0 0.0
    %3470 = vmatpush2.msra.mxu0 0.0
    %3471 = vmatprep.subr.mxu0 0.0
    %3472 = vmatpush2.msra.mxu0 0.0
    %3473 = vmatprep.subr.mxu0 0.0
    %3474 = vmatpush2.msra.mxu0 0.0
    %3475 = vmatprep.subr.mxu0 0.0
    %3476 = vmatpush2.msra.mxu0 0.0
    %3477 = vmatprep.subr.mxu0 0.0
    %3478 = vmatpush2.msra.mxu0 0.0
    %3479 = vmatprep.subr.mxu0 0.0
    %3480 = vmatpush2.msra.mxu0 0.0
    %3481 = vmatprep.subr.mxu0 0.0
    %3482 = vmatpush2.msra.mxu0 0.0
    %3483 = vmatprep.subr.mxu0 0.0
    %3484 = vmatpush2.msra.mxu0 0.0
    %3485 = vmatprep.subr.mxu0 0.0
    %3486 = vmatpush2.msra.mxu0 0.0
    %3487 = vmatprep.subr.mxu0 0.0
    %3488 = vmatpush2.msra.mxu0 0.0
    %3489 = vmatprep.subr.mxu0 0.0
    %3490 = vmatpush2.msra.mxu0 0.0
    %3491 = vmatprep.subr.mxu0 0.0
    %3492 = vmatpush2.msra.mxu0 0.0
    %3493 = vmatprep.subr.mxu0 0.0
    %3494 = vmatpush2.msra.mxu0 0.0
    %3495 = vmatprep.subr.mxu0 0.0
    %3496 = vmatpush2.msra.mxu0 0.0
    %3497 = vmatprep.subr.mxu0 0.0
    %3498 = vmatpush2.msra.mxu0 0.0
    %3499 = vmatprep.mubr.f32.mxu0 0.0
    %3500 = vmatmul.mubr.f32.gmra.mxu0 %v3433
    %v3501 = vpop.f32.mrf.mxu0
    %v3502 = vadd.f32 0.0, %v3501
    %v3503 = vpop.f32.mrf.mxu0
    %3504 = vdwg.mxu0
    %v3506 = vrot.slane %v3502, 4
    %v3508 = vadd.f32 %v3328, %v3506
    %v3509 = vxor.u32 %v3508, 2147483648
    %v3510 = vmul.f32 %v3509, 1.442695
    %v3511 = vpow.pop %v3510
    %v3512 = vadd.f32 %v3511, 1.0
    %v3513 = vrcp.pop %v3512
    %v3514 = vmul.f32 1.0, %v3513
    %v3515 = vtanh.pop %v3508
    %v3517 = vrot.slane %v3422, 2
    %v3519 = vmul.f32 %v3514, %v3517
    %3521 = vrot.lane.b32.xlu0 %v3515, 96
    %v3522 = vpop.permute.xlu0 %3521
    %v3524 = vmul.f32 %v3514, %v3522
    %3526 = vrot.lane.b32.xlu0 %v3524, 16
    %v3527 = vpop.permute.xlu0 %3526
    %v3529 = vadd.f32 %v3519, %v3527
    %v3530 = vtanh.pop %v3529
    %3532 = vrot.lane.b32.xlu0 %v3530, 32
    %v3533 = vpop.permute.xlu0 %3532
    %v3535 = vmul.f32 %v3514, %v3533
    %v3537 = vrot.slane %v3535, 4
    %3538 = vrot.lane.b32.xlu0 %v3537, 80
    %v3539 = vpop.permute.xlu0 %3538
    %v3540 = vsel %vm353, %v3539, 0
    %3542 = vmatprep.subr.mxu0 0.0
    %3543 = vmatpush1.msra.mxu0 0.0
    %3544 = vmatprep.subr.mxu0 0.0
    %3545 = vmatpush1.msra.mxu0 0.0
    %3546 = vmatprep.subr.mxu0 0.0
    %3547 = vmatpush1.msra.mxu0 0.0
    %3548 = vmatprep.subr.mxu0 0.0
    %3549 = vmatpush1.msra.mxu0 0.0
    %3550 = vmatprep.subr.mxu0 0.0
    %3551 = vmatpush1.msra.mxu0 0.0
    %3552 = vmatprep.subr.mxu0 0.0
    %3553 = vmatpush1.msra.mxu0 0.0
    %3554 = vmatprep.subr.mxu0 0.0
    %3555 = vmatpush1.msra.mxu0 0.0
    %3556 = vmatprep.subr.mxu0 0.0
    %3557 = vmatpush1.msra.mxu0 0.0
    %3558 = vmatprep.subr.mxu0 0.0
    %3559 = vmatpush1.msra.mxu0 0.0
    %3560 = vmatprep.subr.mxu0 0.0
    %3561 = vmatpush1.msra.mxu0 0.0
    %3562 = vmatprep.subr.mxu0 0.0
    %3563 = vmatpush1.msra.mxu0 0.0
    %3564 = vmatprep.subr.mxu0 0.0
    %3565 = vmatpush1.msra.mxu0 0.0
    %3566 = vmatprep.subr.mxu0 0.0
    %3567 = vmatpush1.msra.mxu0 0.0
    %3568 = vmatprep.subr.mxu0 0.0
    %3569 = vmatpush1.msra.mxu0 0.0
    %3570 = vmatprep.subr.mxu0 0.0
    %3571 = vmatpush1.msra.mxu0 %v3330
    %3572 = vmatprep.subr.mxu0 0.0
    %3573 = vmatpush1.msra.mxu0 %v3329
    %3574 = vmatprep.subr.mxu0 0.0
    %3575 = vmatpush2.msra.mxu0 0.0
    %3576 = vmatprep.subr.mxu0 0.0
    %3577 = vmatpush2.msra.mxu0 0.0
    %3578 = vmatprep.subr.mxu0 0.0
    %3579 = vmatpush2.msra.mxu0 0.0
    %3580 = vmatprep.subr.mxu0 0.0
    %3581 = vmatpush2.msra.mxu0 0.0
    %3582 = vmatprep.subr.mxu0 0.0
    %3583 = vmatpush2.msra.mxu0 0.0
    %3584 = vmatprep.subr.mxu0 0.0
    %3585 = vmatpush2.msra.mxu0 0.0
    %3586 = vmatprep.subr.mxu0 0.0
    %3587 = vmatpush2.msra.mxu0 0.0
    %3588 = vmatprep.subr.mxu0 0.0
    %3589 = vmatpush2.msra.mxu0 0.0
    %3590 = vmatprep.subr.mxu0 0.0
    %3591 = vmatpush2.msra.mxu0 0.0
    %3592 = vmatprep.subr.mxu0 0.0
    %3593 = vmatpush2.msra.mxu0 0.0
    %3594 = vmatprep.subr.mxu0 0.0
    %3595 = vmatpush2.msra.mxu0 0.0
    %3596 = vmatprep.subr.mxu0 0.0
    %3597 = vmatpush2.msra.mxu0 0.0
    %3598 = vmatprep.subr.mxu0 0.0
    %3599 = vmatpush2.msra.mxu0 0.0
    %3600 = vmatprep.subr.mxu0 0.0
    %3601 = vmatpush2.msra.mxu0 0.0
    %3602 = vmatprep.subr.mxu0 0.0
    %3603 = vmatpush2.msra.mxu0 0.0
    %3604 = vmatprep.subr.mxu0 0.0
    %3605 = vmatpush2.msra.mxu0 0.0
    %3606 = vmatprep.mubr.f32.mxu0 0.0
    %3607 = vmatmul.mubr.f32.gmra.mxu0 %v3540
    %v3608 = vpop.f32.mrf.mxu0
    %v3609 = vadd.f32 0.0, %v3608
    %v3610 = vpop.f32.mrf.mxu0
    %3611 = vdwg.mxu0
    %v3613 = vrot.slane %v3609, 6
    %v3615 = vadd.f32 %v3328, %v3613
    %v3616 = vxor.u32 %v3615, 2147483648
    %v3617 = vmul.f32 %v3616, 1.442695
    %v3618 = vpow.pop %v3617
    %v3619 = vadd.f32 %v3618, 1.0
    %v3620 = vrcp.pop %v3619
    %v3621 = vmul.f32 1.0, %v3620
    %v3622 = vtanh.pop %v3615
    %v3624 = vrot.slane %v3529, 2
    %v3626 = vmul.f32 %v3621, %v3624
    %3628 = vrot.lane.b32.xlu0 %v3622, 96
    %v3629 = vpop.permute.xlu0 %3628
    %v3631 = vmul.f32 %v3621, %v3629
    %3633 = vrot.lane.b32.xlu0 %v3631, 16
    %v3634 = vpop.permute.xlu0 %3633
    %v3636 = vadd.f32 %v3626, %v3634
    %v3637 = vtanh.pop %v3636
    %3639 = vrot.lane.b32.xlu0 %v3637, 32
    %v3640 = vpop.permute.xlu0 %3639
    %v3642 = vmul.f32 %v3621, %v3640
    %v3644 = vrot.slane %v3642, 2
    %3645 = vrot.lane.b32.xlu0 %v3644, 80
    %v3646 = vpop.permute.xlu0 %3645
    %v3647 = vsel %vm353, %v3646, 0
    %3649 = vmatprep.subr.mxu0 0.0
    %3650 = vmatpush1.msra.mxu0 0.0
    %3651 = vmatprep.subr.mxu0 0.0
    %3652 = vmatpush1.msra.mxu0 0.0
    %3653 = vmatprep.subr.mxu0 0.0
    %3654 = vmatpush1.msra.mxu0 0.0
    %3655 = vmatprep.subr.mxu0 0.0
    %3656 = vmatpush1.msra.mxu0 0.0
    %3657 = vmatprep.subr.mxu0 0.0
    %3658 = vmatpush1.msra.mxu0 0.0
    %3659 = vmatprep.subr.mxu0 0.0
    %3660 = vmatpush1.msra.mxu0 0.0
    %3661 = vmatprep.subr.mxu0 0.0
    %3662 = vmatpush1.msra.mxu0 0.0
    %3663 = vmatprep.subr.mxu0 0.0
    %3664 = vmatpush1.msra.mxu0 0.0
    %3665 = vmatprep.subr.mxu0 0.0
    %3666 = vmatpush1.msra.mxu0 0.0
    %3667 = vmatprep.subr.mxu0 0.0
    %3668 = vmatpush1.msra.mxu0 0.0
    %3669 = vmatprep.subr.mxu0 0.0
    %3670 = vmatpush1.msra.mxu0 0.0
    %3671 = vmatprep.subr.mxu0 0.0
    %3672 = vmatpush1.msra.mxu0 0.0
    %3673 = vmatprep.subr.mxu0 0.0
    %3674 = vmatpush1.msra.mxu0 0.0
    %3675 = vmatprep.subr.mxu0 0.0
    %3676 = vmatpush1.msra.mxu0 0.0
    %3677 = vmatprep.subr.mxu0 0.0
    %3678 = vmatpush1.msra.mxu0 %v3330
    %3679 = vmatprep.subr.mxu0 0.0
    %3680 = vmatpush1.msra.mxu0 %v3329
    %3681 = vmatprep.subr.mxu0 0.0
    %3682 = vmatpush2.msra.mxu0 0.0
    %3683 = vmatprep.subr.mxu0 0.0
    %3684 = vmatpush2.msra.mxu0 0.0
    %3685 = vmatprep.subr.mxu0 0.0
    %3686 = vmatpush2.msra.mxu0 0.0
    %3687 = vmatprep.subr.mxu0 0.0
    %3688 = vmatpush2.msra.mxu0 0.0
    %3689 = vmatprep.subr.mxu0 0.0
    %3690 = vmatpush2.msra.mxu0 0.0
    %3691 = vmatprep.subr.mxu0 0.0
    %3692 = vmatpush2.msra.mxu0 0.0
    %3693 = vmatprep.subr.mxu0 0.0
    %3694 = vmatpush2.msra.mxu0 0.0
    %3695 = vmatprep.subr.mxu0 0.0
    %3696 = vmatpush2.msra.mxu0 0.0
    %3697 = vmatprep.subr.mxu0 0.0
    %3698 = vmatpush2.msra.mxu0 0.0
    %3699 = vmatprep.subr.mxu0 0.0
    %3700 = vmatpush2.msra.mxu0 0.0
    %3701 = vmatprep.subr.mxu0 0.0
    %3702 = vmatpush2.msra.mxu0 0.0
    %3703 = vmatprep.subr.mxu0 0.0
    %3704 = vmatpush2.msra.mxu0 0.0
    %3705 = vmatprep.subr.mxu0 0.0
    %3706 = vmatpush2.msra.mxu0 0.0
    %3707 = vmatprep.subr.mxu0 0.0
    %3708 = vmatpush2.msra.mxu0 0.0
    %3709 = vmatprep.subr.mxu0 0.0
    %3710 = vmatpush2.msra.mxu0 0.0
    %3711 = vmatprep.subr.mxu0 0.0
    %3712 = vmatpush2.msra.mxu0 0.0
    %3713 = vmatprep.mubr.f32.mxu0 0.0
    %3714 = vmatmul.mubr.f32.gmra.mxu0 %v3647
    %v3715 = vpop.f32.mrf.mxu0
    %v3716 = vadd.f32 0.0, %v3715
    %v3717 = vpop.f32.mrf.mxu0
    %3718 = vdwg.mxu0
    %v3719 = vadd.f32 %v3328, %v3716
    %v3720 = vxor.u32 %v3719, 2147483648
    %v3721 = vmul.f32 %v3720, 1.442695
    %v3722 = vpow.pop %v3721
    %v3723 = vadd.f32 %v3722, 1.0
    %v3724 = vrcp.pop %v3723
    %v3725 = vmul.f32 1.0, %v3724
    %v3726 = vtanh.pop %v3719
    %v3728 = vrot.slane %v3636, 2
    %v3730 = vmul.f32 %v3725, %v3728
    %3732 = vrot.lane.b32.xlu0 %v3726, 96
    %v3733 = vpop.permute.xlu0 %3732
    %v3735 = vmul.f32 %v3725, %v3733
    %3737 = vrot.lane.b32.xlu0 %v3735, 16
    %v3738 = vpop.permute.xlu0 %3737
    %v3740 = vadd.f32 %v3730, %v3738
    %v3741 = vtanh.pop %v3740
    %3743 = vrot.lane.b32.xlu0 %v3741, 32
    %v3744 = vpop.permute.xlu0 %3743
    %v3746 = vmul.f32 %v3725, %v3744
    %3748 = vrot.lane.b32.xlu0 %v3746, 80
    %v3749 = vpop.permute.xlu0 %3748
    %v3750 = vsel %vm353, %v3749, 0
    %3752 = vmatprep.subr.mxu0 0.0
    %3753 = vmatpush1.msra.mxu0 0.0
    %3754 = vmatprep.subr.mxu0 0.0
    %3755 = vmatpush1.msra.mxu0 0.0
    %3756 = vmatprep.subr.mxu0 0.0
    %3757 = vmatpush1.msra.mxu0 0.0
    %3758 = vmatprep.subr.mxu0 0.0
    %3759 = vmatpush1.msra.mxu0 0.0
    %3760 = vmatprep.subr.mxu0 0.0
    %3761 = vmatpush1.msra.mxu0 0.0
    %3762 = vmatprep.subr.mxu0 0.0
    %3763 = vmatpush1.msra.mxu0 0.0
    %3764 = vmatprep.subr.mxu0 0.0
    %3765 = vmatpush1.msra.mxu0 0.0
    %3766 = vmatprep.subr.mxu0 0.0
    %3767 = vmatpush1.msra.mxu0 0.0
    %3768 = vmatprep.subr.mxu0 0.0
    %3769 = vmatpush1.msra.mxu0 0.0
    %3770 = vmatprep.subr.mxu0 0.0
    %3771 = vmatpush1.msra.mxu0 0.0
    %3772 = vmatprep.subr.mxu0 0.0
    %3773 = vmatpush1.msra.mxu0 0.0
    %3774 = vmatprep.subr.mxu0 0.0
    %3775 = vmatpush1.msra.mxu0 0.0
    %3776 = vmatprep.subr.mxu0 0.0
    %3777 = vmatpush1.msra.mxu0 0.0
    %3778 = vmatprep.subr.mxu0 0.0
    %3779 = vmatpush1.msra.mxu0 0.0
    %3780 = vmatprep.subr.mxu0 0.0
    %3781 = vmatpush1.msra.mxu0 %v3330
    %3782 = vmatprep.subr.mxu0 0.0
    %3783 = vmatpush1.msra.mxu0 %v3329
    %3784 = vmatprep.subr.mxu0 0.0
    %3785 = vmatpush2.msra.mxu0 0.0
    %3786 = vmatprep.subr.mxu0 0.0
    %3787 = vmatpush2.msra.mxu0 0.0
    %3788 = vmatprep.subr.mxu0 0.0
    %3789 = vmatpush2.msra.mxu0 0.0
    %3790 = vmatprep.subr.mxu0 0.0
    %3791 = vmatpush2.msra.mxu0 0.0
    %3792 = vmatprep.subr.mxu0 0.0
    %3793 = vmatpush2.msra.mxu0 0.0
    %3794 = vmatprep.subr.mxu0 0.0
    %3795 = vmatpush2.msra.mxu0 0.0
    %3796 = vmatprep.subr.mxu0 0.0
    %3797 = vmatpush2.msra.mxu0 0.0
    %3798 = vmatprep.subr.mxu0 0.0
    %3799 = vmatpush2.msra.mxu0 0.0
    %3800 = vmatprep.subr.mxu0 0.0
    %3801 = vmatpush2.msra.mxu0 0.0
    %3802 = vmatprep.subr.mxu0 0.0
    %3803 = vmatpush2.msra.mxu0 0.0
    %3804 = vmatprep.subr.mxu0 0.0
    %3805 = vmatpush2.msra.mxu0 0.0
    %3806 = vmatprep.subr.mxu0 0.0
    %3807 = vmatpush2.msra.mxu0 0.0
    %3808 = vmatprep.subr.mxu0 0.0
    %3809 = vmatpush2.msra.mxu0 0.0
    %3810 = vmatprep.subr.mxu0 0.0
    %3811 = vmatpush2.msra.mxu0 0.0
    %3812 = vmatprep.subr.mxu0 0.0
    %3813 = vmatpush2.msra.mxu0 0.0
    %3814 = vmatprep.subr.mxu0 0.0
    %3815 = vmatpush2.msra.mxu0 0.0
    %3816 = vmatprep.mubr.f32.mxu0 0.0
    %3817 = vmatmul.mubr.f32.gmra.mxu0 %v3750
    %v3818 = vpop.f32.mrf.mxu0
    %v3819 = vadd.f32 0.0, %v3818
    %v3820 = vpop.f32.mrf.mxu0
    %3821 = vdwg.mxu0
    %v3823 = vrot.slane %v3819, 2
    %v3825 = vadd.f32 %v3327, %v3823
    %v3826 = vxor.u32 %v3825, 2147483648
    %v3827 = vmul.f32 %v3826, 1.442695
    %v3828 = vpow.pop %v3827
    %v3829 = vadd.f32 %v3828, 1.0
    %v3830 = vrcp.pop %v3829
    %v3831 = vmul.f32 1.0, %v3830
    %v3832 = vtanh.pop %v3825
    %v3834 = vrot.slane %v3740, 2
    %v3836 = vmul.f32 %v3831, %v3834
    %3838 = vrot.lane.b32.xlu0 %v3832, 96
    %v3839 = vpop.permute.xlu0 %3838
    %v3841 = vmul.f32 %v3831, %v3839
    %3843 = vrot.lane.b32.xlu0 %v3841, 16
    %v3844 = vpop.permute.xlu0 %3843
    %v3846 = vadd.f32 %v3836, %v3844
    %v3847 = vtanh.pop %v3846
    %3849 = vrot.lane.b32.xlu0 %v3847, 32
    %v3850 = vpop.permute.xlu0 %3849
    %v3852 = vmul.f32 %v3831, %v3850
    %v3854 = vrot.slane %v3852, 6
    %3855 = vrot.lane.b32.xlu0 %v3854, 80
    %v3856 = vpop.permute.xlu0 %3855
    %v3857 = vsel %vm353, %v3856, 0
    %3859 = vmatprep.subr.mxu0 0.0
    %3860 = vmatpush1.msra.mxu0 0.0
    %3861 = vmatprep.subr.mxu0 0.0
    %3862 = vmatpush1.msra.mxu0 0.0
    %3863 = vmatprep.subr.mxu0 0.0
    %3864 = vmatpush1.msra.mxu0 0.0
    %3865 = vmatprep.subr.mxu0 0.0
    %3866 = vmatpush1.msra.mxu0 0.0
    %3867 = vmatprep.subr.mxu0 0.0
    %3868 = vmatpush1.msra.mxu0 0.0
    %3869 = vmatprep.subr.mxu0 0.0
    %3870 = vmatpush1.msra.mxu0 0.0
    %3871 = vmatprep.subr.mxu0 0.0
    %3872 = vmatpush1.msra.mxu0 0.0
    %3873 = vmatprep.subr.mxu0 0.0
    %3874 = vmatpush1.msra.mxu0 0.0
    %3875 = vmatprep.subr.mxu0 0.0
    %3876 = vmatpush1.msra.mxu0 0.0
    %3877 = vmatprep.subr.mxu0 0.0
    %3878 = vmatpush1.msra.mxu0 0.0
    %3879 = vmatprep.subr.mxu0 0.0
    %3880 = vmatpush1.msra.mxu0 0.0
    %3881 = vmatprep.subr.mxu0 0.0
    %3882 = vmatpush1.msra.mxu0 0.0
    %3883 = vmatprep.subr.mxu0 0.0
    %3884 = vmatpush1.msra.mxu0 0.0
    %3885 = vmatprep.subr.mxu0 0.0
    %3886 = vmatpush1.msra.mxu0 0.0
    %3887 = vmatprep.subr.mxu0 0.0
    %3888 = vmatpush1.msra.mxu0 %v3330
    %3889 = vmatprep.subr.mxu0 0.0
    %3890 = vmatpush1.msra.mxu0 %v3329
    %3891 = vmatprep.subr.mxu0 0.0
    %3892 = vmatpush2.msra.mxu0 0.0
    %3893 = vmatprep.subr.mxu0 0.0
    %3894 = vmatpush2.msra.mxu0 0.0
    %3895 = vmatprep.subr.mxu0 0.0
    %3896 = vmatpush2.msra.mxu0 0.0
    %3897 = vmatprep.subr.mxu0 0.0
    %3898 = vmatpush2.msra.mxu0 0.0
    %3899 = vmatprep.subr.mxu0 0.0
    %3900 = vmatpush2.msra.mxu0 0.0
    %3901 = vmatprep.subr.mxu0 0.0
    %3902 = vmatpush2.msra.mxu0 0.0
    %3903 = vmatprep.subr.mxu0 0.0
    %3904 = vmatpush2.msra.mxu0 0.0
    %3905 = vmatprep.subr.mxu0 0.0
    %3906 = vmatpush2.msra.mxu0 0.0
    %3907 = vmatprep.subr.mxu0 0.0
    %3908 = vmatpush2.msra.mxu0 0.0
    %3909 = vmatprep.subr.mxu0 0.0
    %3910 = vmatpush2.msra.mxu0 0.0
    %3911 = vmatprep.subr.mxu0 0.0
    %3912 = vmatpush2.msra.mxu0 0.0
    %3913 = vmatprep.subr.mxu0 0.0
    %3914 = vmatpush2.msra.mxu0 0.0
    %3915 = vmatprep.subr.mxu0 0.0
    %3916 = vmatpush2.msra.mxu0 0.0
    %3917 = vmatprep.subr.mxu0 0.0
    %3918 = vmatpush2.msra.mxu0 0.0
    %3919 = vmatprep.subr.mxu0 0.0
    %3920 = vmatpush2.msra.mxu0 0.0
    %3921 = vmatprep.subr.mxu0 0.0
    %3922 = vmatpush2.msra.mxu0 0.0
    %3923 = vmatprep.mubr.f32.mxu0 0.0
    %3924 = vmatmul.mubr.f32.gmra.mxu0 %v3857
    %v3925 = vpop.f32.mrf.mxu0
    %v3926 = vadd.f32 0.0, %v3925
    %v3927 = vpop.f32.mrf.mxu0
    %3928 = vdwg.mxu0
    %v3930 = vrot.slane %v3926, 4
    %v3932 = vadd.f32 %v3327, %v3930
    %v3933 = vxor.u32 %v3932, 2147483648
    %v3934 = vmul.f32 %v3933, 1.442695
    %v3935 = vpow.pop %v3934
    %v3936 = vadd.f32 %v3935, 1.0
    %v3937 = vrcp.pop %v3936
    %v3938 = vmul.f32 1.0, %v3937
    %v3939 = vtanh.pop %v3932
    %v3941 = vrot.slane %v3846, 2
    %v3943 = vmul.f32 %v3938, %v3941
    %3945 = vrot.lane.b32.xlu0 %v3939, 96
    %v3946 = vpop.permute.xlu0 %3945
    %v3948 = vmul.f32 %v3938, %v3946
    %3950 = vrot.lane.b32.xlu0 %v3948, 16
    %v3951 = vpop.permute.xlu0 %3950
    %v3953 = vadd.f32 %v3943, %v3951
    %v3954 = vtanh.pop %v3953
    %3956 = vrot.lane.b32.xlu0 %v3954, 32
    %v3957 = vpop.permute.xlu0 %3956
    %v3959 = vmul.f32 %v3938, %v3957
    %v3961 = vrot.slane %v3959, 4
    %3962 = vrot.lane.b32.xlu0 %v3961, 80
    %v3963 = vpop.permute.xlu0 %3962
    %v3964 = vsel %vm353, %v3963, 0
    %3966 = vmatprep.subr.mxu0 0.0
    %3967 = vmatpush1.msra.mxu0 0.0
    %3968 = vmatprep.subr.mxu0 0.0
    %3969 = vmatpush1.msra.mxu0 0.0
    %3970 = vmatprep.subr.mxu0 0.0
    %3971 = vmatpush1.msra.mxu0 0.0
    %3972 = vmatprep.subr.mxu0 0.0
    %3973 = vmatpush1.msra.mxu0 0.0
    %3974 = vmatprep.subr.mxu0 0.0
    %3975 = vmatpush1.msra.mxu0 0.0
    %3976 = vmatprep.subr.mxu0 0.0
    %3977 = vmatpush1.msra.mxu0 0.0
    %3978 = vmatprep.subr.mxu0 0.0
    %3979 = vmatpush1.msra.mxu0 0.0
    %3980 = vmatprep.subr.mxu0 0.0
    %3981 = vmatpush1.msra.mxu0 0.0
    %3982 = vmatprep.subr.mxu0 0.0
    %3983 = vmatpush1.msra.mxu0 0.0
    %3984 = vmatprep.subr.mxu0 0.0
    %3985 = vmatpush1.msra.mxu0 0.0
    %3986 = vmatprep.subr.mxu0 0.0
    %3987 = vmatpush1.msra.mxu0 0.0
    %3988 = vmatprep.subr.mxu0 0.0
    %3989 = vmatpush1.msra.mxu0 0.0
    %3990 = vmatprep.subr.mxu0 0.0
    %3991 = vmatpush1.msra.mxu0 0.0
    %3992 = vmatprep.subr.mxu0 0.0
    %3993 = vmatpush1.msra.mxu0 0.0
    %3994 = vmatprep.subr.mxu0 0.0
    %3995 = vmatpush1.msra.mxu0 %v3330
    %3996 = vmatprep.subr.mxu0 0.0
    %3997 = vmatpush1.msra.mxu0 %v3329
    %3998 = vmatprep.subr.mxu0 0.0
    %3999 = vmatpush2.msra.mxu0 0.0
    %4000 = vmatprep.subr.mxu0 0.0
    %4001 = vmatpush2.msra.mxu0 0.0
    %4002 = vmatprep.subr.mxu0 0.0
    %4003 = vmatpush2.msra.mxu0 0.0
    %4004 = vmatprep.subr.mxu0 0.0
    %4005 = vmatpush2.msra.mxu0 0.0
    %4006 = vmatprep.subr.mxu0 0.0
    %4007 = vmatpush2.msra.mxu0 0.0
    %4008 = vmatprep.subr.mxu0 0.0
    %4009 = vmatpush2.msra.mxu0 0.0
    %4010 = vmatprep.subr.mxu0 0.0
    %4011 = vmatpush2.msra.mxu0 0.0
    %4012 = vmatprep.subr.mxu0 0.0
    %4013 = vmatpush2.msra.mxu0 0.0
    %4014 = vmatprep.subr.mxu0 0.0
    %4015 = vmatpush2.msra.mxu0 0.0
    %4016 = vmatprep.subr.mxu0 0.0
    %4017 = vmatpush2.msra.mxu0 0.0
    %4018 = vmatprep.subr.mxu0 0.0
    %4019 = vmatpush2.msra.mxu0 0.0
    %4020 = vmatprep.subr.mxu0 0.0
    %4021 = vmatpush2.msra.mxu0 0.0
    %4022 = vmatprep.subr.mxu0 0.0
    %4023 = vmatpush2.msra.mxu0 0.0
    %4024 = vmatprep.subr.mxu0 0.0
    %4025 = vmatpush2.msra.mxu0 0.0
    %4026 = vmatprep.subr.mxu0 0.0
    %4027 = vmatpush2.msra.mxu0 0.0
    %4028 = vmatprep.subr.mxu0 0.0
    %4029 = vmatpush2.msra.mxu0 0.0
    %4030 = vmatprep.mubr.f32.mxu0 0.0
    %4031 = vmatmul.mubr.f32.gmra.mxu0 %v3964
    %v4032 = vpop.f32.mrf.mxu0
    %v4033 = vadd.f32 0.0, %v4032
    %v4034 = vpop.f32.mrf.mxu0
    %4035 = vdwg.mxu0
    %v4037 = vrot.slane %v4033, 6
    %v4039 = vadd.f32 %v3327, %v4037
    %v4040 = vxor.u32 %v4039, 2147483648
    %v4041 = vmul.f32 %v4040, 1.442695
    %v4042 = vpow.pop %v4041
    %v4043 = vadd.f32 %v4042, 1.0
    %v4044 = vrcp.pop %v4043
    %v4045 = vmul.f32 1.0, %v4044
    %v4046 = vtanh.pop %v4039
    %v4048 = vrot.slane %v3953, 2
    %v4050 = vmul.f32 %v4045, %v4048
    %4052 = vrot.lane.b32.xlu0 %v4046, 96
    %v4053 = vpop.permute.xlu0 %4052
    %v4055 = vmul.f32 %v4045, %v4053
    %4057 = vrot.lane.b32.xlu0 %v4055, 16
    %v4058 = vpop.permute.xlu0 %4057
    %v4060 = vadd.f32 %v4050, %v4058
    %v4061 = vtanh.pop %v4060
    %4063 = vrot.lane.b32.xlu0 %v4061, 32
    %v4064 = vpop.permute.xlu0 %4063
    %v4066 = vmul.f32 %v4045, %v4064
    %v4068 = vrot.slane %v4066, 2
    %4069 = vrot.lane.b32.xlu0 %v4068, 80
    %v4070 = vpop.permute.xlu0 %4069
    %v4071 = vsel %vm353, %v4070, 0
    %4073 = vmatprep.subr.mxu0 0.0
    %4074 = vmatpush1.msra.mxu0 0.0
    %4075 = vmatprep.subr.mxu0 0.0
    %4076 = vmatpush1.msra.mxu0 0.0
    %4077 = vmatprep.subr.mxu0 0.0
    %4078 = vmatpush1.msra.mxu0 0.0
    %4079 = vmatprep.subr.mxu0 0.0
    %4080 = vmatpush1.msra.mxu0 0.0
    %4081 = vmatprep.subr.mxu0 0.0
    %4082 = vmatpush1.msra.mxu0 0.0
    %4083 = vmatprep.subr.mxu0 0.0
    %4084 = vmatpush1.msra.mxu0 0.0
    %4085 = vmatprep.subr.mxu0 0.0
    %4086 = vmatpush1.msra.mxu0 0.0
    %4087 = vmatprep.subr.mxu0 0.0
    %4088 = vmatpush1.msra.mxu0 0.0
    %4089 = vmatprep.subr.mxu0 0.0
    %4090 = vmatpush1.msra.mxu0 0.0
    %4091 = vmatprep.subr.mxu0 0.0
    %4092 = vmatpush1.msra.mxu0 0.0
    %4093 = vmatprep.subr.mxu0 0.0
    %4094 = vmatpush1.msra.mxu0 0.0
    %4095 = vmatprep.subr.mxu0 0.0
    %4096 = vmatpush1.msra.mxu0 0.0
    %4097 = vmatprep.subr.mxu0 0.0
    %4098 = vmatpush1.msra.mxu0 0.0
    %4099 = vmatprep.subr.mxu0 0.0
    %4100 = vmatpush1.msra.mxu0 0.0
    %4101 = vmatprep.subr.mxu0 0.0
    %4102 = vmatpush1.msra.mxu0 %v3330
    %4103 = vmatprep.subr.mxu0 0.0
    %4104 = vmatpush1.msra.mxu0 %v3329
    %4105 = vmatprep.subr.mxu0 0.0
    %4106 = vmatpush2.msra.mxu0 0.0
    %4107 = vmatprep.subr.mxu0 0.0
    %4108 = vmatpush2.msra.mxu0 0.0
    %4109 = vmatprep.subr.mxu0 0.0
    %4110 = vmatpush2.msra.mxu0 0.0
    %4111 = vmatprep.subr.mxu0 0.0
    %4112 = vmatpush2.msra.mxu0 0.0
    %4113 = vmatprep.subr.mxu0 0.0
    %4114 = vmatpush2.msra.mxu0 0.0
    %4115 = vmatprep.subr.mxu0 0.0
    %4116 = vmatpush2.msra.mxu0 0.0
    %4117 = vmatprep.subr.mxu0 0.0
    %4118 = vmatpush2.msra.mxu0 0.0
    %4119 = vmatprep.subr.mxu0 0.0
    %4120 = vmatpush2.msra.mxu0 0.0
    %4121 = vmatprep.subr.mxu0 0.0
    %4122 = vmatpush2.msra.mxu0 0.0
    %4123 = vmatprep.subr.mxu0 0.0
    %4124 = vmatpush2.msra.mxu0 0.0
    %4125 = vmatprep.subr.mxu0 0.0
    %4126 = vmatpush2.msra.mxu0 0.0
    %4127 = vmatprep.subr.mxu0 0.0
    %4128 = vmatpush2.msra.mxu0 0.0
    %4129 = vmatprep.subr.mxu0 0.0
    %4130 = vmatpush2.msra.mxu0 0.0
    %4131 = vmatprep.subr.mxu0 0.0
    %4132 = vmatpush2.msra.mxu0 0.0
    %4133 = vmatprep.subr.mxu0 0.0
    %4134 = vmatpush2.msra.mxu0 0.0
    %4135 = vmatprep.subr.mxu0 0.0
    %4136 = vmatpush2.msra.mxu0 0.0
    %4137 = vmatprep.mubr.f32.mxu0 0.0
    %4138 = vmatmul.mubr.f32.gmra.mxu0 %v4071
    %v4139 = vpop.f32.mrf.mxu0
    %v4140 = vadd.f32 0.0, %v4139
    %v4141 = vpop.f32.mrf.mxu0
    %4142 = vdwg.mxu0
    %v4143 = vadd.f32 %v3327, %v4140
    %v4144 = vxor.u32 %v4143, 2147483648
    %v4145 = vmul.f32 %v4144, 1.442695
    %v4146 = vpow.pop %v4145
    %v4147 = vadd.f32 %v4146, 1.0
    %v4148 = vrcp.pop %v4147
    %v4149 = vmul.f32 1.0, %v4148
    %v4150 = vtanh.pop %v4143
    %v4152 = vrot.slane %v4060, 2
    %v4154 = vmul.f32 %v4149, %v4152
    %4156 = vrot.lane.b32.xlu0 %v4150, 96
    %v4157 = vpop.permute.xlu0 %4156
    %v4159 = vmul.f32 %v4149, %v4157
    %4161 = vrot.lane.b32.xlu0 %v4159, 16
    %v4162 = vpop.permute.xlu0 %4161
    %v4164 = vadd.f32 %v4154, %v4162
    %v4165 = vtanh.pop %v4164
    %4167 = vrot.lane.b32.xlu0 %v4165, 32
    %v4168 = vpop.permute.xlu0 %4167
    %v4170 = vmul.f32 %v4149, %v4168
    %v4171 = vsel %vm1196, %v4170, %v4066
    %v4172 = vsel %vm1198, %v4171, %v3959
    %v4173 = vsel %vm1200, %v4172, %v3852
    %v4174 = vsel %vm1196, %v3746, %v3642
    %v4175 = vsel %vm1198, %v4174, %v3535
    %v4176 = vsel %vm1200, %v4175, %v3428
    %v4177 = vld [vmem:[#allocation15] sm:$0xff]
    %v4178 = vld [vmem:[#allocation15 + $0x8] sm:$0xff]
    %v4179 = vld [vmem:[#allocation15 + $0x10] sm:$0xff]
    %v4180 = vld [vmem:[#allocation15 + $0x18] sm:$0xff]
    %v4181 = vld [vmem:[#allocation16] sm:$0x1]
    %v4182 = vld [vmem:[#allocation18] sm:$0xff]
    %v4183 = vld [vmem:[#allocation18 + $0x8] sm:$0xff]
    %v4184 = vld [vmem:[#allocation18 + $0x10] sm:$0xff]
    %v4185 = vld [vmem:[#allocation18 + $0x18] sm:$0xff]
    %v4186 = vld [vmem:[#allocation19] sm:$0x1]
    %v4187 = vld [vmem:[%s17] sm:$0xff]
    %v4188 = vld [vmem:[%s17 + $0x8] sm:$0xff]
    %4191 = vrot.lane.b32.xlu0 %v4173, 80
    %v4192 = vpop.permute.xlu0 %4191
    %4193 = vrot.lane.b32.xlu0 %v4176, 80
    %v4194 = vpop.permute.xlu0 %4193
    %v4195 = vsel %vm353, %v4192, 0
    %v4197 = vsel %vm353, %v4194, 0
    %4199 = vmatprep.subr.mxu0 0.0
    %4200 = vmatpush1.msra.mxu0 0.0
    %4201 = vmatprep.subr.mxu0 0.0
    %4202 = vmatpush1.msra.mxu0 0.0
    %4203 = vmatprep.subr.mxu0 0.0
    %4204 = vmatpush1.msra.mxu0 0.0
    %4205 = vmatprep.subr.mxu0 0.0
    %4206 = vmatpush1.msra.mxu0 0.0
    %4207 = vmatprep.subr.mxu0 0.0
    %4208 = vmatpush1.msra.mxu0 0.0
    %4209 = vmatprep.subr.mxu0 0.0
    %4210 = vmatpush1.msra.mxu0 0.0
    %4211 = vmatprep.subr.mxu0 0.0
    %4212 = vmatpush1.msra.mxu0 0.0
    %4213 = vmatprep.subr.mxu0 0.0
    %4214 = vmatpush1.msra.mxu0 0.0
    %4215 = vmatprep.subr.mxu0 0.0
    %4216 = vmatpush1.msra.mxu0 0.0
    %4217 = vmatprep.subr.mxu0 0.0
    %4218 = vmatpush1.msra.mxu0 0.0
    %4219 = vmatprep.subr.mxu0 0.0
    %4220 = vmatpush1.msra.mxu0 0.0
    %4221 = vmatprep.subr.mxu0 0.0
    %4222 = vmatpush1.msra.mxu0 0.0
    %4223 = vmatprep.subr.mxu0 0.0
    %4224 = vmatpush1.msra.mxu0 0.0
    %4225 = vmatprep.subr.mxu0 0.0
    %4226 = vmatpush1.msra.mxu0 0.0
    %4227 = vmatprep.subr.mxu0 0.0
    %4228 = vmatpush1.msra.mxu0 %v4180
    %4229 = vmatprep.subr.mxu0 0.0
    %4230 = vmatpush1.msra.mxu0 %v4179
    %4231 = vmatprep.subr.mxu0 0.0
    %4232 = vmatpush2.msra.mxu0 0.0
    %4233 = vmatprep.subr.mxu0 0.0
    %4234 = vmatpush2.msra.mxu0 0.0
    %4235 = vmatprep.subr.mxu0 0.0
    %4236 = vmatpush2.msra.mxu0 0.0
    %4237 = vmatprep.subr.mxu0 0.0
    %4238 = vmatpush2.msra.mxu0 0.0
    %4239 = vmatprep.subr.mxu0 0.0
    %4240 = vmatpush2.msra.mxu0 0.0
    %4241 = vmatprep.subr.mxu0 0.0
    %4242 = vmatpush2.msra.mxu0 0.0
    %4243 = vmatprep.subr.mxu0 0.0
    %4244 = vmatpush2.msra.mxu0 0.0
    %4245 = vmatprep.subr.mxu0 0.0
    %4246 = vmatpush2.msra.mxu0 0.0
    %4247 = vmatprep.subr.mxu0 0.0
    %4248 = vmatpush2.msra.mxu0 0.0
    %4249 = vmatprep.subr.mxu0 0.0
    %4250 = vmatpush2.msra.mxu0 0.0
    %4251 = vmatprep.subr.mxu0 0.0
    %4252 = vmatpush2.msra.mxu0 0.0
    %4253 = vmatprep.subr.mxu0 0.0
    %4254 = vmatpush2.msra.mxu0 0.0
    %4255 = vmatprep.subr.mxu0 0.0
    %4256 = vmatpush2.msra.mxu0 0.0
    %4257 = vmatprep.subr.mxu0 0.0
    %4258 = vmatpush2.msra.mxu0 0.0
    %4259 = vmatprep.subr.mxu0 0.0
    %4260 = vmatpush2.msra.mxu0 0.0
    %4261 = vmatprep.subr.mxu0 0.0
    %4262 = vmatpush2.msra.mxu0 0.0
    %4263 = vmatprep.mubr.f32.mxu0 0.0
    %4264 = vmatmul.mubr.f32.gmra.mxu0 %v4195
    %v4265 = vpop.f32.mrf.mxu0
    %v4266 = vadd.f32 0.0, %v4265
    %v4267 = vpop.f32.mrf.mxu0
    %4268 = vmatprep.mubr.f32.mxu0 0.0
    %4269 = vmatmul.mubr.f32.gmra.mxu0 %v4197
    %v4270 = vpop.f32.mrf.mxu0
    %v4271 = vadd.f32 0.0, %v4270
    %v4272 = vpop.f32.mrf.mxu0
    %4273 = vdwg.mxu0
    %4276 = vrot.lane.b32.xlu0 %v3162, 80
    %v4277 = vpop.permute.xlu0 %4276
    %4278 = vrot.lane.b32.xlu0 %v3165, 80
    %v4279 = vpop.permute.xlu0 %4278
    %v4280 = vsel %vm353, %v4277, 0
    %v4282 = vsel %vm353, %v4279, 0
    %4284 = vmatprep.subr.mxu0 0.0
    %4285 = vmatpush1.msra.mxu0 0.0
    %4286 = vmatprep.subr.mxu0 0.0
    %4287 = vmatpush1.msra.mxu0 0.0
    %4288 = vmatprep.subr.mxu0 0.0
    %4289 = vmatpush1.msra.mxu0 0.0
    %4290 = vmatprep.subr.mxu0 0.0
    %4291 = vmatpush1.msra.mxu0 0.0
    %4292 = vmatprep.subr.mxu0 0.0
    %4293 = vmatpush1.msra.mxu0 0.0
    %4294 = vmatprep.subr.mxu0 0.0
    %4295 = vmatpush1.msra.mxu0 0.0
    %4296 = vmatprep.subr.mxu0 0.0
    %4297 = vmatpush1.msra.mxu0 0.0
    %4298 = vmatprep.subr.mxu0 0.0
    %4299 = vmatpush1.msra.mxu0 0.0
    %4300 = vmatprep.subr.mxu0 0.0
    %4301 = vmatpush1.msra.mxu0 0.0
    %4302 = vmatprep.subr.mxu0 0.0
    %4303 = vmatpush1.msra.mxu0 0.0
    %4304 = vmatprep.subr.mxu0 0.0
    %4305 = vmatpush1.msra.mxu0 0.0
    %4306 = vmatprep.subr.mxu0 0.0
    %4307 = vmatpush1.msra.mxu0 0.0
    %4308 = vmatprep.subr.mxu0 0.0
    %4309 = vmatpush1.msra.mxu0 0.0
    %4310 = vmatprep.subr.mxu0 0.0
    %4311 = vmatpush1.msra.mxu0 0.0
    %4312 = vmatprep.subr.mxu0 0.0
    %4313 = vmatpush1.msra.mxu0 %v4178
    %4314 = vmatprep.subr.mxu0 0.0
    %4315 = vmatpush1.msra.mxu0 %v4177
    %4316 = vmatprep.subr.mxu0 0.0
    %4317 = vmatpush2.msra.mxu0 0.0
    %4318 = vmatprep.subr.mxu0 0.0
    %4319 = vmatpush2.msra.mxu0 0.0
    %4320 = vmatprep.subr.mxu0 0.0
    %4321 = vmatpush2.msra.mxu0 0.0
    %4322 = vmatprep.subr.mxu0 0.0
    %4323 = vmatpush2.msra.mxu0 0.0
    %4324 = vmatprep.subr.mxu0 0.0
    %4325 = vmatpush2.msra.mxu0 0.0
    %4326 = vmatprep.subr.mxu0 0.0
    %4327 = vmatpush2.msra.mxu0 0.0
    %4328 = vmatprep.subr.mxu0 0.0
    %4329 = vmatpush2.msra.mxu0 0.0
    %4330 = vmatprep.subr.mxu0 0.0
    %4331 = vmatpush2.msra.mxu0 0.0
    %4332 = vmatprep.subr.mxu0 0.0
    %4333 = vmatpush2.msra.mxu0 0.0
    %4334 = vmatprep.subr.mxu0 0.0
    %4335 = vmatpush2.msra.mxu0 0.0
    %4336 = vmatprep.subr.mxu0 0.0
    %4337 = vmatpush2.msra.mxu0 0.0
    %4338 = vmatprep.subr.mxu0 0.0
    %4339 = vmatpush2.msra.mxu0 0.0
    %4340 = vmatprep.subr.mxu0 0.0
    %4341 = vmatpush2.msra.mxu0 0.0
    %4342 = vmatprep.subr.mxu0 0.0
    %4343 = vmatpush2.msra.mxu0 0.0
    %4344 = vmatprep.subr.mxu0 0.0
    %4345 = vmatpush2.msra.mxu0 0.0
    %4346 = vmatprep.subr.mxu0 0.0
    %4347 = vmatpush2.msra.mxu0 0.0
    %4348 = vmatprep.mubr.f32.mxu0 0.0
    %4349 = vmatmul.mubr.f32.gmra.mxu0 %v4280
    %v4350 = vpop.f32.mrf.mxu0
    %v4351 = vadd.f32 %v4266, %v4350
    %v4352 = vpop.f32.mrf.mxu0
    %4353 = vmatprep.mubr.f32.mxu0 0.0
    %4354 = vmatmul.mubr.f32.gmra.mxu0 %v4282
    %v4355 = vpop.f32.mrf.mxu0
    %v4356 = vadd.f32 %v4271, %v4355
    %v4357 = vpop.f32.mrf.mxu0
    %4358 = vdwg.mxu0
    %v4360 = vlaneseq
    %v4361 = vshrl.u32 %v4360, 7
    %v4362 = vsub.s32 0, %v4361
    %v4363 = vrot.slane %v4181, %v4362
    %v4365 = vadd.f32 %v4351, %v4363
    %v4366 = vadd.f32 %v4356, %v4363
    %4369 = vrot.lane.b32.xlu0 %v4365, 120
    %v4370 = vpop.permute.xlu0 %4369
    %4371 = vrot.lane.b32.xlu0 %v4366, 120
    %v4372 = vpop.permute.xlu0 %4371
    %4375 = vrot.lane.b32.xlu0 %v4365, 112
    %v4376 = vpop.permute.xlu0 %4375
    %4377 = vrot.lane.b32.xlu0 %v4366, 112
    %v4378 = vpop.permute.xlu0 %4377
    %4381 = vrot.lane.b32.xlu0 %v4365, 104
    %v4382 = vpop.permute.xlu0 %4381
    %4383 = vrot.lane.b32.xlu0 %v4366, 104
    %v4384 = vpop.permute.xlu0 %4383
    %v4387 = vmul.f32 %v4365, 0.35355338
    %v4388 = vmul.f32 %v4366, 0.35355338
    %v4389 = vmul.f32 %v4370, 0.35355338
    %v4390 = vmul.f32 %v4372, 0.35355338
    %v4391 = vmul.f32 %v4376, 0.35355338
    %v4392 = vmul.f32 %v4378, 0.35355338
    %v4393 = vmul.f32 %v4382, 0.35355338
    %v4394 = vmul.f32 %v4384, 0.35355338
    %4395 = vrot.lane.b32.xlu0 %v4365, 96
    %v4396 = vpop.permute.xlu0 %4395
    %4397 = vrot.lane.b32.xlu0 %v4366, 96
    %v4398 = vpop.permute.xlu0 %4397
    %v4400 = vsel %vm269, %v4387, 0
    %v4403 = vsel %vm269, %v4388, 0
    %v4405 = vsel %vm269, %v4396, 0
    %v4407 = vsel %vm269, %v4398, 0
    %4409 = vmatprep.subr.mxu0 0.0
    %4410 = vmatpush1.xpose.msra.mxu0 0.0
    %4411 = vmatprep.subr.mxu0 0.0
    %4412 = vmatpush1.xpose.msra.mxu0 0.0
    %4413 = vmatprep.subr.mxu0 0.0
    %4414 = vmatpush1.xpose.msra.mxu0 0.0
    %4415 = vmatprep.subr.mxu0 0.0
    %4416 = vmatpush1.xpose.msra.mxu0 0.0
    %4417 = vmatprep.subr.mxu0 0.0
    %4418 = vmatpush1.xpose.msra.mxu0 0.0
    %4419 = vmatprep.subr.mxu0 0.0
    %4420 = vmatpush1.xpose.msra.mxu0 0.0
    %4421 = vmatprep.subr.mxu0 0.0
    %4422 = vmatpush1.xpose.msra.mxu0 0.0
    %4423 = vmatprep.subr.mxu0 0.0
    %4424 = vmatpush1.xpose.msra.mxu0 0.0
    %4425 = vmatprep.subr.mxu0 0.0
    %4426 = vmatpush1.xpose.msra.mxu0 0.0
    %4427 = vmatprep.subr.mxu0 0.0
    %4428 = vmatpush1.xpose.msra.mxu0 0.0
    %4429 = vmatprep.subr.mxu0 0.0
    %4430 = vmatpush1.xpose.msra.mxu0 0.0
    %4431 = vmatprep.subr.mxu0 0.0
    %4432 = vmatpush1.xpose.msra.mxu0 0.0
    %4433 = vmatprep.subr.mxu0 0.0
    %4434 = vmatpush1.xpose.msra.mxu0 0.0
    %4435 = vmatprep.subr.mxu0 0.0
    %4436 = vmatpush1.xpose.msra.mxu0 0.0
    %4437 = vmatprep.subr.mxu0 0.0
    %4438 = vmatpush1.xpose.msra.mxu0 %v4407
    %4439 = vmatprep.subr.mxu0 0.0
    %4440 = vmatpush1.xpose.msra.mxu0 %v4405
    %4441 = vmatprep.subr.mxu0 0.0
    %4442 = vmatpush2.xpose.msra.mxu0 0.0
    %4443 = vmatprep.subr.mxu0 0.0
    %4444 = vmatpush2.xpose.msra.mxu0 0.0
    %4445 = vmatprep.subr.mxu0 0.0
    %4446 = vmatpush2.xpose.msra.mxu0 0.0
    %4447 = vmatprep.subr.mxu0 0.0
    %4448 = vmatpush2.xpose.msra.mxu0 0.0
    %4449 = vmatprep.subr.mxu0 0.0
    %4450 = vmatpush2.xpose.msra.mxu0 0.0
    %4451 = vmatprep.subr.mxu0 0.0
    %4452 = vmatpush2.xpose.msra.mxu0 0.0
    %4453 = vmatprep.subr.mxu0 0.0
    %4454 = vmatpush2.xpose.msra.mxu0 0.0
    %4455 = vmatprep.subr.mxu0 0.0
    %4456 = vmatpush2.xpose.msra.mxu0 0.0
    %4457 = vmatprep.subr.mxu0 0.0
    %4458 = vmatpush2.xpose.msra.mxu0 0.0
    %4459 = vmatprep.subr.mxu0 0.0
    %4460 = vmatpush2.xpose.msra.mxu0 0.0
    %4461 = vmatprep.subr.mxu0 0.0
    %4462 = vmatpush2.xpose.msra.mxu0 0.0
    %4463 = vmatprep.subr.mxu0 0.0
    %4464 = vmatpush2.xpose.msra.mxu0 0.0
    %4465 = vmatprep.subr.mxu0 0.0
    %4466 = vmatpush2.xpose.msra.mxu0 0.0
    %4467 = vmatprep.subr.mxu0 0.0
    %4468 = vmatpush2.xpose.msra.mxu0 0.0
    %4469 = vmatprep.subr.mxu0 0.0
    %4470 = vmatpush2.xpose.msra.mxu0 0.0
    %4471 = vmatprep.subr.mxu0 0.0
    %4472 = vmatpush2.xpose.msra.mxu0 0.0
    %4473 = vmatprep.mubr.f32.mxu0 0.0
    %4474 = vmatmul.mubr.f32.gmra.mxu0 %v4400
    %v4475 = vpop.f32.mrf.mxu0
    %v4476 = vadd.f32 %v4187, %v4475
    %v4477 = vpop.f32.mrf.mxu0
    %4478 = vmatprep.mubr.f32.mxu0 0.0
    %4479 = vmatmul.mubr.f32.gmra.mxu0 %v4403
    %v4480 = vpop.f32.mrf.mxu0
    %v4481 = vadd.f32 %v4188, %v4480
    %v4482 = vpop.f32.mrf.mxu0
    %4483 = vdwg.mxu0
    %4484 = vrot.lane.b32.xlu0 %v4370, 96
    %v4485 = vpop.permute.xlu0 %4484
    %4486 = vrot.lane.b32.xlu0 %v4372, 96
    %v4487 = vpop.permute.xlu0 %4486
    %v4489 = vsel %vm269, %v4389, 0
    %v4492 = vsel %vm269, %v4390, 0
    %v4494 = vsel %vm269, %v4485, 0
    %v4496 = vsel %vm269, %v4487, 0
    %4498 = vmatprep.subr.mxu0 0.0
    %4499 = vmatpush1.xpose.msra.mxu0 0.0
    %4500 = vmatprep.subr.mxu0 0.0
    %4501 = vmatpush1.xpose.msra.mxu0 0.0
    %4502 = vmatprep.subr.mxu0 0.0
    %4503 = vmatpush1.xpose.msra.mxu0 0.0
    %4504 = vmatprep.subr.mxu0 0.0
    %4505 = vmatpush1.xpose.msra.mxu0 0.0
    %4506 = vmatprep.subr.mxu0 0.0
    %4507 = vmatpush1.xpose.msra.mxu0 0.0
    %4508 = vmatprep.subr.mxu0 0.0
    %4509 = vmatpush1.xpose.msra.mxu0 0.0
    %4510 = vmatprep.subr.mxu0 0.0
    %4511 = vmatpush1.xpose.msra.mxu0 0.0
    %4512 = vmatprep.subr.mxu0 0.0
    %4513 = vmatpush1.xpose.msra.mxu0 0.0
    %4514 = vmatprep.subr.mxu0 0.0
    %4515 = vmatpush1.xpose.msra.mxu0 0.0
    %4516 = vmatprep.subr.mxu0 0.0
    %4517 = vmatpush1.xpose.msra.mxu0 0.0
    %4518 = vmatprep.subr.mxu0 0.0
    %4519 = vmatpush1.xpose.msra.mxu0 0.0
    %4520 = vmatprep.subr.mxu0 0.0
    %4521 = vmatpush1.xpose.msra.mxu0 0.0
    %4522 = vmatprep.subr.mxu0 0.0
    %4523 = vmatpush1.xpose.msra.mxu0 0.0
    %4524 = vmatprep.subr.mxu0 0.0
    %4525 = vmatpush1.xpose.msra.mxu0 0.0
    %4526 = vmatprep.subr.mxu0 0.0
    %4527 = vmatpush1.xpose.msra.mxu0 %v4496
    %4528 = vmatprep.subr.mxu0 0.0
    %4529 = vmatpush1.xpose.msra.mxu0 %v4494
    %4530 = vmatprep.subr.mxu0 0.0
    %4531 = vmatpush2.xpose.msra.mxu0 0.0
    %4532 = vmatprep.subr.mxu0 0.0
    %4533 = vmatpush2.xpose.msra.mxu0 0.0
    %4534 = vmatprep.subr.mxu0 0.0
    %4535 = vmatpush2.xpose.msra.mxu0 0.0
    %4536 = vmatprep.subr.mxu0 0.0
    %4537 = vmatpush2.xpose.msra.mxu0 0.0
    %4538 = vmatprep.subr.mxu0 0.0
    %4539 = vmatpush2.xpose.msra.mxu0 0.0
    %4540 = vmatprep.subr.mxu0 0.0
    %4541 = vmatpush2.xpose.msra.mxu0 0.0
    %4542 = vmatprep.subr.mxu0 0.0
    %4543 = vmatpush2.xpose.msra.mxu0 0.0
    %4544 = vmatprep.subr.mxu0 0.0
    %4545 = vmatpush2.xpose.msra.mxu0 0.0
    %4546 = vmatprep.subr.mxu0 0.0
    %4547 = vmatpush2.xpose.msra.mxu0 0.0
    %4548 = vmatprep.subr.mxu0 0.0
    %4549 = vmatpush2.xpose.msra.mxu0 0.0
    %4550 = vmatprep.subr.mxu0 0.0
    %4551 = vmatpush2.xpose.msra.mxu0 0.0
    %4552 = vmatprep.subr.mxu0 0.0
    %4553 = vmatpush2.xpose.msra.mxu0 0.0
    %4554 = vmatprep.subr.mxu0 0.0
    %4555 = vmatpush2.xpose.msra.mxu0 0.0
    %4556 = vmatprep.subr.mxu0 0.0
    %4557 = vmatpush2.xpose.msra.mxu0 0.0
    %4558 = vmatprep.subr.mxu0 0.0
    %4559 = vmatpush2.xpose.msra.mxu0 0.0
    %4560 = vmatprep.subr.mxu0 0.0
    %4561 = vmatpush2.xpose.msra.mxu0 0.0
    %4562 = vmatprep.mubr.f32.mxu0 0.0
    %4563 = vmatmul.mubr.f32.gmra.mxu0 %v4489
    %v4564 = vpop.f32.mrf.mxu0
    %v4565 = vadd.f32 %v4187, %v4564
    %v4566 = vpop.f32.mrf.mxu0
    %4567 = vmatprep.mubr.f32.mxu0 0.0
    %4568 = vmatmul.mubr.f32.gmra.mxu0 %v4492
    %v4569 = vpop.f32.mrf.mxu0
    %v4570 = vadd.f32 %v4188, %v4569
    %v4571 = vpop.f32.mrf.mxu0
    %4572 = vdwg.mxu0
    %4573 = vrot.lane.b32.xlu0 %v4376, 96
    %v4574 = vpop.permute.xlu0 %4573
    %4575 = vrot.lane.b32.xlu0 %v4378, 96
    %v4576 = vpop.permute.xlu0 %4575
    %v4578 = vsel %vm269, %v4391, 0
    %v4581 = vsel %vm269, %v4392, 0
    %v4583 = vsel %vm269, %v4574, 0
    %v4585 = vsel %vm269, %v4576, 0
    %4587 = vmatprep.subr.mxu0 0.0
    %4588 = vmatpush1.xpose.msra.mxu0 0.0
    %4589 = vmatprep.subr.mxu0 0.0
    %4590 = vmatpush1.xpose.msra.mxu0 0.0
    %4591 = vmatprep.subr.mxu0 0.0
    %4592 = vmatpush1.xpose.msra.mxu0 0.0
    %4593 = vmatprep.subr.mxu0 0.0
    %4594 = vmatpush1.xpose.msra.mxu0 0.0
    %4595 = vmatprep.subr.mxu0 0.0
    %4596 = vmatpush1.xpose.msra.mxu0 0.0
    %4597 = vmatprep.subr.mxu0 0.0
    %4598 = vmatpush1.xpose.msra.mxu0 0.0
    %4599 = vmatprep.subr.mxu0 0.0
    %4600 = vmatpush1.xpose.msra.mxu0 0.0
    %4601 = vmatprep.subr.mxu0 0.0
    %4602 = vmatpush1.xpose.msra.mxu0 0.0
    %4603 = vmatprep.subr.mxu0 0.0
    %4604 = vmatpush1.xpose.msra.mxu0 0.0
    %4605 = vmatprep.subr.mxu0 0.0
    %4606 = vmatpush1.xpose.msra.mxu0 0.0
    %4607 = vmatprep.subr.mxu0 0.0
    %4608 = vmatpush1.xpose.msra.mxu0 0.0
    %4609 = vmatprep.subr.mxu0 0.0
    %4610 = vmatpush1.xpose.msra.mxu0 0.0
    %4611 = vmatprep.subr.mxu0 0.0
    %4612 = vmatpush1.xpose.msra.mxu0 0.0
    %4613 = vmatprep.subr.mxu0 0.0
    %4614 = vmatpush1.xpose.msra.mxu0 0.0
    %4615 = vmatprep.subr.mxu0 0.0
    %4616 = vmatpush1.xpose.msra.mxu0 %v4585
    %4617 = vmatprep.subr.mxu0 0.0
    %4618 = vmatpush1.xpose.msra.mxu0 %v4583
    %4619 = vmatprep.subr.mxu0 0.0
    %4620 = vmatpush2.xpose.msra.mxu0 0.0
    %4621 = vmatprep.subr.mxu0 0.0
    %4622 = vmatpush2.xpose.msra.mxu0 0.0
    %4623 = vmatprep.subr.mxu0 0.0
    %4624 = vmatpush2.xpose.msra.mxu0 0.0
    %4625 = vmatprep.subr.mxu0 0.0
    %4626 = vmatpush2.xpose.msra.mxu0 0.0
    %4627 = vmatprep.subr.mxu0 0.0
    %4628 = vmatpush2.xpose.msra.mxu0 0.0
    %4629 = vmatprep.subr.mxu0 0.0
    %4630 = vmatpush2.xpose.msra.mxu0 0.0
    %4631 = vmatprep.subr.mxu0 0.0
    %4632 = vmatpush2.xpose.msra.mxu0 0.0
    %4633 = vmatprep.subr.mxu0 0.0
    %4634 = vmatpush2.xpose.msra.mxu0 0.0
    %4635 = vmatprep.subr.mxu0 0.0
    %4636 = vmatpush2.xpose.msra.mxu0 0.0
    %4637 = vmatprep.subr.mxu0 0.0
    %4638 = vmatpush2.xpose.msra.mxu0 0.0
    %4639 = vmatprep.subr.mxu0 0.0
    %4640 = vmatpush2.xpose.msra.mxu0 0.0
    %4641 = vmatprep.subr.mxu0 0.0
    %4642 = vmatpush2.xpose.msra.mxu0 0.0
    %4643 = vmatprep.subr.mxu0 0.0
    %4644 = vmatpush2.xpose.msra.mxu0 0.0
    %4645 = vmatprep.subr.mxu0 0.0
    %4646 = vmatpush2.xpose.msra.mxu0 0.0
    %4647 = vmatprep.subr.mxu0 0.0
    %4648 = vmatpush2.xpose.msra.mxu0 0.0
    %4649 = vmatprep.subr.mxu0 0.0
    %4650 = vmatpush2.xpose.msra.mxu0 0.0
    %4651 = vmatprep.mubr.f32.mxu0 0.0
    %4652 = vmatmul.mubr.f32.gmra.mxu0 %v4578
    %v4653 = vpop.f32.mrf.mxu0
    %v4654 = vadd.f32 %v4187, %v4653
    %v4655 = vpop.f32.mrf.mxu0
    %4656 = vmatprep.mubr.f32.mxu0 0.0
    %4657 = vmatmul.mubr.f32.gmra.mxu0 %v4581
    %v4658 = vpop.f32.mrf.mxu0
    %v4659 = vadd.f32 %v4188, %v4658
    %v4660 = vpop.f32.mrf.mxu0
    %4661 = vdwg.mxu0
    %4662 = vrot.lane.b32.xlu0 %v4382, 96
    %v4663 = vpop.permute.xlu0 %4662
    %4664 = vrot.lane.b32.xlu0 %v4384, 96
    %v4665 = vpop.permute.xlu0 %4664
    %v4667 = vsel %vm269, %v4393, 0
    %v4670 = vsel %vm269, %v4394, 0
    %v4672 = vsel %vm269, %v4663, 0
    %v4674 = vsel %vm269, %v4665, 0
    %4676 = vmatprep.subr.mxu0 0.0
    %4677 = vmatpush1.xpose.msra.mxu0 0.0
    %4678 = vmatprep.subr.mxu0 0.0
    %4679 = vmatpush1.xpose.msra.mxu0 0.0
    %4680 = vmatprep.subr.mxu0 0.0
    %4681 = vmatpush1.xpose.msra.mxu0 0.0
    %4682 = vmatprep.subr.mxu0 0.0
    %4683 = vmatpush1.xpose.msra.mxu0 0.0
    %4684 = vmatprep.subr.mxu0 0.0
    %4685 = vmatpush1.xpose.msra.mxu0 0.0
    %4686 = vmatprep.subr.mxu0 0.0
    %4687 = vmatpush1.xpose.msra.mxu0 0.0
    %4688 = vmatprep.subr.mxu0 0.0
    %4689 = vmatpush1.xpose.msra.mxu0 0.0
    %4690 = vmatprep.subr.mxu0 0.0
    %4691 = vmatpush1.xpose.msra.mxu0 0.0
    %4692 = vmatprep.subr.mxu0 0.0
    %4693 = vmatpush1.xpose.msra.mxu0 0.0
    %4694 = vmatprep.subr.mxu0 0.0
    %4695 = vmatpush1.xpose.msra.mxu0 0.0
    %4696 = vmatprep.subr.mxu0 0.0
    %4697 = vmatpush1.xpose.msra.mxu0 0.0
    %4698 = vmatprep.subr.mxu0 0.0
    %4699 = vmatpush1.xpose.msra.mxu0 0.0
    %4700 = vmatprep.subr.mxu0 0.0
    %4701 = vmatpush1.xpose.msra.mxu0 0.0
    %4702 = vmatprep.subr.mxu0 0.0
    %4703 = vmatpush1.xpose.msra.mxu0 0.0
    %4704 = vmatprep.subr.mxu0 0.0
    %4705 = vmatpush1.xpose.msra.mxu0 %v4674
    %4706 = vmatprep.subr.mxu0 0.0
    %4707 = vmatpush1.xpose.msra.mxu0 %v4672
    %4708 = vmatprep.subr.mxu0 0.0
    %4709 = vmatpush2.xpose.msra.mxu0 0.0
    %4710 = vmatprep.subr.mxu0 0.0
    %4711 = vmatpush2.xpose.msra.mxu0 0.0
    %4712 = vmatprep.subr.mxu0 0.0
    %4713 = vmatpush2.xpose.msra.mxu0 0.0
    %4714 = vmatprep.subr.mxu0 0.0
    %4715 = vmatpush2.xpose.msra.mxu0 0.0
    %4716 = vmatprep.subr.mxu0 0.0
    %4717 = vmatpush2.xpose.msra.mxu0 0.0
    %4718 = vmatprep.subr.mxu0 0.0
    %4719 = vmatpush2.xpose.msra.mxu0 0.0
    %4720 = vmatprep.subr.mxu0 0.0
    %4721 = vmatpush2.xpose.msra.mxu0 0.0
    %4722 = vmatprep.subr.mxu0 0.0
    %4723 = vmatpush2.xpose.msra.mxu0 0.0
    %4724 = vmatprep.subr.mxu0 0.0
    %4725 = vmatpush2.xpose.msra.mxu0 0.0
    %4726 = vmatprep.subr.mxu0 0.0
    %4727 = vmatpush2.xpose.msra.mxu0 0.0
    %4728 = vmatprep.subr.mxu0 0.0
    %4729 = vmatpush2.xpose.msra.mxu0 0.0
    %4730 = vmatprep.subr.mxu0 0.0
    %4731 = vmatpush2.xpose.msra.mxu0 0.0
    %4732 = vmatprep.subr.mxu0 0.0
    %4733 = vmatpush2.xpose.msra.mxu0 0.0
    %4734 = vmatprep.subr.mxu0 0.0
    %4735 = vmatpush2.xpose.msra.mxu0 0.0
    %4736 = vmatprep.subr.mxu0 0.0
    %4737 = vmatpush2.xpose.msra.mxu0 0.0
    %4738 = vmatprep.subr.mxu0 0.0
    %4739 = vmatpush2.xpose.msra.mxu0 0.0
    %4740 = vmatprep.mubr.f32.mxu0 0.0
    %4741 = vmatmul.mubr.f32.gmra.mxu0 %v4667
    %v4742 = vpop.f32.mrf.mxu0
    %v4743 = vadd.f32 %v4187, %v4742
    %v4744 = vpop.f32.mrf.mxu0
    %4745 = vmatprep.mubr.f32.mxu0 0.0
    %4746 = vmatmul.mubr.f32.gmra.mxu0 %v4670
    %v4747 = vpop.f32.mrf.mxu0
    %v4748 = vadd.f32 %v4188, %v4747
    %v4749 = vpop.f32.mrf.mxu0
    %4750 = vdwg.mxu0
    %v4751 = vsel %vm353, %v4476, -inf
    %4752 = vmax.xlane.f32.xlu0 %v4751
    %v4753 = vpop.xlane.xlu0 %4752
    %v4754 = vsel %vm353, %v4481, -inf
    %4755 = vmax.xlane.f32.xlu0 %v4754
    %v4756 = vpop.xlane.xlu0 %4755
    %v4757 = vsel %vm353, %v4565, -inf
    %4758 = vmax.xlane.f32.xlu0 %v4757
    %v4759 = vpop.xlane.xlu0 %4758
    %v4760 = vsel %vm353, %v4570, -inf
    %4761 = vmax.xlane.f32.xlu0 %v4760
    %v4762 = vpop.xlane.xlu0 %4761
    %v4763 = vsel %vm353, %v4654, -inf
    %4764 = vmax.xlane.f32.xlu0 %v4763
    %v4765 = vpop.xlane.xlu0 %4764
    %v4766 = vsel %vm353, %v4659, -inf
    %4767 = vmax.xlane.f32.xlu0 %v4766
    %v4768 = vpop.xlane.xlu0 %4767
    %v4769 = vsel %vm353, %v4743, -inf
    %4770 = vmax.xlane.f32.xlu0 %v4769
    %v4771 = vpop.xlane.xlu0 %4770
    %v4772 = vsel %vm353, %v4748, -inf
    %4773 = vmax.xlane.f32.xlu0 %v4772
    %v4774 = vpop.xlane.xlu0 %4773
    %v4775 = vsub.f32 %v4476, %v4753
    %v4776 = vsub.f32 %v4481, %v4756
    %v4777 = vsub.f32 %v4565, %v4759
    %v4778 = vsub.f32 %v4570, %v4762
    %v4779 = vsub.f32 %v4654, %v4765
    %v4780 = vsub.f32 %v4659, %v4768
    %v4781 = vsub.f32 %v4743, %v4771
    %v4782 = vsub.f32 %v4748, %v4774
    %v4783 = vmul.f32 %v4775, 1.442695
    %v4784 = vpow.pop %v4783
    %v4785 = vmul.f32 %v4776, 1.442695
    %v4786 = vpow.pop %v4785
    %v4787 = vmul.f32 %v4777, 1.442695
    %v4788 = vpow.pop %v4787
    %v4789 = vmul.f32 %v4778, 1.442695
    %v4790 = vpow.pop %v4789
    %v4791 = vmul.f32 %v4779, 1.442695
    %v4792 = vpow.pop %v4791
    %v4793 = vmul.f32 %v4780, 1.442695
    %v4794 = vpow.pop %v4793
    %v4795 = vmul.f32 %v4781, 1.442695
    %v4796 = vpow.pop %v4795
    %v4797 = vmul.f32 %v4782, 1.442695
    %v4798 = vpow.pop %v4797
    %v4799 = vsel %vm353, %v4784, 0.0
    %4800 = vadd.xlane.f32.xlu0 %v4799
    %v4801 = vpop.xlane.xlu0 %4800
    %v4802 = vsel %vm353, %v4786, 0.0
    %4803 = vadd.xlane.f32.xlu0 %v4802
    %v4804 = vpop.xlane.xlu0 %4803
    %v4805 = vsel %vm353, %v4788, 0.0
    %4806 = vadd.xlane.f32.xlu0 %v4805
    %v4807 = vpop.xlane.xlu0 %4806
    %v4808 = vsel %vm353, %v4790, 0.0
    %4809 = vadd.xlane.f32.xlu0 %v4808
    %v4810 = vpop.xlane.xlu0 %4809
    %v4811 = vsel %vm353, %v4792, 0.0
    %4812 = vadd.xlane.f32.xlu0 %v4811
    %v4813 = vpop.xlane.xlu0 %4812
    %v4814 = vsel %vm353, %v4794, 0.0
    %4815 = vadd.xlane.f32.xlu0 %v4814
    %v4816 = vpop.xlane.xlu0 %4815
    %v4817 = vsel %vm353, %v4796, 0.0
    %4818 = vadd.xlane.f32.xlu0 %v4817
    %v4819 = vpop.xlane.xlu0 %4818
    %v4820 = vsel %vm353, %v4798, 0.0
    %4821 = vadd.xlane.f32.xlu0 %v4820
    %v4822 = vpop.xlane.xlu0 %4821
    %v4823 = vrcp.pop %v4801
    %v4824 = vmul.f32 %v4784, %v4823
    %v4825 = vrcp.pop %v4804
    %v4826 = vmul.f32 %v4786, %v4825
    %v4827 = vrcp.pop %v4807
    %v4828 = vmul.f32 %v4788, %v4827
    %v4829 = vrcp.pop %v4810
    %v4830 = vmul.f32 %v4790, %v4829
    %v4831 = vrcp.pop %v4813
    %v4832 = vmul.f32 %v4792, %v4831
    %v4833 = vrcp.pop %v4816
    %v4834 = vmul.f32 %v4794, %v4833
    %v4835 = vrcp.pop %v4819
    %v4836 = vmul.f32 %v4796, %v4835
    %v4837 = vrcp.pop %v4822
    %v4838 = vmul.f32 %v4798, %v4837
    %4839 = vrot.lane.b32.xlu0 %v4365, 64
    %v4840 = vpop.permute.xlu0 %4839
    %4841 = vrot.lane.b32.xlu0 %v4366, 64
    %v4842 = vpop.permute.xlu0 %4841
    %v4846 = vsel %vm353, %v4824, 0
    %v4849 = vsel %vm353, %v4826, 0
    %4851 = vmatprep.subr.mxu0 0.0
    %4852 = vmatpush1.msra.mxu0 0.0
    %4853 = vmatprep.subr.mxu0 0.0
    %4854 = vmatpush1.msra.mxu0 0.0
    %4855 = vmatprep.subr.mxu0 0.0
    %4856 = vmatpush1.msra.mxu0 0.0
    %4857 = vmatprep.subr.mxu0 0.0
    %4858 = vmatpush1.msra.mxu0 0.0
    %4859 = vmatprep.subr.mxu0 0.0
    %4860 = vmatpush1.msra.mxu0 0.0
    %4861 = vmatprep.subr.mxu0 0.0
    %4862 = vmatpush1.msra.mxu0 0.0
    %4863 = vmatprep.subr.mxu0 0.0
    %4864 = vmatpush1.msra.mxu0 0.0
    %4865 = vmatprep.subr.mxu0 0.0
    %4866 = vmatpush1.msra.mxu0 0.0
    %4867 = vmatprep.subr.mxu0 0.0
    %4868 = vmatpush1.msra.mxu0 0.0
    %4869 = vmatprep.subr.mxu0 0.0
    %4870 = vmatpush1.msra.mxu0 0.0
    %4871 = vmatprep.subr.mxu0 0.0
    %4872 = vmatpush1.msra.mxu0 0.0
    %4873 = vmatprep.subr.mxu0 0.0
    %4874 = vmatpush1.msra.mxu0 0.0
    %4875 = vmatprep.subr.mxu0 0.0
    %4876 = vmatpush1.msra.mxu0 0.0
    %4877 = vmatprep.subr.mxu0 0.0
    %4878 = vmatpush1.msra.mxu0 0.0
    %4879 = vmatprep.subr.mxu0 0.0
    %4880 = vmatpush1.msra.mxu0 %v4842
    %4881 = vmatprep.subr.mxu0 0.0
    %4882 = vmatpush1.msra.mxu0 %v4840
    %4883 = vmatprep.subr.mxu0 0.0
    %4884 = vmatpush2.msra.mxu0 0.0
    %4885 = vmatprep.subr.mxu0 0.0
    %4886 = vmatpush2.msra.mxu0 0.0
    %4887 = vmatprep.subr.mxu0 0.0
    %4888 = vmatpush2.msra.mxu0 0.0
    %4889 = vmatprep.subr.mxu0 0.0
    %4890 = vmatpush2.msra.mxu0 0.0
    %4891 = vmatprep.subr.mxu0 0.0
    %4892 = vmatpush2.msra.mxu0 0.0
    %4893 = vmatprep.subr.mxu0 0.0
    %4894 = vmatpush2.msra.mxu0 0.0
    %4895 = vmatprep.subr.mxu0 0.0
    %4896 = vmatpush2.msra.mxu0 0.0
    %4897 = vmatprep.subr.mxu0 0.0
    %4898 = vmatpush2.msra.mxu0 0.0
    %4899 = vmatprep.subr.mxu0 0.0
    %4900 = vmatpush2.msra.mxu0 0.0
    %4901 = vmatprep.subr.mxu0 0.0
    %4902 = vmatpush2.msra.mxu0 0.0
    %4903 = vmatprep.subr.mxu0 0.0
    %4904 = vmatpush2.msra.mxu0 0.0
    %4905 = vmatprep.subr.mxu0 0.0
    %4906 = vmatpush2.msra.mxu0 0.0
    %4907 = vmatprep.subr.mxu0 0.0
    %4908 = vmatpush2.msra.mxu0 0.0
    %4909 = vmatprep.subr.mxu0 0.0
    %4910 = vmatpush2.msra.mxu0 0.0
    %4911 = vmatprep.subr.mxu0 0.0
    %4912 = vmatpush2.msra.mxu0 0.0
    %4913 = vmatprep.subr.mxu0 0.0
    %4914 = vmatpush2.msra.mxu0 0.0
    %4915 = vmatprep.mubr.f32.mxu0 0.0
    %4916 = vmatmul.mubr.f32.gmra.mxu0 %v4846
    %v4917 = vpop.f32.mrf.mxu0
    %v4918 = vadd.f32 0.0, %v4917
    %v4919 = vpop.f32.mrf.mxu0
    %4920 = vmatprep.mubr.f32.mxu0 0.0
    %4921 = vmatmul.mubr.f32.gmra.mxu0 %v4849
    %v4922 = vpop.f32.mrf.mxu0
    %v4923 = vadd.f32 0.0, %v4922
    %v4924 = vpop.f32.mrf.mxu0
    %4925 = vdwg.mxu0
    %4926 = vrot.lane.b32.xlu0 %v4370, 64
    %v4927 = vpop.permute.xlu0 %4926
    %4928 = vrot.lane.b32.xlu0 %v4372, 64
    %v4929 = vpop.permute.xlu0 %4928
    %v4933 = vsel %vm353, %v4828, 0
    %v4936 = vsel %vm353, %v4830, 0
    %4938 = vmatprep.subr.mxu0 0.0
    %4939 = vmatpush1.msra.mxu0 0.0
    %4940 = vmatprep.subr.mxu0 0.0
    %4941 = vmatpush1.msra.mxu0 0.0
    %4942 = vmatprep.subr.mxu0 0.0
    %4943 = vmatpush1.msra.mxu0 0.0
    %4944 = vmatprep.subr.mxu0 0.0
    %4945 = vmatpush1.msra.mxu0 0.0
    %4946 = vmatprep.subr.mxu0 0.0
    %4947 = vmatpush1.msra.mxu0 0.0
    %4948 = vmatprep.subr.mxu0 0.0
    %4949 = vmatpush1.msra.mxu0 0.0
    %4950 = vmatprep.subr.mxu0 0.0
    %4951 = vmatpush1.msra.mxu0 0.0
    %4952 = vmatprep.subr.mxu0 0.0
    %4953 = vmatpush1.msra.mxu0 0.0
    %4954 = vmatprep.subr.mxu0 0.0
    %4955 = vmatpush1.msra.mxu0 0.0
    %4956 = vmatprep.subr.mxu0 0.0
    %4957 = vmatpush1.msra.mxu0 0.0
    %4958 = vmatprep.subr.mxu0 0.0
    %4959 = vmatpush1.msra.mxu0 0.0
    %4960 = vmatprep.subr.mxu0 0.0
    %4961 = vmatpush1.msra.mxu0 0.0
    %4962 = vmatprep.subr.mxu0 0.0
    %4963 = vmatpush1.msra.mxu0 0.0
    %4964 = vmatprep.subr.mxu0 0.0
    %4965 = vmatpush1.msra.mxu0 0.0
    %4966 = vmatprep.subr.mxu0 0.0
    %4967 = vmatpush1.msra.mxu0 %v4929
    %4968 = vmatprep.subr.mxu0 0.0
    %4969 = vmatpush1.msra.mxu0 %v4927
    %4970 = vmatprep.subr.mxu0 0.0
    %4971 = vmatpush2.msra.mxu0 0.0
    %4972 = vmatprep.subr.mxu0 0.0
    %4973 = vmatpush2.msra.mxu0 0.0
    %4974 = vmatprep.subr.mxu0 0.0
    %4975 = vmatpush2.msra.mxu0 0.0
    %4976 = vmatprep.subr.mxu0 0.0
    %4977 = vmatpush2.msra.mxu0 0.0
    %4978 = vmatprep.subr.mxu0 0.0
    %4979 = vmatpush2.msra.mxu0 0.0
    %4980 = vmatprep.subr.mxu0 0.0
    %4981 = vmatpush2.msra.mxu0 0.0
    %4982 = vmatprep.subr.mxu0 0.0
    %4983 = vmatpush2.msra.mxu0 0.0
    %4984 = vmatprep.subr.mxu0 0.0
    %4985 = vmatpush2.msra.mxu0 0.0
    %4986 = vmatprep.subr.mxu0 0.0
    %4987 = vmatpush2.msra.mxu0 0.0
    %4988 = vmatprep.subr.mxu0 0.0
    %4989 = vmatpush2.msra.mxu0 0.0
    %4990 = vmatprep.subr.mxu0 0.0
    %4991 = vmatpush2.msra.mxu0 0.0
    %4992 = vmatprep.subr.mxu0 0.0
    %4993 = vmatpush2.msra.mxu0 0.0
    %4994 = vmatprep.subr.mxu0 0.0
    %4995 = vmatpush2.msra.mxu0 0.0
    %4996 = vmatprep.subr.mxu0 0.0
    %4997 = vmatpush2.msra.mxu0 0.0
    %4998 = vmatprep.subr.mxu0 0.0
    %4999 = vmatpush2.msra.mxu0 0.0
    %5000 = vmatprep.subr.mxu0 0.0
    %5001 = vmatpush2.msra.mxu0 0.0
    %5002 = vmatprep.mubr.f32.mxu0 0.0
    %5003 = vmatmul.mubr.f32.gmra.mxu0 %v4933
    %v5004 = vpop.f32.mrf.mxu0
    %v5005 = vadd.f32 0.0, %v5004
    %v5006 = vpop.f32.mrf.mxu0
    %5007 = vmatprep.mubr.f32.mxu0 0.0
    %5008 = vmatmul.mubr.f32.gmra.mxu0 %v4936
    %v5009 = vpop.f32.mrf.mxu0
    %v5010 = vadd.f32 0.0, %v5009
    %v5011 = vpop.f32.mrf.mxu0
    %5012 = vdwg.mxu0
    %5013 = vrot.lane.b32.xlu0 %v4376, 64
    %v5014 = vpop.permute.xlu0 %5013
    %5015 = vrot.lane.b32.xlu0 %v4378, 64
    %v5016 = vpop.permute.xlu0 %5015
    %v5020 = vsel %vm353, %v4832, 0
    %v5023 = vsel %vm353, %v4834, 0
    %5025 = vmatprep.subr.mxu0 0.0
    %5026 = vmatpush1.msra.mxu0 0.0
    %5027 = vmatprep.subr.mxu0 0.0
    %5028 = vmatpush1.msra.mxu0 0.0
    %5029 = vmatprep.subr.mxu0 0.0
    %5030 = vmatpush1.msra.mxu0 0.0
    %5031 = vmatprep.subr.mxu0 0.0
    %5032 = vmatpush1.msra.mxu0 0.0
    %5033 = vmatprep.subr.mxu0 0.0
    %5034 = vmatpush1.msra.mxu0 0.0
    %5035 = vmatprep.subr.mxu0 0.0
    %5036 = vmatpush1.msra.mxu0 0.0
    %5037 = vmatprep.subr.mxu0 0.0
    %5038 = vmatpush1.msra.mxu0 0.0
    %5039 = vmatprep.subr.mxu0 0.0
    %5040 = vmatpush1.msra.mxu0 0.0
    %5041 = vmatprep.subr.mxu0 0.0
    %5042 = vmatpush1.msra.mxu0 0.0
    %5043 = vmatprep.subr.mxu0 0.0
    %5044 = vmatpush1.msra.mxu0 0.0
    %5045 = vmatprep.subr.mxu0 0.0
    %5046 = vmatpush1.msra.mxu0 0.0
    %5047 = vmatprep.subr.mxu0 0.0
    %5048 = vmatpush1.msra.mxu0 0.0
    %5049 = vmatprep.subr.mxu0 0.0
    %5050 = vmatpush1.msra.mxu0 0.0
    %5051 = vmatprep.subr.mxu0 0.0
    %5052 = vmatpush1.msra.mxu0 0.0
    %5053 = vmatprep.subr.mxu0 0.0
    %5054 = vmatpush1.msra.mxu0 %v5016
    %5055 = vmatprep.subr.mxu0 0.0
    %5056 = vmatpush1.msra.mxu0 %v5014
    %5057 = vmatprep.subr.mxu0 0.0
    %5058 = vmatpush2.msra.mxu0 0.0
    %5059 = vmatprep.subr.mxu0 0.0
    %5060 = vmatpush2.msra.mxu0 0.0
    %5061 = vmatprep.subr.mxu0 0.0
    %5062 = vmatpush2.msra.mxu0 0.0
    %5063 = vmatprep.subr.mxu0 0.0
    %5064 = vmatpush2.msra.mxu0 0.0
    %5065 = vmatprep.subr.mxu0 0.0
    %5066 = vmatpush2.msra.mxu0 0.0
    %5067 = vmatprep.subr.mxu0 0.0
    %5068 = vmatpush2.msra.mxu0 0.0
    %5069 = vmatprep.subr.mxu0 0.0
    %5070 = vmatpush2.msra.mxu0 0.0
    %5071 = vmatprep.subr.mxu0 0.0
    %5072 = vmatpush2.msra.mxu0 0.0
    %5073 = vmatprep.subr.mxu0 0.0
    %5074 = vmatpush2.msra.mxu0 0.0
    %5075 = vmatprep.subr.mxu0 0.0
    %5076 = vmatpush2.msra.mxu0 0.0
    %5077 = vmatprep.subr.mxu0 0.0
    %5078 = vmatpush2.msra.mxu0 0.0
    %5079 = vmatprep.subr.mxu0 0.0
    %5080 = vmatpush2.msra.mxu0 0.0
    %5081 = vmatprep.subr.mxu0 0.0
    %5082 = vmatpush2.msra.mxu0 0.0
    %5083 = vmatprep.subr.mxu0 0.0
    %5084 = vmatpush2.msra.mxu0 0.0
    %5085 = vmatprep.subr.mxu0 0.0
    %5086 = vmatpush2.msra.mxu0 0.0
    %5087 = vmatprep.subr.mxu0 0.0
    %5088 = vmatpush2.msra.mxu0 0.0
    %5089 = vmatprep.mubr.f32.mxu0 0.0
    %5090 = vmatmul.mubr.f32.gmra.mxu0 %v5020
    %v5091 = vpop.f32.mrf.mxu0
    %v5092 = vadd.f32 0.0, %v5091
    %v5093 = vpop.f32.mrf.mxu0
    %5094 = vmatprep.mubr.f32.mxu0 0.0
    %5095 = vmatmul.mubr.f32.gmra.mxu0 %v5023
    %v5096 = vpop.f32.mrf.mxu0
    %v5097 = vadd.f32 0.0, %v5096
    %v5098 = vpop.f32.mrf.mxu0
    %5099 = vdwg.mxu0
    %5100 = vrot.lane.b32.xlu0 %v4382, 64
    %v5101 = vpop.permute.xlu0 %5100
    %5102 = vrot.lane.b32.xlu0 %v4384, 64
    %v5103 = vpop.permute.xlu0 %5102
    %v5107 = vsel %vm353, %v4836, 0
    %v5110 = vsel %vm353, %v4838, 0
    %5112 = vmatprep.subr.mxu0 0.0
    %5113 = vmatpush1.msra.mxu0 0.0
    %5114 = vmatprep.subr.mxu0 0.0
    %5115 = vmatpush1.msra.mxu0 0.0
    %5116 = vmatprep.subr.mxu0 0.0
    %5117 = vmatpush1.msra.mxu0 0.0
    %5118 = vmatprep.subr.mxu0 0.0
    %5119 = vmatpush1.msra.mxu0 0.0
    %5120 = vmatprep.subr.mxu0 0.0
    %5121 = vmatpush1.msra.mxu0 0.0
    %5122 = vmatprep.subr.mxu0 0.0
    %5123 = vmatpush1.msra.mxu0 0.0
    %5124 = vmatprep.subr.mxu0 0.0
    %5125 = vmatpush1.msra.mxu0 0.0
    %5126 = vmatprep.subr.mxu0 0.0
    %5127 = vmatpush1.msra.mxu0 0.0
    %5128 = vmatprep.subr.mxu0 0.0
    %5129 = vmatpush1.msra.mxu0 0.0
    %5130 = vmatprep.subr.mxu0 0.0
    %5131 = vmatpush1.msra.mxu0 0.0
    %5132 = vmatprep.subr.mxu0 0.0
    %5133 = vmatpush1.msra.mxu0 0.0
    %5134 = vmatprep.subr.mxu0 0.0
    %5135 = vmatpush1.msra.mxu0 0.0
    %5136 = vmatprep.subr.mxu0 0.0
    %5137 = vmatpush1.msra.mxu0 0.0
    %5138 = vmatprep.subr.mxu0 0.0
    %5139 = vmatpush1.msra.mxu0 0.0
    %5140 = vmatprep.subr.mxu0 0.0
    %5141 = vmatpush1.msra.mxu0 %v5103
    %5142 = vmatprep.subr.mxu0 0.0
    %5143 = vmatpush1.msra.mxu0 %v5101
    %5144 = vmatprep.subr.mxu0 0.0
    %5145 = vmatpush2.msra.mxu0 0.0
    %5146 = vmatprep.subr.mxu0 0.0
    %5147 = vmatpush2.msra.mxu0 0.0
    %5148 = vmatprep.subr.mxu0 0.0
    %5149 = vmatpush2.msra.mxu0 0.0
    %5150 = vmatprep.subr.mxu0 0.0
    %5151 = vmatpush2.msra.mxu0 0.0
    %5152 = vmatprep.subr.mxu0 0.0
    %5153 = vmatpush2.msra.mxu0 0.0
    %5154 = vmatprep.subr.mxu0 0.0
    %5155 = vmatpush2.msra.mxu0 0.0
    %5156 = vmatprep.subr.mxu0 0.0
    %5157 = vmatpush2.msra.mxu0 0.0
    %5158 = vmatprep.subr.mxu0 0.0
    %5159 = vmatpush2.msra.mxu0 0.0
    %5160 = vmatprep.subr.mxu0 0.0
    %5161 = vmatpush2.msra.mxu0 0.0
    %5162 = vmatprep.subr.mxu0 0.0
    %5163 = vmatpush2.msra.mxu0 0.0
    %5164 = vmatprep.subr.mxu0 0.0
    %5165 = vmatpush2.msra.mxu0 0.0
    %5166 = vmatprep.subr.mxu0 0.0
    %5167 = vmatpush2.msra.mxu0 0.0
    %5168 = vmatprep.subr.mxu0 0.0
    %5169 = vmatpush2.msra.mxu0 0.0
    %5170 = vmatprep.subr.mxu0 0.0
    %5171 = vmatpush2.msra.mxu0 0.0
    %5172 = vmatprep.subr.mxu0 0.0
    %5173 = vmatpush2.msra.mxu0 0.0
    %5174 = vmatprep.subr.mxu0 0.0
    %5175 = vmatpush2.msra.mxu0 0.0
    %5176 = vmatprep.mubr.f32.mxu0 0.0
    %5177 = vmatmul.mubr.f32.gmra.mxu0 %v5107
    %v5178 = vpop.f32.mrf.mxu0
    %v5179 = vadd.f32 0.0, %v5178
    %v5180 = vpop.f32.mrf.mxu0
    %5181 = vmatprep.mubr.f32.mxu0 0.0
    %5182 = vmatmul.mubr.f32.gmra.mxu0 %v5110
    %v5183 = vpop.f32.mrf.mxu0
    %v5184 = vadd.f32 0.0, %v5183
    %v5185 = vpop.f32.mrf.mxu0
    %5186 = vdwg.mxu0
    %v5188 = vsel %vm269, %v4918, 0
    %v5191 = vsel %vm269, %v4923, 0
    %5193 = vmatprep.subr.mxu0 0.0
    %5194 = vmatpush1.msra.mxu0 0.0
    %5195 = vmatprep.subr.mxu0 0.0
    %5196 = vmatpush1.msra.mxu0 0.0
    %5197 = vmatprep.subr.mxu0 0.0
    %5198 = vmatpush1.msra.mxu0 0.0
    %5199 = vmatprep.subr.mxu0 0.0
    %5200 = vmatpush1.msra.mxu0 0.0
    %5201 = vmatprep.subr.mxu0 0.0
    %5202 = vmatpush1.msra.mxu0 0.0
    %5203 = vmatprep.subr.mxu0 0.0
    %5204 = vmatpush1.msra.mxu0 0.0
    %5205 = vmatprep.subr.mxu0 0.0
    %5206 = vmatpush1.msra.mxu0 0.0
    %5207 = vmatprep.subr.mxu0 0.0
    %5208 = vmatpush1.msra.mxu0 0.0
    %5209 = vmatprep.subr.mxu0 0.0
    %5210 = vmatpush1.msra.mxu0 0.0
    %5211 = vmatprep.subr.mxu0 0.0
    %5212 = vmatpush1.msra.mxu0 0.0
    %5213 = vmatprep.subr.mxu0 0.0
    %5214 = vmatpush1.msra.mxu0 0.0
    %5215 = vmatprep.subr.mxu0 0.0
    %5216 = vmatpush1.msra.mxu0 0.0
    %5217 = vmatprep.subr.mxu0 0.0
    %5218 = vmatpush1.msra.mxu0 0.0
    %5219 = vmatprep.subr.mxu0 0.0
    %5220 = vmatpush1.msra.mxu0 0.0
    %5221 = vmatprep.subr.mxu0 0.0
    %5222 = vmatpush1.msra.mxu0 0.0
    %5223 = vmatprep.subr.mxu0 0.0
    %5224 = vmatpush1.msra.mxu0 %v4182
    %5225 = vmatprep.subr.mxu0 0.0
    %5226 = vmatpush2.msra.mxu0 0.0
    %5227 = vmatprep.subr.mxu0 0.0
    %5228 = vmatpush2.msra.mxu0 0.0
    %5229 = vmatprep.subr.mxu0 0.0
    %5230 = vmatpush2.msra.mxu0 0.0
    %5231 = vmatprep.subr.mxu0 0.0
    %5232 = vmatpush2.msra.mxu0 0.0
    %5233 = vmatprep.subr.mxu0 0.0
    %5234 = vmatpush2.msra.mxu0 0.0
    %5235 = vmatprep.subr.mxu0 0.0
    %5236 = vmatpush2.msra.mxu0 0.0
    %5237 = vmatprep.subr.mxu0 0.0
    %5238 = vmatpush2.msra.mxu0 0.0
    %5239 = vmatprep.subr.mxu0 0.0
    %5240 = vmatpush2.msra.mxu0 0.0
    %5241 = vmatprep.subr.mxu0 0.0
    %5242 = vmatpush2.msra.mxu0 0.0
    %5243 = vmatprep.subr.mxu0 0.0
    %5244 = vmatpush2.msra.mxu0 0.0
    %5245 = vmatprep.subr.mxu0 0.0
    %5246 = vmatpush2.msra.mxu0 0.0
    %5247 = vmatprep.subr.mxu0 0.0
    %5248 = vmatpush2.msra.mxu0 0.0
    %5249 = vmatprep.subr.mxu0 0.0
    %5250 = vmatpush2.msra.mxu0 0.0
    %5251 = vmatprep.subr.mxu0 0.0
    %5252 = vmatpush2.msra.mxu0 0.0
    %5253 = vmatprep.subr.mxu0 0.0
    %5254 = vmatpush2.msra.mxu0 0.0
    %5255 = vmatprep.subr.mxu0 0.0
    %5256 = vmatpush2.msra.mxu0 0.0
    %5257 = vmatprep.mubr.f32.mxu0 0.0
    %5258 = vmatmul.mubr.f32.gmra.mxu0 %v5188
    %v5259 = vpop.f32.mrf.mxu0
    %v5260 = vadd.f32 0.0, %v5259
    %v5261 = vpop.f32.mrf.mxu0
    %5262 = vmatprep.mubr.f32.mxu0 0.0
    %5263 = vmatmul.mubr.f32.gmra.mxu0 %v5191
    %v5264 = vpop.f32.mrf.mxu0
    %v5265 = vadd.f32 0.0, %v5264
    %v5266 = vpop.f32.mrf.mxu0
    %5267 = vdwg.mxu0
    %v5269 = vsel %vm269, %v5005, 0
    %v5272 = vsel %vm269, %v5010, 0
    %5274 = vmatprep.subr.mxu0 0.0
    %5275 = vmatpush1.msra.mxu0 0.0
    %5276 = vmatprep.subr.mxu0 0.0
    %5277 = vmatpush1.msra.mxu0 0.0
    %5278 = vmatprep.subr.mxu0 0.0
    %5279 = vmatpush1.msra.mxu0 0.0
    %5280 = vmatprep.subr.mxu0 0.0
    %5281 = vmatpush1.msra.mxu0 0.0
    %5282 = vmatprep.subr.mxu0 0.0
    %5283 = vmatpush1.msra.mxu0 0.0
    %5284 = vmatprep.subr.mxu0 0.0
    %5285 = vmatpush1.msra.mxu0 0.0
    %5286 = vmatprep.subr.mxu0 0.0
    %5287 = vmatpush1.msra.mxu0 0.0
    %5288 = vmatprep.subr.mxu0 0.0
    %5289 = vmatpush1.msra.mxu0 0.0
    %5290 = vmatprep.subr.mxu0 0.0
    %5291 = vmatpush1.msra.mxu0 0.0
    %5292 = vmatprep.subr.mxu0 0.0
    %5293 = vmatpush1.msra.mxu0 0.0
    %5294 = vmatprep.subr.mxu0 0.0
    %5295 = vmatpush1.msra.mxu0 0.0
    %5296 = vmatprep.subr.mxu0 0.0
    %5297 = vmatpush1.msra.mxu0 0.0
    %5298 = vmatprep.subr.mxu0 0.0
    %5299 = vmatpush1.msra.mxu0 0.0
    %5300 = vmatprep.subr.mxu0 0.0
    %5301 = vmatpush1.msra.mxu0 0.0
    %5302 = vmatprep.subr.mxu0 0.0
    %5303 = vmatpush1.msra.mxu0 0.0
    %5304 = vmatprep.subr.mxu0 0.0
    %5305 = vmatpush1.msra.mxu0 %v4183
    %5306 = vmatprep.subr.mxu0 0.0
    %5307 = vmatpush2.msra.mxu0 0.0
    %5308 = vmatprep.subr.mxu0 0.0
    %5309 = vmatpush2.msra.mxu0 0.0
    %5310 = vmatprep.subr.mxu0 0.0
    %5311 = vmatpush2.msra.mxu0 0.0
    %5312 = vmatprep.subr.mxu0 0.0
    %5313 = vmatpush2.msra.mxu0 0.0
    %5314 = vmatprep.subr.mxu0 0.0
    %5315 = vmatpush2.msra.mxu0 0.0
    %5316 = vmatprep.subr.mxu0 0.0
    %5317 = vmatpush2.msra.mxu0 0.0
    %5318 = vmatprep.subr.mxu0 0.0
    %5319 = vmatpush2.msra.mxu0 0.0
    %5320 = vmatprep.subr.mxu0 0.0
    %5321 = vmatpush2.msra.mxu0 0.0
    %5322 = vmatprep.subr.mxu0 0.0
    %5323 = vmatpush2.msra.mxu0 0.0
    %5324 = vmatprep.subr.mxu0 0.0
    %5325 = vmatpush2.msra.mxu0 0.0
    %5326 = vmatprep.subr.mxu0 0.0
    %5327 = vmatpush2.msra.mxu0 0.0
    %5328 = vmatprep.subr.mxu0 0.0
    %5329 = vmatpush2.msra.mxu0 0.0
    %5330 = vmatprep.subr.mxu0 0.0
    %5331 = vmatpush2.msra.mxu0 0.0
    %5332 = vmatprep.subr.mxu0 0.0
    %5333 = vmatpush2.msra.mxu0 0.0
    %5334 = vmatprep.subr.mxu0 0.0
    %5335 = vmatpush2.msra.mxu0 0.0
    %5336 = vmatprep.subr.mxu0 0.0
    %5337 = vmatpush2.msra.mxu0 0.0
    %5338 = vmatprep.mubr.f32.mxu0 0.0
    %5339 = vmatmul.mubr.f32.gmra.mxu0 %v5269
    %v5340 = vpop.f32.mrf.mxu0
    %v5341 = vadd.f32 0.0, %v5340
    %v5342 = vpop.f32.mrf.mxu0
    %5343 = vmatprep.mubr.f32.mxu0 0.0
    %5344 = vmatmul.mubr.f32.gmra.mxu0 %v5272
    %v5345 = vpop.f32.mrf.mxu0
    %v5346 = vadd.f32 0.0, %v5345
    %v5347 = vpop.f32.mrf.mxu0
    %5348 = vdwg.mxu0
    %v5350 = vsel %vm269, %v5092, 0
    %v5353 = vsel %vm269, %v5097, 0
    %5355 = vmatprep.subr.mxu0 0.0
    %5356 = vmatpush1.msra.mxu0 0.0
    %5357 = vmatprep.subr.mxu0 0.0
    %5358 = vmatpush1.msra.mxu0 0.0
    %5359 = vmatprep.subr.mxu0 0.0
    %5360 = vmatpush1.msra.mxu0 0.0
    %5361 = vmatprep.subr.mxu0 0.0
    %5362 = vmatpush1.msra.mxu0 0.0
    %5363 = vmatprep.subr.mxu0 0.0
    %5364 = vmatpush1.msra.mxu0 0.0
    %5365 = vmatprep.subr.mxu0 0.0
    %5366 = vmatpush1.msra.mxu0 0.0
    %5367 = vmatprep.subr.mxu0 0.0
    %5368 = vmatpush1.msra.mxu0 0.0
    %5369 = vmatprep.subr.mxu0 0.0
    %5370 = vmatpush1.msra.mxu0 0.0
    %5371 = vmatprep.subr.mxu0 0.0
    %5372 = vmatpush1.msra.mxu0 0.0
    %5373 = vmatprep.subr.mxu0 0.0
    %5374 = vmatpush1.msra.mxu0 0.0
    %5375 = vmatprep.subr.mxu0 0.0
    %5376 = vmatpush1.msra.mxu0 0.0
    %5377 = vmatprep.subr.mxu0 0.0
    %5378 = vmatpush1.msra.mxu0 0.0
    %5379 = vmatprep.subr.mxu0 0.0
    %5380 = vmatpush1.msra.mxu0 0.0
    %5381 = vmatprep.subr.mxu0 0.0
    %5382 = vmatpush1.msra.mxu0 0.0
    %5383 = vmatprep.subr.mxu0 0.0
    %5384 = vmatpush1.msra.mxu0 0.0
    %5385 = vmatprep.subr.mxu0 0.0
    %5386 = vmatpush1.msra.mxu0 %v4184
    %5387 = vmatprep.subr.mxu0 0.0
    %5388 = vmatpush2.msra.mxu0 0.0
    %5389 = vmatprep.subr.mxu0 0.0
    %5390 = vmatpush2.msra.mxu0 0.0
    %5391 = vmatprep.subr.mxu0 0.0
    %5392 = vmatpush2.msra.mxu0 0.0
    %5393 = vmatprep.subr.mxu0 0.0
    %5394 = vmatpush2.msra.mxu0 0.0
    %5395 = vmatprep.subr.mxu0 0.0
    %5396 = vmatpush2.msra.mxu0 0.0
    %5397 = vmatprep.subr.mxu0 0.0
    %5398 = vmatpush2.msra.mxu0 0.0
    %5399 = vmatprep.subr.mxu0 0.0
    %5400 = vmatpush2.msra.mxu0 0.0
    %5401 = vmatprep.subr.mxu0 0.0
    %5402 = vmatpush2.msra.mxu0 0.0
    %5403 = vmatprep.subr.mxu0 0.0
    %5404 = vmatpush2.msra.mxu0 0.0
    %5405 = vmatprep.subr.mxu0 0.0
    %5406 = vmatpush2.msra.mxu0 0.0
    %5407 = vmatprep.subr.mxu0 0.0
    %5408 = vmatpush2.msra.mxu0 0.0
    %5409 = vmatprep.subr.mxu0 0.0
    %5410 = vmatpush2.msra.mxu0 0.0
    %5411 = vmatprep.subr.mxu0 0.0
    %5412 = vmatpush2.msra.mxu0 0.0
    %5413 = vmatprep.subr.mxu0 0.0
    %5414 = vmatpush2.msra.mxu0 0.0
    %5415 = vmatprep.subr.mxu0 0.0
    %5416 = vmatpush2.msra.mxu0 0.0
    %5417 = vmatprep.subr.mxu0 0.0
    %5418 = vmatpush2.msra.mxu0 0.0
    %5419 = vmatprep.mubr.f32.mxu0 0.0
    %5420 = vmatmul.mubr.f32.gmra.mxu0 %v5350
    %v5421 = vpop.f32.mrf.mxu0
    %v5422 = vadd.f32 0.0, %v5421
    %v5423 = vpop.f32.mrf.mxu0
    %5424 = vmatprep.mubr.f32.mxu0 0.0
    %5425 = vmatmul.mubr.f32.gmra.mxu0 %v5353
    %v5426 = vpop.f32.mrf.mxu0
    %v5427 = vadd.f32 0.0, %v5426
    %v5428 = vpop.f32.mrf.mxu0
    %5429 = vdwg.mxu0
    %v5431 = vsel %vm269, %v5179, 0
    %v5434 = vsel %vm269, %v5184, 0
    %5436 = vmatprep.subr.mxu0 0.0
    %5437 = vmatpush1.msra.mxu0 0.0
    %5438 = vmatprep.subr.mxu0 0.0
    %5439 = vmatpush1.msra.mxu0 0.0
    %5440 = vmatprep.subr.mxu0 0.0
    %5441 = vmatpush1.msra.mxu0 0.0
    %5442 = vmatprep.subr.mxu0 0.0
    %5443 = vmatpush1.msra.mxu0 0.0
    %5444 = vmatprep.subr.mxu0 0.0
    %5445 = vmatpush1.msra.mxu0 0.0
    %5446 = vmatprep.subr.mxu0 0.0
    %5447 = vmatpush1.msra.mxu0 0.0
    %5448 = vmatprep.subr.mxu0 0.0
    %5449 = vmatpush1.msra.mxu0 0.0
    %5450 = vmatprep.subr.mxu0 0.0
    %5451 = vmatpush1.msra.mxu0 0.0
    %5452 = vmatprep.subr.mxu0 0.0
    %5453 = vmatpush1.msra.mxu0 0.0
    %5454 = vmatprep.subr.mxu0 0.0
    %5455 = vmatpush1.msra.mxu0 0.0
    %5456 = vmatprep.subr.mxu0 0.0
    %5457 = vmatpush1.msra.mxu0 0.0
    %5458 = vmatprep.subr.mxu0 0.0
    %5459 = vmatpush1.msra.mxu0 0.0
    %5460 = vmatprep.subr.mxu0 0.0
    %5461 = vmatpush1.msra.mxu0 0.0
    %5462 = vmatprep.subr.mxu0 0.0
    %5463 = vmatpush1.msra.mxu0 0.0
    %5464 = vmatprep.subr.mxu0 0.0
    %5465 = vmatpush1.msra.mxu0 0.0
    %5466 = vmatprep.subr.mxu0 0.0
    %5467 = vmatpush1.msra.mxu0 %v4185
    %5468 = vmatprep.subr.mxu0 0.0
    %5469 = vmatpush2.msra.mxu0 0.0
    %5470 = vmatprep.subr.mxu0 0.0
    %5471 = vmatpush2.msra.mxu0 0.0
    %5472 = vmatprep.subr.mxu0 0.0
    %5473 = vmatpush2.msra.mxu0 0.0
    %5474 = vmatprep.subr.mxu0 0.0
    %5475 = vmatpush2.msra.mxu0 0.0
    %5476 = vmatprep.subr.mxu0 0.0
    %5477 = vmatpush2.msra.mxu0 0.0
    %5478 = vmatprep.subr.mxu0 0.0
    %5479 = vmatpush2.msra.mxu0 0.0
    %5480 = vmatprep.subr.mxu0 0.0
    %5481 = vmatpush2.msra.mxu0 0.0
    %5482 = vmatprep.subr.mxu0 0.0
    %5483 = vmatpush2.msra.mxu0 0.0
    %5484 = vmatprep.subr.mxu0 0.0
    %5485 = vmatpush2.msra.mxu0 0.0
    %5486 = vmatprep.subr.mxu0 0.0
    %5487 = vmatpush2.msra.mxu0 0.0
    %5488 = vmatprep.subr.mxu0 0.0
    %5489 = vmatpush2.msra.mxu0 0.0
    %5490 = vmatprep.subr.mxu0 0.0
    %5491 = vmatpush2.msra.mxu0 0.0
    %5492 = vmatprep.subr.mxu0 0.0
    %5493 = vmatpush2.msra.mxu0 0.0
    %5494 = vmatprep.subr.mxu0 0.0
    %5495 = vmatpush2.msra.mxu0 0.0
    %5496 = vmatprep.subr.mxu0 0.0
    %5497 = vmatpush2.msra.mxu0 0.0
    %5498 = vmatprep.subr.mxu0 0.0
    %5499 = vmatpush2.msra.mxu0 0.0
    %5500 = vmatprep.mubr.f32.mxu0 0.0
    %5501 = vmatmul.mubr.f32.gmra.mxu0 %v5431
    %v5502 = vpop.f32.mrf.mxu0
    %v5503 = vadd.f32 0.0, %v5502
    %v5504 = vpop.f32.mrf.mxu0
    %5505 = vmatprep.mubr.f32.mxu0 0.0
    %5506 = vmatmul.mubr.f32.gmra.mxu0 %v5434
    %v5507 = vpop.f32.mrf.mxu0
    %v5508 = vadd.f32 0.0, %v5507
    %v5509 = vpop.f32.mrf.mxu0
    %5510 = vdwg.mxu0
    %vm5511 = vcmask 261120
    %v5512 = vsel %vm5511, %v5260, 0.0
    %v5513 = vsel %vm5511, %v5341, 0.0
    %v5514 = vadd.f32 %v5512, %v5513
    %v5515 = vsel %vm5511, %v5422, 0.0
    %v5516 = vadd.f32 %v5514, %v5515
    %v5517 = vsel %vm5511, %v5503, 0.0
    %v5518 = vadd.f32 %v5516, %v5517
    %v5519 = vsel %vm5511, %v5265, 0.0
    %v5520 = vsel %vm5511, %v5346, 0.0
    %v5521 = vadd.f32 %v5519, %v5520
    %v5522 = vsel %vm5511, %v5427, 0.0
    %v5523 = vadd.f32 %v5521, %v5522
    %v5524 = vsel %vm5511, %v5508, 0.0
    %v5525 = vadd.f32 %v5523, %v5524
    %v5527 = vlaneseq
    %v5528 = vshrl.u32 %v5527, 7
    %v5529 = vsub.s32 0, %v5528
    %v5530 = vrot.slane %v4186, %v5529
    %v5532 = vadd.f32 %v5518, %v5530
    %v5533 = vadd.f32 %v5525, %v5530
    %v5534 = vld [vmem:[#allocation21] sm:$0xff]
    %v5535 = vld [vmem:[#allocation21 + $0x8] sm:$0xff]
    %v5536 = vld [vmem:[#allocation21 + $0x10] sm:$0xff]
    %v5537 = vld [vmem:[#allocation21 + $0x18] sm:$0xff]
    %v5538 = vld [vmem:[#allocation24] sm:$0x1]
    %v5540 = vlaneseq
    %v5541 = vshrl.u32 %v5540, 7
    %v5542 = vsub.s32 0, %v5541
    %v5543 = vrot.slane %v5538, %v5542
    %v5546 = vsel %vm5511, %v5532, 0
    %v5549 = vsel %vm5511, %v5533, 0
    %5551 = vmatprep.subr.mxu0 0.0
    %5552 = vmatpush1.msra.mxu0 0.0
    %5553 = vmatprep.subr.mxu0 0.0
    %5554 = vmatpush1.msra.mxu0 0.0
    %5555 = vmatprep.subr.mxu0 0.0
    %5556 = vmatpush1.msra.mxu0 0.0
    %5557 = vmatprep.subr.mxu0 0.0
    %5558 = vmatpush1.msra.mxu0 0.0
    %5559 = vmatprep.subr.mxu0 0.0
    %5560 = vmatpush1.msra.mxu0 0.0
    %5561 = vmatprep.subr.mxu0 0.0
    %5562 = vmatpush1.msra.mxu0 0.0
    %5563 = vmatprep.subr.mxu0 0.0
    %5564 = vmatpush1.msra.mxu0 0.0
    %5565 = vmatprep.subr.mxu0 0.0
    %5566 = vmatpush1.msra.mxu0 0.0
    %5567 = vmatprep.subr.mxu0 0.0
    %5568 = vmatpush1.msra.mxu0 0.0
    %5569 = vmatprep.subr.mxu0 0.0
    %5570 = vmatpush1.msra.mxu0 0.0
    %5571 = vmatprep.subr.mxu0 0.0
    %5572 = vmatpush1.msra.mxu0 0.0
    %5573 = vmatprep.subr.mxu0 0.0
    %5574 = vmatpush1.msra.mxu0 0.0
    %5575 = vmatprep.subr.mxu0 0.0
    %5576 = vmatpush1.msra.mxu0 %v5537
    %5577 = vmatprep.subr.mxu0 0.0
    %5578 = vmatpush1.msra.mxu0 %v5536
    %5579 = vmatprep.subr.mxu0 0.0
    %5580 = vmatpush1.msra.mxu0 %v5535
    %5581 = vmatprep.subr.mxu0 0.0
    %5582 = vmatpush1.msra.mxu0 %v5534
    %5583 = vmatprep.subr.mxu0 0.0
    %5584 = vmatpush2.msra.mxu0 0.0
    %5585 = vmatprep.subr.mxu0 0.0
    %5586 = vmatpush2.msra.mxu0 0.0
    %5587 = vmatprep.subr.mxu0 0.0
    %5588 = vmatpush2.msra.mxu0 0.0
    %5589 = vmatprep.subr.mxu0 0.0
    %5590 = vmatpush2.msra.mxu0 0.0
    %5591 = vmatprep.subr.mxu0 0.0
    %5592 = vmatpush2.msra.mxu0 0.0
    %5593 = vmatprep.subr.mxu0 0.0
    %5594 = vmatpush2.msra.mxu0 0.0
    %5595 = vmatprep.subr.mxu0 0.0
    %5596 = vmatpush2.msra.mxu0 0.0
    %5597 = vmatprep.subr.mxu0 0.0
    %5598 = vmatpush2.msra.mxu0 0.0
    %5599 = vmatprep.subr.mxu0 0.0
    %5600 = vmatpush2.msra.mxu0 0.0
    %5601 = vmatprep.subr.mxu0 0.0
    %5602 = vmatpush2.msra.mxu0 0.0
    %5603 = vmatprep.subr.mxu0 0.0
    %5604 = vmatpush2.msra.mxu0 0.0
    %5605 = vmatprep.subr.mxu0 0.0
    %5606 = vmatpush2.msra.mxu0 0.0
    %5607 = vmatprep.subr.mxu0 0.0
    %5608 = vmatpush2.msra.mxu0 0.0
    %5609 = vmatprep.subr.mxu0 0.0
    %5610 = vmatpush2.msra.mxu0 0.0
    %5611 = vmatprep.subr.mxu0 0.0
    %5612 = vmatpush2.msra.mxu0 0.0
    %5613 = vmatprep.subr.mxu0 0.0
    %5614 = vmatpush2.msra.mxu0 0.0
    %5615 = vmatprep.mubr.f32.mxu0 0.0
    %5616 = vmatmul.mubr.f32.gmra.mxu0 %v5546
    %v5617 = vpop.f32.mrf.mxu0
    %v5618 = vadd.f32 %v5543, %v5617
    %v5619 = vpop.f32.mrf.mxu0
    %5620 = vmatprep.mubr.f32.mxu0 0.0
    %5621 = vmatmul.mubr.f32.gmra.mxu0 %v5549
    %v5622 = vpop.f32.mrf.mxu0
    %v5623 = vadd.f32 %v5543, %v5622
    %v5624 = vpop.f32.mrf.mxu0
    %5625 = vdwg.mxu0
    %v5626 = vld [vmem:[#allocation22] sm:$0xff]
    %v5627 = vld [vmem:[#allocation22 + $0x8] sm:$0xff]
    %5628 = vmatprep.subr.mxu0 0.0
    %5629 = vmatpush1.msra.mxu0 0.0
    %5630 = vmatprep.subr.mxu0 0.0
    %5631 = vmatpush1.msra.mxu0 0.0
    %5632 = vmatprep.subr.mxu0 0.0
    %5633 = vmatpush1.msra.mxu0 0.0
    %5634 = vmatprep.subr.mxu0 0.0
    %5635 = vmatpush1.msra.mxu0 0.0
    %5636 = vmatprep.subr.mxu0 0.0
    %5637 = vmatpush1.msra.mxu0 0.0
    %5638 = vmatprep.subr.mxu0 0.0
    %5639 = vmatpush1.msra.mxu0 0.0
    %5640 = vmatprep.subr.mxu0 0.0
    %5641 = vmatpush1.msra.mxu0 0.0
    %5642 = vmatprep.subr.mxu0 0.0
    %5643 = vmatpush1.msra.mxu0 0.0
    %5644 = vmatprep.subr.mxu0 0.0
    %5645 = vmatpush1.msra.mxu0 0.0
    %5646 = vmatprep.subr.mxu0 0.0
    %5647 = vmatpush1.msra.mxu0 0.0
    %5648 = vmatprep.subr.mxu0 0.0
    %5649 = vmatpush1.msra.mxu0 0.0
    %5650 = vmatprep.subr.mxu0 0.0
    %5651 = vmatpush1.msra.mxu0 0.0
    %5652 = vmatprep.subr.mxu0 0.0
    %5653 = vmatpush1.msra.mxu0 0.0
    %5654 = vmatprep.subr.mxu0 0.0
    %5655 = vmatpush1.msra.mxu0 0.0
    %5656 = vmatprep.subr.mxu0 0.0
    %5657 = vmatpush1.msra.mxu0 %v5627
    %5658 = vmatprep.subr.mxu0 0.0
    %5659 = vmatpush1.msra.mxu0 %v5626
    %5660 = vmatprep.subr.mxu0 0.0
    %5661 = vmatpush2.msra.mxu0 0.0
    %5662 = vmatprep.subr.mxu0 0.0
    %5663 = vmatpush2.msra.mxu0 0.0
    %5664 = vmatprep.subr.mxu0 0.0
    %5665 = vmatpush2.msra.mxu0 0.0
    %5666 = vmatprep.subr.mxu0 0.0
    %5667 = vmatpush2.msra.mxu0 0.0
    %5668 = vmatprep.subr.mxu0 0.0
    %5669 = vmatpush2.msra.mxu0 0.0
    %5670 = vmatprep.subr.mxu0 0.0
    %5671 = vmatpush2.msra.mxu0 0.0
    %5672 = vmatprep.subr.mxu0 0.0
    %5673 = vmatpush2.msra.mxu0 0.0
    %5674 = vmatprep.subr.mxu0 0.0
    %5675 = vmatpush2.msra.mxu0 0.0
    %5676 = vmatprep.subr.mxu0 0.0
    %5677 = vmatpush2.msra.mxu0 0.0
    %5678 = vmatprep.subr.mxu0 0.0
    %5679 = vmatpush2.msra.mxu0 0.0
    %5680 = vmatprep.subr.mxu0 0.0
    %5681 = vmatpush2.msra.mxu0 0.0
    %5682 = vmatprep.subr.mxu0 0.0
    %5683 = vmatpush2.msra.mxu0 0.0
    %5684 = vmatprep.subr.mxu0 0.0
    %5685 = vmatpush2.msra.mxu0 0.0
    %5686 = vmatprep.subr.mxu0 0.0
    %5687 = vmatpush2.msra.mxu0 0.0
    %5688 = vmatprep.subr.mxu0 0.0
    %5689 = vmatpush2.msra.mxu0 0.0
    %5690 = vmatprep.subr.mxu0 0.0
    %5691 = vmatpush2.msra.mxu0 0.0
    %5692 = vmatprep.mubr.f32.mxu0 0.0
    %5693 = vmatmul.mubr.f32.gmra.mxu0 %v355
    %v5694 = vpop.f32.mrf.mxu0
    %v5695 = vadd.f32 0.0, %v5694
    %v5696 = vpop.f32.mrf.mxu0
    %5697 = vdwg.mxu0
    %v5698 = vadd.f32 %v5618, %v5695
    %v5699 = vxor.u32 %v5698, 2147483648
    %v5700 = vmul.f32 %v5699, 1.442695
    %v5701 = vpow.pop %v5700
    %v5702 = vadd.f32 %v5701, 1.0
    %v5703 = vrcp.pop %v5702
    %v5704 = vmul.f32 1.0, %v5703
    %v5705 = vtanh.pop %v5698
    %v5706 = vmul.f32 %v5704, 0.0
    %5708 = vrot.lane.b32.xlu0 %v5705, 96
    %v5709 = vpop.permute.xlu0 %5708
    %v5711 = vmul.f32 %v5704, %v5709
    %5713 = vrot.lane.b32.xlu0 %v5711, 16
    %v5714 = vpop.permute.xlu0 %5713
    %v5716 = vadd.f32 %v5706, %v5714
    %v5717 = vtanh.pop %v5716
    %5719 = vrot.lane.b32.xlu0 %v5717, 32
    %v5720 = vpop.permute.xlu0 %5719
    %v5722 = vmul.f32 %v5704, %v5720
    %5724 = vrot.lane.b32.xlu0 %v5722, 80
    %v5725 = vpop.permute.xlu0 %5724
    %v5726 = vsel %vm353, %v5725, 0
    %5728 = vmatprep.subr.mxu0 0.0
    %5729 = vmatpush1.msra.mxu0 0.0
    %5730 = vmatprep.subr.mxu0 0.0
    %5731 = vmatpush1.msra.mxu0 0.0
    %5732 = vmatprep.subr.mxu0 0.0
    %5733 = vmatpush1.msra.mxu0 0.0
    %5734 = vmatprep.subr.mxu0 0.0
    %5735 = vmatpush1.msra.mxu0 0.0
    %5736 = vmatprep.subr.mxu0 0.0
    %5737 = vmatpush1.msra.mxu0 0.0
    %5738 = vmatprep.subr.mxu0 0.0
    %5739 = vmatpush1.msra.mxu0 0.0
    %5740 = vmatprep.subr.mxu0 0.0
    %5741 = vmatpush1.msra.mxu0 0.0
    %5742 = vmatprep.subr.mxu0 0.0
    %5743 = vmatpush1.msra.mxu0 0.0
    %5744 = vmatprep.subr.mxu0 0.0
    %5745 = vmatpush1.msra.mxu0 0.0
    %5746 = vmatprep.subr.mxu0 0.0
    %5747 = vmatpush1.msra.mxu0 0.0
    %5748 = vmatprep.subr.mxu0 0.0
    %5749 = vmatpush1.msra.mxu0 0.0
    %5750 = vmatprep.subr.mxu0 0.0
    %5751 = vmatpush1.msra.mxu0 0.0
    %5752 = vmatprep.subr.mxu0 0.0
    %5753 = vmatpush1.msra.mxu0 0.0
    %5754 = vmatprep.subr.mxu0 0.0
    %5755 = vmatpush1.msra.mxu0 0.0
    %5756 = vmatprep.subr.mxu0 0.0
    %5757 = vmatpush1.msra.mxu0 %v5627
    %5758 = vmatprep.subr.mxu0 0.0
    %5759 = vmatpush1.msra.mxu0 %v5626
    %5760 = vmatprep.subr.mxu0 0.0
    %5761 = vmatpush2.msra.mxu0 0.0
    %5762 = vmatprep.subr.mxu0 0.0
    %5763 = vmatpush2.msra.mxu0 0.0
    %5764 = vmatprep.subr.mxu0 0.0
    %5765 = vmatpush2.msra.mxu0 0.0
    %5766 = vmatprep.subr.mxu0 0.0
    %5767 = vmatpush2.msra.mxu0 0.0
    %5768 = vmatprep.subr.mxu0 0.0
    %5769 = vmatpush2.msra.mxu0 0.0
    %5770 = vmatprep.subr.mxu0 0.0
    %5771 = vmatpush2.msra.mxu0 0.0
    %5772 = vmatprep.subr.mxu0 0.0
    %5773 = vmatpush2.msra.mxu0 0.0
    %5774 = vmatprep.subr.mxu0 0.0
    %5775 = vmatpush2.msra.mxu0 0.0
    %5776 = vmatprep.subr.mxu0 0.0
    %5777 = vmatpush2.msra.mxu0 0.0
    %5778 = vmatprep.subr.mxu0 0.0
    %5779 = vmatpush2.msra.mxu0 0.0
    %5780 = vmatprep.subr.mxu0 0.0
    %5781 = vmatpush2.msra.mxu0 0.0
    %5782 = vmatprep.subr.mxu0 0.0
    %5783 = vmatpush2.msra.mxu0 0.0
    %5784 = vmatprep.subr.mxu0 0.0
    %5785 = vmatpush2.msra.mxu0 0.0
    %5786 = vmatprep.subr.mxu0 0.0
    %5787 = vmatpush2.msra.mxu0 0.0
    %5788 = vmatprep.subr.mxu0 0.0
    %5789 = vmatpush2.msra.mxu0 0.0
    %5790 = vmatprep.subr.mxu0 0.0
    %5791 = vmatpush2.msra.mxu0 0.0
    %5792 = vmatprep.mubr.f32.mxu0 0.0
    %5793 = vmatmul.mubr.f32.gmra.mxu0 %v5726
    %v5794 = vpop.f32.mrf.mxu0
    %v5795 = vadd.f32 0.0, %v5794
    %v5796 = vpop.f32.mrf.mxu0
    %5797 = vdwg.mxu0
    %v5799 = vrot.slane %v5795, 6
    %v5801 = vadd.f32 %v5618, %v5799
    %v5802 = vxor.u32 %v5801, 2147483648
    %v5803 = vmul.f32 %v5802, 1.442695
    %v5804 = vpow.pop %v5803
    %v5805 = vadd.f32 %v5804, 1.0
    %v5806 = vrcp.pop %v5805
    %v5807 = vmul.f32 1.0, %v5806
    %v5808 = vtanh.pop %v5801
    %v5810 = vrot.slane %v5716, 6
    %v5812 = vmul.f32 %v5807, %v5810
    %5814 = vrot.lane.b32.xlu0 %v5808, 96
    %v5815 = vpop.permute.xlu0 %5814
    %v5817 = vmul.f32 %v5807, %v5815
    %5819 = vrot.lane.b32.xlu0 %v5817, 16
    %v5820 = vpop.permute.xlu0 %5819
    %v5822 = vadd.f32 %v5812, %v5820
    %v5823 = vtanh.pop %v5822
    %5825 = vrot.lane.b32.xlu0 %v5823, 32
    %v5826 = vpop.permute.xlu0 %5825
    %v5828 = vmul.f32 %v5807, %v5826
    %v5830 = vrot.slane %v5828, 2
    %5831 = vrot.lane.b32.xlu0 %v5830, 80
    %v5832 = vpop.permute.xlu0 %5831
    %v5833 = vsel %vm353, %v5832, 0
    %5835 = vmatprep.subr.mxu0 0.0
    %5836 = vmatpush1.msra.mxu0 0.0
    %5837 = vmatprep.subr.mxu0 0.0
    %5838 = vmatpush1.msra.mxu0 0.0
    %5839 = vmatprep.subr.mxu0 0.0
    %5840 = vmatpush1.msra.mxu0 0.0
    %5841 = vmatprep.subr.mxu0 0.0
    %5842 = vmatpush1.msra.mxu0 0.0
    %5843 = vmatprep.subr.mxu0 0.0
    %5844 = vmatpush1.msra.mxu0 0.0
    %5845 = vmatprep.subr.mxu0 0.0
    %5846 = vmatpush1.msra.mxu0 0.0
    %5847 = vmatprep.subr.mxu0 0.0
    %5848 = vmatpush1.msra.mxu0 0.0
    %5849 = vmatprep.subr.mxu0 0.0
    %5850 = vmatpush1.msra.mxu0 0.0
    %5851 = vmatprep.subr.mxu0 0.0
    %5852 = vmatpush1.msra.mxu0 0.0
    %5853 = vmatprep.subr.mxu0 0.0
    %5854 = vmatpush1.msra.mxu0 0.0
    %5855 = vmatprep.subr.mxu0 0.0
    %5856 = vmatpush1.msra.mxu0 0.0
    %5857 = vmatprep.subr.mxu0 0.0
    %5858 = vmatpush1.msra.mxu0 0.0
    %5859 = vmatprep.subr.mxu0 0.0
    %5860 = vmatpush1.msra.mxu0 0.0
    %5861 = vmatprep.subr.mxu0 0.0
    %5862 = vmatpush1.msra.mxu0 0.0
    %5863 = vmatprep.subr.mxu0 0.0
    %5864 = vmatpush1.msra.mxu0 %v5627
    %5865 = vmatprep.subr.mxu0 0.0
    %5866 = vmatpush1.msra.mxu0 %v5626
    %5867 = vmatprep.subr.mxu0 0.0
    %5868 = vmatpush2.msra.mxu0 0.0
    %5869 = vmatprep.subr.mxu0 0.0
    %5870 = vmatpush2.msra.mxu0 0.0
    %5871 = vmatprep.subr.mxu0 0.0
    %5872 = vmatpush2.msra.mxu0 0.0
    %5873 = vmatprep.subr.mxu0 0.0
    %5874 = vmatpush2.msra.mxu0 0.0
    %5875 = vmatprep.subr.mxu0 0.0
    %5876 = vmatpush2.msra.mxu0 0.0
    %5877 = vmatprep.subr.mxu0 0.0
    %5878 = vmatpush2.msra.mxu0 0.0
    %5879 = vmatprep.subr.mxu0 0.0
    %5880 = vmatpush2.msra.mxu0 0.0
    %5881 = vmatprep.subr.mxu0 0.0
    %5882 = vmatpush2.msra.mxu0 0.0
    %5883 = vmatprep.subr.mxu0 0.0
    %5884 = vmatpush2.msra.mxu0 0.0
    %5885 = vmatprep.subr.mxu0 0.0
    %5886 = vmatpush2.msra.mxu0 0.0
    %5887 = vmatprep.subr.mxu0 0.0
    %5888 = vmatpush2.msra.mxu0 0.0
    %5889 = vmatprep.subr.mxu0 0.0
    %5890 = vmatpush2.msra.mxu0 0.0
    %5891 = vmatprep.subr.mxu0 0.0
    %5892 = vmatpush2.msra.mxu0 0.0
    %5893 = vmatprep.subr.mxu0 0.0
    %5894 = vmatpush2.msra.mxu0 0.0
    %5895 = vmatprep.subr.mxu0 0.0
    %5896 = vmatpush2.msra.mxu0 0.0
    %5897 = vmatprep.subr.mxu0 0.0
    %5898 = vmatpush2.msra.mxu0 0.0
    %5899 = vmatprep.mubr.f32.mxu0 0.0
    %5900 = vmatmul.mubr.f32.gmra.mxu0 %v5833
    %v5901 = vpop.f32.mrf.mxu0
    %v5902 = vadd.f32 0.0, %v5901
    %v5903 = vpop.f32.mrf.mxu0
    %5904 = vdwg.mxu0
    %v5906 = vrot.slane %v5902, 4
    %v5908 = vadd.f32 %v5618, %v5906
    %v5909 = vxor.u32 %v5908, 2147483648
    %v5910 = vmul.f32 %v5909, 1.442695
    %v5911 = vpow.pop %v5910
    %v5912 = vadd.f32 %v5911, 1.0
    %v5913 = vrcp.pop %v5912
    %v5914 = vmul.f32 1.0, %v5913
    %v5915 = vtanh.pop %v5908
    %v5917 = vrot.slane %v5822, 6
    %v5919 = vmul.f32 %v5914, %v5917
    %5921 = vrot.lane.b32.xlu0 %v5915, 96
    %v5922 = vpop.permute.xlu0 %5921
    %v5924 = vmul.f32 %v5914, %v5922
    %5926 = vrot.lane.b32.xlu0 %v5924, 16
    %v5927 = vpop.permute.xlu0 %5926
    %v5929 = vadd.f32 %v5919, %v5927
    %v5930 = vtanh.pop %v5929
    %5932 = vrot.lane.b32.xlu0 %v5930, 32
    %v5933 = vpop.permute.xlu0 %5932
    %v5935 = vmul.f32 %v5914, %v5933
    %v5937 = vrot.slane %v5935, 4
    %5938 = vrot.lane.b32.xlu0 %v5937, 80
    %v5939 = vpop.permute.xlu0 %5938
    %v5940 = vsel %vm353, %v5939, 0
    %5942 = vmatprep.subr.mxu0 0.0
    %5943 = vmatpush1.msra.mxu0 0.0
    %5944 = vmatprep.subr.mxu0 0.0
    %5945 = vmatpush1.msra.mxu0 0.0
    %5946 = vmatprep.subr.mxu0 0.0
    %5947 = vmatpush1.msra.mxu0 0.0
    %5948 = vmatprep.subr.mxu0 0.0
    %5949 = vmatpush1.msra.mxu0 0.0
    %5950 = vmatprep.subr.mxu0 0.0
    %5951 = vmatpush1.msra.mxu0 0.0
    %5952 = vmatprep.subr.mxu0 0.0
    %5953 = vmatpush1.msra.mxu0 0.0
    %5954 = vmatprep.subr.mxu0 0.0
    %5955 = vmatpush1.msra.mxu0 0.0
    %5956 = vmatprep.subr.mxu0 0.0
    %5957 = vmatpush1.msra.mxu0 0.0
    %5958 = vmatprep.subr.mxu0 0.0
    %5959 = vmatpush1.msra.mxu0 0.0
    %5960 = vmatprep.subr.mxu0 0.0
    %5961 = vmatpush1.msra.mxu0 0.0
    %5962 = vmatprep.subr.mxu0 0.0
    %5963 = vmatpush1.msra.mxu0 0.0
    %5964 = vmatprep.subr.mxu0 0.0
    %5965 = vmatpush1.msra.mxu0 0.0
    %5966 = vmatprep.subr.mxu0 0.0
    %5967 = vmatpush1.msra.mxu0 0.0
    %5968 = vmatprep.subr.mxu0 0.0
    %5969 = vmatpush1.msra.mxu0 0.0
    %5970 = vmatprep.subr.mxu0 0.0
    %5971 = vmatpush1.msra.mxu0 %v5627
    %5972 = vmatprep.subr.mxu0 0.0
    %5973 = vmatpush1.msra.mxu0 %v5626
    %5974 = vmatprep.subr.mxu0 0.0
    %5975 = vmatpush2.msra.mxu0 0.0
    %5976 = vmatprep.subr.mxu0 0.0
    %5977 = vmatpush2.msra.mxu0 0.0
    %5978 = vmatprep.subr.mxu0 0.0
    %5979 = vmatpush2.msra.mxu0 0.0
    %5980 = vmatprep.subr.mxu0 0.0
    %5981 = vmatpush2.msra.mxu0 0.0
    %5982 = vmatprep.subr.mxu0 0.0
    %5983 = vmatpush2.msra.mxu0 0.0
    %5984 = vmatprep.subr.mxu0 0.0
    %5985 = vmatpush2.msra.mxu0 0.0
    %5986 = vmatprep.subr.mxu0 0.0
    %5987 = vmatpush2.msra.mxu0 0.0
    %5988 = vmatprep.subr.mxu0 0.0
    %5989 = vmatpush2.msra.mxu0 0.0
    %5990 = vmatprep.subr.mxu0 0.0
    %5991 = vmatpush2.msra.mxu0 0.0
    %5992 = vmatprep.subr.mxu0 0.0
    %5993 = vmatpush2.msra.mxu0 0.0
    %5994 = vmatprep.subr.mxu0 0.0
    %5995 = vmatpush2.msra.mxu0 0.0
    %5996 = vmatprep.subr.mxu0 0.0
    %5997 = vmatpush2.msra.mxu0 0.0
    %5998 = vmatprep.subr.mxu0 0.0
    %5999 = vmatpush2.msra.mxu0 0.0
    %6000 = vmatprep.subr.mxu0 0.0
    %6001 = vmatpush2.msra.mxu0 0.0
    %6002 = vmatprep.subr.mxu0 0.0
    %6003 = vmatpush2.msra.mxu0 0.0
    %6004 = vmatprep.subr.mxu0 0.0
    %6005 = vmatpush2.msra.mxu0 0.0
    %6006 = vmatprep.mubr.f32.mxu0 0.0
    %6007 = vmatmul.mubr.f32.gmra.mxu0 %v5940
    %v6008 = vpop.f32.mrf.mxu0
    %v6009 = vadd.f32 0.0, %v6008
    %v6010 = vpop.f32.mrf.mxu0
    %6011 = vdwg.mxu0
    %v6013 = vrot.slane %v6009, 2
    %v6015 = vadd.f32 %v5618, %v6013
    %v6016 = vxor.u32 %v6015, 2147483648
    %v6017 = vmul.f32 %v6016, 1.442695
    %v6018 = vpow.pop %v6017
    %v6019 = vadd.f32 %v6018, 1.0
    %v6020 = vrcp.pop %v6019
    %v6021 = vmul.f32 1.0, %v6020
    %v6022 = vtanh.pop %v6015
    %v6024 = vrot.slane %v5929, 6
    %v6026 = vmul.f32 %v6021, %v6024
    %6028 = vrot.lane.b32.xlu0 %v6022, 96
    %v6029 = vpop.permute.xlu0 %6028
    %v6031 = vmul.f32 %v6021, %v6029
    %6033 = vrot.lane.b32.xlu0 %v6031, 16
    %v6034 = vpop.permute.xlu0 %6033
    %v6036 = vadd.f32 %v6026, %v6034
    %v6037 = vtanh.pop %v6036
    %6039 = vrot.lane.b32.xlu0 %v6037, 32
    %v6040 = vpop.permute.xlu0 %6039
    %v6042 = vmul.f32 %v6021, %v6040
    %v6044 = vrot.slane %v6042, 6
    %6045 = vrot.lane.b32.xlu0 %v6044, 80
    %v6046 = vpop.permute.xlu0 %6045
    %v6047 = vsel %vm353, %v6046, 0
    %6049 = vmatprep.subr.mxu0 0.0
    %6050 = vmatpush1.msra.mxu0 0.0
    %6051 = vmatprep.subr.mxu0 0.0
    %6052 = vmatpush1.msra.mxu0 0.0
    %6053 = vmatprep.subr.mxu0 0.0
    %6054 = vmatpush1.msra.mxu0 0.0
    %6055 = vmatprep.subr.mxu0 0.0
    %6056 = vmatpush1.msra.mxu0 0.0
    %6057 = vmatprep.subr.mxu0 0.0
    %6058 = vmatpush1.msra.mxu0 0.0
    %6059 = vmatprep.subr.mxu0 0.0
    %6060 = vmatpush1.msra.mxu0 0.0
    %6061 = vmatprep.subr.mxu0 0.0
    %6062 = vmatpush1.msra.mxu0 0.0
    %6063 = vmatprep.subr.mxu0 0.0
    %6064 = vmatpush1.msra.mxu0 0.0
    %6065 = vmatprep.subr.mxu0 0.0
    %6066 = vmatpush1.msra.mxu0 0.0
    %6067 = vmatprep.subr.mxu0 0.0
    %6068 = vmatpush1.msra.mxu0 0.0
    %6069 = vmatprep.subr.mxu0 0.0
    %6070 = vmatpush1.msra.mxu0 0.0
    %6071 = vmatprep.subr.mxu0 0.0
    %6072 = vmatpush1.msra.mxu0 0.0
    %6073 = vmatprep.subr.mxu0 0.0
    %6074 = vmatpush1.msra.mxu0 0.0
    %6075 = vmatprep.subr.mxu0 0.0
    %6076 = vmatpush1.msra.mxu0 0.0
    %6077 = vmatprep.subr.mxu0 0.0
    %6078 = vmatpush1.msra.mxu0 %v5627
    %6079 = vmatprep.subr.mxu0 0.0
    %6080 = vmatpush1.msra.mxu0 %v5626
    %6081 = vmatprep.subr.mxu0 0.0
    %6082 = vmatpush2.msra.mxu0 0.0
    %6083 = vmatprep.subr.mxu0 0.0
    %6084 = vmatpush2.msra.mxu0 0.0
    %6085 = vmatprep.subr.mxu0 0.0
    %6086 = vmatpush2.msra.mxu0 0.0
    %6087 = vmatprep.subr.mxu0 0.0
    %6088 = vmatpush2.msra.mxu0 0.0
    %6089 = vmatprep.subr.mxu0 0.0
    %6090 = vmatpush2.msra.mxu0 0.0
    %6091 = vmatprep.subr.mxu0 0.0
    %6092 = vmatpush2.msra.mxu0 0.0
    %6093 = vmatprep.subr.mxu0 0.0
    %6094 = vmatpush2.msra.mxu0 0.0
    %6095 = vmatprep.subr.mxu0 0.0
    %6096 = vmatpush2.msra.mxu0 0.0
    %6097 = vmatprep.subr.mxu0 0.0
    %6098 = vmatpush2.msra.mxu0 0.0
    %6099 = vmatprep.subr.mxu0 0.0
    %6100 = vmatpush2.msra.mxu0 0.0
    %6101 = vmatprep.subr.mxu0 0.0
    %6102 = vmatpush2.msra.mxu0 0.0
    %6103 = vmatprep.subr.mxu0 0.0
    %6104 = vmatpush2.msra.mxu0 0.0
    %6105 = vmatprep.subr.mxu0 0.0
    %6106 = vmatpush2.msra.mxu0 0.0
    %6107 = vmatprep.subr.mxu0 0.0
    %6108 = vmatpush2.msra.mxu0 0.0
    %6109 = vmatprep.subr.mxu0 0.0
    %6110 = vmatpush2.msra.mxu0 0.0
    %6111 = vmatprep.subr.mxu0 0.0
    %6112 = vmatpush2.msra.mxu0 0.0
    %6113 = vmatprep.mubr.f32.mxu0 0.0
    %6114 = vmatmul.mubr.f32.gmra.mxu0 %v6047
    %v6115 = vpop.f32.mrf.mxu0
    %v6116 = vadd.f32 0.0, %v6115
    %v6117 = vpop.f32.mrf.mxu0
    %6118 = vdwg.mxu0
    %v6119 = vadd.f32 %v5623, %v6116
    %v6120 = vxor.u32 %v6119, 2147483648
    %v6121 = vmul.f32 %v6120, 1.442695
    %v6122 = vpow.pop %v6121
    %v6123 = vadd.f32 %v6122, 1.0
    %v6124 = vrcp.pop %v6123
    %v6125 = vmul.f32 1.0, %v6124
    %v6126 = vtanh.pop %v6119
    %v6128 = vrot.slane %v6036, 6
    %v6130 = vmul.f32 %v6125, %v6128
    %6132 = vrot.lane.b32.xlu0 %v6126, 96
    %v6133 = vpop.permute.xlu0 %6132
    %v6135 = vmul.f32 %v6125, %v6133
    %6137 = vrot.lane.b32.xlu0 %v6135, 16
    %v6138 = vpop.permute.xlu0 %6137
    %v6140 = vadd.f32 %v6130, %v6138
    %v6141 = vtanh.pop %v6140
    %6143 = vrot.lane.b32.xlu0 %v6141, 32
    %v6144 = vpop.permute.xlu0 %6143
    %v6146 = vmul.f32 %v6125, %v6144
    %6148 = vrot.lane.b32.xlu0 %v6146, 80
    %v6149 = vpop.permute.xlu0 %6148
    %v6150 = vsel %vm353, %v6149, 0
    %6152 = vmatprep.subr.mxu0 0.0
    %6153 = vmatpush1.msra.mxu0 0.0
    %6154 = vmatprep.subr.mxu0 0.0
    %6155 = vmatpush1.msra.mxu0 0.0
    %6156 = vmatprep.subr.mxu0 0.0
    %6157 = vmatpush1.msra.mxu0 0.0
    %6158 = vmatprep.subr.mxu0 0.0
    %6159 = vmatpush1.msra.mxu0 0.0
    %6160 = vmatprep.subr.mxu0 0.0
    %6161 = vmatpush1.msra.mxu0 0.0
    %6162 = vmatprep.subr.mxu0 0.0
    %6163 = vmatpush1.msra.mxu0 0.0
    %6164 = vmatprep.subr.mxu0 0.0
    %6165 = vmatpush1.msra.mxu0 0.0
    %6166 = vmatprep.subr.mxu0 0.0
    %6167 = vmatpush1.msra.mxu0 0.0
    %6168 = vmatprep.subr.mxu0 0.0
    %6169 = vmatpush1.msra.mxu0 0.0
    %6170 = vmatprep.subr.mxu0 0.0
    %6171 = vmatpush1.msra.mxu0 0.0
    %6172 = vmatprep.subr.mxu0 0.0
    %6173 = vmatpush1.msra.mxu0 0.0
    %6174 = vmatprep.subr.mxu0 0.0
    %6175 = vmatpush1.msra.mxu0 0.0
    %6176 = vmatprep.subr.mxu0 0.0
    %6177 = vmatpush1.msra.mxu0 0.0
    %6178 = vmatprep.subr.mxu0 0.0
    %6179 = vmatpush1.msra.mxu0 0.0
    %6180 = vmatprep.subr.mxu0 0.0
    %6181 = vmatpush1.msra.mxu0 %v5627
    %6182 = vmatprep.subr.mxu0 0.0
    %6183 = vmatpush1.msra.mxu0 %v5626
    %6184 = vmatprep.subr.mxu0 0.0
    %6185 = vmatpush2.msra.mxu0 0.0
    %6186 = vmatprep.subr.mxu0 0.0
    %6187 = vmatpush2.msra.mxu0 0.0
    %6188 = vmatprep.subr.mxu0 0.0
    %6189 = vmatpush2.msra.mxu0 0.0
    %6190 = vmatprep.subr.mxu0 0.0
    %6191 = vmatpush2.msra.mxu0 0.0
    %6192 = vmatprep.subr.mxu0 0.0
    %6193 = vmatpush2.msra.mxu0 0.0
    %6194 = vmatprep.subr.mxu0 0.0
    %6195 = vmatpush2.msra.mxu0 0.0
    %6196 = vmatprep.subr.mxu0 0.0
    %6197 = vmatpush2.msra.mxu0 0.0
    %6198 = vmatprep.subr.mxu0 0.0
    %6199 = vmatpush2.msra.mxu0 0.0
    %6200 = vmatprep.subr.mxu0 0.0
    %6201 = vmatpush2.msra.mxu0 0.0
    %6202 = vmatprep.subr.mxu0 0.0
    %6203 = vmatpush2.msra.mxu0 0.0
    %6204 = vmatprep.subr.mxu0 0.0
    %6205 = vmatpush2.msra.mxu0 0.0
    %6206 = vmatprep.subr.mxu0 0.0
    %6207 = vmatpush2.msra.mxu0 0.0
    %6208 = vmatprep.subr.mxu0 0.0
    %6209 = vmatpush2.msra.mxu0 0.0
    %6210 = vmatprep.subr.mxu0 0.0
    %6211 = vmatpush2.msra.mxu0 0.0
    %6212 = vmatprep.subr.mxu0 0.0
    %6213 = vmatpush2.msra.mxu0 0.0
    %6214 = vmatprep.subr.mxu0 0.0
    %6215 = vmatpush2.msra.mxu0 0.0
    %6216 = vmatprep.mubr.f32.mxu0 0.0
    %6217 = vmatmul.mubr.f32.gmra.mxu0 %v6150
    %v6218 = vpop.f32.mrf.mxu0
    %v6219 = vadd.f32 0.0, %v6218
    %v6220 = vpop.f32.mrf.mxu0
    %6221 = vdwg.mxu0
    %v6223 = vrot.slane %v6219, 6
    %v6225 = vadd.f32 %v5623, %v6223
    %v6226 = vxor.u32 %v6225, 2147483648
    %v6227 = vmul.f32 %v6226, 1.442695
    %v6228 = vpow.pop %v6227
    %v6229 = vadd.f32 %v6228, 1.0
    %v6230 = vrcp.pop %v6229
    %v6231 = vmul.f32 1.0, %v6230
    %v6232 = vtanh.pop %v6225
    %v6234 = vrot.slane %v6140, 6
    %v6236 = vmul.f32 %v6231, %v6234
    %6238 = vrot.lane.b32.xlu0 %v6232, 96
    %v6239 = vpop.permute.xlu0 %6238
    %v6241 = vmul.f32 %v6231, %v6239
    %6243 = vrot.lane.b32.xlu0 %v6241, 16
    %v6244 = vpop.permute.xlu0 %6243
    %v6246 = vadd.f32 %v6236, %v6244
    %v6247 = vtanh.pop %v6246
    %6249 = vrot.lane.b32.xlu0 %v6247, 32
    %v6250 = vpop.permute.xlu0 %6249
    %v6252 = vmul.f32 %v6231, %v6250
    %v6254 = vrot.slane %v6252, 2
    %6255 = vrot.lane.b32.xlu0 %v6254, 80
    %v6256 = vpop.permute.xlu0 %6255
    %v6257 = vsel %vm353, %v6256, 0
    %6259 = vmatprep.subr.mxu0 0.0
    %6260 = vmatpush1.msra.mxu0 0.0
    %6261 = vmatprep.subr.mxu0 0.0
    %6262 = vmatpush1.msra.mxu0 0.0
    %6263 = vmatprep.subr.mxu0 0.0
    %6264 = vmatpush1.msra.mxu0 0.0
    %6265 = vmatprep.subr.mxu0 0.0
    %6266 = vmatpush1.msra.mxu0 0.0
    %6267 = vmatprep.subr.mxu0 0.0
    %6268 = vmatpush1.msra.mxu0 0.0
    %6269 = vmatprep.subr.mxu0 0.0
    %6270 = vmatpush1.msra.mxu0 0.0
    %6271 = vmatprep.subr.mxu0 0.0
    %6272 = vmatpush1.msra.mxu0 0.0
    %6273 = vmatprep.subr.mxu0 0.0
    %6274 = vmatpush1.msra.mxu0 0.0
    %6275 = vmatprep.subr.mxu0 0.0
    %6276 = vmatpush1.msra.mxu0 0.0
    %6277 = vmatprep.subr.mxu0 0.0
    %6278 = vmatpush1.msra.mxu0 0.0
    %6279 = vmatprep.subr.mxu0 0.0
    %6280 = vmatpush1.msra.mxu0 0.0
    %6281 = vmatprep.subr.mxu0 0.0
    %6282 = vmatpush1.msra.mxu0 0.0
    %6283 = vmatprep.subr.mxu0 0.0
    %6284 = vmatpush1.msra.mxu0 0.0
    %6285 = vmatprep.subr.mxu0 0.0
    %6286 = vmatpush1.msra.mxu0 0.0
    %6287 = vmatprep.subr.mxu0 0.0
    %6288 = vmatpush1.msra.mxu0 %v5627
    %6289 = vmatprep.subr.mxu0 0.0
    %6290 = vmatpush1.msra.mxu0 %v5626
    %6291 = vmatprep.subr.mxu0 0.0
    %6292 = vmatpush2.msra.mxu0 0.0
    %6293 = vmatprep.subr.mxu0 0.0
    %6294 = vmatpush2.msra.mxu0 0.0
    %6295 = vmatprep.subr.mxu0 0.0
    %6296 = vmatpush2.msra.mxu0 0.0
    %6297 = vmatprep.subr.mxu0 0.0
    %6298 = vmatpush2.msra.mxu0 0.0
    %6299 = vmatprep.subr.mxu0 0.0
    %6300 = vmatpush2.msra.mxu0 0.0
    %6301 = vmatprep.subr.mxu0 0.0
    %6302 = vmatpush2.msra.mxu0 0.0
    %6303 = vmatprep.subr.mxu0 0.0
    %6304 = vmatpush2.msra.mxu0 0.0
    %6305 = vmatprep.subr.mxu0 0.0
    %6306 = vmatpush2.msra.mxu0 0.0
    %6307 = vmatprep.subr.mxu0 0.0
    %6308 = vmatpush2.msra.mxu0 0.0
    %6309 = vmatprep.subr.mxu0 0.0
    %6310 = vmatpush2.msra.mxu0 0.0
    %6311 = vmatprep.subr.mxu0 0.0
    %6312 = vmatpush2.msra.mxu0 0.0
    %6313 = vmatprep.subr.mxu0 0.0
    %6314 = vmatpush2.msra.mxu0 0.0
    %6315 = vmatprep.subr.mxu0 0.0
    %6316 = vmatpush2.msra.mxu0 0.0
    %6317 = vmatprep.subr.mxu0 0.0
    %6318 = vmatpush2.msra.mxu0 0.0
    %6319 = vmatprep.subr.mxu0 0.0
    %6320 = vmatpush2.msra.mxu0 0.0
    %6321 = vmatprep.subr.mxu0 0.0
    %6322 = vmatpush2.msra.mxu0 0.0
    %6323 = vmatprep.mubr.f32.mxu0 0.0
    %6324 = vmatmul.mubr.f32.gmra.mxu0 %v6257
    %v6325 = vpop.f32.mrf.mxu0
    %v6326 = vadd.f32 0.0, %v6325
    %v6327 = vpop.f32.mrf.mxu0
    %6328 = vdwg.mxu0
    %v6330 = vrot.slane %v6326, 4
    %v6332 = vadd.f32 %v5623, %v6330
    %v6333 = vxor.u32 %v6332, 2147483648
    %v6334 = vmul.f32 %v6333, 1.442695
    %v6335 = vpow.pop %v6334
    %v6336 = vadd.f32 %v6335, 1.0
    %v6337 = vrcp.pop %v6336
    %v6338 = vmul.f32 1.0, %v6337
    %v6339 = vtanh.pop %v6332
    %v6341 = vrot.slane %v6246, 6
    %v6343 = vmul.f32 %v6338, %v6341
    %6345 = vrot.lane.b32.xlu0 %v6339, 96
    %v6346 = vpop.permute.xlu0 %6345
    %v6348 = vmul.f32 %v6338, %v6346
    %6350 = vrot.lane.b32.xlu0 %v6348, 16
    %v6351 = vpop.permute.xlu0 %6350
    %v6353 = vadd.f32 %v6343, %v6351
    %v6354 = vtanh.pop %v6353
    %6356 = vrot.lane.b32.xlu0 %v6354, 32
    %v6357 = vpop.permute.xlu0 %6356
    %v6359 = vmul.f32 %v6338, %v6357
    %v6361 = vrot.slane %v6359, 4
    %6362 = vrot.lane.b32.xlu0 %v6361, 80
    %v6363 = vpop.permute.xlu0 %6362
    %v6364 = vsel %vm353, %v6363, 0
    %6366 = vmatprep.subr.mxu0 0.0
    %6367 = vmatpush1.msra.mxu0 0.0
    %6368 = vmatprep.subr.mxu0 0.0
    %6369 = vmatpush1.msra.mxu0 0.0
    %6370 = vmatprep.subr.mxu0 0.0
    %6371 = vmatpush1.msra.mxu0 0.0
    %6372 = vmatprep.subr.mxu0 0.0
    %6373 = vmatpush1.msra.mxu0 0.0
    %6374 = vmatprep.subr.mxu0 0.0
    %6375 = vmatpush1.msra.mxu0 0.0
    %6376 = vmatprep.subr.mxu0 0.0
    %6377 = vmatpush1.msra.mxu0 0.0
    %6378 = vmatprep.subr.mxu0 0.0
    %6379 = vmatpush1.msra.mxu0 0.0
    %6380 = vmatprep.subr.mxu0 0.0
    %6381 = vmatpush1.msra.mxu0 0.0
    %6382 = vmatprep.subr.mxu0 0.0
    %6383 = vmatpush1.msra.mxu0 0.0
    %6384 = vmatprep.subr.mxu0 0.0
    %6385 = vmatpush1.msra.mxu0 0.0
    %6386 = vmatprep.subr.mxu0 0.0
    %6387 = vmatpush1.msra.mxu0 0.0
    %6388 = vmatprep.subr.mxu0 0.0
    %6389 = vmatpush1.msra.mxu0 0.0
    %6390 = vmatprep.subr.mxu0 0.0
    %6391 = vmatpush1.msra.mxu0 0.0
    %6392 = vmatprep.subr.mxu0 0.0
    %6393 = vmatpush1.msra.mxu0 0.0
    %6394 = vmatprep.subr.mxu0 0.0
    %6395 = vmatpush1.msra.mxu0 %v5627
    %6396 = vmatprep.subr.mxu0 0.0
    %6397 = vmatpush1.msra.mxu0 %v5626
    %6398 = vmatprep.subr.mxu0 0.0
    %6399 = vmatpush2.msra.mxu0 0.0
    %6400 = vmatprep.subr.mxu0 0.0
    %6401 = vmatpush2.msra.mxu0 0.0
    %6402 = vmatprep.subr.mxu0 0.0
    %6403 = vmatpush2.msra.mxu0 0.0
    %6404 = vmatprep.subr.mxu0 0.0
    %6405 = vmatpush2.msra.mxu0 0.0
    %6406 = vmatprep.subr.mxu0 0.0
    %6407 = vmatpush2.msra.mxu0 0.0
    %6408 = vmatprep.subr.mxu0 0.0
    %6409 = vmatpush2.msra.mxu0 0.0
    %6410 = vmatprep.subr.mxu0 0.0
    %6411 = vmatpush2.msra.mxu0 0.0
    %6412 = vmatprep.subr.mxu0 0.0
    %6413 = vmatpush2.msra.mxu0 0.0
    %6414 = vmatprep.subr.mxu0 0.0
    %6415 = vmatpush2.msra.mxu0 0.0
    %6416 = vmatprep.subr.mxu0 0.0
    %6417 = vmatpush2.msra.mxu0 0.0
    %6418 = vmatprep.subr.mxu0 0.0
    %6419 = vmatpush2.msra.mxu0 0.0
    %6420 = vmatprep.subr.mxu0 0.0
    %6421 = vmatpush2.msra.mxu0 0.0
    %6422 = vmatprep.subr.mxu0 0.0
    %6423 = vmatpush2.msra.mxu0 0.0
    %6424 = vmatprep.subr.mxu0 0.0
    %6425 = vmatpush2.msra.mxu0 0.0
    %6426 = vmatprep.subr.mxu0 0.0
    %6427 = vmatpush2.msra.mxu0 0.0
    %6428 = vmatprep.subr.mxu0 0.0
    %6429 = vmatpush2.msra.mxu0 0.0
    %6430 = vmatprep.mubr.f32.mxu0 0.0
    %6431 = vmatmul.mubr.f32.gmra.mxu0 %v6364
    %v6432 = vpop.f32.mrf.mxu0
    %v6433 = vadd.f32 0.0, %v6432
    %v6434 = vpop.f32.mrf.mxu0
    %6435 = vdwg.mxu0
    %v6437 = vrot.slane %v6433, 2
    %v6439 = vadd.f32 %v5623, %v6437
    %v6440 = vxor.u32 %v6439, 2147483648
    %v6441 = vmul.f32 %v6440, 1.442695
    %v6442 = vpow.pop %v6441
    %v6443 = vadd.f32 %v6442, 1.0
    %v6444 = vrcp.pop %v6443
    %v6445 = vmul.f32 1.0, %v6444
    %v6446 = vtanh.pop %v6439
    %v6448 = vrot.slane %v6353, 6
    %v6450 = vmul.f32 %v6445, %v6448
    %6452 = vrot.lane.b32.xlu0 %v6446, 96
    %v6453 = vpop.permute.xlu0 %6452
    %v6455 = vmul.f32 %v6445, %v6453
    %6457 = vrot.lane.b32.xlu0 %v6455, 16
    %v6458 = vpop.permute.xlu0 %6457
    %v6460 = vadd.f32 %v6450, %v6458
    %v6461 = vtanh.pop %v6460
    %6463 = vrot.lane.b32.xlu0 %v6461, 32
    %v6464 = vpop.permute.xlu0 %6463
    %v6466 = vmul.f32 %v6445, %v6464
    %v6467 = vsel %vm1196, %v5722, %v5828
    %v6468 = vsel %vm1198, %v6467, %v5935
    %v6469 = vsel %vm1200, %v6468, %v6042
    %v6470 = vsel %vm1196, %v6146, %v6252
    %v6471 = vsel %vm1198, %v6470, %v6359
    %v6472 = vsel %vm1200, %v6471, %v6466
    %v6473 = vld [vmem:[%s21] sm:$0xff]
    %v6474 = vld [vmem:[%s21 + $0x8] sm:$0xff]
    %v6475 = vld [vmem:[%s22] sm:$0x1]
    %v6477 = vlaneseq
    %v6478 = vshrl.u32 %v6477, 7
    %v6479 = vsub.s32 0, %v6478
    %v6480 = vrot.slane %v6475, %v6479
    %6484 = vrot.lane.b32.xlu0 %v6469, 80
    %v6485 = vpop.permute.xlu0 %6484
    %6486 = vrot.lane.b32.xlu0 %v6472, 80
    %v6487 = vpop.permute.xlu0 %6486
    %v6488 = vsel %vm353, %v6485, 0
    %v6490 = vsel %vm353, %v6487, 0
    %6492 = vmatprep.subr.mxu0 0.0
    %6493 = vmatpush1.msra.mxu0 0.0
    %6494 = vmatprep.subr.mxu0 0.0
    %6495 = vmatpush1.msra.mxu0 0.0
    %6496 = vmatprep.subr.mxu0 0.0
    %6497 = vmatpush1.msra.mxu0 0.0
    %6498 = vmatprep.subr.mxu0 0.0
    %6499 = vmatpush1.msra.mxu0 0.0
    %6500 = vmatprep.subr.mxu0 0.0
    %6501 = vmatpush1.msra.mxu0 0.0
    %6502 = vmatprep.subr.mxu0 0.0
    %6503 = vmatpush1.msra.mxu0 0.0
    %6504 = vmatprep.subr.mxu0 0.0
    %6505 = vmatpush1.msra.mxu0 0.0
    %6506 = vmatprep.subr.mxu0 0.0
    %6507 = vmatpush1.msra.mxu0 0.0
    %6508 = vmatprep.subr.mxu0 0.0
    %6509 = vmatpush1.msra.mxu0 0.0
    %6510 = vmatprep.subr.mxu0 0.0
    %6511 = vmatpush1.msra.mxu0 0.0
    %6512 = vmatprep.subr.mxu0 0.0
    %6513 = vmatpush1.msra.mxu0 0.0
    %6514 = vmatprep.subr.mxu0 0.0
    %6515 = vmatpush1.msra.mxu0 0.0
    %6516 = vmatprep.subr.mxu0 0.0
    %6517 = vmatpush1.msra.mxu0 0.0
    %6518 = vmatprep.subr.mxu0 0.0
    %6519 = vmatpush1.msra.mxu0 0.0
    %6520 = vmatprep.subr.mxu0 0.0
    %6521 = vmatpush1.msra.mxu0 %v6474
    %6522 = vmatprep.subr.mxu0 0.0
    %6523 = vmatpush1.msra.mxu0 %v6473
    %6524 = vmatprep.subr.mxu0 0.0
    %6525 = vmatpush2.msra.mxu0 0.0
    %6526 = vmatprep.subr.mxu0 0.0
    %6527 = vmatpush2.msra.mxu0 0.0
    %6528 = vmatprep.subr.mxu0 0.0
    %6529 = vmatpush2.msra.mxu0 0.0
    %6530 = vmatprep.subr.mxu0 0.0
    %6531 = vmatpush2.msra.mxu0 0.0
    %6532 = vmatprep.subr.mxu0 0.0
    %6533 = vmatpush2.msra.mxu0 0.0
    %6534 = vmatprep.subr.mxu0 0.0
    %6535 = vmatpush2.msra.mxu0 0.0
    %6536 = vmatprep.subr.mxu0 0.0
    %6537 = vmatpush2.msra.mxu0 0.0
    %6538 = vmatprep.subr.mxu0 0.0
    %6539 = vmatpush2.msra.mxu0 0.0
    %6540 = vmatprep.subr.mxu0 0.0
    %6541 = vmatpush2.msra.mxu0 0.0
    %6542 = vmatprep.subr.mxu0 0.0
    %6543 = vmatpush2.msra.mxu0 0.0
    %6544 = vmatprep.subr.mxu0 0.0
    %6545 = vmatpush2.msra.mxu0 0.0
    %6546 = vmatprep.subr.mxu0 0.0
    %6547 = vmatpush2.msra.mxu0 0.0
    %6548 = vmatprep.subr.mxu0 0.0
    %6549 = vmatpush2.msra.mxu0 0.0
    %6550 = vmatprep.subr.mxu0 0.0
    %6551 = vmatpush2.msra.mxu0 0.0
    %6552 = vmatprep.subr.mxu0 0.0
    %6553 = vmatpush2.msra.mxu0 0.0
    %6554 = vmatprep.subr.mxu0 0.0
    %6555 = vmatpush2.msra.mxu0 0.0
    %6556 = vmatprep.mubr.f32.mxu0 0.0
    %6557 = vmatmul.mubr.f32.gmra.mxu0 %v6488
    %v6558 = vpop.f32.mrf.mxu0
    %v6559 = vadd.f32 %v6480, %v6558
    %v6560 = vpop.f32.mrf.mxu0
    %6561 = vmatprep.mubr.f32.mxu0 0.0
    %6562 = vmatmul.mubr.f32.gmra.mxu0 %v6490
    %v6563 = vpop.f32.mrf.mxu0
    %v6564 = vadd.f32 %v6480, %v6563
    %v6565 = vpop.f32.mrf.mxu0
    %6566 = vdwg.mxu0
    %6567 = vst.msk [vmem:[%s23] sm:$0xff] %vm269, %v6559
    %6568 = vst.msk [vmem:[%s23 + $0x8] sm:$0xff] %vm269, %v6564
    // Predicated region
    $region154: #{run.1} parent=1 // pred_check
      _
    $region155: #{run.1} parent=1 // pred_check_branch
      %6570 = sbr.rel (0) target = $region157
    $region156: #{run.1} parent=1 // pred_region
      _
    $region157: #{run.1} parent=1 // pred_fallthru
      _
    // Predicated region
    $region158: #{run.1} parent=1 // pred_check
      _
    $region159: #{run.1} parent=1 // pred_check_branch
      %6572 = sbr.rel (0) target = $region161
    $region160: #{run.1} parent=1 // pred_region
      _
    $region161: #{run.1} parent=1 // pred_fallthru
      _
    %6573 = vsyncpa [#allocation3], 1
    %6574 = vsyncpa [#allocation5], 1
    %6575 = vsyncpa [#allocation8], 1
    %6576 = vsyncpa [#allocation11], 1
    %6577 = vsyncpa [#allocation14], 1
    %6578 = vsyncpa [#allocation17], 1
    %6579 = vsyncpa [#allocation20], 1
    %6580 = vsyncpa [#allocation23], 1

</llo_original>
